<compile_context>
chip_gen: v6e
topology: v6e:2x2x1
jax: 0.10.0
libtpu: 0.0.40
codegen_flags: <defaults>
</compile_context>

<pallas_src>
import functools

import jax
import jax.numpy as jnp
import numpy as np
from jax import lax
from jax.experimental import pallas as pl
from jax.experimental.pallas import tpu as pltpu


# ----------------------------- in-kernel helpers -----------------------------

def _store_padded(pad_ref, val, off_h, off_w):
    """Write `val` at (off_h, off_w) into a VMEM scratch and zero the halo border.

    Border is rewritten every grid step (scratch is per-core; no reliance on step 0).
    """
    hp, wp, c = pad_ref.shape
    h, w, _ = val.shape
    zrow = jnp.zeros((1, wp, c), val.dtype)
    zcol = jnp.zeros((hp, 1, c), val.dtype)
    for r in range(off_h):                       # top halo rows
        pad_ref[r:r + 1] = zrow
    for r in range(off_h + h, hp):               # bottom halo rows
        pad_ref[r:r + 1] = zrow
    for q in range(off_w):                       # left halo cols
        pad_ref[:, q:q + 1, :] = zcol
    for q in range(off_w + w, wp):               # right halo cols
        pad_ref[:, q:q + 1, :] = zcol
    pad_ref[off_h:off_h + h, off_w:off_w + w, :] = val


# ------------------------------- fused kernel --------------------------------

def _deconv_block_kernel(x_ref, w2_ref, w1_ref, *rest, meta):
    has_sc = meta["has_shortcut"]
    if has_sc:
        wsc_ref, o_ref, xpad_ref, o2pad_ref = rest
    else:
        o_ref, xpad_ref, o2pad_ref = rest

    h, w = meta["hw"]
    stride = meta["stride"]
    cdt = meta["compute_dtype"]

    # ---- fused relu(x) into zero-halo VMEM scratch (no wrapper-side pad) ----
    xr = jnp.maximum(x_ref[0], 0).astype(cdt)                       # (H, W, Cin)
    _store_padded(xpad_ref, xr, 1, 1)
    xpadv = xpad_ref[...]                                           # (H+2, W+2, Cin)

    # ---- Deconv2: 3x3, s=1, p=1 ; relu ; result stays in VMEM ----
    cin = xpadv.shape[-1]
    cmid = w2_ref.shape[-1]
    # Hoist the sublane-misaligned W shifts: 3 relayouts instead of 9.
    xsh = {dw: xpadv[:, dw:dw + w, :] for dw in range(3)}           # (H+2, W, Cin)
    acc2 = jnp.zeros((h * w, cmid), jnp.float32)
    for dh in range(3):
        for dw in range(3):
            patch = xsh[dw][dh:dh + h].reshape(h * w, cin)          # free slice + reshape
            acc2 = acc2 + jnp.dot(patch, w2_ref[3 * dh + dw],
                                  preferred_element_type=jnp.float32)
    out2 = jnp.maximum(acc2, 0).astype(cdt).reshape(h, w, cmid)

    off = 1 if stride == 1 else 0                                   # s=2 needs bottom/right halo only
    _store_padded(o2pad_ref, out2, off, off)
    o2padv = o2pad_ref[...]

    cout = w1_ref.shape[-1]
    xr_flat = xr.reshape(h * w, cin)

    if stride == 1:
        # ---- Deconv1: 3x3, s=1, p=1 ; + shortcut ----
        osh = {dw: o2padv[:, dw:dw + w, :] for dw in range(3)}
        acc = jnp.zeros((h * w, cout), jnp.float32)
        for dh in range(3):
            for dw in range(3):
                patch = osh[dw][dh:dh + h].reshape(h * w, cmid)
                acc = acc + jnp.dot(patch, w1_ref[3 * dh + dw],
                                    preferred_element_type=jnp.float32)
        if has_sc:
            acc = acc + jnp.dot(xr_flat, wsc_ref[...],
                                preferred_element_type=jnp.float32)
        else:
            acc = acc + xr_flat.astype(jnp.float32)                 # identity shortcut
        o_ref[0] = acc.reshape(h, w, cout).astype(o_ref.dtype)
    else:
        # ---- Deconv1: 3x3, s=2, p=1, op=1 via sub-pixel decomposition ----
        # output pixel (2i+ry, 2j+rx) <- phase p = 2*ry + rx
        osh = {dw: o2padv[:, dw:dw + w, :] for dw in range(2)}
        for p, taps in enumerate(meta["sub_taps"]):
            acc = jnp.zeros((h * w, cout), jnp.float32)
            for (t, dh, dw) in taps:
                patch = osh[dw][dh:dh + h].reshape(h * w, cmid)
                acc = acc + jnp.dot(patch, w1_ref[t],
                                    preferred_element_type=jnp.float32)
            if p == 0:                                              # 1x1 shortcut hits even/even only
                acc = acc + jnp.dot(xr_flat, wsc_ref[...],
                                    preferred_element_type=jnp.float32)
            # store each phase as soon as it is done -> one live f32 accumulator
            o_ref[0, p] = acc.reshape(h, w, cout).astype(o_ref.dtype)


# ------------------------------- block wrapper -------------------------------

def deconv_basic_block(x, w_deconv2, w_deconv1, w_shortcut, stride=1,
                       compute_dtype=jnp.float32):
    """x: (N, Cin, H, W) NCHW; ConvTranspose2d weights in (Cin, Cout, kH, kW) layout.

    Returns (N, Cout, H*stride, W*stride), same dtype as x.
    """
    n, cin, h, w = x.shape
    cmid = w_deconv2.shape[1]
    cout = w_deconv1.shape[1]
    s = stride
    assert s in (1, 2), "Deconv_BasicBlock only uses stride 1 or 2"
    if s != 1:
        assert w_shortcut is not None, "stride>1 requires the 1x1 shortcut deconv"
    if w_shortcut is None:
        assert cin == cout, "identity shortcut needs Cin == Cout"
    out_dtype = x.dtype
    cdt = compute_dtype

    # NCHW -> NHWC (channels on the 128-lane axis); bf16 cast here halves activation DMA.
    x_nhwc = jnp.transpose(x, (0, 2, 3, 1)).astype(cdt)

    # transposed conv == stride-1 conv with spatially flipped weights, (kh, kw, Ci, Co)
    w2f = jnp.transpose(w_deconv2, (2, 3, 0, 1))[::-1, ::-1].astype(cdt)
    w1f = jnp.transpose(w_deconv1, (2, 3, 0, 1))[::-1, ::-1].astype(cdt)
    w2_taps = w2f.reshape(9, cin, cmid)
    wsc = None
    if w_shortcut is not None:
        wsc = w_shortcut[:, :, 0, 0].astype(cdt)                    # (Cin, Cout)

    if s == 1:
        w1_taps = w1f.reshape(9, cmid, cout)
        sub_taps = None
        o2p_shape = (h + 2, w + 2, cmid)
        out_shape = jax.ShapeDtypeStruct((n, h, w, cout), out_dtype)
        out_spec = pl.BlockSpec((1, h, w, cout), lambda b: (b, 0, 0, 0))
    else:
        # weight index order for the 9 sub-pixel taps
        sub_kk = ((1, 1), (1, 0), (1, 2), (0, 1), (2, 1),
                  (0, 0), (0, 2), (2, 0), (2, 2))
        w1_taps = jnp.stack([w1f[kh, kw] for kh, kw in sub_kk], axis=0)   # (9, Cmid, Cout)
        sub_taps = (((0, 0, 0),),                                    # phase 0: (ry,rx)=(0,0)
                    ((1, 0, 0), (2, 0, 1)),                          # phase 1: (0,1)
                    ((3, 0, 0), (4, 1, 0)),                          # phase 2: (1,0)
                    ((5, 0, 0), (6, 0, 1), (7, 1, 0), (8, 1, 1)))    # phase 3: (1,1)
        o2p_shape = (h + 1, w + 1, cmid)
        out_shape = jax.ShapeDtypeStruct((n, 4, h, w, cout), out_dtype)
        out_spec = pl.BlockSpec((1, 4, h, w, cout), lambda b: (b, 0, 0, 0, 0))

    meta = dict(hw=(h, w), stride=s, compute_dtype=cdt,
                has_shortcut=wsc is not None, sub_taps=sub_taps)

    args = [x_nhwc, w2_taps, w1_taps]
    in_specs = [
        pl.BlockSpec((1, h, w, cin), lambda b: (b, 0, 0, 0)),
        pl.BlockSpec((9, cin, cmid), lambda b: (0, 0, 0)),
        pl.BlockSpec((9, cmid, cout), lambda b: (0, 0, 0)),
    ]
    if wsc is not None:
        args.append(wsc)
        in_specs.append(pl.BlockSpec((cin, cout), lambda b: (0, 0)))

    scratch_shapes = [
        pltpu.VMEM((h + 2, w + 2, cin), cdt),        # zero-halo relu(x)
        pltpu.VMEM(o2p_shape, cdt),                  # zero-halo relu(Deconv2(x))
    ]

    # ---- scoped-VMEM budget: double-buffered blocks + scratch + live temporaries ----
    def nbytes(shape, dt):
        return int(np.prod(shape)) * np.dtype(dt).itemsize

    blk = (nbytes((1, h, w, cin), cdt) + nbytes((9, cin, cmid), cdt)
           + nbytes((9, cmid, cout), cdt)
           + (nbytes((cin, cout), cdt) if wsc is not None else 0)
           + nbytes(out_shape.shape[1:], out_dtype))
    scr = nbytes((h + 2, w + 2, cin), cdt) + nbytes(o2p_shape, cdt)
    temps = (4 * nbytes((h + 2, w + 2, cin), cdt) + 5 * nbytes(o2p_shape, cdt)
             + nbytes((h * w, cmid), jnp.float32) + 2 * nbytes((h * w, cout), jnp.float32))
    est = 2 * blk + scr + temps
    vmem_limit = None
    if est > 16 * 2 ** 20:
        # 48 MiB cap keeps headroom on v7x (64 MiB physical); v5e/v6e (128 MiB) could go
        # higher, and larger images should get an H-tile grid axis instead (see TODOs).
        vmem_limit = min(int(1.25 * est), 48 * 2 ** 20)

    kern = functools.partial(_deconv_block_kernel, meta=meta)
    out = pl.pallas_call(
        kern,
        out_shape=out_shape,
        grid=(n,),
        in_specs=in_specs,
        out_specs=out_spec,
        scratch_shapes=scratch_shapes,
        compiler_params=pltpu.CompilerParams(
            dimension_semantics=("parallel",),       # batch images -> both TCs (megacore/v7x)
            vmem_limit_bytes=vmem_limit),
    )(*args)

    if s == 1:
        return jnp.transpose(out, (0, 3, 1, 2)).astype(out_dtype)
    # pixel shuffle + NHWC->NCHW folded into a single XLA transpose pass
    out = out.reshape(n, 2, 2, h, w, cout)
    out = jnp.transpose(out, (0, 5, 3, 1, 4, 2)).reshape(n, cout, 2 * h, 2 * w)
    return out.astype(out_dtype)


# ----------------------------- pure-JAX reference -----------------------------

def _convtranspose2d_ref(x, w_t, stride, padding, output_padding):
    k = w_t.shape[2]
    w_conv = jnp.transpose(w_t, (1, 0, 2, 3))[:, :, ::-1, ::-1]     # OIHW, flipped
    lo = k - 1 - padding
    hi = k - 1 - padding + output_padding
    return lax.conv_general_dilated(
        x, w_conv, window_strides=(1, 1),
        padding=[(lo, hi), (lo, hi)],
        lhs_dilation=(stride, stride),
        dimension_numbers=("NCHW", "OIHW", "NCHW"))


def _block_ref(x, w2, w1, wsc, stride):
    xr = jnp.maximum(x, 0.0)
    out = jnp.maximum(_convtranspose2d_ref(xr, w2, 1, 1, 0), 0.0)
    out = _convtranspose2d_ref(out, w1, stride, 1, stride - 1)
    sc = _convtranspose2d_ref(xr, wsc, stride, 0, stride - 1) if wsc is not None else xr
    return out + sc


# ----------------------------------- main -------------------------------------

if __name__ == "__main__":
    key = jax.random.PRNGKey(0)
    k1, k2, k3, k4, k5, k6, k7 = jax.random.split(key, 7)

    n, c, h, w = 2, 4, 16, 16
    x = jax.random.normal(k1, (n, c, h, w), dtype=jnp.float32)
    # ConvTranspose2d weight layout: (in_channel, out_channel, kH, kW)
    w_d2 = 0.2 * jax.random.normal(k2, (c, c, 3, 3), dtype=jnp.float32)
    w_d1 = 0.2 * jax.random.normal(k3, (c, c, 3, 3), dtype=jnp.float32)
    w_sc = 0.2 * jax.random.normal(k4, (c, c, 1, 1), dtype=jnp.float32)

    # --- stride=2 (1x1 deconv shortcut), f32 ---
    fwd_s2 = jax.jit(functools.partial(deconv_basic_block, stride=2))
    out = jax.block_until_ready(fwd_s2(x, w_d2, w_d1, w_sc))
    ref = _block_ref(x, w_d2, w_d1, w_sc, 2)
    assert out.shape == (n, c, 2 * h, 2 * w), out.shape
    np.testing.assert_allclose(np.asarray(out), np.asarray(ref), rtol=1e-4, atol=1e-4)

    # --- stride=1 (identity shortcut), f32 ---
    fwd_s1 = jax.jit(functools.partial(deconv_basic_block, stride=1))
    out1 = jax.block_until_ready(fwd_s1(x, w_d2, w_d1, None))
    ref1 = _block_ref(x, w_d2, w_d1, None, 1)
    assert out1.shape == (n, c, h, w), out1.shape
    np.testing.assert_allclose(np.asarray(out1), np.asarray(ref1), rtol=1e-4, atol=1e-4)

    # --- stride=1, channel-changing (1x1 deconv shortcut), f32 ---
    c2 = 8
    w_d2b = 0.2 * jax.random.normal(k5, (c, c2, 3, 3), dtype=jnp.float32)
    w_d1b = 0.2 * jax.random.normal(k6, (c2, c2, 3, 3), dtype=jnp.float32)
    w_scb = 0.2 * jax.random.normal(k7, (c, c2, 1, 1), dtype=jnp.float32)
    out2 = jax.block_until_ready(fwd_s1(x, w_d2b, w_d1b, w_scb))
    ref2 = _block_ref(x, w_d2b, w_d1b, w_scb, 1)
    assert out2.shape == (n, c2, h, w), out2.shape
    np.testing.assert_allclose(np.asarray(out2), np.asarray(ref2), rtol=1e-4, atol=1e-4)

    # --- stride=2, bf16 MXU operands + f32 accumulation (looser tolerance) ---
    fwd_bf16 = jax.jit(functools.partial(deconv_basic_block, stride=2,
                                         compute_dtype=jnp.bfloat16))
    out_bf = jax.block_until_ready(fwd_bf16(x, w_d2, w_d1, w_sc))
    np.testing.assert_allclose(np.asarray(out_bf), np.asarray(ref), rtol=1e-1, atol=1e-1)

    print("KERNEL_OK")
</pallas_src>

<mosaic_0001>
module attributes {stable_mosaic.version = 11 : i64} {
  func.func @_deconv_block_kernel(%arg0: i32, %arg1: memref<1x16x16x4xf32, #tpu.memory_space<vmem>>, %arg2: memref<9x4x4xf32, #tpu.memory_space<vmem>>, %arg3: memref<9x4x4xf32, #tpu.memory_space<vmem>>, %arg4: memref<4x4xf32, #tpu.memory_space<vmem>>, %arg5: memref<1x4x16x16x4xf32, #tpu.memory_space<vmem>>, %arg6: memref<18x18x4xf32, #tpu.memory_space<vmem>>, %arg7: memref<17x17x4xf32, #tpu.memory_space<vmem>>) attributes {dimension_semantics = [#tpu.dimension_semantics<parallel>], iteration_bounds = array<i64: 2>, scalar_prefetch = 0 : i64, scratch_operands = 2 : i64, tpu.core_type = #tpu.core_type<tc>, window_params = [{transform_indices = @transform_0, window_bounds = array<i64: 1, 16, 16, 4>}, {pipeline_mode = #tpu.pipeline_mode<synchronous>, transform_indices = @transform_1, window_bounds = array<i64: 9, 4, 4>}, {pipeline_mode = #tpu.pipeline_mode<synchronous>, transform_indices = @transform_2, window_bounds = array<i64: 9, 4, 4>}, {pipeline_mode = #tpu.pipeline_mode<synchronous>, transform_indices = @transform_3, window_bounds = array<i64: 4, 4>}, {transform_indices = @transform_4, window_bounds = array<i64: 1, 4, 16, 16, 4>}]} {
    %c0 = arith.constant 0 : index
    %c0_0 = arith.constant 0 : index
    %c0_1 = arith.constant 0 : index
    %c0_2 = arith.constant 0 : index
    %0 = vector.load %arg1[%c0, %c0_0, %c0_1, %c0_2] : memref<1x16x16x4xf32, #tpu.memory_space<vmem>>, vector<1x16x16x4xf32>
    %1 = vector.shape_cast %0 : vector<1x16x16x4xf32> to vector<16x16x4xf32>
    %cst = arith.constant 0.000000e+00 : f32
    %2 = vector.broadcast %cst : f32 to vector<16x16x4xf32>
    %3 = arith.maximumf %1, %2 : vector<16x16x4xf32>
    %cst_3 = arith.constant 0.000000e+00 : f32
    %4 = vector.broadcast %cst_3 : f32 to vector<1x18x4xf32>
    %cst_4 = arith.constant 0.000000e+00 : f32
    %5 = vector.broadcast %cst_4 : f32 to vector<18x1x4xf32>
    %c0_5 = arith.constant 0 : index
    %c0_6 = arith.constant 0 : index
    %c0_7 = arith.constant 0 : index
    %6 = vector.load %arg6[%c0_5, %c0_6, %c0_7] : memref<18x18x4xf32, #tpu.memory_space<vmem>>, vector<1x18x4xf32>
    tpu.vector_store %arg6[%c0_5, %c0_6, %c0_7], %4 {strides = array<i32>} : memref<18x18x4xf32, #tpu.memory_space<vmem>>, vector<1x18x4xf32>,
    %c17 = arith.constant 17 : index
    %c0_8 = arith.constant 0 : index
    %c0_9 = arith.constant 0 : index
    %7 = vector.load %arg6[%c17, %c0_8, %c0_9] : memref<18x18x4xf32, #tpu.memory_space<vmem>>, vector<1x18x4xf32>
    tpu.vector_store %arg6[%c17, %c0_8, %c0_9], %4 {strides = array<i32>} : memref<18x18x4xf32, #tpu.memory_space<vmem>>, vector<1x18x4xf32>,
    %c0_10 = arith.constant 0 : index
    %c0_11 = arith.constant 0 : index
    %c0_12 = arith.constant 0 : index
    %8 = vector.load %arg6[%c0_10, %c0_11, %c0_12] : memref<18x18x4xf32, #tpu.memory_space<vmem>>, vector<18x1x4xf32>
    tpu.vector_store %arg6[%c0_10, %c0_11, %c0_12], %5 {strides = array<i32>} : memref<18x18x4xf32, #tpu.memory_space<vmem>>, vector<18x1x4xf32>,
    %c0_13 = arith.constant 0 : index
    %c17_14 = arith.constant 17 : index
    %c0_15 = arith.constant 0 : index
    %9 = vector.load %arg6[%c0_13, %c17_14, %c0_15] : memref<18x18x4xf32, #tpu.memory_space<vmem>>, vector<18x1x4xf32>
    tpu.vector_store %arg6[%c0_13, %c17_14, %c0_15], %5 {strides = array<i32>} : memref<18x18x4xf32, #tpu.memory_space<vmem>>, vector<18x1x4xf32>,
    %c1 = arith.constant 1 : index
    %c1_16 = arith.constant 1 : index
    %c0_17 = arith.constant 0 : index
    %10 = vector.load %arg6[%c1, %c1_16, %c0_17] : memref<18x18x4xf32, #tpu.memory_space<vmem>>, vector<16x16x4xf32>
    tpu.vector_store %arg6[%c1, %c1_16, %c0_17], %3 {strides = array<i32>} : memref<18x18x4xf32, #tpu.memory_space<vmem>>, vector<16x16x4xf32>,
    %c0_18 = arith.constant 0 : index
    %c0_19 = arith.constant 0 : index
    %c0_20 = arith.constant 0 : index
    %11 = vector.load %arg6[%c0_18, %c0_19, %c0_20] : memref<18x18x4xf32, #tpu.memory_space<vmem>>, vector<18x18x4xf32>
    %12 = vector.extract_strided_slice %11 {offsets = [0, 0, 0], sizes = [18, 16, 4], strides = [1, 1, 1]} : vector<18x18x4xf32> to vector<18x16x4xf32>
    %13 = vector.extract_strided_slice %11 {offsets = [0, 1, 0], sizes = [18, 16, 4], strides = [1, 1, 1]} : vector<18x18x4xf32> to vector<18x16x4xf32>
    %14 = vector.extract_strided_slice %11 {offsets = [0, 2, 0], sizes = [18, 16, 4], strides = [1, 1, 1]} : vector<18x18x4xf32> to vector<18x16x4xf32>
    %cst_21 = arith.constant 0.000000e+00 : f32
    %15 = vector.broadcast %cst_21 : f32 to vector<256x4xf32>
    %16 = vector.extract_strided_slice %12 {offsets = [0, 0, 0], sizes = [16, 16, 4], strides = [1, 1, 1]} : vector<18x16x4xf32> to vector<16x16x4xf32>
    %17 = vector.shape_cast %16 : vector<16x16x4xf32> to vector<256x4xf32>
    %c0_22 = arith.constant 0 : index
    %c0_23 = arith.constant 0 : index
    %c0_24 = arith.constant 0 : index
    %18 = vector.load %arg2[%c0_22, %c0_23, %c0_24] : memref<9x4x4xf32, #tpu.memory_space<vmem>>, vector<1x4x4xf32>
    %19 = vector.shape_cast %18 : vector<1x4x4xf32> to vector<4x4xf32>
    %cst_25 = arith.constant dense<0.000000e+00> : vector<256x4xf32>
    %20 = tpu.matmul %17, %19, %cst_25 {dimension_numbers = #tpu.dot_dimension_numbers<[1], [0], [0], [1], [0, 0, 1, 1], [], []>} : vector<256x4xf32>, vector<4x4xf32>, vector<256x4xf32> -> vector<256x4xf32>
    %21 = arith.addf %15, %20 : vector<256x4xf32>
    %22 = vector.extract_strided_slice %13 {offsets = [0, 0, 0], sizes = [16, 16, 4], strides = [1, 1, 1]} : vector<18x16x4xf32> to vector<16x16x4xf32>
    %23 = vector.shape_cast %22 : vector<16x16x4xf32> to vector<256x4xf32>
    %c1_26 = arith.constant 1 : index
    %c0_27 = arith.constant 0 : index
    %c0_28 = arith.constant 0 : index
    %24 = vector.load %arg2[%c1_26, %c0_27, %c0_28] : memref<9x4x4xf32, #tpu.memory_space<vmem>>, vector<1x4x4xf32>
    %25 = vector.shape_cast %24 : vector<1x4x4xf32> to vector<4x4xf32>
    %cst_29 = arith.constant dense<0.000000e+00> : vector<256x4xf32>
    %26 = tpu.matmul %23, %25, %cst_29 {dimension_numbers = #tpu.dot_dimension_numbers<[1], [0], [0], [1], [0, 0, 1, 1], [], []>} : vector<256x4xf32>, vector<4x4xf32>, vector<256x4xf32> -> vector<256x4xf32>
    %27 = arith.addf %21, %26 : vector<256x4xf32>
    %28 = vector.extract_strided_slice %14 {offsets = [0, 0, 0], sizes = [16, 16, 4], strides = [1, 1, 1]} : vector<18x16x4xf32> to vector<16x16x4xf32>
    %29 = vector.shape_cast %28 : vector<16x16x4xf32> to vector<256x4xf32>
    %c2 = arith.constant 2 : index
    %c0_30 = arith.constant 0 : index
    %c0_31 = arith.constant 0 : index
    %30 = vector.load %arg2[%c2, %c0_30, %c0_31] : memref<9x4x4xf32, #tpu.memory_space<vmem>>, vector<1x4x4xf32>
    %31 = vector.shape_cast %30 : vector<1x4x4xf32> to vector<4x4xf32>
    %cst_32 = arith.constant dense<0.000000e+00> : vector<256x4xf32>
    %32 = tpu.matmul %29, %31, %cst_32 {dimension_numbers = #tpu.dot_dimension_numbers<[1], [0], [0], [1], [0, 0, 1, 1], [], []>} : vector<256x4xf32>, vector<4x4xf32>, vector<256x4xf32> -> vector<256x4xf32>
    %33 = arith.addf %27, %32 : vector<256x4xf32>
    %34 = vector.extract_strided_slice %12 {offsets = [1, 0, 0], sizes = [16, 16, 4], strides = [1, 1, 1]} : vector<18x16x4xf32> to vector<16x16x4xf32>
    %35 = vector.shape_cast %34 : vector<16x16x4xf32> to vector<256x4xf32>
    %c3 = arith.constant 3 : index
    %c0_33 = arith.constant 0 : index
    %c0_34 = arith.constant 0 : index
    %36 = vector.load %arg2[%c3, %c0_33, %c0_34] : memref<9x4x4xf32, #tpu.memory_space<vmem>>, vector<1x4x4xf32>
    %37 = vector.shape_cast %36 : vector<1x4x4xf32> to vector<4x4xf32>
    %cst_35 = arith.constant dense<0.000000e+00> : vector<256x4xf32>
    %38 = tpu.matmul %35, %37, %cst_35 {dimension_numbers = #tpu.dot_dimension_numbers<[1], [0], [0], [1], [0, 0, 1, 1], [], []>} : vector<256x4xf32>, vector<4x4xf32>, vector<256x4xf32> -> vector<256x4xf32>
    %39 = arith.addf %33, %38 : vector<256x4xf32>
    %40 = vector.extract_strided_slice %13 {offsets = [1, 0, 0], sizes = [16, 16, 4], strides = [1, 1, 1]} : vector<18x16x4xf32> to vector<16x16x4xf32>
    %41 = vector.shape_cast %40 : vector<16x16x4xf32> to vector<256x4xf32>
    %c4 = arith.constant 4 : index
    %c0_36 = arith.constant 0 : index
    %c0_37 = arith.constant 0 : index
    %42 = vector.load %arg2[%c4, %c0_36, %c0_37] : memref<9x4x4xf32, #tpu.memory_space<vmem>>, vector<1x4x4xf32>
    %43 = vector.shape_cast %42 : vector<1x4x4xf32> to vector<4x4xf32>
    %cst_38 = arith.constant dense<0.000000e+00> : vector<256x4xf32>
    %44 = tpu.matmul %41, %43, %cst_38 {dimension_numbers = #tpu.dot_dimension_numbers<[1], [0], [0], [1], [0, 0, 1, 1], [], []>} : vector<256x4xf32>, vector<4x4xf32>, vector<256x4xf32> -> vector<256x4xf32>
    %45 = arith.addf %39, %44 : vector<256x4xf32>
    %46 = vector.extract_strided_slice %14 {offsets = [1, 0, 0], sizes = [16, 16, 4], strides = [1, 1, 1]} : vector<18x16x4xf32> to vector<16x16x4xf32>
    %47 = vector.shape_cast %46 : vector<16x16x4xf32> to vector<256x4xf32>
    %c5 = arith.constant 5 : index
    %c0_39 = arith.constant 0 : index
    %c0_40 = arith.constant 0 : index
    %48 = vector.load %arg2[%c5, %c0_39, %c0_40] : memref<9x4x4xf32, #tpu.memory_space<vmem>>, vector<1x4x4xf32>
    %49 = vector.shape_cast %48 : vector<1x4x4xf32> to vector<4x4xf32>
    %cst_41 = arith.constant dense<0.000000e+00> : vector<256x4xf32>
    %50 = tpu.matmul %47, %49, %cst_41 {dimension_numbers = #tpu.dot_dimension_numbers<[1], [0], [0], [1], [0, 0, 1, 1], [], []>} : vector<256x4xf32>, vector<4x4xf32>, vector<256x4xf32> -> vector<256x4xf32>
    %51 = arith.addf %45, %50 : vector<256x4xf32>
    %52 = vector.extract_strided_slice %12 {offsets = [2, 0, 0], sizes = [16, 16, 4], strides = [1, 1, 1]} : vector<18x16x4xf32> to vector<16x16x4xf32>
    %53 = vector.shape_cast %52 : vector<16x16x4xf32> to vector<256x4xf32>
    %c6 = arith.constant 6 : index
    %c0_42 = arith.constant 0 : index
    %c0_43 = arith.constant 0 : index
    %54 = vector.load %arg2[%c6, %c0_42, %c0_43] : memref<9x4x4xf32, #tpu.memory_space<vmem>>, vector<1x4x4xf32>
    %55 = vector.shape_cast %54 : vector<1x4x4xf32> to vector<4x4xf32>
    %cst_44 = arith.constant dense<0.000000e+00> : vector<256x4xf32>
    %56 = tpu.matmul %53, %55, %cst_44 {dimension_numbers = #tpu.dot_dimension_numbers<[1], [0], [0], [1], [0, 0, 1, 1], [], []>} : vector<256x4xf32>, vector<4x4xf32>, vector<256x4xf32> -> vector<256x4xf32>
    %57 = arith.addf %51, %56 : vector<256x4xf32>
    %58 = vector.extract_strided_slice %13 {offsets = [2, 0, 0], sizes = [16, 16, 4], strides = [1, 1, 1]} : vector<18x16x4xf32> to vector<16x16x4xf32>
    %59 = vector.shape_cast %58 : vector<16x16x4xf32> to vector<256x4xf32>
    %c7 = arith.constant 7 : index
    %c0_45 = arith.constant 0 : index
    %c0_46 = arith.constant 0 : index
    %60 = vector.load %arg2[%c7, %c0_45, %c0_46] : memref<9x4x4xf32, #tpu.memory_space<vmem>>, vector<1x4x4xf32>
    %61 = vector.shape_cast %60 : vector<1x4x4xf32> to vector<4x4xf32>
    %cst_47 = arith.constant dense<0.000000e+00> : vector<256x4xf32>
    %62 = tpu.matmul %59, %61, %cst_47 {dimension_numbers = #tpu.dot_dimension_numbers<[1], [0], [0], [1], [0, 0, 1, 1], [], []>} : vector<256x4xf32>, vector<4x4xf32>, vector<256x4xf32> -> vector<256x4xf32>
    %63 = arith.addf %57, %62 : vector<256x4xf32>
    %64 = vector.extract_strided_slice %14 {offsets = [2, 0, 0], sizes = [16, 16, 4], strides = [1, 1, 1]} : vector<18x16x4xf32> to vector<16x16x4xf32>
    %65 = vector.shape_cast %64 : vector<16x16x4xf32> to vector<256x4xf32>
    %c8 = arith.constant 8 : index
    %c0_48 = arith.constant 0 : index
    %c0_49 = arith.constant 0 : index
    %66 = vector.load %arg2[%c8, %c0_48, %c0_49] : memref<9x4x4xf32, #tpu.memory_space<vmem>>, vector<1x4x4xf32>
    %67 = vector.shape_cast %66 : vector<1x4x4xf32> to vector<4x4xf32>
    %cst_50 = arith.constant dense<0.000000e+00> : vector<256x4xf32>
    %68 = tpu.matmul %65, %67, %cst_50 {dimension_numbers = #tpu.dot_dimension_numbers<[1], [0], [0], [1], [0, 0, 1, 1], [], []>} : vector<256x4xf32>, vector<4x4xf32>, vector<256x4xf32> -> vector<256x4xf32>
    %69 = arith.addf %63, %68 : vector<256x4xf32>
    %cst_51 = arith.constant 0.000000e+00 : f32
    %70 = vector.broadcast %cst_51 : f32 to vector<256x4xf32>
    %71 = arith.maximumf %69, %70 : vector<256x4xf32>
    %72 = vector.shape_cast %71 : vector<256x4xf32> to vector<16x16x4xf32>
    %cst_52 = arith.constant 0.000000e+00 : f32
    %73 = vector.broadcast %cst_52 : f32 to vector<1x17x4xf32>
    %cst_53 = arith.constant 0.000000e+00 : f32
    %74 = vector.broadcast %cst_53 : f32 to vector<17x1x4xf32>
    %c16 = arith.constant 16 : index
    %c0_54 = arith.constant 0 : index
    %c0_55 = arith.constant 0 : index
    %75 = vector.load %arg7[%c16, %c0_54, %c0_55] : memref<17x17x4xf32, #tpu.memory_space<vmem>>, vector<1x17x4xf32>
    tpu.vector_store %arg7[%c16, %c0_54, %c0_55], %73 {strides = array<i32>} : memref<17x17x4xf32, #tpu.memory_space<vmem>>, vector<1x17x4xf32>,
    %c0_56 = arith.constant 0 : index
    %c16_57 = arith.constant 16 : index
    %c0_58 = arith.constant 0 : index
    %76 = vector.load %arg7[%c0_56, %c16_57, %c0_58] : memref<17x17x4xf32, #tpu.memory_space<vmem>>, vector<17x1x4xf32>
    tpu.vector_store %arg7[%c0_56, %c16_57, %c0_58], %74 {strides = array<i32>} : memref<17x17x4xf32, #tpu.memory_space<vmem>>, vector<17x1x4xf32>,
    %c0_59 = arith.constant 0 : index
    %c0_60 = arith.constant 0 : index
    %c0_61 = arith.constant 0 : index
    %77 = vector.load %arg7[%c0_59, %c0_60, %c0_61] : memref<17x17x4xf32, #tpu.memory_space<vmem>>, vector<16x16x4xf32>
    tpu.vector_store %arg7[%c0_59, %c0_60, %c0_61], %72 {strides = array<i32>} : memref<17x17x4xf32, #tpu.memory_space<vmem>>, vector<16x16x4xf32>,
    %c0_62 = arith.constant 0 : index
    %c0_63 = arith.constant 0 : index
    %c0_64 = arith.constant 0 : index
    %78 = vector.load %arg7[%c0_62, %c0_63, %c0_64] : memref<17x17x4xf32, #tpu.memory_space<vmem>>, vector<17x17x4xf32>
    %79 = vector.shape_cast %3 : vector<16x16x4xf32> to vector<256x4xf32>
    %80 = vector.extract_strided_slice %78 {offsets = [0, 0, 0], sizes = [17, 16, 4], strides = [1, 1, 1]} : vector<17x17x4xf32> to vector<17x16x4xf32>
    %81 = vector.extract_strided_slice %78 {offsets = [0, 1, 0], sizes = [17, 16, 4], strides = [1, 1, 1]} : vector<17x17x4xf32> to vector<17x16x4xf32>
    %cst_65 = arith.constant 0.000000e+00 : f32
    %82 = vector.broadcast %cst_65 : f32 to vector<256x4xf32>
    %83 = vector.extract_strided_slice %80 {offsets = [0, 0, 0], sizes = [16, 16, 4], strides = [1, 1, 1]} : vector<17x16x4xf32> to vector<16x16x4xf32>
    %84 = vector.shape_cast %83 : vector<16x16x4xf32> to vector<256x4xf32>
    %c0_66 = arith.constant 0 : index
    %c0_67 = arith.constant 0 : index
    %c0_68 = arith.constant 0 : index
    %85 = vector.load %arg3[%c0_66, %c0_67, %c0_68] : memref<9x4x4xf32, #tpu.memory_space<vmem>>, vector<1x4x4xf32>
    %86 = vector.shape_cast %85 : vector<1x4x4xf32> to vector<4x4xf32>
    %cst_69 = arith.constant dense<0.000000e+00> : vector<256x4xf32>
    %87 = tpu.matmul %84, %86, %cst_69 {dimension_numbers = #tpu.dot_dimension_numbers<[1], [0], [0], [1], [0, 0, 1, 1], [], []>} : vector<256x4xf32>, vector<4x4xf32>, vector<256x4xf32> -> vector<256x4xf32>
    %88 = arith.addf %82, %87 : vector<256x4xf32>
    %c0_70 = arith.constant 0 : index
    %c0_71 = arith.constant 0 : index
    %89 = vector.load %arg4[%c0_70, %c0_71] : memref<4x4xf32, #tpu.memory_space<vmem>>, vector<4x4xf32>
    %cst_72 = arith.constant dense<0.000000e+00> : vector<256x4xf32>
    %90 = tpu.matmul %79, %89, %cst_72 {dimension_numbers = #tpu.dot_dimension_numbers<[1], [0], [0], [1], [0, 0, 1, 1], [], []>} : vector<256x4xf32>, vector<4x4xf32>, vector<256x4xf32> -> vector<256x4xf32>
    %91 = arith.addf %88, %90 : vector<256x4xf32>
    %92 = vector.shape_cast %91 : vector<256x4xf32> to vector<16x16x4xf32>
    %c0_73 = arith.constant 0 : index
    %c0_74 = arith.constant 0 : index
    %c0_75 = arith.constant 0 : index
    %c0_76 = arith.constant 0 : index
    %c0_77 = arith.constant 0 : index
    %93 = vector.load %arg5[%c0_73, %c0_74, %c0_75, %c0_76, %c0_77] : memref<1x4x16x16x4xf32, #tpu.memory_space<vmem>>, vector<1x1x16x16x4xf32>
    %94 = vector.shape_cast %93 : vector<1x1x16x16x4xf32> to vector<16x16x4xf32>
    %95 = vector.shape_cast %92 : vector<16x16x4xf32> to vector<1x1x16x16x4xf32>
    tpu.vector_store %arg5[%c0_73, %c0_74, %c0_75, %c0_76, %c0_77], %95 {strides = array<i32>} : memref<1x4x16x16x4xf32, #tpu.memory_space<vmem>>, vector<1x1x16x16x4xf32>,
    %cst_78 = arith.constant 0.000000e+00 : f32
    %96 = vector.broadcast %cst_78 : f32 to vector<256x4xf32>
    %97 = vector.extract_strided_slice %80 {offsets = [0, 0, 0], sizes = [16, 16, 4], strides = [1, 1, 1]} : vector<17x16x4xf32> to vector<16x16x4xf32>
    %98 = vector.shape_cast %97 : vector<16x16x4xf32> to vector<256x4xf32>
    %c1_79 = arith.constant 1 : index
    %c0_80 = arith.constant 0 : index
    %c0_81 = arith.constant 0 : index
    %99 = vector.load %arg3[%c1_79, %c0_80, %c0_81] : memref<9x4x4xf32, #tpu.memory_space<vmem>>, vector<1x4x4xf32>
    %100 = vector.shape_cast %99 : vector<1x4x4xf32> to vector<4x4xf32>
    %cst_82 = arith.constant dense<0.000000e+00> : vector<256x4xf32>
    %101 = tpu.matmul %98, %100, %cst_82 {dimension_numbers = #tpu.dot_dimension_numbers<[1], [0], [0], [1], [0, 0, 1, 1], [], []>} : vector<256x4xf32>, vector<4x4xf32>, vector<256x4xf32> -> vector<256x4xf32>
    %102 = arith.addf %96, %101 : vector<256x4xf32>
    %103 = vector.extract_strided_slice %81 {offsets = [0, 0, 0], sizes = [16, 16, 4], strides = [1, 1, 1]} : vector<17x16x4xf32> to vector<16x16x4xf32>
    %104 = vector.shape_cast %103 : vector<16x16x4xf32> to vector<256x4xf32>
    %c2_83 = arith.constant 2 : index
    %c0_84 = arith.constant 0 : index
    %c0_85 = arith.constant 0 : index
    %105 = vector.load %arg3[%c2_83, %c0_84, %c0_85] : memref<9x4x4xf32, #tpu.memory_space<vmem>>, vector<1x4x4xf32>
    %106 = vector.shape_cast %105 : vector<1x4x4xf32> to vector<4x4xf32>
    %cst_86 = arith.constant dense<0.000000e+00> : vector<256x4xf32>
    %107 = tpu.matmul %104, %106, %cst_86 {dimension_numbers = #tpu.dot_dimension_numbers<[1], [0], [0], [1], [0, 0, 1, 1], [], []>} : vector<256x4xf32>, vector<4x4xf32>, vector<256x4xf32> -> vector<256x4xf32>
    %108 = arith.addf %102, %107 : vector<256x4xf32>
    %109 = vector.shape_cast %108 : vector<256x4xf32> to vector<16x16x4xf32>
    %c0_87 = arith.constant 0 : index
    %c1_88 = arith.constant 1 : index
    %c0_89 = arith.constant 0 : index
    %c0_90 = arith.constant 0 : index
    %c0_91 = arith.constant 0 : index
    %110 = vector.load %arg5[%c0_87, %c1_88, %c0_89, %c0_90, %c0_91] : memref<1x4x16x16x4xf32, #tpu.memory_space<vmem>>, vector<1x1x16x16x4xf32>
    %111 = vector.shape_cast %110 : vector<1x1x16x16x4xf32> to vector<16x16x4xf32>
    %112 = vector.shape_cast %109 : vector<16x16x4xf32> to vector<1x1x16x16x4xf32>
    tpu.vector_store %arg5[%c0_87, %c1_88, %c0_89, %c0_90, %c0_91], %112 {strides = array<i32>} : memref<1x4x16x16x4xf32, #tpu.memory_space<vmem>>, vector<1x1x16x16x4xf32>,
    %cst_92 = arith.constant 0.000000e+00 : f32
    %113 = vector.broadcast %cst_92 : f32 to vector<256x4xf32>
    %114 = vector.extract_strided_slice %80 {offsets = [0, 0, 0], sizes = [16, 16, 4], strides = [1, 1, 1]} : vector<17x16x4xf32> to vector<16x16x4xf32>
    %115 = vector.shape_cast %114 : vector<16x16x4xf32> to vector<256x4xf32>
    %c3_93 = arith.constant 3 : index
    %c0_94 = arith.constant 0 : index
    %c0_95 = arith.constant 0 : index
    %116 = vector.load %arg3[%c3_93, %c0_94, %c0_95] : memref<9x4x4xf32, #tpu.memory_space<vmem>>, vector<1x4x4xf32>
    %117 = vector.shape_cast %116 : vector<1x4x4xf32> to vector<4x4xf32>
    %cst_96 = arith.constant dense<0.000000e+00> : vector<256x4xf32>
    %118 = tpu.matmul %115, %117, %cst_96 {dimension_numbers = #tpu.dot_dimension_numbers<[1], [0], [0], [1], [0, 0, 1, 1], [], []>} : vector<256x4xf32>, vector<4x4xf32>, vector<256x4xf32> -> vector<256x4xf32>
    %119 = arith.addf %113, %118 : vector<256x4xf32>
    %120 = vector.extract_strided_slice %80 {offsets = [1, 0, 0], sizes = [16, 16, 4], strides = [1, 1, 1]} : vector<17x16x4xf32> to vector<16x16x4xf32>
    %121 = vector.shape_cast %120 : vector<16x16x4xf32> to vector<256x4xf32>
    %c4_97 = arith.constant 4 : index
    %c0_98 = arith.constant 0 : index
    %c0_99 = arith.constant 0 : index
    %122 = vector.load %arg3[%c4_97, %c0_98, %c0_99] : memref<9x4x4xf32, #tpu.memory_space<vmem>>, vector<1x4x4xf32>
    %123 = vector.shape_cast %122 : vector<1x4x4xf32> to vector<4x4xf32>
    %cst_100 = arith.constant dense<0.000000e+00> : vector<256x4xf32>
    %124 = tpu.matmul %121, %123, %cst_100 {dimension_numbers = #tpu.dot_dimension_numbers<[1], [0], [0], [1], [0, 0, 1, 1], [], []>} : vector<256x4xf32>, vector<4x4xf32>, vector<256x4xf32> -> vector<256x4xf32>
    %125 = arith.addf %119, %124 : vector<256x4xf32>
    %126 = vector.shape_cast %125 : vector<256x4xf32> to vector<16x16x4xf32>
    %c0_101 = arith.constant 0 : index
    %c2_102 = arith.constant 2 : index
    %c0_103 = arith.constant 0 : index
    %c0_104 = arith.constant 0 : index
    %c0_105 = arith.constant 0 : index
    %127 = vector.load %arg5[%c0_101, %c2_102, %c0_103, %c0_104, %c0_105] : memref<1x4x16x16x4xf32, #tpu.memory_space<vmem>>, vector<1x1x16x16x4xf32>
    %128 = vector.shape_cast %127 : vector<1x1x16x16x4xf32> to vector<16x16x4xf32>
    %129 = vector.shape_cast %126 : vector<16x16x4xf32> to vector<1x1x16x16x4xf32>
    tpu.vector_store %arg5[%c0_101, %c2_102, %c0_103, %c0_104, %c0_105], %129 {strides = array<i32>} : memref<1x4x16x16x4xf32, #tpu.memory_space<vmem>>, vector<1x1x16x16x4xf32>,
    %cst_106 = arith.constant 0.000000e+00 : f32
    %130 = vector.broadcast %cst_106 : f32 to vector<256x4xf32>
    %131 = vector.extract_strided_slice %80 {offsets = [0, 0, 0], sizes = [16, 16, 4], strides = [1, 1, 1]} : vector<17x16x4xf32> to vector<16x16x4xf32>
    %132 = vector.shape_cast %131 : vector<16x16x4xf32> to vector<256x4xf32>
    %c5_107 = arith.constant 5 : index
    %c0_108 = arith.constant 0 : index
    %c0_109 = arith.constant 0 : index
    %133 = vector.load %arg3[%c5_107, %c0_108, %c0_109] : memref<9x4x4xf32, #tpu.memory_space<vmem>>, vector<1x4x4xf32>
    %134 = vector.shape_cast %133 : vector<1x4x4xf32> to vector<4x4xf32>
    %cst_110 = arith.constant dense<0.000000e+00> : vector<256x4xf32>
    %135 = tpu.matmul %132, %134, %cst_110 {dimension_numbers = #tpu.dot_dimension_numbers<[1], [0], [0], [1], [0, 0, 1, 1], [], []>} : vector<256x4xf32>, vector<4x4xf32>, vector<256x4xf32> -> vector<256x4xf32>
    %136 = arith.addf %130, %135 : vector<256x4xf32>
    %137 = vector.extract_strided_slice %81 {offsets = [0, 0, 0], sizes = [16, 16, 4], strides = [1, 1, 1]} : vector<17x16x4xf32> to vector<16x16x4xf32>
    %138 = vector.shape_cast %137 : vector<16x16x4xf32> to vector<256x4xf32>
    %c6_111 = arith.constant 6 : index
    %c0_112 = arith.constant 0 : index
    %c0_113 = arith.constant 0 : index
    %139 = vector.load %arg3[%c6_111, %c0_112, %c0_113] : memref<9x4x4xf32, #tpu.memory_space<vmem>>, vector<1x4x4xf32>
    %140 = vector.shape_cast %139 : vector<1x4x4xf32> to vector<4x4xf32>
    %cst_114 = arith.constant dense<0.000000e+00> : vector<256x4xf32>
    %141 = tpu.matmul %138, %140, %cst_114 {dimension_numbers = #tpu.dot_dimension_numbers<[1], [0], [0], [1], [0, 0, 1, 1], [], []>} : vector<256x4xf32>, vector<4x4xf32>, vector<256x4xf32> -> vector<256x4xf32>
    %142 = arith.addf %136, %141 : vector<256x4xf32>
    %143 = vector.extract_strided_slice %80 {offsets = [1, 0, 0], sizes = [16, 16, 4], strides = [1, 1, 1]} : vector<17x16x4xf32> to vector<16x16x4xf32>
    %144 = vector.shape_cast %143 : vector<16x16x4xf32> to vector<256x4xf32>
    %c7_115 = arith.constant 7 : index
    %c0_116 = arith.constant 0 : index
    %c0_117 = arith.constant 0 : index
    %145 = vector.load %arg3[%c7_115, %c0_116, %c0_117] : memref<9x4x4xf32, #tpu.memory_space<vmem>>, vector<1x4x4xf32>
    %146 = vector.shape_cast %145 : vector<1x4x4xf32> to vector<4x4xf32>
    %cst_118 = arith.constant dense<0.000000e+00> : vector<256x4xf32>
    %147 = tpu.matmul %144, %146, %cst_118 {dimension_numbers = #tpu.dot_dimension_numbers<[1], [0], [0], [1], [0, 0, 1, 1], [], []>} : vector<256x4xf32>, vector<4x4xf32>, vector<256x4xf32> -> vector<256x4xf32>
    %148 = arith.addf %142, %147 : vector<256x4xf32>
    %149 = vector.extract_strided_slice %81 {offsets = [1, 0, 0], sizes = [16, 16, 4], strides = [1, 1, 1]} : vector<17x16x4xf32> to vector<16x16x4xf32>
    %150 = vector.shape_cast %149 : vector<16x16x4xf32> to vector<256x4xf32>
    %c8_119 = arith.constant 8 : index
    %c0_120 = arith.constant 0 : index
    %c0_121 = arith.constant 0 : index
    %151 = vector.load %arg3[%c8_119, %c0_120, %c0_121] : memref<9x4x4xf32, #tpu.memory_space<vmem>>, vector<1x4x4xf32>
    %152 = vector.shape_cast %151 : vector<1x4x4xf32> to vector<4x4xf32>
    %cst_122 = arith.constant dense<0.000000e+00> : vector<256x4xf32>
    %153 = tpu.matmul %150, %152, %cst_122 {dimension_numbers = #tpu.dot_dimension_numbers<[1], [0], [0], [1], [0, 0, 1, 1], [], []>} : vector<256x4xf32>, vector<4x4xf32>, vector<256x4xf32> -> vector<256x4xf32>
    %154 = arith.addf %148, %153 : vector<256x4xf32>
    %155 = vector.shape_cast %154 : vector<256x4xf32> to vector<16x16x4xf32>
    %c0_123 = arith.constant 0 : index
    %c3_124 = arith.constant 3 : index
    %c0_125 = arith.constant 0 : index
    %c0_126 = arith.constant 0 : index
    %c0_127 = arith.constant 0 : index
    %156 = vector.load %arg5[%c0_123, %c3_124, %c0_125, %c0_126, %c0_127] : memref<1x4x16x16x4xf32, #tpu.memory_space<vmem>>, vector<1x1x16x16x4xf32>
    %157 = vector.shape_cast %156 : vector<1x1x16x16x4xf32> to vector<16x16x4xf32>
    %158 = vector.shape_cast %155 : vector<16x16x4xf32> to vector<1x1x16x16x4xf32>
    tpu.vector_store %arg5[%c0_123, %c3_124, %c0_125, %c0_126, %c0_127], %158 {strides = array<i32>} : memref<1x4x16x16x4xf32, #tpu.memory_space<vmem>>, vector<1x1x16x16x4xf32>,
    return
  }
  func.func @transform_0(%arg0: i32) -> (i32, i32, i32, i32) {
    %c0_i32 = arith.constant 0 : i32
    %c0_i32_0 = arith.constant 0 : i32
    %c0_i32_1 = arith.constant 0 : i32
    %c0_i32_2 = arith.constant 0 : i32
    return %arg0, %c0_i32, %c0_i32_0, %c0_i32_1 : i32, i32, i32, i32
  }
  func.func @transform_1(%arg0: i32) -> (i32, i32, i32) {
    %c0_i32 = arith.constant 0 : i32
    %c0_i32_0 = arith.constant 0 : i32
    %c0_i32_1 = arith.constant 0 : i32
    %c0_i32_2 = arith.constant 0 : i32
    return %c0_i32, %c0_i32_0, %c0_i32_1 : i32, i32, i32
  }
  func.func @transform_2(%arg0: i32) -> (i32, i32, i32) {
    %c0_i32 = arith.constant 0 : i32
    %c0_i32_0 = arith.constant 0 : i32
    %c0_i32_1 = arith.constant 0 : i32
    %c0_i32_2 = arith.constant 0 : i32
    return %c0_i32, %c0_i32_0, %c0_i32_1 : i32, i32, i32
  }
  func.func @transform_3(%arg0: i32) -> (i32, i32) {
    %c0_i32 = arith.constant 0 : i32
    %c0_i32_0 = arith.constant 0 : i32
    %c0_i32_1 = arith.constant 0 : i32
    return %c0_i32, %c0_i32_0 : i32, i32
  }
  func.func @transform_4(%arg0: i32) -> (i32, i32, i32, i32, i32) {
    %c0_i32 = arith.constant 0 : i32
    %c0_i32_0 = arith.constant 0 : i32
    %c0_i32_1 = arith.constant 0 : i32
    %c0_i32_2 = arith.constant 0 : i32
    %c0_i32_3 = arith.constant 0 : i32
    return %arg0, %c0_i32, %c0_i32_0, %c0_i32_1, %c0_i32_2 : i32, i32, i32, i32, i32
  }
}

</mosaic_0001>

<llo_original>
// kernel: deconv_basic_block.1
$region0: #{deconv_basic_block.1}
  #allocation0 [shape = 'u32[]', space=smem, size = 0x4, offset = 0x4, fixed_abs, tag = 'smem constant byte address 0x4 - core index']
  #allocation1 [shape = 'u32[144,128]{1,0:T(1,128)}', space=vmem, size = 0x12000, scoped, tag = 'internal scratch']
  #allocation2 [shape = 'f32[18,18,4]{2,1,0:T(8,128)}', space=vmem, size = 0x36000, scoped, tag = 'scratch operand']
  #allocation3 [shape = 'f32[17,17,4]{2,1,0:T(8,128)}', space=vmem, size = 0x33000, scoped, tag = 'scratch operand']
  %s0 = inlined_call_operand.vmem [shape: f32[2,16,16,4], index: 0, kind: input, shape index: {}]
  %s1 = inlined_call_operand.vmem [shape: f32[9,4,4], index: 1, kind: input, shape index: {}]
  %s2 = inlined_call_operand.vmem [shape: f32[9,4,4], index: 2, kind: input, shape index: {}]
  %s3 = inlined_call_operand.vmem [shape: f32[4,4], index: 3, kind: input, shape index: {}]
  %s4 = inlined_call_operand.vmem [shape: f32[2,4,16,16,4], index: 4, kind: output, shape index: {}]
  %s5 = sld [smem:[#allocation0]]
  $region49: #{deconv_basic_block.1} parent=0
    _
  %s7 = ssub.s32 1, %s5
  %s8 = scalar_select 0, %s7, %s5
  loop: start=0, step=1, limit=4
  $region2: #{deconv_basic_block.1} parent=0 // loop_pre_header
    _
  $region3: #{deconv_basic_block.1} parent=0 // loop_header
    %s10 = sphi 0, %s14
    %p11 = scmp.ge.s32.totalorder %s10, 4
    %s20 = sphi 0, %s22
    %s23 = sphi 0, %s20
    %s24 = sphi 0, %s23
    %s40 = sphi 0, %s24
    %s44 = sphi 0, %s44
    %s46 = sphi 0, %s44
    %s47 = sphi 0, %s46
    %s61 = sphi 0, %s47
    %s65 = sphi 0, %s65
    %s67 = sphi 0, %s65
    %s68 = sphi 0, %s67
    %s82 = sphi 0, %s68
    %s86 = sphi 0, %s86
    %s88 = sphi 0, %s86
    %s89 = sphi 0, %s88
    %s103 = sphi 0, %s89
    %s109 = sphi 0, %s111
    %s112 = sphi 0, %s109
    %s113 = sphi 0, %s112
    %s129 = sphi 0, %s113
  $region4: #{deconv_basic_block.1} parent=0 // loop_header_branch
    %13 = sbr.rel (%p11) target = $region8
  $region5: #{deconv_basic_block.1} parent=0 // loop_body
    %s15 = ssub.s32 %s10, 1
    %s16 = ssub.s32 %s10, 2
    %s17 = sadd.s32 %s10, 1
    %s18 = ssub.s32 %s10, %s17
    %p19 = scmp.eq.s32.totalorder %s18, 0
    %s21 = sadd.s32 %s20, 1
    %s22 = scalar_select %p19, %s20, %s21
    %p25 = pneg %p19
    %p26 = scmp.eq.s32.totalorder %s10, 1
    %p27 = por %p25, %p26
    %p28 = scmp.ne.s32.totalorder %s20, %s23
    %p29 = scmp.eq.s32.totalorder %s10, 0
    %p30 = por %p28, %p29
    %p31 = scmp.ne.s32.totalorder %s20, %s23
    %p32 = scmp.eq.s32.totalorder %s15, 1
    %p33 = por %p31, %p32
    %p34 = scmp.ne.s32.totalorder %s23, %s24
    %p35 = scmp.eq.s32.totalorder %s15, 0
    %p36 = por %p34, %p35
    %p37 = scmp.ne.s32.totalorder %s23, %s24
    %p38 = scmp.eq.s32.totalorder %s16, 1
    %p39 = por %p37, %p38
    %p41 = scmp.ne.s32.totalorder %s24, %s40
    %p42 = scmp.eq.s32.totalorder %s16, 0
    %p43 = por %p41, %p42
    %s45 = sadd.s32 %s44, 1
    %p48 = scmp.eq.s32.totalorder %s10, 1
    %p49 = scmp.ne.s32.totalorder %s44, %s46
    %p50 = scmp.eq.s32.totalorder %s10, 0
    %p51 = por %p49, %p50
    %p52 = scmp.ne.s32.totalorder %s44, %s46
    %p53 = scmp.eq.s32.totalorder %s15, 1
    %p54 = por %p52, %p53
    %p55 = scmp.ne.s32.totalorder %s46, %s47
    %p56 = scmp.eq.s32.totalorder %s15, 0
    %p57 = por %p55, %p56
    %p58 = scmp.ne.s32.totalorder %s46, %s47
    %p59 = scmp.eq.s32.totalorder %s16, 1
    %p60 = por %p58, %p59
    %p62 = scmp.ne.s32.totalorder %s47, %s61
    %p63 = scmp.eq.s32.totalorder %s16, 0
    %p64 = por %p62, %p63
    %s66 = sadd.s32 %s65, 1
    %p69 = scmp.eq.s32.totalorder %s10, 1
    %p70 = scmp.ne.s32.totalorder %s65, %s67
    %p71 = scmp.eq.s32.totalorder %s10, 0
    %p72 = por %p70, %p71
    %p73 = scmp.ne.s32.totalorder %s65, %s67
    %p74 = scmp.eq.s32.totalorder %s15, 1
    %p75 = por %p73, %p74
    %p76 = scmp.ne.s32.totalorder %s67, %s68
    %p77 = scmp.eq.s32.totalorder %s15, 0
    %p78 = por %p76, %p77
    %p79 = scmp.ne.s32.totalorder %s67, %s68
    %p80 = scmp.eq.s32.totalorder %s16, 1
    %p81 = por %p79, %p80
    %p83 = scmp.ne.s32.totalorder %s68, %s82
    %p84 = scmp.eq.s32.totalorder %s16, 0
    %p85 = por %p83, %p84
    %s87 = sadd.s32 %s86, 1
    %p90 = scmp.eq.s32.totalorder %s10, 1
    %p91 = scmp.ne.s32.totalorder %s86, %s88
    %p92 = scmp.eq.s32.totalorder %s10, 0
    %p93 = por %p91, %p92
    %p94 = scmp.ne.s32.totalorder %s86, %s88
    %p95 = scmp.eq.s32.totalorder %s15, 1
    %p96 = por %p94, %p95
    %p97 = scmp.ne.s32.totalorder %s88, %s89
    %p98 = scmp.eq.s32.totalorder %s15, 0
    %p99 = por %p97, %p98
    %p100 = scmp.ne.s32.totalorder %s88, %s89
    %p101 = scmp.eq.s32.totalorder %s16, 1
    %p102 = por %p100, %p101
    %p104 = scmp.ne.s32.totalorder %s89, %s103
    %p105 = scmp.eq.s32.totalorder %s16, 0
    %p106 = por %p104, %p105
    %s107 = ssub.s32 %s10, %s17
    %p108 = scmp.eq.s32.totalorder %s107, 0
    %s110 = sadd.s32 %s109, 1
    %s111 = scalar_select %p108, %s109, %s110
    %p114 = pneg %p108
    %p115 = scmp.eq.s32.totalorder %s10, 1
    %p116 = por %p114, %p115
    %p117 = scmp.ne.s32.totalorder %s109, %s112
    %p118 = scmp.eq.s32.totalorder %s10, 0
    %p119 = por %p117, %p118
    %p120 = scmp.ne.s32.totalorder %s109, %s112
    %p121 = scmp.eq.s32.totalorder %s15, 1
    %p122 = por %p120, %p121
    %p123 = scmp.ne.s32.totalorder %s112, %s113
    %p124 = scmp.eq.s32.totalorder %s15, 0
    %p125 = por %p123, %p124
    %p126 = scmp.ne.s32.totalorder %s112, %s113
    %p127 = scmp.eq.s32.totalorder %s16, 1
    %p128 = por %p126, %p127
    %p130 = scmp.ne.s32.totalorder %s113, %s129
    %p131 = scmp.eq.s32.totalorder %s16, 0
    %p132 = por %p130, %p131
    %p133 = scmp.le.s32.totalorder 1, %s10
    %p134 = scmp.lt.s32.totalorder %s10, 3
    %p135 = pnand %p133, %p134
    %p136 = pneg %p135
    // Predicated region
    $region9: #{deconv_basic_block.1} parent=5 // pred_check
      _
    $region10: #{deconv_basic_block.1} parent=5 // pred_check_branch
      %138 = sbr.rel (%p135) target = $region12
    $region11: #{deconv_basic_block.1} parent=5 // pred_region
      %s139 = ssub.s32 %s10, 1
      // Predicated region
      $region13: #{deconv_basic_block.1} parent=11 // pred_check
        %p140 = pneg %p57
      $region14: #{deconv_basic_block.1} parent=11 // pred_check_branch
        %142 = sbr.rel (%p140) target = $region16
      $region15: #{deconv_basic_block.1} parent=11 // pred_region
        _
      $region16: #{deconv_basic_block.1} parent=11 // pred_fallthru
        _
      // Predicated region
      $region17: #{deconv_basic_block.1} parent=11 // pred_check
        %p143 = pneg %p78
      $region18: #{deconv_basic_block.1} parent=11 // pred_check_branch
        %145 = sbr.rel (%p143) target = $region20
      $region19: #{deconv_basic_block.1} parent=11 // pred_region
        _
      $region20: #{deconv_basic_block.1} parent=11 // pred_fallthru
        _
      // Predicated region
      $region21: #{deconv_basic_block.1} parent=11 // pred_check
        %p146 = pneg %p99
      $region22: #{deconv_basic_block.1} parent=11 // pred_check_branch
        %148 = sbr.rel (%p146) target = $region24
      $region23: #{deconv_basic_block.1} parent=11 // pred_region
        _
      $region24: #{deconv_basic_block.1} parent=11 // pred_fallthru
        _
    $region12: #{deconv_basic_block.1} parent=5 // pred_fallthru
      _
    %p149 = scmp.lt.s32.totalorder %s10, 2
    // Predicated region
    $region25: #{deconv_basic_block.1} parent=5 // pred_check
      %p150 = pneg %p149
    $region26: #{deconv_basic_block.1} parent=5 // pred_check_branch
      %152 = sbr.rel (%p150) target = $region28
    $region27: #{deconv_basic_block.1} parent=5 // pred_region
      // Predicated region
      $region29: #{deconv_basic_block.1} parent=27 // pred_check
        %p153 = pneg %p30
      $region30: #{deconv_basic_block.1} parent=27 // pred_check_branch
        %155 = sbr.rel (%p153) target = $region32
      $region31: #{deconv_basic_block.1} parent=27 // pred_region
        %p156 = scmp.lt.s32.totalorder %s10, 1
        %s157 = scalar_select %p156, %s10, 1
        %s158 = smul.addr %s157, 32
        %s159 = smul.addr %s158, 8
        %s160 = scalar_lea.vmem %s0, %s159
      $region32: #{deconv_basic_block.1} parent=27 // pred_fallthru
        _
    $region28: #{deconv_basic_block.1} parent=5 // pred_fallthru
      _
    %p161 = scmp.le.s32.totalorder 1, %s10
    %p162 = scmp.lt.s32.totalorder %s10, 3
    %p163 = pnand %p161, %p162
    %p164 = pneg %p163
    // Predicated region
    $region33: #{deconv_basic_block.1} parent=5 // pred_check
      _
    $region34: #{deconv_basic_block.1} parent=5 // pred_check_branch
      %166 = sbr.rel (%p163) target = $region36
    $region35: #{deconv_basic_block.1} parent=5 // pred_region
      %s167 = ssub.s32 %s10, 1
      %p168 = scmp.lt.s32.totalorder %s15, 1
      %s169 = scalar_select %p168, %s15, 1
      %s170 = smul.addr %s169, 32
      %s171 = smul.addr %s170, 8
      %s172 = scalar_lea.vmem %s0, %s171
      %p173 = pneg %p36
      %p174 = pneg %p33
      %p175 = pneg %p57
      %p176 = pneg %p54
      %p177 = pneg %p78
      %p178 = pneg %p75
      %p179 = pneg %p99
      %p180 = pneg %p96
      %p181 = pneg %p125
      %p182 = pneg %p122
      %p183 = scmp.lt.s32.totalorder %s15, 1
      %s184 = scalar_select %p183, %s15, 1
      %s185 = smul.addr %s184, 128
      %s186 = smul.addr %s185, 8
      %s187 = scalar_lea.vmem %s4, %s186
      %p188 = scmp.lt.s32.totalorder %s15, 1
      %s189 = scalar_select %p188, %s15, 1
      %s190 = smul.addr %s189, 32
      %s191 = smul.addr %s190, 8
      %s192 = scalar_lea.vmem %s0, %s191
      %p193 = scmp.lt.s32.totalorder %s15, 1
      %s194 = scalar_select %p193, %s15, 1
      %s195 = smul.addr %s194, 128
      %s196 = smul.addr %s195, 8
      %s197 = scalar_lea.vmem %s4, %s196
      %v198 = vld [vmem:[%s192] sm:$0xff]
      %v199 = vld [vmem:[%s192 + $0x8] sm:$0xff]
      %v200 = vld [vmem:[%s192 + $0x10] sm:$0xff]
      %v201 = vld [vmem:[%s192 + $0x18] sm:$0xff]
      %v202 = vld [vmem:[%s192 + $0x20] sm:$0xff]
      %v203 = vld [vmem:[%s192 + $0x28] sm:$0xff]
      %v204 = vld [vmem:[%s192 + $0x30] sm:$0xff]
      %v205 = vld [vmem:[%s192 + $0x38] sm:$0xff]
      %v206 = vld [vmem:[%s192 + $0x40] sm:$0xff]
      %v207 = vld [vmem:[%s192 + $0x48] sm:$0xff]
      %v208 = vld [vmem:[%s192 + $0x50] sm:$0xff]
      %v209 = vld [vmem:[%s192 + $0x58] sm:$0xff]
      %v210 = vld [vmem:[%s192 + $0x60] sm:$0xff]
      %v211 = vld [vmem:[%s192 + $0x68] sm:$0xff]
      %v212 = vld [vmem:[%s192 + $0x70] sm:$0xff]
      %v213 = vld [vmem:[%s192 + $0x78] sm:$0xff]
      %v214 = vld [vmem:[%s192 + $0x80] sm:$0xff]
      %v215 = vld [vmem:[%s192 + $0x88] sm:$0xff]
      %v216 = vld [vmem:[%s192 + $0x90] sm:$0xff]
      %v217 = vld [vmem:[%s192 + $0x98] sm:$0xff]
      %v218 = vld [vmem:[%s192 + $0xa0] sm:$0xff]
      %v219 = vld [vmem:[%s192 + $0xa8] sm:$0xff]
      %v220 = vld [vmem:[%s192 + $0xb0] sm:$0xff]
      %v221 = vld [vmem:[%s192 + $0xb8] sm:$0xff]
      %v222 = vld [vmem:[%s192 + $0xc0] sm:$0xff]
      %v223 = vld [vmem:[%s192 + $0xc8] sm:$0xff]
      %v224 = vld [vmem:[%s192 + $0xd0] sm:$0xff]
      %v225 = vld [vmem:[%s192 + $0xd8] sm:$0xff]
      %v226 = vld [vmem:[%s192 + $0xe0] sm:$0xff]
      %v227 = vld [vmem:[%s192 + $0xe8] sm:$0xff]
      %v228 = vld [vmem:[%s192 + $0xf0] sm:$0xff]
      %v229 = vld [vmem:[%s192 + $0xf8] sm:$0xff]
      %v230 = vmax.f32 %v198, 0.0
      %v231 = vmax.f32 %v199, 0.0
      %v232 = vmax.f32 %v200, 0.0
      %v233 = vmax.f32 %v201, 0.0
      %v234 = vmax.f32 %v202, 0.0
      %v235 = vmax.f32 %v203, 0.0
      %v236 = vmax.f32 %v204, 0.0
      %v237 = vmax.f32 %v205, 0.0
      %v238 = vmax.f32 %v206, 0.0
      %v239 = vmax.f32 %v207, 0.0
      %v240 = vmax.f32 %v208, 0.0
      %v241 = vmax.f32 %v209, 0.0
      %v242 = vmax.f32 %v210, 0.0
      %v243 = vmax.f32 %v211, 0.0
      %v244 = vmax.f32 %v212, 0.0
      %v245 = vmax.f32 %v213, 0.0
      %v246 = vmax.f32 %v214, 0.0
      %v247 = vmax.f32 %v215, 0.0
      %v248 = vmax.f32 %v216, 0.0
      %v249 = vmax.f32 %v217, 0.0
      %v250 = vmax.f32 %v218, 0.0
      %v251 = vmax.f32 %v219, 0.0
      %v252 = vmax.f32 %v220, 0.0
      %v253 = vmax.f32 %v221, 0.0
      %v254 = vmax.f32 %v222, 0.0
      %v255 = vmax.f32 %v223, 0.0
      %v256 = vmax.f32 %v224, 0.0
      %v257 = vmax.f32 %v225, 0.0
      %v258 = vmax.f32 %v226, 0.0
      %v259 = vmax.f32 %v227, 0.0
      %v260 = vmax.f32 %v228, 0.0
      %v261 = vmax.f32 %v229, 0.0
      %vm262 = vcmask 31744
      %263 = vst.msk [vmem:[#allocation2] sm:$0xff] %vm262, 0.0
      %264 = vst.msk [vmem:[#allocation2 + $0x8] sm:$0xff] %vm262, 0.0
      %vm265 = vcmask 25600
      %266 = vst.msk [vmem:[#allocation2 + $0x10] sm:$0x3] %vm265, 0.0
      %s267 = scalar_lea.vmem [#allocation2], 408
      %268 = vst.msk [vmem:[%s267] sm:$0xff] %vm262, 0.0
      %269 = vst.msk [vmem:[%s267 + $0x8] sm:$0xff] %vm262, 0.0
      %270 = vst.msk [vmem:[%s267 + $0x10] sm:$0x3] %vm265, 0.0
      %vm271 = vcmask 24576
      %272 = vst.msk [vmem:[#allocation2] sm:$0x1] %vm271, 0.0
      %273 = vst.msk [vmem:[#allocation2 + $0x18] sm:$0x1] %vm271, 0.0
      %274 = vst.msk [vmem:[#allocation2 + $0x30] sm:$0x1] %vm271, 0.0
      %275 = vst.msk [vmem:[#allocation2 + $0x48] sm:$0x1] %vm271, 0.0
      %276 = vst.msk [vmem:[#allocation2 + $0x60] sm:$0x1] %vm271, 0.0
      %277 = vst.msk [vmem:[#allocation2 + $0x78] sm:$0x1] %vm271, 0.0
      %278 = vst.msk [vmem:[#allocation2 + $0x90] sm:$0x1] %vm271, 0.0
      %279 = vst.msk [vmem:[#allocation2 + $0xa8] sm:$0x1] %vm271, 0.0
      %280 = vst.msk [vmem:[#allocation2 + $0xc0] sm:$0x1] %vm271, 0.0
      %281 = vst.msk [vmem:[#allocation2 + $0xd8] sm:$0x1] %vm271, 0.0
      %282 = vst.msk [vmem:[#allocation2 + $0xf0] sm:$0x1] %vm271, 0.0
      %283 = vst.msk [vmem:[#allocation2 + $0x108] sm:$0x1] %vm271, 0.0
      %284 = vst.msk [vmem:[#allocation2 + $0x120] sm:$0x1] %vm271, 0.0
      %285 = vst.msk [vmem:[#allocation2 + $0x138] sm:$0x1] %vm271, 0.0
      %286 = vst.msk [vmem:[#allocation2 + $0x150] sm:$0x1] %vm271, 0.0
      %287 = vst.msk [vmem:[#allocation2 + $0x168] sm:$0x1] %vm271, 0.0
      %288 = vst.msk [vmem:[#allocation2 + $0x180] sm:$0x1] %vm271, 0.0
      %289 = vst.msk [vmem:[#allocation2 + $0x198] sm:$0x1] %vm271, 0.0
      %290 = vst.msk [vmem:[#allocation2 + $0x11] sm:$0x1] %vm271, 0.0
      %291 = vst.msk [vmem:[#allocation2 + $0x29] sm:$0x1] %vm271, 0.0
      %292 = vst.msk [vmem:[#allocation2 + $0x41] sm:$0x1] %vm271, 0.0
      %293 = vst.msk [vmem:[#allocation2 + $0x59] sm:$0x1] %vm271, 0.0
      %294 = vst.msk [vmem:[#allocation2 + $0x71] sm:$0x1] %vm271, 0.0
      %295 = vst.msk [vmem:[#allocation2 + $0x89] sm:$0x1] %vm271, 0.0
      %296 = vst.msk [vmem:[#allocation2 + $0xa1] sm:$0x1] %vm271, 0.0
      %297 = vst.msk [vmem:[#allocation2 + $0xb9] sm:$0x1] %vm271, 0.0
      %298 = vst.msk [vmem:[#allocation2 + $0xd1] sm:$0x1] %vm271, 0.0
      %299 = vst.msk [vmem:[#allocation2 + $0xe9] sm:$0x1] %vm271, 0.0
      %300 = vst.msk [vmem:[#allocation2 + $0x101] sm:$0x1] %vm271, 0.0
      %301 = vst.msk [vmem:[#allocation2 + $0x119] sm:$0x1] %vm271, 0.0
      %302 = vst.msk [vmem:[#allocation2 + $0x131] sm:$0x1] %vm271, 0.0
      %303 = vst.msk [vmem:[#allocation2 + $0x149] sm:$0x1] %vm271, 0.0
      %304 = vst.msk [vmem:[#allocation2 + $0x161] sm:$0x1] %vm271, 0.0
      %305 = vst.msk [vmem:[#allocation2 + $0x179] sm:$0x1] %vm271, 0.0
      %306 = vst.msk [vmem:[#allocation2 + $0x191] sm:$0x1] %vm271, 0.0
      %307 = vst.msk [vmem:[#allocation2 + $0x1a9] sm:$0x1] %vm271, 0.0
      %s308 = scalar_lea.vmem [#allocation2], 24
      %309 = vst.msk [vmem:[%s308 + $0x1] sm:$0xff] %vm262, %v230
      %310 = vst.msk [vmem:[%s308 + $0x9] sm:$0xff] %vm262, %v231
      %311 = vst.msk [vmem:[%s308 + $0x19] sm:$0xff] %vm262, %v232
      %312 = vst.msk [vmem:[%s308 + $0x21] sm:$0xff] %vm262, %v233
      %313 = vst.msk [vmem:[%s308 + $0x31] sm:$0xff] %vm262, %v234
      %314 = vst.msk [vmem:[%s308 + $0x39] sm:$0xff] %vm262, %v235
      %315 = vst.msk [vmem:[%s308 + $0x49] sm:$0xff] %vm262, %v236
      %316 = vst.msk [vmem:[%s308 + $0x51] sm:$0xff] %vm262, %v237
      %317 = vst.msk [vmem:[%s308 + $0x61] sm:$0xff] %vm262, %v238
      %318 = vst.msk [vmem:[%s308 + $0x69] sm:$0xff] %vm262, %v239
      %319 = vst.msk [vmem:[%s308 + $0x79] sm:$0xff] %vm262, %v240
      %320 = vst.msk [vmem:[%s308 + $0x81] sm:$0xff] %vm262, %v241
      %321 = vst.msk [vmem:[%s308 + $0x91] sm:$0xff] %vm262, %v242
      %322 = vst.msk [vmem:[%s308 + $0x99] sm:$0xff] %vm262, %v243
      %323 = vst.msk [vmem:[%s308 + $0xa9] sm:$0xff] %vm262, %v244
      %324 = vst.msk [vmem:[%s308 + $0xb1] sm:$0xff] %vm262, %v245
      %325 = vst.msk [vmem:[%s308 + $0xc1] sm:$0xff] %vm262, %v246
      %326 = vst.msk [vmem:[%s308 + $0xc9] sm:$0xff] %vm262, %v247
      %327 = vst.msk [vmem:[%s308 + $0xd9] sm:$0xff] %vm262, %v248
      %328 = vst.msk [vmem:[%s308 + $0xe1] sm:$0xff] %vm262, %v249
      %329 = vst.msk [vmem:[%s308 + $0xf1] sm:$0xff] %vm262, %v250
      %330 = vst.msk [vmem:[%s308 + $0xf9] sm:$0xff] %vm262, %v251
      %331 = vst.msk [vmem:[%s308 + $0x109] sm:$0xff] %vm262, %v252
      %332 = vst.msk [vmem:[%s308 + $0x111] sm:$0xff] %vm262, %v253
      %333 = vst.msk [vmem:[%s308 + $0x121] sm:$0xff] %vm262, %v254
      %334 = vst.msk [vmem:[%s308 + $0x129] sm:$0xff] %vm262, %v255
      %335 = vst.msk [vmem:[%s308 + $0x139] sm:$0xff] %vm262, %v256
      %336 = vst.msk [vmem:[%s308 + $0x141] sm:$0xff] %vm262, %v257
      %337 = vst.msk [vmem:[%s308 + $0x151] sm:$0xff] %vm262, %v258
      %338 = vst.msk [vmem:[%s308 + $0x159] sm:$0xff] %vm262, %v259
      %339 = vst.msk [vmem:[%s308 + $0x169] sm:$0xff] %vm262, %v260
      %340 = vst.msk [vmem:[%s308 + $0x171] sm:$0xff] %vm262, %v261
      %v341 = vld [vmem:[#allocation2] sm:$0xff]
      %v342 = vld [vmem:[#allocation2 + $0x8] sm:$0xff]
      %v343 = vld [vmem:[#allocation2 + $0x10] sm:$0x3]
      %v344 = vld [vmem:[#allocation2 + $0x18] sm:$0xff]
      %v345 = vld [vmem:[#allocation2 + $0x20] sm:$0xff]
      %v346 = vld [vmem:[#allocation2 + $0x28] sm:$0x3]
      %v347 = vld [vmem:[#allocation2 + $0x30] sm:$0xff]
      %v348 = vld [vmem:[#allocation2 + $0x38] sm:$0xff]
      %v349 = vld [vmem:[#allocation2 + $0x40] sm:$0x3]
      %v350 = vld [vmem:[#allocation2 + $0x48] sm:$0xff]
      %v351 = vld [vmem:[#allocation2 + $0x50] sm:$0xff]
      %v352 = vld [vmem:[#allocation2 + $0x58] sm:$0x3]
      %v353 = vld [vmem:[#allocation2 + $0x60] sm:$0xff]
      %v354 = vld [vmem:[#allocation2 + $0x68] sm:$0xff]
      %v355 = vld [vmem:[#allocation2 + $0x70] sm:$0x3]
      %v356 = vld [vmem:[#allocation2 + $0x78] sm:$0xff]
      %v357 = vld [vmem:[#allocation2 + $0x80] sm:$0xff]
      %v358 = vld [vmem:[#allocation2 + $0x88] sm:$0x3]
      %v359 = vld [vmem:[#allocation2 + $0x90] sm:$0xff]
      %v360 = vld [vmem:[#allocation2 + $0x98] sm:$0xff]
      %v361 = vld [vmem:[#allocation2 + $0xa0] sm:$0x3]
      %v362 = vld [vmem:[#allocation2 + $0xa8] sm:$0xff]
      %v363 = vld [vmem:[#allocation2 + $0xb0] sm:$0xff]
      %v364 = vld [vmem:[#allocation2 + $0xb8] sm:$0x3]
      %v365 = vld [vmem:[#allocation2 + $0xc0] sm:$0xff]
      %v366 = vld [vmem:[#allocation2 + $0xc8] sm:$0xff]
      %v367 = vld [vmem:[#allocation2 + $0xd0] sm:$0x3]
      %v368 = vld [vmem:[#allocation2 + $0xd8] sm:$0xff]
      %v369 = vld [vmem:[#allocation2 + $0xe0] sm:$0xff]
      %v370 = vld [vmem:[#allocation2 + $0xe8] sm:$0x3]
      %v371 = vld [vmem:[#allocation2 + $0xf0] sm:$0xff]
      %v372 = vld [vmem:[#allocation2 + $0xf8] sm:$0xff]
      %v373 = vld [vmem:[#allocation2 + $0x100] sm:$0x3]
      %v374 = vld [vmem:[#allocation2 + $0x108] sm:$0xff]
      %v375 = vld [vmem:[#allocation2 + $0x110] sm:$0xff]
      %v376 = vld [vmem:[#allocation2 + $0x118] sm:$0x3]
      %v377 = vld [vmem:[#allocation2 + $0x120] sm:$0xff]
      %v378 = vld [vmem:[#allocation2 + $0x128] sm:$0xff]
      %v379 = vld [vmem:[#allocation2 + $0x130] sm:$0x3]
      %v380 = vld [vmem:[#allocation2 + $0x138] sm:$0xff]
      %v381 = vld [vmem:[#allocation2 + $0x140] sm:$0xff]
      %v382 = vld [vmem:[#allocation2 + $0x148] sm:$0x3]
      %v383 = vld [vmem:[#allocation2 + $0x150] sm:$0xff]
      %v384 = vld [vmem:[#allocation2 + $0x158] sm:$0xff]
      %v385 = vld [vmem:[#allocation2 + $0x160] sm:$0x3]
      %v386 = vld [vmem:[#allocation2 + $0x168] sm:$0xff]
      %v387 = vld [vmem:[#allocation2 + $0x170] sm:$0xff]
      %v388 = vld [vmem:[#allocation2 + $0x178] sm:$0x3]
      %v389 = vld [vmem:[#allocation2 + $0x180] sm:$0xff]
      %v390 = vld [vmem:[#allocation2 + $0x188] sm:$0xff]
      %v391 = vld [vmem:[#allocation2 + $0x190] sm:$0x3]
      %v392 = vld [vmem:[#allocation2 + $0x198] sm:$0xff]
      %v393 = vld [vmem:[#allocation2 + $0x1a0] sm:$0xff]
      %v394 = vld [vmem:[#allocation2 + $0x1a8] sm:$0x3]
      %v395 = vld [vmem:[%s1] sm:$0xf]
      %vm444 = vcmask 1046528
      %v445 = vrot.slane %v341, 1
      %v446 = vrot.slane %v342, 1
      %v447 = vsel %vm444, %v445, %v446
      %v448 = vrot.slane %v343, 1
      %v449 = vsel %vm444, %v446, %v448
      %v450 = vrot.slane %v344, 1
      %v451 = vrot.slane %v345, 1
      %v452 = vsel %vm444, %v450, %v451
      %v453 = vrot.slane %v346, 1
      %v454 = vsel %vm444, %v451, %v453
      %v455 = vrot.slane %v347, 1
      %v456 = vrot.slane %v348, 1
      %v457 = vsel %vm444, %v455, %v456
      %v458 = vrot.slane %v349, 1
      %v459 = vsel %vm444, %v456, %v458
      %v460 = vrot.slane %v350, 1
      %v461 = vrot.slane %v351, 1
      %v462 = vsel %vm444, %v460, %v461
      %v463 = vrot.slane %v352, 1
      %v464 = vsel %vm444, %v461, %v463
      %v465 = vrot.slane %v353, 1
      %v466 = vrot.slane %v354, 1
      %v467 = vsel %vm444, %v465, %v466
      %v468 = vrot.slane %v355, 1
      %v469 = vsel %vm444, %v466, %v468
      %v470 = vrot.slane %v356, 1
      %v471 = vrot.slane %v357, 1
      %v472 = vsel %vm444, %v470, %v471
      %v473 = vrot.slane %v358, 1
      %v474 = vsel %vm444, %v471, %v473
      %v475 = vrot.slane %v359, 1
      %v476 = vrot.slane %v360, 1
      %v477 = vsel %vm444, %v475, %v476
      %v478 = vrot.slane %v361, 1
      %v479 = vsel %vm444, %v476, %v478
      %v480 = vrot.slane %v362, 1
      %v481 = vrot.slane %v363, 1
      %v482 = vsel %vm444, %v480, %v481
      %v483 = vrot.slane %v364, 1
      %v484 = vsel %vm444, %v481, %v483
      %v485 = vrot.slane %v365, 1
      %v486 = vrot.slane %v366, 1
      %v487 = vsel %vm444, %v485, %v486
      %v488 = vrot.slane %v367, 1
      %v489 = vsel %vm444, %v486, %v488
      %v490 = vrot.slane %v368, 1
      %v491 = vrot.slane %v369, 1
      %v492 = vsel %vm444, %v490, %v491
      %v493 = vrot.slane %v370, 1
      %v494 = vsel %vm444, %v491, %v493
      %v495 = vrot.slane %v371, 1
      %v496 = vrot.slane %v372, 1
      %v497 = vsel %vm444, %v495, %v496
      %v498 = vrot.slane %v373, 1
      %v499 = vsel %vm444, %v496, %v498
      %v500 = vrot.slane %v374, 1
      %v501 = vrot.slane %v375, 1
      %v502 = vsel %vm444, %v500, %v501
      %v503 = vrot.slane %v376, 1
      %v504 = vsel %vm444, %v501, %v503
      %v505 = vrot.slane %v377, 1
      %v506 = vrot.slane %v378, 1
      %v507 = vsel %vm444, %v505, %v506
      %v508 = vrot.slane %v379, 1
      %v509 = vsel %vm444, %v506, %v508
      %v510 = vrot.slane %v380, 1
      %v511 = vrot.slane %v381, 1
      %v512 = vsel %vm444, %v510, %v511
      %v513 = vrot.slane %v382, 1
      %v514 = vsel %vm444, %v511, %v513
      %v515 = vrot.slane %v383, 1
      %v516 = vrot.slane %v384, 1
      %v517 = vsel %vm444, %v515, %v516
      %v518 = vrot.slane %v385, 1
      %v519 = vsel %vm444, %v516, %v518
      %v520 = vrot.slane %v386, 1
      %v521 = vrot.slane %v387, 1
      %v522 = vsel %vm444, %v520, %v521
      %v523 = vrot.slane %v388, 1
      %v524 = vsel %vm444, %v521, %v523
      %s525 = scalar_lea.vmem %s1, 4
      %v526 = vld [vmem:[%s525] sm:$0xf]
      %v527 = vsel %vm262, %v447, 0
      %v529 = vsel %vm262, %v449, 0
      %v531 = vsel %vm262, %v452, 0
      %v533 = vsel %vm262, %v454, 0
      %v535 = vsel %vm262, %v457, 0
      %v537 = vsel %vm262, %v459, 0
      %v539 = vsel %vm262, %v462, 0
      %v541 = vsel %vm262, %v464, 0
      %v543 = vsel %vm262, %v467, 0
      %v545 = vsel %vm262, %v469, 0
      %v547 = vsel %vm262, %v472, 0
      %v549 = vsel %vm262, %v474, 0
      %v551 = vsel %vm262, %v477, 0
      %v553 = vsel %vm262, %v479, 0
      %v555 = vsel %vm262, %v482, 0
      %v557 = vsel %vm262, %v484, 0
      %v559 = vsel %vm262, %v487, 0
      %v561 = vsel %vm262, %v489, 0
      %v563 = vsel %vm262, %v492, 0
      %v565 = vsel %vm262, %v494, 0
      %v567 = vsel %vm262, %v497, 0
      %v569 = vsel %vm262, %v499, 0
      %v571 = vsel %vm262, %v502, 0
      %v573 = vsel %vm262, %v504, 0
      %v575 = vsel %vm262, %v507, 0
      %v577 = vsel %vm262, %v509, 0
      %v579 = vsel %vm262, %v512, 0
      %v581 = vsel %vm262, %v514, 0
      %v583 = vsel %vm262, %v517, 0
      %v585 = vsel %vm262, %v519, 0
      %v587 = vsel %vm262, %v522, 0
      %v589 = vsel %vm262, %v524, 0
      %vm591 = vcmask 1043456
      %v593 = vsel %vm591, %v526, 0
      %595 = vmatprep.subr.mxu0 0.0
      %596 = vmatpush1.msra.mxu0 0.0
      %597 = vmatprep.subr.mxu0 0.0
      %598 = vmatpush1.msra.mxu0 0.0
      %599 = vmatprep.subr.mxu0 0.0
      %600 = vmatpush1.msra.mxu0 0.0
      %601 = vmatprep.subr.mxu0 0.0
      %602 = vmatpush1.msra.mxu0 0.0
      %603 = vmatprep.subr.mxu0 0.0
      %604 = vmatpush1.msra.mxu0 0.0
      %605 = vmatprep.subr.mxu0 0.0
      %606 = vmatpush1.msra.mxu0 0.0
      %607 = vmatprep.subr.mxu0 0.0
      %608 = vmatpush1.msra.mxu0 0.0
      %609 = vmatprep.subr.mxu0 0.0
      %610 = vmatpush1.msra.mxu0 0.0
      %611 = vmatprep.subr.mxu0 0.0
      %612 = vmatpush1.msra.mxu0 0.0
      %613 = vmatprep.subr.mxu0 0.0
      %614 = vmatpush1.msra.mxu0 0.0
      %615 = vmatprep.subr.mxu0 0.0
      %616 = vmatpush1.msra.mxu0 0.0
      %617 = vmatprep.subr.mxu0 0.0
      %618 = vmatpush1.msra.mxu0 0.0
      %619 = vmatprep.subr.mxu0 0.0
      %620 = vmatpush1.msra.mxu0 0.0
      %621 = vmatprep.subr.mxu0 0.0
      %622 = vmatpush1.msra.mxu0 0.0
      %623 = vmatprep.subr.mxu0 0.0
      %624 = vmatpush1.msra.mxu0 0.0
      %625 = vmatprep.subr.mxu0 0.0
      %626 = vmatpush1.msra.mxu0 %v593
      %627 = vmatprep.subr.mxu0 0.0
      %628 = vmatpush2.msra.mxu0 0.0
      %629 = vmatprep.subr.mxu0 0.0
      %630 = vmatpush2.msra.mxu0 0.0
      %631 = vmatprep.subr.mxu0 0.0
      %632 = vmatpush2.msra.mxu0 0.0
      %633 = vmatprep.subr.mxu0 0.0
      %634 = vmatpush2.msra.mxu0 0.0
      %635 = vmatprep.subr.mxu0 0.0
      %636 = vmatpush2.msra.mxu0 0.0
      %637 = vmatprep.subr.mxu0 0.0
      %638 = vmatpush2.msra.mxu0 0.0
      %639 = vmatprep.subr.mxu0 0.0
      %640 = vmatpush2.msra.mxu0 0.0
      %641 = vmatprep.subr.mxu0 0.0
      %642 = vmatpush2.msra.mxu0 0.0
      %643 = vmatprep.subr.mxu0 0.0
      %644 = vmatpush2.msra.mxu0 0.0
      %645 = vmatprep.subr.mxu0 0.0
      %646 = vmatpush2.msra.mxu0 0.0
      %647 = vmatprep.subr.mxu0 0.0
      %648 = vmatpush2.msra.mxu0 0.0
      %649 = vmatprep.subr.mxu0 0.0
      %650 = vmatpush2.msra.mxu0 0.0
      %651 = vmatprep.subr.mxu0 0.0
      %652 = vmatpush2.msra.mxu0 0.0
      %653 = vmatprep.subr.mxu0 0.0
      %654 = vmatpush2.msra.mxu0 0.0
      %655 = vmatprep.subr.mxu0 0.0
      %656 = vmatpush2.msra.mxu0 0.0
      %657 = vmatprep.subr.mxu0 0.0
      %658 = vmatpush2.msra.mxu0 0.0
      %659 = vmatprep.mubr.f32.mxu0 0.0
      %660 = vmatmul.mubr.f32.gmra.mxu0 %v527
      %v661 = vpop.f32.mrf.mxu0
      %v662 = vadd.f32 0.0, %v661
      %v663 = vpop.f32.mrf.mxu0
      %664 = vmatprep.mubr.f32.mxu0 0.0
      %665 = vmatmul.mubr.f32.gmra.mxu0 %v529
      %v666 = vpop.f32.mrf.mxu0
      %v667 = vadd.f32 0.0, %v666
      %v668 = vpop.f32.mrf.mxu0
      %669 = vmatprep.mubr.f32.mxu0 0.0
      %670 = vmatmul.mubr.f32.gmra.mxu0 %v531
      %v671 = vpop.f32.mrf.mxu0
      %v672 = vadd.f32 0.0, %v671
      %v673 = vpop.f32.mrf.mxu0
      %674 = vmatprep.mubr.f32.mxu0 0.0
      %675 = vmatmul.mubr.f32.gmra.mxu0 %v533
      %v676 = vpop.f32.mrf.mxu0
      %v677 = vadd.f32 0.0, %v676
      %v678 = vpop.f32.mrf.mxu0
      %679 = vmatprep.mubr.f32.mxu0 0.0
      %680 = vmatmul.mubr.f32.gmra.mxu0 %v535
      %v681 = vpop.f32.mrf.mxu0
      %v682 = vadd.f32 0.0, %v681
      %v683 = vpop.f32.mrf.mxu0
      %684 = vmatprep.mubr.f32.mxu0 0.0
      %685 = vmatmul.mubr.f32.gmra.mxu0 %v537
      %v686 = vpop.f32.mrf.mxu0
      %v687 = vadd.f32 0.0, %v686
      %v688 = vpop.f32.mrf.mxu0
      %689 = vmatprep.mubr.f32.mxu0 0.0
      %690 = vmatmul.mubr.f32.gmra.mxu0 %v539
      %v691 = vpop.f32.mrf.mxu0
      %v692 = vadd.f32 0.0, %v691
      %v693 = vpop.f32.mrf.mxu0
      %694 = vmatprep.mubr.f32.mxu0 0.0
      %695 = vmatmul.mubr.f32.gmra.mxu0 %v541
      %v696 = vpop.f32.mrf.mxu0
      %v697 = vadd.f32 0.0, %v696
      %v698 = vpop.f32.mrf.mxu0
      %699 = vmatprep.mubr.f32.mxu0 0.0
      %700 = vmatmul.mubr.f32.gmra.mxu0 %v543
      %v701 = vpop.f32.mrf.mxu0
      %v702 = vadd.f32 0.0, %v701
      %v703 = vpop.f32.mrf.mxu0
      %704 = vmatprep.mubr.f32.mxu0 0.0
      %705 = vmatmul.mubr.f32.gmra.mxu0 %v545
      %v706 = vpop.f32.mrf.mxu0
      %v707 = vadd.f32 0.0, %v706
      %v708 = vpop.f32.mrf.mxu0
      %709 = vmatprep.mubr.f32.mxu0 0.0
      %710 = vmatmul.mubr.f32.gmra.mxu0 %v547
      %v711 = vpop.f32.mrf.mxu0
      %v712 = vadd.f32 0.0, %v711
      %v713 = vpop.f32.mrf.mxu0
      %714 = vmatprep.mubr.f32.mxu0 0.0
      %715 = vmatmul.mubr.f32.gmra.mxu0 %v549
      %v716 = vpop.f32.mrf.mxu0
      %v717 = vadd.f32 0.0, %v716
      %v718 = vpop.f32.mrf.mxu0
      %719 = vmatprep.mubr.f32.mxu0 0.0
      %720 = vmatmul.mubr.f32.gmra.mxu0 %v551
      %v721 = vpop.f32.mrf.mxu0
      %v722 = vadd.f32 0.0, %v721
      %v723 = vpop.f32.mrf.mxu0
      %724 = vmatprep.mubr.f32.mxu0 0.0
      %725 = vmatmul.mubr.f32.gmra.mxu0 %v553
      %v726 = vpop.f32.mrf.mxu0
      %v727 = vadd.f32 0.0, %v726
      %v728 = vpop.f32.mrf.mxu0
      %729 = vmatprep.mubr.f32.mxu0 0.0
      %730 = vmatmul.mubr.f32.gmra.mxu0 %v555
      %v731 = vpop.f32.mrf.mxu0
      %v732 = vadd.f32 0.0, %v731
      %v733 = vpop.f32.mrf.mxu0
      %734 = vmatprep.mubr.f32.mxu0 0.0
      %735 = vmatmul.mubr.f32.gmra.mxu0 %v557
      %v736 = vpop.f32.mrf.mxu0
      %v737 = vadd.f32 0.0, %v736
      %v738 = vpop.f32.mrf.mxu0
      %739 = vmatprep.mubr.f32.mxu0 0.0
      %740 = vmatmul.mubr.f32.gmra.mxu0 %v559
      %v741 = vpop.f32.mrf.mxu0
      %v742 = vadd.f32 0.0, %v741
      %v743 = vpop.f32.mrf.mxu0
      %744 = vmatprep.mubr.f32.mxu0 0.0
      %745 = vmatmul.mubr.f32.gmra.mxu0 %v561
      %v746 = vpop.f32.mrf.mxu0
      %v747 = vadd.f32 0.0, %v746
      %v748 = vpop.f32.mrf.mxu0
      %749 = vmatprep.mubr.f32.mxu0 0.0
      %750 = vmatmul.mubr.f32.gmra.mxu0 %v563
      %v751 = vpop.f32.mrf.mxu0
      %v752 = vadd.f32 0.0, %v751
      %v753 = vpop.f32.mrf.mxu0
      %754 = vmatprep.mubr.f32.mxu0 0.0
      %755 = vmatmul.mubr.f32.gmra.mxu0 %v565
      %v756 = vpop.f32.mrf.mxu0
      %v757 = vadd.f32 0.0, %v756
      %v758 = vpop.f32.mrf.mxu0
      %759 = vmatprep.mubr.f32.mxu0 0.0
      %760 = vmatmul.mubr.f32.gmra.mxu0 %v567
      %v761 = vpop.f32.mrf.mxu0
      %v762 = vadd.f32 0.0, %v761
      %v763 = vpop.f32.mrf.mxu0
      %764 = vmatprep.mubr.f32.mxu0 0.0
      %765 = vmatmul.mubr.f32.gmra.mxu0 %v569
      %v766 = vpop.f32.mrf.mxu0
      %v767 = vadd.f32 0.0, %v766
      %v768 = vpop.f32.mrf.mxu0
      %769 = vmatprep.mubr.f32.mxu0 0.0
      %770 = vmatmul.mubr.f32.gmra.mxu0 %v571
      %v771 = vpop.f32.mrf.mxu0
      %v772 = vadd.f32 0.0, %v771
      %v773 = vpop.f32.mrf.mxu0
      %774 = vmatprep.mubr.f32.mxu0 0.0
      %775 = vmatmul.mubr.f32.gmra.mxu0 %v573
      %v776 = vpop.f32.mrf.mxu0
      %v777 = vadd.f32 0.0, %v776
      %v778 = vpop.f32.mrf.mxu0
      %779 = vmatprep.mubr.f32.mxu0 0.0
      %780 = vmatmul.mubr.f32.gmra.mxu0 %v575
      %v781 = vpop.f32.mrf.mxu0
      %v782 = vadd.f32 0.0, %v781
      %v783 = vpop.f32.mrf.mxu0
      %784 = vmatprep.mubr.f32.mxu0 0.0
      %785 = vmatmul.mubr.f32.gmra.mxu0 %v577
      %v786 = vpop.f32.mrf.mxu0
      %v787 = vadd.f32 0.0, %v786
      %v788 = vpop.f32.mrf.mxu0
      %789 = vmatprep.mubr.f32.mxu0 0.0
      %790 = vmatmul.mubr.f32.gmra.mxu0 %v579
      %v791 = vpop.f32.mrf.mxu0
      %v792 = vadd.f32 0.0, %v791
      %v793 = vpop.f32.mrf.mxu0
      %794 = vmatprep.mubr.f32.mxu0 0.0
      %795 = vmatmul.mubr.f32.gmra.mxu0 %v581
      %v796 = vpop.f32.mrf.mxu0
      %v797 = vadd.f32 0.0, %v796
      %v798 = vpop.f32.mrf.mxu0
      %799 = vmatprep.mubr.f32.mxu0 0.0
      %800 = vmatmul.mubr.f32.gmra.mxu0 %v583
      %v801 = vpop.f32.mrf.mxu0
      %v802 = vadd.f32 0.0, %v801
      %v803 = vpop.f32.mrf.mxu0
      %804 = vmatprep.mubr.f32.mxu0 0.0
      %805 = vmatmul.mubr.f32.gmra.mxu0 %v585
      %v806 = vpop.f32.mrf.mxu0
      %v807 = vadd.f32 0.0, %v806
      %v808 = vpop.f32.mrf.mxu0
      %809 = vmatprep.mubr.f32.mxu0 0.0
      %810 = vmatmul.mubr.f32.gmra.mxu0 %v587
      %v811 = vpop.f32.mrf.mxu0
      %v812 = vadd.f32 0.0, %v811
      %v813 = vpop.f32.mrf.mxu0
      %814 = vmatprep.mubr.f32.mxu0 0.0
      %815 = vmatmul.mubr.f32.gmra.mxu0 %v589
      %v816 = vpop.f32.mrf.mxu0
      %v817 = vadd.f32 0.0, %v816
      %v818 = vpop.f32.mrf.mxu0
      %819 = vdwg.mxu0
      %v820 = vsel %vm262, %v341, 0
      %v822 = vsel %vm262, %v342, 0
      %v824 = vsel %vm262, %v344, 0
      %v826 = vsel %vm262, %v345, 0
      %v828 = vsel %vm262, %v347, 0
      %v830 = vsel %vm262, %v348, 0
      %v832 = vsel %vm262, %v350, 0
      %v834 = vsel %vm262, %v351, 0
      %v836 = vsel %vm262, %v353, 0
      %v838 = vsel %vm262, %v354, 0
      %v840 = vsel %vm262, %v356, 0
      %v842 = vsel %vm262, %v357, 0
      %v844 = vsel %vm262, %v359, 0
      %v846 = vsel %vm262, %v360, 0
      %v848 = vsel %vm262, %v362, 0
      %v850 = vsel %vm262, %v363, 0
      %v852 = vsel %vm262, %v365, 0
      %v854 = vsel %vm262, %v366, 0
      %v856 = vsel %vm262, %v368, 0
      %v858 = vsel %vm262, %v369, 0
      %v860 = vsel %vm262, %v371, 0
      %v862 = vsel %vm262, %v372, 0
      %v864 = vsel %vm262, %v374, 0
      %v866 = vsel %vm262, %v375, 0
      %v868 = vsel %vm262, %v377, 0
      %v870 = vsel %vm262, %v378, 0
      %v872 = vsel %vm262, %v380, 0
      %v874 = vsel %vm262, %v381, 0
      %v876 = vsel %vm262, %v383, 0
      %v878 = vsel %vm262, %v384, 0
      %v880 = vsel %vm262, %v386, 0
      %v882 = vsel %vm262, %v387, 0
      %v885 = vsel %vm591, %v395, 0
      %887 = vmatprep.subr.mxu0 0.0
      %888 = vmatpush1.msra.mxu0 0.0
      %889 = vmatprep.subr.mxu0 0.0
      %890 = vmatpush1.msra.mxu0 0.0
      %891 = vmatprep.subr.mxu0 0.0
      %892 = vmatpush1.msra.mxu0 0.0
      %893 = vmatprep.subr.mxu0 0.0
      %894 = vmatpush1.msra.mxu0 0.0
      %895 = vmatprep.subr.mxu0 0.0
      %896 = vmatpush1.msra.mxu0 0.0
      %897 = vmatprep.subr.mxu0 0.0
      %898 = vmatpush1.msra.mxu0 0.0
      %899 = vmatprep.subr.mxu0 0.0
      %900 = vmatpush1.msra.mxu0 0.0
      %901 = vmatprep.subr.mxu0 0.0
      %902 = vmatpush1.msra.mxu0 0.0
      %903 = vmatprep.subr.mxu0 0.0
      %904 = vmatpush1.msra.mxu0 0.0
      %905 = vmatprep.subr.mxu0 0.0
      %906 = vmatpush1.msra.mxu0 0.0
      %907 = vmatprep.subr.mxu0 0.0
      %908 = vmatpush1.msra.mxu0 0.0
      %909 = vmatprep.subr.mxu0 0.0
      %910 = vmatpush1.msra.mxu0 0.0
      %911 = vmatprep.subr.mxu0 0.0
      %912 = vmatpush1.msra.mxu0 0.0
      %913 = vmatprep.subr.mxu0 0.0
      %914 = vmatpush1.msra.mxu0 0.0
      %915 = vmatprep.subr.mxu0 0.0
      %916 = vmatpush1.msra.mxu0 0.0
      %917 = vmatprep.subr.mxu0 0.0
      %918 = vmatpush1.msra.mxu0 %v885
      %919 = vmatprep.subr.mxu0 0.0
      %920 = vmatpush2.msra.mxu0 0.0
      %921 = vmatprep.subr.mxu0 0.0
      %922 = vmatpush2.msra.mxu0 0.0
      %923 = vmatprep.subr.mxu0 0.0
      %924 = vmatpush2.msra.mxu0 0.0
      %925 = vmatprep.subr.mxu0 0.0
      %926 = vmatpush2.msra.mxu0 0.0
      %927 = vmatprep.subr.mxu0 0.0
      %928 = vmatpush2.msra.mxu0 0.0
      %929 = vmatprep.subr.mxu0 0.0
      %930 = vmatpush2.msra.mxu0 0.0
      %931 = vmatprep.subr.mxu0 0.0
      %932 = vmatpush2.msra.mxu0 0.0
      %933 = vmatprep.subr.mxu0 0.0
      %934 = vmatpush2.msra.mxu0 0.0
      %935 = vmatprep.subr.mxu0 0.0
      %936 = vmatpush2.msra.mxu0 0.0
      %937 = vmatprep.subr.mxu0 0.0
      %938 = vmatpush2.msra.mxu0 0.0
      %939 = vmatprep.subr.mxu0 0.0
      %940 = vmatpush2.msra.mxu0 0.0
      %941 = vmatprep.subr.mxu0 0.0
      %942 = vmatpush2.msra.mxu0 0.0
      %943 = vmatprep.subr.mxu0 0.0
      %944 = vmatpush2.msra.mxu0 0.0
      %945 = vmatprep.subr.mxu0 0.0
      %946 = vmatpush2.msra.mxu0 0.0
      %947 = vmatprep.subr.mxu0 0.0
      %948 = vmatpush2.msra.mxu0 0.0
      %949 = vmatprep.subr.mxu0 0.0
      %950 = vmatpush2.msra.mxu0 0.0
      %951 = vmatprep.mubr.f32.mxu0 0.0
      %952 = vmatmul.mubr.f32.gmra.mxu0 %v820
      %v953 = vpop.f32.mrf.mxu0
      %v954 = vadd.f32 %v662, %v953
      %v955 = vpop.f32.mrf.mxu0
      %956 = vmatprep.mubr.f32.mxu0 0.0
      %957 = vmatmul.mubr.f32.gmra.mxu0 %v822
      %v958 = vpop.f32.mrf.mxu0
      %v959 = vadd.f32 %v667, %v958
      %v960 = vpop.f32.mrf.mxu0
      %961 = vmatprep.mubr.f32.mxu0 0.0
      %962 = vmatmul.mubr.f32.gmra.mxu0 %v824
      %v963 = vpop.f32.mrf.mxu0
      %v964 = vadd.f32 %v672, %v963
      %v965 = vpop.f32.mrf.mxu0
      %966 = vmatprep.mubr.f32.mxu0 0.0
      %967 = vmatmul.mubr.f32.gmra.mxu0 %v826
      %v968 = vpop.f32.mrf.mxu0
      %v969 = vadd.f32 %v677, %v968
      %v970 = vpop.f32.mrf.mxu0
      %971 = vmatprep.mubr.f32.mxu0 0.0
      %972 = vmatmul.mubr.f32.gmra.mxu0 %v828
      %v973 = vpop.f32.mrf.mxu0
      %v974 = vadd.f32 %v682, %v973
      %v975 = vpop.f32.mrf.mxu0
      %976 = vmatprep.mubr.f32.mxu0 0.0
      %977 = vmatmul.mubr.f32.gmra.mxu0 %v830
      %v978 = vpop.f32.mrf.mxu0
      %v979 = vadd.f32 %v687, %v978
      %v980 = vpop.f32.mrf.mxu0
      %981 = vmatprep.mubr.f32.mxu0 0.0
      %982 = vmatmul.mubr.f32.gmra.mxu0 %v832
      %v983 = vpop.f32.mrf.mxu0
      %v984 = vadd.f32 %v692, %v983
      %v985 = vpop.f32.mrf.mxu0
      %986 = vmatprep.mubr.f32.mxu0 0.0
      %987 = vmatmul.mubr.f32.gmra.mxu0 %v834
      %v988 = vpop.f32.mrf.mxu0
      %v989 = vadd.f32 %v697, %v988
      %v990 = vpop.f32.mrf.mxu0
      %991 = vmatprep.mubr.f32.mxu0 0.0
      %992 = vmatmul.mubr.f32.gmra.mxu0 %v836
      %v993 = vpop.f32.mrf.mxu0
      %v994 = vadd.f32 %v702, %v993
      %v995 = vpop.f32.mrf.mxu0
      %996 = vmatprep.mubr.f32.mxu0 0.0
      %997 = vmatmul.mubr.f32.gmra.mxu0 %v838
      %v998 = vpop.f32.mrf.mxu0
      %v999 = vadd.f32 %v707, %v998
      %v1000 = vpop.f32.mrf.mxu0
      %1001 = vmatprep.mubr.f32.mxu0 0.0
      %1002 = vmatmul.mubr.f32.gmra.mxu0 %v840
      %v1003 = vpop.f32.mrf.mxu0
      %v1004 = vadd.f32 %v712, %v1003
      %v1005 = vpop.f32.mrf.mxu0
      %1006 = vmatprep.mubr.f32.mxu0 0.0
      %1007 = vmatmul.mubr.f32.gmra.mxu0 %v842
      %v1008 = vpop.f32.mrf.mxu0
      %v1009 = vadd.f32 %v717, %v1008
      %v1010 = vpop.f32.mrf.mxu0
      %1011 = vmatprep.mubr.f32.mxu0 0.0
      %1012 = vmatmul.mubr.f32.gmra.mxu0 %v844
      %v1013 = vpop.f32.mrf.mxu0
      %v1014 = vadd.f32 %v722, %v1013
      %v1015 = vpop.f32.mrf.mxu0
      %1016 = vmatprep.mubr.f32.mxu0 0.0
      %1017 = vmatmul.mubr.f32.gmra.mxu0 %v846
      %v1018 = vpop.f32.mrf.mxu0
      %v1019 = vadd.f32 %v727, %v1018
      %v1020 = vpop.f32.mrf.mxu0
      %1021 = vmatprep.mubr.f32.mxu0 0.0
      %1022 = vmatmul.mubr.f32.gmra.mxu0 %v848
      %v1023 = vpop.f32.mrf.mxu0
      %v1024 = vadd.f32 %v732, %v1023
      %v1025 = vpop.f32.mrf.mxu0
      %1026 = vmatprep.mubr.f32.mxu0 0.0
      %1027 = vmatmul.mubr.f32.gmra.mxu0 %v850
      %v1028 = vpop.f32.mrf.mxu0
      %v1029 = vadd.f32 %v737, %v1028
      %v1030 = vpop.f32.mrf.mxu0
      %1031 = vmatprep.mubr.f32.mxu0 0.0
      %1032 = vmatmul.mubr.f32.gmra.mxu0 %v852
      %v1033 = vpop.f32.mrf.mxu0
      %v1034 = vadd.f32 %v742, %v1033
      %v1035 = vpop.f32.mrf.mxu0
      %1036 = vmatprep.mubr.f32.mxu0 0.0
      %1037 = vmatmul.mubr.f32.gmra.mxu0 %v854
      %v1038 = vpop.f32.mrf.mxu0
      %v1039 = vadd.f32 %v747, %v1038
      %v1040 = vpop.f32.mrf.mxu0
      %1041 = vmatprep.mubr.f32.mxu0 0.0
      %1042 = vmatmul.mubr.f32.gmra.mxu0 %v856
      %v1043 = vpop.f32.mrf.mxu0
      %v1044 = vadd.f32 %v752, %v1043
      %v1045 = vpop.f32.mrf.mxu0
      %1046 = vmatprep.mubr.f32.mxu0 0.0
      %1047 = vmatmul.mubr.f32.gmra.mxu0 %v858
      %v1048 = vpop.f32.mrf.mxu0
      %v1049 = vadd.f32 %v757, %v1048
      %v1050 = vpop.f32.mrf.mxu0
      %1051 = vmatprep.mubr.f32.mxu0 0.0
      %1052 = vmatmul.mubr.f32.gmra.mxu0 %v860
      %v1053 = vpop.f32.mrf.mxu0
      %v1054 = vadd.f32 %v762, %v1053
      %v1055 = vpop.f32.mrf.mxu0
      %1056 = vmatprep.mubr.f32.mxu0 0.0
      %1057 = vmatmul.mubr.f32.gmra.mxu0 %v862
      %v1058 = vpop.f32.mrf.mxu0
      %v1059 = vadd.f32 %v767, %v1058
      %v1060 = vpop.f32.mrf.mxu0
      %1061 = vmatprep.mubr.f32.mxu0 0.0
      %1062 = vmatmul.mubr.f32.gmra.mxu0 %v864
      %v1063 = vpop.f32.mrf.mxu0
      %v1064 = vadd.f32 %v772, %v1063
      %v1065 = vpop.f32.mrf.mxu0
      %1066 = vmatprep.mubr.f32.mxu0 0.0
      %1067 = vmatmul.mubr.f32.gmra.mxu0 %v866
      %v1068 = vpop.f32.mrf.mxu0
      %v1069 = vadd.f32 %v777, %v1068
      %v1070 = vpop.f32.mrf.mxu0
      %1071 = vmatprep.mubr.f32.mxu0 0.0
      %1072 = vmatmul.mubr.f32.gmra.mxu0 %v868
      %v1073 = vpop.f32.mrf.mxu0
      %v1074 = vadd.f32 %v782, %v1073
      %v1075 = vpop.f32.mrf.mxu0
      %1076 = vmatprep.mubr.f32.mxu0 0.0
      %1077 = vmatmul.mubr.f32.gmra.mxu0 %v870
      %v1078 = vpop.f32.mrf.mxu0
      %v1079 = vadd.f32 %v787, %v1078
      %v1080 = vpop.f32.mrf.mxu0
      %1081 = vmatprep.mubr.f32.mxu0 0.0
      %1082 = vmatmul.mubr.f32.gmra.mxu0 %v872
      %v1083 = vpop.f32.mrf.mxu0
      %v1084 = vadd.f32 %v792, %v1083
      %v1085 = vpop.f32.mrf.mxu0
      %1086 = vmatprep.mubr.f32.mxu0 0.0
      %1087 = vmatmul.mubr.f32.gmra.mxu0 %v874
      %v1088 = vpop.f32.mrf.mxu0
      %v1089 = vadd.f32 %v797, %v1088
      %v1090 = vpop.f32.mrf.mxu0
      %1091 = vmatprep.mubr.f32.mxu0 0.0
      %1092 = vmatmul.mubr.f32.gmra.mxu0 %v876
      %v1093 = vpop.f32.mrf.mxu0
      %v1094 = vadd.f32 %v802, %v1093
      %v1095 = vpop.f32.mrf.mxu0
      %1096 = vmatprep.mubr.f32.mxu0 0.0
      %1097 = vmatmul.mubr.f32.gmra.mxu0 %v878
      %v1098 = vpop.f32.mrf.mxu0
      %v1099 = vadd.f32 %v807, %v1098
      %v1100 = vpop.f32.mrf.mxu0
      %1101 = vmatprep.mubr.f32.mxu0 0.0
      %1102 = vmatmul.mubr.f32.gmra.mxu0 %v880
      %v1103 = vpop.f32.mrf.mxu0
      %v1104 = vadd.f32 %v812, %v1103
      %v1105 = vpop.f32.mrf.mxu0
      %1106 = vmatprep.mubr.f32.mxu0 0.0
      %1107 = vmatmul.mubr.f32.gmra.mxu0 %v882
      %v1108 = vpop.f32.mrf.mxu0
      %v1109 = vadd.f32 %v817, %v1108
      %v1110 = vpop.f32.mrf.mxu0
      %1111 = vdwg.mxu0
      %vm1112 = vcmask 1045504
      %v1113 = vrot.slane %v341, 2
      %v1114 = vrot.slane %v342, 2
      %v1115 = vsel %vm1112, %v1113, %v1114
      %v1116 = vrot.slane %v343, 2
      %v1117 = vsel %vm1112, %v1114, %v1116
      %v1118 = vrot.slane %v344, 2
      %v1119 = vrot.slane %v345, 2
      %v1120 = vsel %vm1112, %v1118, %v1119
      %v1121 = vrot.slane %v346, 2
      %v1122 = vsel %vm1112, %v1119, %v1121
      %v1123 = vrot.slane %v347, 2
      %v1124 = vrot.slane %v348, 2
      %v1125 = vsel %vm1112, %v1123, %v1124
      %v1126 = vrot.slane %v349, 2
      %v1127 = vsel %vm1112, %v1124, %v1126
      %v1128 = vrot.slane %v350, 2
      %v1129 = vrot.slane %v351, 2
      %v1130 = vsel %vm1112, %v1128, %v1129
      %v1131 = vrot.slane %v352, 2
      %v1132 = vsel %vm1112, %v1129, %v1131
      %v1133 = vrot.slane %v353, 2
      %v1134 = vrot.slane %v354, 2
      %v1135 = vsel %vm1112, %v1133, %v1134
      %v1136 = vrot.slane %v355, 2
      %v1137 = vsel %vm1112, %v1134, %v1136
      %v1138 = vrot.slane %v356, 2
      %v1139 = vrot.slane %v357, 2
      %v1140 = vsel %vm1112, %v1138, %v1139
      %v1141 = vrot.slane %v358, 2
      %v1142 = vsel %vm1112, %v1139, %v1141
      %v1143 = vrot.slane %v359, 2
      %v1144 = vrot.slane %v360, 2
      %v1145 = vsel %vm1112, %v1143, %v1144
      %v1146 = vrot.slane %v361, 2
      %v1147 = vsel %vm1112, %v1144, %v1146
      %v1148 = vrot.slane %v362, 2
      %v1149 = vrot.slane %v363, 2
      %v1150 = vsel %vm1112, %v1148, %v1149
      %v1151 = vrot.slane %v364, 2
      %v1152 = vsel %vm1112, %v1149, %v1151
      %v1153 = vrot.slane %v365, 2
      %v1154 = vrot.slane %v366, 2
      %v1155 = vsel %vm1112, %v1153, %v1154
      %v1156 = vrot.slane %v367, 2
      %v1157 = vsel %vm1112, %v1154, %v1156
      %v1158 = vrot.slane %v368, 2
      %v1159 = vrot.slane %v369, 2
      %v1160 = vsel %vm1112, %v1158, %v1159
      %v1161 = vrot.slane %v370, 2
      %v1162 = vsel %vm1112, %v1159, %v1161
      %v1163 = vrot.slane %v371, 2
      %v1164 = vrot.slane %v372, 2
      %v1165 = vsel %vm1112, %v1163, %v1164
      %v1166 = vrot.slane %v373, 2
      %v1167 = vsel %vm1112, %v1164, %v1166
      %v1168 = vrot.slane %v374, 2
      %v1169 = vrot.slane %v375, 2
      %v1170 = vsel %vm1112, %v1168, %v1169
      %v1171 = vrot.slane %v376, 2
      %v1172 = vsel %vm1112, %v1169, %v1171
      %v1173 = vrot.slane %v377, 2
      %v1174 = vrot.slane %v378, 2
      %v1175 = vsel %vm1112, %v1173, %v1174
      %v1176 = vrot.slane %v379, 2
      %v1177 = vsel %vm1112, %v1174, %v1176
      %v1178 = vrot.slane %v380, 2
      %v1179 = vrot.slane %v381, 2
      %v1180 = vsel %vm1112, %v1178, %v1179
      %v1181 = vrot.slane %v382, 2
      %v1182 = vsel %vm1112, %v1179, %v1181
      %v1183 = vrot.slane %v383, 2
      %v1184 = vrot.slane %v384, 2
      %v1185 = vsel %vm1112, %v1183, %v1184
      %v1186 = vrot.slane %v385, 2
      %v1187 = vsel %vm1112, %v1184, %v1186
      %v1188 = vrot.slane %v386, 2
      %v1189 = vrot.slane %v387, 2
      %v1190 = vsel %vm1112, %v1188, %v1189
      %v1191 = vrot.slane %v388, 2
      %v1192 = vsel %vm1112, %v1189, %v1191
      %s1193 = scalar_lea.vmem %s1, 8
      %v1194 = vld [vmem:[%s1193] sm:$0xf]
      %v1195 = vsel %vm262, %v1115, 0
      %v1197 = vsel %vm262, %v1117, 0
      %v1199 = vsel %vm262, %v1120, 0
      %v1201 = vsel %vm262, %v1122, 0
      %v1203 = vsel %vm262, %v1125, 0
      %v1205 = vsel %vm262, %v1127, 0
      %v1207 = vsel %vm262, %v1130, 0
      %v1209 = vsel %vm262, %v1132, 0
      %v1211 = vsel %vm262, %v1135, 0
      %v1213 = vsel %vm262, %v1137, 0
      %v1215 = vsel %vm262, %v1140, 0
      %v1217 = vsel %vm262, %v1142, 0
      %v1219 = vsel %vm262, %v1145, 0
      %v1221 = vsel %vm262, %v1147, 0
      %v1223 = vsel %vm262, %v1150, 0
      %v1225 = vsel %vm262, %v1152, 0
      %v1227 = vsel %vm262, %v1155, 0
      %v1229 = vsel %vm262, %v1157, 0
      %v1231 = vsel %vm262, %v1160, 0
      %v1233 = vsel %vm262, %v1162, 0
      %v1235 = vsel %vm262, %v1165, 0
      %v1237 = vsel %vm262, %v1167, 0
      %v1239 = vsel %vm262, %v1170, 0
      %v1241 = vsel %vm262, %v1172, 0
      %v1243 = vsel %vm262, %v1175, 0
      %v1245 = vsel %vm262, %v1177, 0
      %v1247 = vsel %vm262, %v1180, 0
      %v1249 = vsel %vm262, %v1182, 0
      %v1251 = vsel %vm262, %v1185, 0
      %v1253 = vsel %vm262, %v1187, 0
      %v1255 = vsel %vm262, %v1190, 0
      %v1257 = vsel %vm262, %v1192, 0
      %v1260 = vsel %vm591, %v1194, 0
      %1262 = vmatprep.subr.mxu0 0.0
      %1263 = vmatpush1.msra.mxu0 0.0
      %1264 = vmatprep.subr.mxu0 0.0
      %1265 = vmatpush1.msra.mxu0 0.0
      %1266 = vmatprep.subr.mxu0 0.0
      %1267 = vmatpush1.msra.mxu0 0.0
      %1268 = vmatprep.subr.mxu0 0.0
      %1269 = vmatpush1.msra.mxu0 0.0
      %1270 = vmatprep.subr.mxu0 0.0
      %1271 = vmatpush1.msra.mxu0 0.0
      %1272 = vmatprep.subr.mxu0 0.0
      %1273 = vmatpush1.msra.mxu0 0.0
      %1274 = vmatprep.subr.mxu0 0.0
      %1275 = vmatpush1.msra.mxu0 0.0
      %1276 = vmatprep.subr.mxu0 0.0
      %1277 = vmatpush1.msra.mxu0 0.0
      %1278 = vmatprep.subr.mxu0 0.0
      %1279 = vmatpush1.msra.mxu0 0.0
      %1280 = vmatprep.subr.mxu0 0.0
      %1281 = vmatpush1.msra.mxu0 0.0
      %1282 = vmatprep.subr.mxu0 0.0
      %1283 = vmatpush1.msra.mxu0 0.0
      %1284 = vmatprep.subr.mxu0 0.0
      %1285 = vmatpush1.msra.mxu0 0.0
      %1286 = vmatprep.subr.mxu0 0.0
      %1287 = vmatpush1.msra.mxu0 0.0
      %1288 = vmatprep.subr.mxu0 0.0
      %1289 = vmatpush1.msra.mxu0 0.0
      %1290 = vmatprep.subr.mxu0 0.0
      %1291 = vmatpush1.msra.mxu0 0.0
      %1292 = vmatprep.subr.mxu0 0.0
      %1293 = vmatpush1.msra.mxu0 %v1260
      %1294 = vmatprep.subr.mxu0 0.0
      %1295 = vmatpush2.msra.mxu0 0.0
      %1296 = vmatprep.subr.mxu0 0.0
      %1297 = vmatpush2.msra.mxu0 0.0
      %1298 = vmatprep.subr.mxu0 0.0
      %1299 = vmatpush2.msra.mxu0 0.0
      %1300 = vmatprep.subr.mxu0 0.0
      %1301 = vmatpush2.msra.mxu0 0.0
      %1302 = vmatprep.subr.mxu0 0.0
      %1303 = vmatpush2.msra.mxu0 0.0
      %1304 = vmatprep.subr.mxu0 0.0
      %1305 = vmatpush2.msra.mxu0 0.0
      %1306 = vmatprep.subr.mxu0 0.0
      %1307 = vmatpush2.msra.mxu0 0.0
      %1308 = vmatprep.subr.mxu0 0.0
      %1309 = vmatpush2.msra.mxu0 0.0
      %1310 = vmatprep.subr.mxu0 0.0
      %1311 = vmatpush2.msra.mxu0 0.0
      %1312 = vmatprep.subr.mxu0 0.0
      %1313 = vmatpush2.msra.mxu0 0.0
      %1314 = vmatprep.subr.mxu0 0.0
      %1315 = vmatpush2.msra.mxu0 0.0
      %1316 = vmatprep.subr.mxu0 0.0
      %1317 = vmatpush2.msra.mxu0 0.0
      %1318 = vmatprep.subr.mxu0 0.0
      %1319 = vmatpush2.msra.mxu0 0.0
      %1320 = vmatprep.subr.mxu0 0.0
      %1321 = vmatpush2.msra.mxu0 0.0
      %1322 = vmatprep.subr.mxu0 0.0
      %1323 = vmatpush2.msra.mxu0 0.0
      %1324 = vmatprep.subr.mxu0 0.0
      %1325 = vmatpush2.msra.mxu0 0.0
      %1326 = vmatprep.mubr.f32.mxu0 0.0
      %1327 = vmatmul.mubr.f32.gmra.mxu0 %v1195
      %v1328 = vpop.f32.mrf.mxu0
      %v1329 = vadd.f32 0.0, %v1328
      %v1330 = vpop.f32.mrf.mxu0
      %1331 = vmatprep.mubr.f32.mxu0 0.0
      %1332 = vmatmul.mubr.f32.gmra.mxu0 %v1197
      %v1333 = vpop.f32.mrf.mxu0
      %v1334 = vadd.f32 0.0, %v1333
      %v1335 = vpop.f32.mrf.mxu0
      %1336 = vmatprep.mubr.f32.mxu0 0.0
      %1337 = vmatmul.mubr.f32.gmra.mxu0 %v1199
      %v1338 = vpop.f32.mrf.mxu0
      %v1339 = vadd.f32 0.0, %v1338
      %v1340 = vpop.f32.mrf.mxu0
      %1341 = vmatprep.mubr.f32.mxu0 0.0
      %1342 = vmatmul.mubr.f32.gmra.mxu0 %v1201
      %v1343 = vpop.f32.mrf.mxu0
      %v1344 = vadd.f32 0.0, %v1343
      %v1345 = vpop.f32.mrf.mxu0
      %1346 = vmatprep.mubr.f32.mxu0 0.0
      %1347 = vmatmul.mubr.f32.gmra.mxu0 %v1203
      %v1348 = vpop.f32.mrf.mxu0
      %v1349 = vadd.f32 0.0, %v1348
      %v1350 = vpop.f32.mrf.mxu0
      %1351 = vmatprep.mubr.f32.mxu0 0.0
      %1352 = vmatmul.mubr.f32.gmra.mxu0 %v1205
      %v1353 = vpop.f32.mrf.mxu0
      %v1354 = vadd.f32 0.0, %v1353
      %v1355 = vpop.f32.mrf.mxu0
      %1356 = vmatprep.mubr.f32.mxu0 0.0
      %1357 = vmatmul.mubr.f32.gmra.mxu0 %v1207
      %v1358 = vpop.f32.mrf.mxu0
      %v1359 = vadd.f32 0.0, %v1358
      %v1360 = vpop.f32.mrf.mxu0
      %1361 = vmatprep.mubr.f32.mxu0 0.0
      %1362 = vmatmul.mubr.f32.gmra.mxu0 %v1209
      %v1363 = vpop.f32.mrf.mxu0
      %v1364 = vadd.f32 0.0, %v1363
      %v1365 = vpop.f32.mrf.mxu0
      %1366 = vmatprep.mubr.f32.mxu0 0.0
      %1367 = vmatmul.mubr.f32.gmra.mxu0 %v1211
      %v1368 = vpop.f32.mrf.mxu0
      %v1369 = vadd.f32 0.0, %v1368
      %v1370 = vpop.f32.mrf.mxu0
      %1371 = vmatprep.mubr.f32.mxu0 0.0
      %1372 = vmatmul.mubr.f32.gmra.mxu0 %v1213
      %v1373 = vpop.f32.mrf.mxu0
      %v1374 = vadd.f32 0.0, %v1373
      %v1375 = vpop.f32.mrf.mxu0
      %1376 = vmatprep.mubr.f32.mxu0 0.0
      %1377 = vmatmul.mubr.f32.gmra.mxu0 %v1215
      %v1378 = vpop.f32.mrf.mxu0
      %v1379 = vadd.f32 0.0, %v1378
      %v1380 = vpop.f32.mrf.mxu0
      %1381 = vmatprep.mubr.f32.mxu0 0.0
      %1382 = vmatmul.mubr.f32.gmra.mxu0 %v1217
      %v1383 = vpop.f32.mrf.mxu0
      %v1384 = vadd.f32 0.0, %v1383
      %v1385 = vpop.f32.mrf.mxu0
      %1386 = vmatprep.mubr.f32.mxu0 0.0
      %1387 = vmatmul.mubr.f32.gmra.mxu0 %v1219
      %v1388 = vpop.f32.mrf.mxu0
      %v1389 = vadd.f32 0.0, %v1388
      %v1390 = vpop.f32.mrf.mxu0
      %1391 = vmatprep.mubr.f32.mxu0 0.0
      %1392 = vmatmul.mubr.f32.gmra.mxu0 %v1221
      %v1393 = vpop.f32.mrf.mxu0
      %v1394 = vadd.f32 0.0, %v1393
      %v1395 = vpop.f32.mrf.mxu0
      %1396 = vmatprep.mubr.f32.mxu0 0.0
      %1397 = vmatmul.mubr.f32.gmra.mxu0 %v1223
      %v1398 = vpop.f32.mrf.mxu0
      %v1399 = vadd.f32 0.0, %v1398
      %v1400 = vpop.f32.mrf.mxu0
      %1401 = vmatprep.mubr.f32.mxu0 0.0
      %1402 = vmatmul.mubr.f32.gmra.mxu0 %v1225
      %v1403 = vpop.f32.mrf.mxu0
      %v1404 = vadd.f32 0.0, %v1403
      %v1405 = vpop.f32.mrf.mxu0
      %1406 = vmatprep.mubr.f32.mxu0 0.0
      %1407 = vmatmul.mubr.f32.gmra.mxu0 %v1227
      %v1408 = vpop.f32.mrf.mxu0
      %v1409 = vadd.f32 0.0, %v1408
      %v1410 = vpop.f32.mrf.mxu0
      %1411 = vmatprep.mubr.f32.mxu0 0.0
      %1412 = vmatmul.mubr.f32.gmra.mxu0 %v1229
      %v1413 = vpop.f32.mrf.mxu0
      %v1414 = vadd.f32 0.0, %v1413
      %v1415 = vpop.f32.mrf.mxu0
      %1416 = vmatprep.mubr.f32.mxu0 0.0
      %1417 = vmatmul.mubr.f32.gmra.mxu0 %v1231
      %v1418 = vpop.f32.mrf.mxu0
      %v1419 = vadd.f32 0.0, %v1418
      %v1420 = vpop.f32.mrf.mxu0
      %1421 = vmatprep.mubr.f32.mxu0 0.0
      %1422 = vmatmul.mubr.f32.gmra.mxu0 %v1233
      %v1423 = vpop.f32.mrf.mxu0
      %v1424 = vadd.f32 0.0, %v1423
      %v1425 = vpop.f32.mrf.mxu0
      %1426 = vmatprep.mubr.f32.mxu0 0.0
      %1427 = vmatmul.mubr.f32.gmra.mxu0 %v1235
      %v1428 = vpop.f32.mrf.mxu0
      %v1429 = vadd.f32 0.0, %v1428
      %v1430 = vpop.f32.mrf.mxu0
      %1431 = vmatprep.mubr.f32.mxu0 0.0
      %1432 = vmatmul.mubr.f32.gmra.mxu0 %v1237
      %v1433 = vpop.f32.mrf.mxu0
      %v1434 = vadd.f32 0.0, %v1433
      %v1435 = vpop.f32.mrf.mxu0
      %1436 = vmatprep.mubr.f32.mxu0 0.0
      %1437 = vmatmul.mubr.f32.gmra.mxu0 %v1239
      %v1438 = vpop.f32.mrf.mxu0
      %v1439 = vadd.f32 0.0, %v1438
      %v1440 = vpop.f32.mrf.mxu0
      %1441 = vmatprep.mubr.f32.mxu0 0.0
      %1442 = vmatmul.mubr.f32.gmra.mxu0 %v1241
      %v1443 = vpop.f32.mrf.mxu0
      %v1444 = vadd.f32 0.0, %v1443
      %v1445 = vpop.f32.mrf.mxu0
      %1446 = vmatprep.mubr.f32.mxu0 0.0
      %1447 = vmatmul.mubr.f32.gmra.mxu0 %v1243
      %v1448 = vpop.f32.mrf.mxu0
      %v1449 = vadd.f32 0.0, %v1448
      %v1450 = vpop.f32.mrf.mxu0
      %1451 = vmatprep.mubr.f32.mxu0 0.0
      %1452 = vmatmul.mubr.f32.gmra.mxu0 %v1245
      %v1453 = vpop.f32.mrf.mxu0
      %v1454 = vadd.f32 0.0, %v1453
      %v1455 = vpop.f32.mrf.mxu0
      %1456 = vmatprep.mubr.f32.mxu0 0.0
      %1457 = vmatmul.mubr.f32.gmra.mxu0 %v1247
      %v1458 = vpop.f32.mrf.mxu0
      %v1459 = vadd.f32 0.0, %v1458
      %v1460 = vpop.f32.mrf.mxu0
      %1461 = vmatprep.mubr.f32.mxu0 0.0
      %1462 = vmatmul.mubr.f32.gmra.mxu0 %v1249
      %v1463 = vpop.f32.mrf.mxu0
      %v1464 = vadd.f32 0.0, %v1463
      %v1465 = vpop.f32.mrf.mxu0
      %1466 = vmatprep.mubr.f32.mxu0 0.0
      %1467 = vmatmul.mubr.f32.gmra.mxu0 %v1251
      %v1468 = vpop.f32.mrf.mxu0
      %v1469 = vadd.f32 0.0, %v1468
      %v1470 = vpop.f32.mrf.mxu0
      %1471 = vmatprep.mubr.f32.mxu0 0.0
      %1472 = vmatmul.mubr.f32.gmra.mxu0 %v1253
      %v1473 = vpop.f32.mrf.mxu0
      %v1474 = vadd.f32 0.0, %v1473
      %v1475 = vpop.f32.mrf.mxu0
      %1476 = vmatprep.mubr.f32.mxu0 0.0
      %1477 = vmatmul.mubr.f32.gmra.mxu0 %v1255
      %v1478 = vpop.f32.mrf.mxu0
      %v1479 = vadd.f32 0.0, %v1478
      %v1480 = vpop.f32.mrf.mxu0
      %1481 = vmatprep.mubr.f32.mxu0 0.0
      %1482 = vmatmul.mubr.f32.gmra.mxu0 %v1257
      %v1483 = vpop.f32.mrf.mxu0
      %v1484 = vadd.f32 0.0, %v1483
      %v1485 = vpop.f32.mrf.mxu0
      %1486 = vdwg.mxu0
      %v1487 = vadd.f32 %v954, %v1329
      %v1488 = vadd.f32 %v959, %v1334
      %v1489 = vadd.f32 %v964, %v1339
      %v1490 = vadd.f32 %v969, %v1344
      %v1491 = vadd.f32 %v974, %v1349
      %v1492 = vadd.f32 %v979, %v1354
      %v1493 = vadd.f32 %v984, %v1359
      %v1494 = vadd.f32 %v989, %v1364
      %v1495 = vadd.f32 %v994, %v1369
      %v1496 = vadd.f32 %v999, %v1374
      %v1497 = vadd.f32 %v1004, %v1379
      %v1498 = vadd.f32 %v1009, %v1384
      %v1499 = vadd.f32 %v1014, %v1389
      %v1500 = vadd.f32 %v1019, %v1394
      %v1501 = vadd.f32 %v1024, %v1399
      %v1502 = vadd.f32 %v1029, %v1404
      %v1503 = vadd.f32 %v1034, %v1409
      %v1504 = vadd.f32 %v1039, %v1414
      %v1505 = vadd.f32 %v1044, %v1419
      %v1506 = vadd.f32 %v1049, %v1424
      %v1507 = vadd.f32 %v1054, %v1429
      %v1508 = vadd.f32 %v1059, %v1434
      %v1509 = vadd.f32 %v1064, %v1439
      %v1510 = vadd.f32 %v1069, %v1444
      %v1511 = vadd.f32 %v1074, %v1449
      %v1512 = vadd.f32 %v1079, %v1454
      %v1513 = vadd.f32 %v1084, %v1459
      %v1514 = vadd.f32 %v1089, %v1464
      %v1515 = vadd.f32 %v1094, %v1469
      %v1516 = vadd.f32 %v1099, %v1474
      %v1517 = vadd.f32 %v1104, %v1479
      %v1518 = vadd.f32 %v1109, %v1484
      %s1519 = scalar_lea.vmem %s1, 12
      %v1520 = vld [vmem:[%s1519] sm:$0xf]
      %v1522 = vsel %vm262, %v389, 0
      %v1525 = vsel %vm262, %v390, 0
      %v1528 = vsel %vm591, %v1520, 0
      %1530 = vmatprep.subr.mxu0 0.0
      %1531 = vmatpush1.msra.mxu0 0.0
      %1532 = vmatprep.subr.mxu0 0.0
      %1533 = vmatpush1.msra.mxu0 0.0
      %1534 = vmatprep.subr.mxu0 0.0
      %1535 = vmatpush1.msra.mxu0 0.0
      %1536 = vmatprep.subr.mxu0 0.0
      %1537 = vmatpush1.msra.mxu0 0.0
      %1538 = vmatprep.subr.mxu0 0.0
      %1539 = vmatpush1.msra.mxu0 0.0
      %1540 = vmatprep.subr.mxu0 0.0
      %1541 = vmatpush1.msra.mxu0 0.0
      %1542 = vmatprep.subr.mxu0 0.0
      %1543 = vmatpush1.msra.mxu0 0.0
      %1544 = vmatprep.subr.mxu0 0.0
      %1545 = vmatpush1.msra.mxu0 0.0
      %1546 = vmatprep.subr.mxu0 0.0
      %1547 = vmatpush1.msra.mxu0 0.0
      %1548 = vmatprep.subr.mxu0 0.0
      %1549 = vmatpush1.msra.mxu0 0.0
      %1550 = vmatprep.subr.mxu0 0.0
      %1551 = vmatpush1.msra.mxu0 0.0
      %1552 = vmatprep.subr.mxu0 0.0
      %1553 = vmatpush1.msra.mxu0 0.0
      %1554 = vmatprep.subr.mxu0 0.0
      %1555 = vmatpush1.msra.mxu0 0.0
      %1556 = vmatprep.subr.mxu0 0.0
      %1557 = vmatpush1.msra.mxu0 0.0
      %1558 = vmatprep.subr.mxu0 0.0
      %1559 = vmatpush1.msra.mxu0 0.0
      %1560 = vmatprep.subr.mxu0 0.0
      %1561 = vmatpush1.msra.mxu0 %v1528
      %1562 = vmatprep.subr.mxu0 0.0
      %1563 = vmatpush2.msra.mxu0 0.0
      %1564 = vmatprep.subr.mxu0 0.0
      %1565 = vmatpush2.msra.mxu0 0.0
      %1566 = vmatprep.subr.mxu0 0.0
      %1567 = vmatpush2.msra.mxu0 0.0
      %1568 = vmatprep.subr.mxu0 0.0
      %1569 = vmatpush2.msra.mxu0 0.0
      %1570 = vmatprep.subr.mxu0 0.0
      %1571 = vmatpush2.msra.mxu0 0.0
      %1572 = vmatprep.subr.mxu0 0.0
      %1573 = vmatpush2.msra.mxu0 0.0
      %1574 = vmatprep.subr.mxu0 0.0
      %1575 = vmatpush2.msra.mxu0 0.0
      %1576 = vmatprep.subr.mxu0 0.0
      %1577 = vmatpush2.msra.mxu0 0.0
      %1578 = vmatprep.subr.mxu0 0.0
      %1579 = vmatpush2.msra.mxu0 0.0
      %1580 = vmatprep.subr.mxu0 0.0
      %1581 = vmatpush2.msra.mxu0 0.0
      %1582 = vmatprep.subr.mxu0 0.0
      %1583 = vmatpush2.msra.mxu0 0.0
      %1584 = vmatprep.subr.mxu0 0.0
      %1585 = vmatpush2.msra.mxu0 0.0
      %1586 = vmatprep.subr.mxu0 0.0
      %1587 = vmatpush2.msra.mxu0 0.0
      %1588 = vmatprep.subr.mxu0 0.0
      %1589 = vmatpush2.msra.mxu0 0.0
      %1590 = vmatprep.subr.mxu0 0.0
      %1591 = vmatpush2.msra.mxu0 0.0
      %1592 = vmatprep.subr.mxu0 0.0
      %1593 = vmatpush2.msra.mxu0 0.0
      %1594 = vmatprep.mubr.f32.mxu0 0.0
      %1595 = vmatmul.mubr.f32.gmra.mxu0 %v824
      %v1596 = vpop.f32.mrf.mxu0
      %v1597 = vadd.f32 0.0, %v1596
      %v1598 = vpop.f32.mrf.mxu0
      %1599 = vmatprep.mubr.f32.mxu0 0.0
      %1600 = vmatmul.mubr.f32.gmra.mxu0 %v826
      %v1601 = vpop.f32.mrf.mxu0
      %v1602 = vadd.f32 0.0, %v1601
      %v1603 = vpop.f32.mrf.mxu0
      %1604 = vmatprep.mubr.f32.mxu0 0.0
      %1605 = vmatmul.mubr.f32.gmra.mxu0 %v828
      %v1606 = vpop.f32.mrf.mxu0
      %v1607 = vadd.f32 0.0, %v1606
      %v1608 = vpop.f32.mrf.mxu0
      %1609 = vmatprep.mubr.f32.mxu0 0.0
      %1610 = vmatmul.mubr.f32.gmra.mxu0 %v830
      %v1611 = vpop.f32.mrf.mxu0
      %v1612 = vadd.f32 0.0, %v1611
      %v1613 = vpop.f32.mrf.mxu0
      %1614 = vmatprep.mubr.f32.mxu0 0.0
      %1615 = vmatmul.mubr.f32.gmra.mxu0 %v832
      %v1616 = vpop.f32.mrf.mxu0
      %v1617 = vadd.f32 0.0, %v1616
      %v1618 = vpop.f32.mrf.mxu0
      %1619 = vmatprep.mubr.f32.mxu0 0.0
      %1620 = vmatmul.mubr.f32.gmra.mxu0 %v834
      %v1621 = vpop.f32.mrf.mxu0
      %v1622 = vadd.f32 0.0, %v1621
      %v1623 = vpop.f32.mrf.mxu0
      %1624 = vmatprep.mubr.f32.mxu0 0.0
      %1625 = vmatmul.mubr.f32.gmra.mxu0 %v836
      %v1626 = vpop.f32.mrf.mxu0
      %v1627 = vadd.f32 0.0, %v1626
      %v1628 = vpop.f32.mrf.mxu0
      %1629 = vmatprep.mubr.f32.mxu0 0.0
      %1630 = vmatmul.mubr.f32.gmra.mxu0 %v838
      %v1631 = vpop.f32.mrf.mxu0
      %v1632 = vadd.f32 0.0, %v1631
      %v1633 = vpop.f32.mrf.mxu0
      %1634 = vmatprep.mubr.f32.mxu0 0.0
      %1635 = vmatmul.mubr.f32.gmra.mxu0 %v840
      %v1636 = vpop.f32.mrf.mxu0
      %v1637 = vadd.f32 0.0, %v1636
      %v1638 = vpop.f32.mrf.mxu0
      %1639 = vmatprep.mubr.f32.mxu0 0.0
      %1640 = vmatmul.mubr.f32.gmra.mxu0 %v842
      %v1641 = vpop.f32.mrf.mxu0
      %v1642 = vadd.f32 0.0, %v1641
      %v1643 = vpop.f32.mrf.mxu0
      %1644 = vmatprep.mubr.f32.mxu0 0.0
      %1645 = vmatmul.mubr.f32.gmra.mxu0 %v844
      %v1646 = vpop.f32.mrf.mxu0
      %v1647 = vadd.f32 0.0, %v1646
      %v1648 = vpop.f32.mrf.mxu0
      %1649 = vmatprep.mubr.f32.mxu0 0.0
      %1650 = vmatmul.mubr.f32.gmra.mxu0 %v846
      %v1651 = vpop.f32.mrf.mxu0
      %v1652 = vadd.f32 0.0, %v1651
      %v1653 = vpop.f32.mrf.mxu0
      %1654 = vmatprep.mubr.f32.mxu0 0.0
      %1655 = vmatmul.mubr.f32.gmra.mxu0 %v848
      %v1656 = vpop.f32.mrf.mxu0
      %v1657 = vadd.f32 0.0, %v1656
      %v1658 = vpop.f32.mrf.mxu0
      %1659 = vmatprep.mubr.f32.mxu0 0.0
      %1660 = vmatmul.mubr.f32.gmra.mxu0 %v850
      %v1661 = vpop.f32.mrf.mxu0
      %v1662 = vadd.f32 0.0, %v1661
      %v1663 = vpop.f32.mrf.mxu0
      %1664 = vmatprep.mubr.f32.mxu0 0.0
      %1665 = vmatmul.mubr.f32.gmra.mxu0 %v852
      %v1666 = vpop.f32.mrf.mxu0
      %v1667 = vadd.f32 0.0, %v1666
      %v1668 = vpop.f32.mrf.mxu0
      %1669 = vmatprep.mubr.f32.mxu0 0.0
      %1670 = vmatmul.mubr.f32.gmra.mxu0 %v854
      %v1671 = vpop.f32.mrf.mxu0
      %v1672 = vadd.f32 0.0, %v1671
      %v1673 = vpop.f32.mrf.mxu0
      %1674 = vmatprep.mubr.f32.mxu0 0.0
      %1675 = vmatmul.mubr.f32.gmra.mxu0 %v856
      %v1676 = vpop.f32.mrf.mxu0
      %v1677 = vadd.f32 0.0, %v1676
      %v1678 = vpop.f32.mrf.mxu0
      %1679 = vmatprep.mubr.f32.mxu0 0.0
      %1680 = vmatmul.mubr.f32.gmra.mxu0 %v858
      %v1681 = vpop.f32.mrf.mxu0
      %v1682 = vadd.f32 0.0, %v1681
      %v1683 = vpop.f32.mrf.mxu0
      %1684 = vmatprep.mubr.f32.mxu0 0.0
      %1685 = vmatmul.mubr.f32.gmra.mxu0 %v860
      %v1686 = vpop.f32.mrf.mxu0
      %v1687 = vadd.f32 0.0, %v1686
      %v1688 = vpop.f32.mrf.mxu0
      %1689 = vmatprep.mubr.f32.mxu0 0.0
      %1690 = vmatmul.mubr.f32.gmra.mxu0 %v862
      %v1691 = vpop.f32.mrf.mxu0
      %v1692 = vadd.f32 0.0, %v1691
      %v1693 = vpop.f32.mrf.mxu0
      %1694 = vmatprep.mubr.f32.mxu0 0.0
      %1695 = vmatmul.mubr.f32.gmra.mxu0 %v864
      %v1696 = vpop.f32.mrf.mxu0
      %v1697 = vadd.f32 0.0, %v1696
      %v1698 = vpop.f32.mrf.mxu0
      %1699 = vmatprep.mubr.f32.mxu0 0.0
      %1700 = vmatmul.mubr.f32.gmra.mxu0 %v866
      %v1701 = vpop.f32.mrf.mxu0
      %v1702 = vadd.f32 0.0, %v1701
      %v1703 = vpop.f32.mrf.mxu0
      %1704 = vmatprep.mubr.f32.mxu0 0.0
      %1705 = vmatmul.mubr.f32.gmra.mxu0 %v868
      %v1706 = vpop.f32.mrf.mxu0
      %v1707 = vadd.f32 0.0, %v1706
      %v1708 = vpop.f32.mrf.mxu0
      %1709 = vmatprep.mubr.f32.mxu0 0.0
      %1710 = vmatmul.mubr.f32.gmra.mxu0 %v870
      %v1711 = vpop.f32.mrf.mxu0
      %v1712 = vadd.f32 0.0, %v1711
      %v1713 = vpop.f32.mrf.mxu0
      %1714 = vmatprep.mubr.f32.mxu0 0.0
      %1715 = vmatmul.mubr.f32.gmra.mxu0 %v872
      %v1716 = vpop.f32.mrf.mxu0
      %v1717 = vadd.f32 0.0, %v1716
      %v1718 = vpop.f32.mrf.mxu0
      %1719 = vmatprep.mubr.f32.mxu0 0.0
      %1720 = vmatmul.mubr.f32.gmra.mxu0 %v874
      %v1721 = vpop.f32.mrf.mxu0
      %v1722 = vadd.f32 0.0, %v1721
      %v1723 = vpop.f32.mrf.mxu0
      %1724 = vmatprep.mubr.f32.mxu0 0.0
      %1725 = vmatmul.mubr.f32.gmra.mxu0 %v876
      %v1726 = vpop.f32.mrf.mxu0
      %v1727 = vadd.f32 0.0, %v1726
      %v1728 = vpop.f32.mrf.mxu0
      %1729 = vmatprep.mubr.f32.mxu0 0.0
      %1730 = vmatmul.mubr.f32.gmra.mxu0 %v878
      %v1731 = vpop.f32.mrf.mxu0
      %v1732 = vadd.f32 0.0, %v1731
      %v1733 = vpop.f32.mrf.mxu0
      %1734 = vmatprep.mubr.f32.mxu0 0.0
      %1735 = vmatmul.mubr.f32.gmra.mxu0 %v880
      %v1736 = vpop.f32.mrf.mxu0
      %v1737 = vadd.f32 0.0, %v1736
      %v1738 = vpop.f32.mrf.mxu0
      %1739 = vmatprep.mubr.f32.mxu0 0.0
      %1740 = vmatmul.mubr.f32.gmra.mxu0 %v882
      %v1741 = vpop.f32.mrf.mxu0
      %v1742 = vadd.f32 0.0, %v1741
      %v1743 = vpop.f32.mrf.mxu0
      %1744 = vmatprep.mubr.f32.mxu0 0.0
      %1745 = vmatmul.mubr.f32.gmra.mxu0 %v1522
      %v1746 = vpop.f32.mrf.mxu0
      %v1747 = vadd.f32 0.0, %v1746
      %v1748 = vpop.f32.mrf.mxu0
      %1749 = vmatprep.mubr.f32.mxu0 0.0
      %1750 = vmatmul.mubr.f32.gmra.mxu0 %v1525
      %v1751 = vpop.f32.mrf.mxu0
      %v1752 = vadd.f32 0.0, %v1751
      %v1753 = vpop.f32.mrf.mxu0
      %1754 = vdwg.mxu0
      %v1755 = vadd.f32 %v1487, %v1597
      %v1756 = vadd.f32 %v1488, %v1602
      %v1757 = vadd.f32 %v1489, %v1607
      %v1758 = vadd.f32 %v1490, %v1612
      %v1759 = vadd.f32 %v1491, %v1617
      %v1760 = vadd.f32 %v1492, %v1622
      %v1761 = vadd.f32 %v1493, %v1627
      %v1762 = vadd.f32 %v1494, %v1632
      %v1763 = vadd.f32 %v1495, %v1637
      %v1764 = vadd.f32 %v1496, %v1642
      %v1765 = vadd.f32 %v1497, %v1647
      %v1766 = vadd.f32 %v1498, %v1652
      %v1767 = vadd.f32 %v1499, %v1657
      %v1768 = vadd.f32 %v1500, %v1662
      %v1769 = vadd.f32 %v1501, %v1667
      %v1770 = vadd.f32 %v1502, %v1672
      %v1771 = vadd.f32 %v1503, %v1677
      %v1772 = vadd.f32 %v1504, %v1682
      %v1773 = vadd.f32 %v1505, %v1687
      %v1774 = vadd.f32 %v1506, %v1692
      %v1775 = vadd.f32 %v1507, %v1697
      %v1776 = vadd.f32 %v1508, %v1702
      %v1777 = vadd.f32 %v1509, %v1707
      %v1778 = vadd.f32 %v1510, %v1712
      %v1779 = vadd.f32 %v1511, %v1717
      %v1780 = vadd.f32 %v1512, %v1722
      %v1781 = vadd.f32 %v1513, %v1727
      %v1782 = vadd.f32 %v1514, %v1732
      %v1783 = vadd.f32 %v1515, %v1737
      %v1784 = vadd.f32 %v1516, %v1742
      %v1785 = vadd.f32 %v1517, %v1747
      %v1786 = vadd.f32 %v1518, %v1752
      %v1788 = vrot.slane %v389, 1
      %v1789 = vrot.slane %v390, 1
      %v1790 = vsel %vm444, %v1788, %v1789
      %v1791 = vrot.slane %v391, 1
      %v1792 = vsel %vm444, %v1789, %v1791
      %s1793 = scalar_lea.vmem %s1, 16
      %v1794 = vld [vmem:[%s1793] sm:$0xf]
      %v1795 = vsel %vm262, %v1790, 0
      %v1797 = vsel %vm262, %v1792, 0
      %v1800 = vsel %vm591, %v1794, 0
      %1802 = vmatprep.subr.mxu0 0.0
      %1803 = vmatpush1.msra.mxu0 0.0
      %1804 = vmatprep.subr.mxu0 0.0
      %1805 = vmatpush1.msra.mxu0 0.0
      %1806 = vmatprep.subr.mxu0 0.0
      %1807 = vmatpush1.msra.mxu0 0.0
      %1808 = vmatprep.subr.mxu0 0.0
      %1809 = vmatpush1.msra.mxu0 0.0
      %1810 = vmatprep.subr.mxu0 0.0
      %1811 = vmatpush1.msra.mxu0 0.0
      %1812 = vmatprep.subr.mxu0 0.0
      %1813 = vmatpush1.msra.mxu0 0.0
      %1814 = vmatprep.subr.mxu0 0.0
      %1815 = vmatpush1.msra.mxu0 0.0
      %1816 = vmatprep.subr.mxu0 0.0
      %1817 = vmatpush1.msra.mxu0 0.0
      %1818 = vmatprep.subr.mxu0 0.0
      %1819 = vmatpush1.msra.mxu0 0.0
      %1820 = vmatprep.subr.mxu0 0.0
      %1821 = vmatpush1.msra.mxu0 0.0
      %1822 = vmatprep.subr.mxu0 0.0
      %1823 = vmatpush1.msra.mxu0 0.0
      %1824 = vmatprep.subr.mxu0 0.0
      %1825 = vmatpush1.msra.mxu0 0.0
      %1826 = vmatprep.subr.mxu0 0.0
      %1827 = vmatpush1.msra.mxu0 0.0
      %1828 = vmatprep.subr.mxu0 0.0
      %1829 = vmatpush1.msra.mxu0 0.0
      %1830 = vmatprep.subr.mxu0 0.0
      %1831 = vmatpush1.msra.mxu0 0.0
      %1832 = vmatprep.subr.mxu0 0.0
      %1833 = vmatpush1.msra.mxu0 %v1800
      %1834 = vmatprep.subr.mxu0 0.0
      %1835 = vmatpush2.msra.mxu0 0.0
      %1836 = vmatprep.subr.mxu0 0.0
      %1837 = vmatpush2.msra.mxu0 0.0
      %1838 = vmatprep.subr.mxu0 0.0
      %1839 = vmatpush2.msra.mxu0 0.0
      %1840 = vmatprep.subr.mxu0 0.0
      %1841 = vmatpush2.msra.mxu0 0.0
      %1842 = vmatprep.subr.mxu0 0.0
      %1843 = vmatpush2.msra.mxu0 0.0
      %1844 = vmatprep.subr.mxu0 0.0
      %1845 = vmatpush2.msra.mxu0 0.0
      %1846 = vmatprep.subr.mxu0 0.0
      %1847 = vmatpush2.msra.mxu0 0.0
      %1848 = vmatprep.subr.mxu0 0.0
      %1849 = vmatpush2.msra.mxu0 0.0
      %1850 = vmatprep.subr.mxu0 0.0
      %1851 = vmatpush2.msra.mxu0 0.0
      %1852 = vmatprep.subr.mxu0 0.0
      %1853 = vmatpush2.msra.mxu0 0.0
      %1854 = vmatprep.subr.mxu0 0.0
      %1855 = vmatpush2.msra.mxu0 0.0
      %1856 = vmatprep.subr.mxu0 0.0
      %1857 = vmatpush2.msra.mxu0 0.0
      %1858 = vmatprep.subr.mxu0 0.0
      %1859 = vmatpush2.msra.mxu0 0.0
      %1860 = vmatprep.subr.mxu0 0.0
      %1861 = vmatpush2.msra.mxu0 0.0
      %1862 = vmatprep.subr.mxu0 0.0
      %1863 = vmatpush2.msra.mxu0 0.0
      %1864 = vmatprep.subr.mxu0 0.0
      %1865 = vmatpush2.msra.mxu0 0.0
      %1866 = vmatprep.mubr.f32.mxu0 0.0
      %1867 = vmatmul.mubr.f32.gmra.mxu0 %v531
      %v1868 = vpop.f32.mrf.mxu0
      %v1869 = vadd.f32 0.0, %v1868
      %v1870 = vpop.f32.mrf.mxu0
      %1871 = vmatprep.mubr.f32.mxu0 0.0
      %1872 = vmatmul.mubr.f32.gmra.mxu0 %v533
      %v1873 = vpop.f32.mrf.mxu0
      %v1874 = vadd.f32 0.0, %v1873
      %v1875 = vpop.f32.mrf.mxu0
      %1876 = vmatprep.mubr.f32.mxu0 0.0
      %1877 = vmatmul.mubr.f32.gmra.mxu0 %v535
      %v1878 = vpop.f32.mrf.mxu0
      %v1879 = vadd.f32 0.0, %v1878
      %v1880 = vpop.f32.mrf.mxu0
      %1881 = vmatprep.mubr.f32.mxu0 0.0
      %1882 = vmatmul.mubr.f32.gmra.mxu0 %v537
      %v1883 = vpop.f32.mrf.mxu0
      %v1884 = vadd.f32 0.0, %v1883
      %v1885 = vpop.f32.mrf.mxu0
      %1886 = vmatprep.mubr.f32.mxu0 0.0
      %1887 = vmatmul.mubr.f32.gmra.mxu0 %v539
      %v1888 = vpop.f32.mrf.mxu0
      %v1889 = vadd.f32 0.0, %v1888
      %v1890 = vpop.f32.mrf.mxu0
      %1891 = vmatprep.mubr.f32.mxu0 0.0
      %1892 = vmatmul.mubr.f32.gmra.mxu0 %v541
      %v1893 = vpop.f32.mrf.mxu0
      %v1894 = vadd.f32 0.0, %v1893
      %v1895 = vpop.f32.mrf.mxu0
      %1896 = vmatprep.mubr.f32.mxu0 0.0
      %1897 = vmatmul.mubr.f32.gmra.mxu0 %v543
      %v1898 = vpop.f32.mrf.mxu0
      %v1899 = vadd.f32 0.0, %v1898
      %v1900 = vpop.f32.mrf.mxu0
      %1901 = vmatprep.mubr.f32.mxu0 0.0
      %1902 = vmatmul.mubr.f32.gmra.mxu0 %v545
      %v1903 = vpop.f32.mrf.mxu0
      %v1904 = vadd.f32 0.0, %v1903
      %v1905 = vpop.f32.mrf.mxu0
      %1906 = vmatprep.mubr.f32.mxu0 0.0
      %1907 = vmatmul.mubr.f32.gmra.mxu0 %v547
      %v1908 = vpop.f32.mrf.mxu0
      %v1909 = vadd.f32 0.0, %v1908
      %v1910 = vpop.f32.mrf.mxu0
      %1911 = vmatprep.mubr.f32.mxu0 0.0
      %1912 = vmatmul.mubr.f32.gmra.mxu0 %v549
      %v1913 = vpop.f32.mrf.mxu0
      %v1914 = vadd.f32 0.0, %v1913
      %v1915 = vpop.f32.mrf.mxu0
      %1916 = vmatprep.mubr.f32.mxu0 0.0
      %1917 = vmatmul.mubr.f32.gmra.mxu0 %v551
      %v1918 = vpop.f32.mrf.mxu0
      %v1919 = vadd.f32 0.0, %v1918
      %v1920 = vpop.f32.mrf.mxu0
      %1921 = vmatprep.mubr.f32.mxu0 0.0
      %1922 = vmatmul.mubr.f32.gmra.mxu0 %v553
      %v1923 = vpop.f32.mrf.mxu0
      %v1924 = vadd.f32 0.0, %v1923
      %v1925 = vpop.f32.mrf.mxu0
      %1926 = vmatprep.mubr.f32.mxu0 0.0
      %1927 = vmatmul.mubr.f32.gmra.mxu0 %v555
      %v1928 = vpop.f32.mrf.mxu0
      %v1929 = vadd.f32 0.0, %v1928
      %v1930 = vpop.f32.mrf.mxu0
      %1931 = vmatprep.mubr.f32.mxu0 0.0
      %1932 = vmatmul.mubr.f32.gmra.mxu0 %v557
      %v1933 = vpop.f32.mrf.mxu0
      %v1934 = vadd.f32 0.0, %v1933
      %v1935 = vpop.f32.mrf.mxu0
      %1936 = vmatprep.mubr.f32.mxu0 0.0
      %1937 = vmatmul.mubr.f32.gmra.mxu0 %v559
      %v1938 = vpop.f32.mrf.mxu0
      %v1939 = vadd.f32 0.0, %v1938
      %v1940 = vpop.f32.mrf.mxu0
      %1941 = vmatprep.mubr.f32.mxu0 0.0
      %1942 = vmatmul.mubr.f32.gmra.mxu0 %v561
      %v1943 = vpop.f32.mrf.mxu0
      %v1944 = vadd.f32 0.0, %v1943
      %v1945 = vpop.f32.mrf.mxu0
      %1946 = vmatprep.mubr.f32.mxu0 0.0
      %1947 = vmatmul.mubr.f32.gmra.mxu0 %v563
      %v1948 = vpop.f32.mrf.mxu0
      %v1949 = vadd.f32 0.0, %v1948
      %v1950 = vpop.f32.mrf.mxu0
      %1951 = vmatprep.mubr.f32.mxu0 0.0
      %1952 = vmatmul.mubr.f32.gmra.mxu0 %v565
      %v1953 = vpop.f32.mrf.mxu0
      %v1954 = vadd.f32 0.0, %v1953
      %v1955 = vpop.f32.mrf.mxu0
      %1956 = vmatprep.mubr.f32.mxu0 0.0
      %1957 = vmatmul.mubr.f32.gmra.mxu0 %v567
      %v1958 = vpop.f32.mrf.mxu0
      %v1959 = vadd.f32 0.0, %v1958
      %v1960 = vpop.f32.mrf.mxu0
      %1961 = vmatprep.mubr.f32.mxu0 0.0
      %1962 = vmatmul.mubr.f32.gmra.mxu0 %v569
      %v1963 = vpop.f32.mrf.mxu0
      %v1964 = vadd.f32 0.0, %v1963
      %v1965 = vpop.f32.mrf.mxu0
      %1966 = vmatprep.mubr.f32.mxu0 0.0
      %1967 = vmatmul.mubr.f32.gmra.mxu0 %v571
      %v1968 = vpop.f32.mrf.mxu0
      %v1969 = vadd.f32 0.0, %v1968
      %v1970 = vpop.f32.mrf.mxu0
      %1971 = vmatprep.mubr.f32.mxu0 0.0
      %1972 = vmatmul.mubr.f32.gmra.mxu0 %v573
      %v1973 = vpop.f32.mrf.mxu0
      %v1974 = vadd.f32 0.0, %v1973
      %v1975 = vpop.f32.mrf.mxu0
      %1976 = vmatprep.mubr.f32.mxu0 0.0
      %1977 = vmatmul.mubr.f32.gmra.mxu0 %v575
      %v1978 = vpop.f32.mrf.mxu0
      %v1979 = vadd.f32 0.0, %v1978
      %v1980 = vpop.f32.mrf.mxu0
      %1981 = vmatprep.mubr.f32.mxu0 0.0
      %1982 = vmatmul.mubr.f32.gmra.mxu0 %v577
      %v1983 = vpop.f32.mrf.mxu0
      %v1984 = vadd.f32 0.0, %v1983
      %v1985 = vpop.f32.mrf.mxu0
      %1986 = vmatprep.mubr.f32.mxu0 0.0
      %1987 = vmatmul.mubr.f32.gmra.mxu0 %v579
      %v1988 = vpop.f32.mrf.mxu0
      %v1989 = vadd.f32 0.0, %v1988
      %v1990 = vpop.f32.mrf.mxu0
      %1991 = vmatprep.mubr.f32.mxu0 0.0
      %1992 = vmatmul.mubr.f32.gmra.mxu0 %v581
      %v1993 = vpop.f32.mrf.mxu0
      %v1994 = vadd.f32 0.0, %v1993
      %v1995 = vpop.f32.mrf.mxu0
      %1996 = vmatprep.mubr.f32.mxu0 0.0
      %1997 = vmatmul.mubr.f32.gmra.mxu0 %v583
      %v1998 = vpop.f32.mrf.mxu0
      %v1999 = vadd.f32 0.0, %v1998
      %v2000 = vpop.f32.mrf.mxu0
      %2001 = vmatprep.mubr.f32.mxu0 0.0
      %2002 = vmatmul.mubr.f32.gmra.mxu0 %v585
      %v2003 = vpop.f32.mrf.mxu0
      %v2004 = vadd.f32 0.0, %v2003
      %v2005 = vpop.f32.mrf.mxu0
      %2006 = vmatprep.mubr.f32.mxu0 0.0
      %2007 = vmatmul.mubr.f32.gmra.mxu0 %v587
      %v2008 = vpop.f32.mrf.mxu0
      %v2009 = vadd.f32 0.0, %v2008
      %v2010 = vpop.f32.mrf.mxu0
      %2011 = vmatprep.mubr.f32.mxu0 0.0
      %2012 = vmatmul.mubr.f32.gmra.mxu0 %v589
      %v2013 = vpop.f32.mrf.mxu0
      %v2014 = vadd.f32 0.0, %v2013
      %v2015 = vpop.f32.mrf.mxu0
      %2016 = vmatprep.mubr.f32.mxu0 0.0
      %2017 = vmatmul.mubr.f32.gmra.mxu0 %v1795
      %v2018 = vpop.f32.mrf.mxu0
      %v2019 = vadd.f32 0.0, %v2018
      %v2020 = vpop.f32.mrf.mxu0
      %2021 = vmatprep.mubr.f32.mxu0 0.0
      %2022 = vmatmul.mubr.f32.gmra.mxu0 %v1797
      %v2023 = vpop.f32.mrf.mxu0
      %v2024 = vadd.f32 0.0, %v2023
      %v2025 = vpop.f32.mrf.mxu0
      %2026 = vdwg.mxu0
      %v2027 = vadd.f32 %v1755, %v1869
      %v2028 = vadd.f32 %v1756, %v1874
      %v2029 = vadd.f32 %v1757, %v1879
      %v2030 = vadd.f32 %v1758, %v1884
      %v2031 = vadd.f32 %v1759, %v1889
      %v2032 = vadd.f32 %v1760, %v1894
      %v2033 = vadd.f32 %v1761, %v1899
      %v2034 = vadd.f32 %v1762, %v1904
      %v2035 = vadd.f32 %v1763, %v1909
      %v2036 = vadd.f32 %v1764, %v1914
      %v2037 = vadd.f32 %v1765, %v1919
      %v2038 = vadd.f32 %v1766, %v1924
      %v2039 = vadd.f32 %v1767, %v1929
      %v2040 = vadd.f32 %v1768, %v1934
      %v2041 = vadd.f32 %v1769, %v1939
      %v2042 = vadd.f32 %v1770, %v1944
      %v2043 = vadd.f32 %v1771, %v1949
      %v2044 = vadd.f32 %v1772, %v1954
      %v2045 = vadd.f32 %v1773, %v1959
      %v2046 = vadd.f32 %v1774, %v1964
      %v2047 = vadd.f32 %v1775, %v1969
      %v2048 = vadd.f32 %v1776, %v1974
      %v2049 = vadd.f32 %v1777, %v1979
      %v2050 = vadd.f32 %v1778, %v1984
      %v2051 = vadd.f32 %v1779, %v1989
      %v2052 = vadd.f32 %v1780, %v1994
      %v2053 = vadd.f32 %v1781, %v1999
      %v2054 = vadd.f32 %v1782, %v2004
      %v2055 = vadd.f32 %v1783, %v2009
      %v2056 = vadd.f32 %v1784, %v2014
      %v2057 = vadd.f32 %v1785, %v2019
      %v2058 = vadd.f32 %v1786, %v2024
      %v2059 = vrot.slane %v389, 2
      %v2060 = vrot.slane %v390, 2
      %v2061 = vsel %vm1112, %v2059, %v2060
      %v2062 = vrot.slane %v391, 2
      %v2063 = vsel %vm1112, %v2060, %v2062
      %s2064 = scalar_lea.vmem %s1, 20
      %v2065 = vld [vmem:[%s2064] sm:$0xf]
      %v2066 = vsel %vm262, %v2061, 0
      %v2068 = vsel %vm262, %v2063, 0
      %v2071 = vsel %vm591, %v2065, 0
      %2073 = vmatprep.subr.mxu0 0.0
      %2074 = vmatpush1.msra.mxu0 0.0
      %2075 = vmatprep.subr.mxu0 0.0
      %2076 = vmatpush1.msra.mxu0 0.0
      %2077 = vmatprep.subr.mxu0 0.0
      %2078 = vmatpush1.msra.mxu0 0.0
      %2079 = vmatprep.subr.mxu0 0.0
      %2080 = vmatpush1.msra.mxu0 0.0
      %2081 = vmatprep.subr.mxu0 0.0
      %2082 = vmatpush1.msra.mxu0 0.0
      %2083 = vmatprep.subr.mxu0 0.0
      %2084 = vmatpush1.msra.mxu0 0.0
      %2085 = vmatprep.subr.mxu0 0.0
      %2086 = vmatpush1.msra.mxu0 0.0
      %2087 = vmatprep.subr.mxu0 0.0
      %2088 = vmatpush1.msra.mxu0 0.0
      %2089 = vmatprep.subr.mxu0 0.0
      %2090 = vmatpush1.msra.mxu0 0.0
      %2091 = vmatprep.subr.mxu0 0.0
      %2092 = vmatpush1.msra.mxu0 0.0
      %2093 = vmatprep.subr.mxu0 0.0
      %2094 = vmatpush1.msra.mxu0 0.0
      %2095 = vmatprep.subr.mxu0 0.0
      %2096 = vmatpush1.msra.mxu0 0.0
      %2097 = vmatprep.subr.mxu0 0.0
      %2098 = vmatpush1.msra.mxu0 0.0
      %2099 = vmatprep.subr.mxu0 0.0
      %2100 = vmatpush1.msra.mxu0 0.0
      %2101 = vmatprep.subr.mxu0 0.0
      %2102 = vmatpush1.msra.mxu0 0.0
      %2103 = vmatprep.subr.mxu0 0.0
      %2104 = vmatpush1.msra.mxu0 %v2071
      %2105 = vmatprep.subr.mxu0 0.0
      %2106 = vmatpush2.msra.mxu0 0.0
      %2107 = vmatprep.subr.mxu0 0.0
      %2108 = vmatpush2.msra.mxu0 0.0
      %2109 = vmatprep.subr.mxu0 0.0
      %2110 = vmatpush2.msra.mxu0 0.0
      %2111 = vmatprep.subr.mxu0 0.0
      %2112 = vmatpush2.msra.mxu0 0.0
      %2113 = vmatprep.subr.mxu0 0.0
      %2114 = vmatpush2.msra.mxu0 0.0
      %2115 = vmatprep.subr.mxu0 0.0
      %2116 = vmatpush2.msra.mxu0 0.0
      %2117 = vmatprep.subr.mxu0 0.0
      %2118 = vmatpush2.msra.mxu0 0.0
      %2119 = vmatprep.subr.mxu0 0.0
      %2120 = vmatpush2.msra.mxu0 0.0
      %2121 = vmatprep.subr.mxu0 0.0
      %2122 = vmatpush2.msra.mxu0 0.0
      %2123 = vmatprep.subr.mxu0 0.0
      %2124 = vmatpush2.msra.mxu0 0.0
      %2125 = vmatprep.subr.mxu0 0.0
      %2126 = vmatpush2.msra.mxu0 0.0
      %2127 = vmatprep.subr.mxu0 0.0
      %2128 = vmatpush2.msra.mxu0 0.0
      %2129 = vmatprep.subr.mxu0 0.0
      %2130 = vmatpush2.msra.mxu0 0.0
      %2131 = vmatprep.subr.mxu0 0.0
      %2132 = vmatpush2.msra.mxu0 0.0
      %2133 = vmatprep.subr.mxu0 0.0
      %2134 = vmatpush2.msra.mxu0 0.0
      %2135 = vmatprep.subr.mxu0 0.0
      %2136 = vmatpush2.msra.mxu0 0.0
      %2137 = vmatprep.mubr.f32.mxu0 0.0
      %2138 = vmatmul.mubr.f32.gmra.mxu0 %v1199
      %v2139 = vpop.f32.mrf.mxu0
      %v2140 = vadd.f32 0.0, %v2139
      %v2141 = vpop.f32.mrf.mxu0
      %2142 = vmatprep.mubr.f32.mxu0 0.0
      %2143 = vmatmul.mubr.f32.gmra.mxu0 %v1201
      %v2144 = vpop.f32.mrf.mxu0
      %v2145 = vadd.f32 0.0, %v2144
      %v2146 = vpop.f32.mrf.mxu0
      %2147 = vmatprep.mubr.f32.mxu0 0.0
      %2148 = vmatmul.mubr.f32.gmra.mxu0 %v1203
      %v2149 = vpop.f32.mrf.mxu0
      %v2150 = vadd.f32 0.0, %v2149
      %v2151 = vpop.f32.mrf.mxu0
      %2152 = vmatprep.mubr.f32.mxu0 0.0
      %2153 = vmatmul.mubr.f32.gmra.mxu0 %v1205
      %v2154 = vpop.f32.mrf.mxu0
      %v2155 = vadd.f32 0.0, %v2154
      %v2156 = vpop.f32.mrf.mxu0
      %2157 = vmatprep.mubr.f32.mxu0 0.0
      %2158 = vmatmul.mubr.f32.gmra.mxu0 %v1207
      %v2159 = vpop.f32.mrf.mxu0
      %v2160 = vadd.f32 0.0, %v2159
      %v2161 = vpop.f32.mrf.mxu0
      %2162 = vmatprep.mubr.f32.mxu0 0.0
      %2163 = vmatmul.mubr.f32.gmra.mxu0 %v1209
      %v2164 = vpop.f32.mrf.mxu0
      %v2165 = vadd.f32 0.0, %v2164
      %v2166 = vpop.f32.mrf.mxu0
      %2167 = vmatprep.mubr.f32.mxu0 0.0
      %2168 = vmatmul.mubr.f32.gmra.mxu0 %v1211
      %v2169 = vpop.f32.mrf.mxu0
      %v2170 = vadd.f32 0.0, %v2169
      %v2171 = vpop.f32.mrf.mxu0
      %2172 = vmatprep.mubr.f32.mxu0 0.0
      %2173 = vmatmul.mubr.f32.gmra.mxu0 %v1213
      %v2174 = vpop.f32.mrf.mxu0
      %v2175 = vadd.f32 0.0, %v2174
      %v2176 = vpop.f32.mrf.mxu0
      %2177 = vmatprep.mubr.f32.mxu0 0.0
      %2178 = vmatmul.mubr.f32.gmra.mxu0 %v1215
      %v2179 = vpop.f32.mrf.mxu0
      %v2180 = vadd.f32 0.0, %v2179
      %v2181 = vpop.f32.mrf.mxu0
      %2182 = vmatprep.mubr.f32.mxu0 0.0
      %2183 = vmatmul.mubr.f32.gmra.mxu0 %v1217
      %v2184 = vpop.f32.mrf.mxu0
      %v2185 = vadd.f32 0.0, %v2184
      %v2186 = vpop.f32.mrf.mxu0
      %2187 = vmatprep.mubr.f32.mxu0 0.0
      %2188 = vmatmul.mubr.f32.gmra.mxu0 %v1219
      %v2189 = vpop.f32.mrf.mxu0
      %v2190 = vadd.f32 0.0, %v2189
      %v2191 = vpop.f32.mrf.mxu0
      %2192 = vmatprep.mubr.f32.mxu0 0.0
      %2193 = vmatmul.mubr.f32.gmra.mxu0 %v1221
      %v2194 = vpop.f32.mrf.mxu0
      %v2195 = vadd.f32 0.0, %v2194
      %v2196 = vpop.f32.mrf.mxu0
      %2197 = vmatprep.mubr.f32.mxu0 0.0
      %2198 = vmatmul.mubr.f32.gmra.mxu0 %v1223
      %v2199 = vpop.f32.mrf.mxu0
      %v2200 = vadd.f32 0.0, %v2199
      %v2201 = vpop.f32.mrf.mxu0
      %2202 = vmatprep.mubr.f32.mxu0 0.0
      %2203 = vmatmul.mubr.f32.gmra.mxu0 %v1225
      %v2204 = vpop.f32.mrf.mxu0
      %v2205 = vadd.f32 0.0, %v2204
      %v2206 = vpop.f32.mrf.mxu0
      %2207 = vmatprep.mubr.f32.mxu0 0.0
      %2208 = vmatmul.mubr.f32.gmra.mxu0 %v1227
      %v2209 = vpop.f32.mrf.mxu0
      %v2210 = vadd.f32 0.0, %v2209
      %v2211 = vpop.f32.mrf.mxu0
      %2212 = vmatprep.mubr.f32.mxu0 0.0
      %2213 = vmatmul.mubr.f32.gmra.mxu0 %v1229
      %v2214 = vpop.f32.mrf.mxu0
      %v2215 = vadd.f32 0.0, %v2214
      %v2216 = vpop.f32.mrf.mxu0
      %2217 = vmatprep.mubr.f32.mxu0 0.0
      %2218 = vmatmul.mubr.f32.gmra.mxu0 %v1231
      %v2219 = vpop.f32.mrf.mxu0
      %v2220 = vadd.f32 0.0, %v2219
      %v2221 = vpop.f32.mrf.mxu0
      %2222 = vmatprep.mubr.f32.mxu0 0.0
      %2223 = vmatmul.mubr.f32.gmra.mxu0 %v1233
      %v2224 = vpop.f32.mrf.mxu0
      %v2225 = vadd.f32 0.0, %v2224
      %v2226 = vpop.f32.mrf.mxu0
      %2227 = vmatprep.mubr.f32.mxu0 0.0
      %2228 = vmatmul.mubr.f32.gmra.mxu0 %v1235
      %v2229 = vpop.f32.mrf.mxu0
      %v2230 = vadd.f32 0.0, %v2229
      %v2231 = vpop.f32.mrf.mxu0
      %2232 = vmatprep.mubr.f32.mxu0 0.0
      %2233 = vmatmul.mubr.f32.gmra.mxu0 %v1237
      %v2234 = vpop.f32.mrf.mxu0
      %v2235 = vadd.f32 0.0, %v2234
      %v2236 = vpop.f32.mrf.mxu0
      %2237 = vmatprep.mubr.f32.mxu0 0.0
      %2238 = vmatmul.mubr.f32.gmra.mxu0 %v1239
      %v2239 = vpop.f32.mrf.mxu0
      %v2240 = vadd.f32 0.0, %v2239
      %v2241 = vpop.f32.mrf.mxu0
      %2242 = vmatprep.mubr.f32.mxu0 0.0
      %2243 = vmatmul.mubr.f32.gmra.mxu0 %v1241
      %v2244 = vpop.f32.mrf.mxu0
      %v2245 = vadd.f32 0.0, %v2244
      %v2246 = vpop.f32.mrf.mxu0
      %2247 = vmatprep.mubr.f32.mxu0 0.0
      %2248 = vmatmul.mubr.f32.gmra.mxu0 %v1243
      %v2249 = vpop.f32.mrf.mxu0
      %v2250 = vadd.f32 0.0, %v2249
      %v2251 = vpop.f32.mrf.mxu0
      %2252 = vmatprep.mubr.f32.mxu0 0.0
      %2253 = vmatmul.mubr.f32.gmra.mxu0 %v1245
      %v2254 = vpop.f32.mrf.mxu0
      %v2255 = vadd.f32 0.0, %v2254
      %v2256 = vpop.f32.mrf.mxu0
      %2257 = vmatprep.mubr.f32.mxu0 0.0
      %2258 = vmatmul.mubr.f32.gmra.mxu0 %v1247
      %v2259 = vpop.f32.mrf.mxu0
      %v2260 = vadd.f32 0.0, %v2259
      %v2261 = vpop.f32.mrf.mxu0
      %2262 = vmatprep.mubr.f32.mxu0 0.0
      %2263 = vmatmul.mubr.f32.gmra.mxu0 %v1249
      %v2264 = vpop.f32.mrf.mxu0
      %v2265 = vadd.f32 0.0, %v2264
      %v2266 = vpop.f32.mrf.mxu0
      %2267 = vmatprep.mubr.f32.mxu0 0.0
      %2268 = vmatmul.mubr.f32.gmra.mxu0 %v1251
      %v2269 = vpop.f32.mrf.mxu0
      %v2270 = vadd.f32 0.0, %v2269
      %v2271 = vpop.f32.mrf.mxu0
      %2272 = vmatprep.mubr.f32.mxu0 0.0
      %2273 = vmatmul.mubr.f32.gmra.mxu0 %v1253
      %v2274 = vpop.f32.mrf.mxu0
      %v2275 = vadd.f32 0.0, %v2274
      %v2276 = vpop.f32.mrf.mxu0
      %2277 = vmatprep.mubr.f32.mxu0 0.0
      %2278 = vmatmul.mubr.f32.gmra.mxu0 %v1255
      %v2279 = vpop.f32.mrf.mxu0
      %v2280 = vadd.f32 0.0, %v2279
      %v2281 = vpop.f32.mrf.mxu0
      %2282 = vmatprep.mubr.f32.mxu0 0.0
      %2283 = vmatmul.mubr.f32.gmra.mxu0 %v1257
      %v2284 = vpop.f32.mrf.mxu0
      %v2285 = vadd.f32 0.0, %v2284
      %v2286 = vpop.f32.mrf.mxu0
      %2287 = vmatprep.mubr.f32.mxu0 0.0
      %2288 = vmatmul.mubr.f32.gmra.mxu0 %v2066
      %v2289 = vpop.f32.mrf.mxu0
      %v2290 = vadd.f32 0.0, %v2289
      %v2291 = vpop.f32.mrf.mxu0
      %2292 = vmatprep.mubr.f32.mxu0 0.0
      %2293 = vmatmul.mubr.f32.gmra.mxu0 %v2068
      %v2294 = vpop.f32.mrf.mxu0
      %v2295 = vadd.f32 0.0, %v2294
      %v2296 = vpop.f32.mrf.mxu0
      %2297 = vdwg.mxu0
      %v2298 = vadd.f32 %v2027, %v2140
      %v2299 = vadd.f32 %v2028, %v2145
      %v2300 = vadd.f32 %v2029, %v2150
      %v2301 = vadd.f32 %v2030, %v2155
      %v2302 = vadd.f32 %v2031, %v2160
      %v2303 = vadd.f32 %v2032, %v2165
      %v2304 = vadd.f32 %v2033, %v2170
      %v2305 = vadd.f32 %v2034, %v2175
      %v2306 = vadd.f32 %v2035, %v2180
      %v2307 = vadd.f32 %v2036, %v2185
      %v2308 = vadd.f32 %v2037, %v2190
      %v2309 = vadd.f32 %v2038, %v2195
      %v2310 = vadd.f32 %v2039, %v2200
      %v2311 = vadd.f32 %v2040, %v2205
      %v2312 = vadd.f32 %v2041, %v2210
      %v2313 = vadd.f32 %v2042, %v2215
      %v2314 = vadd.f32 %v2043, %v2220
      %v2315 = vadd.f32 %v2044, %v2225
      %v2316 = vadd.f32 %v2045, %v2230
      %v2317 = vadd.f32 %v2046, %v2235
      %v2318 = vadd.f32 %v2047, %v2240
      %v2319 = vadd.f32 %v2048, %v2245
      %v2320 = vadd.f32 %v2049, %v2250
      %v2321 = vadd.f32 %v2050, %v2255
      %v2322 = vadd.f32 %v2051, %v2260
      %v2323 = vadd.f32 %v2052, %v2265
      %v2324 = vadd.f32 %v2053, %v2270
      %v2325 = vadd.f32 %v2054, %v2275
      %v2326 = vadd.f32 %v2055, %v2280
      %v2327 = vadd.f32 %v2056, %v2285
      %v2328 = vadd.f32 %v2057, %v2290
      %v2329 = vadd.f32 %v2058, %v2295
      %s2330 = scalar_lea.vmem %s1, 24
      %v2331 = vld [vmem:[%s2330] sm:$0xf]
      %v2333 = vsel %vm262, %v392, 0
      %v2336 = vsel %vm262, %v393, 0
      %v2339 = vsel %vm591, %v2331, 0
      %2341 = vmatprep.subr.mxu0 0.0
      %2342 = vmatpush1.msra.mxu0 0.0
      %2343 = vmatprep.subr.mxu0 0.0
      %2344 = vmatpush1.msra.mxu0 0.0
      %2345 = vmatprep.subr.mxu0 0.0
      %2346 = vmatpush1.msra.mxu0 0.0
      %2347 = vmatprep.subr.mxu0 0.0
      %2348 = vmatpush1.msra.mxu0 0.0
      %2349 = vmatprep.subr.mxu0 0.0
      %2350 = vmatpush1.msra.mxu0 0.0
      %2351 = vmatprep.subr.mxu0 0.0
      %2352 = vmatpush1.msra.mxu0 0.0
      %2353 = vmatprep.subr.mxu0 0.0
      %2354 = vmatpush1.msra.mxu0 0.0
      %2355 = vmatprep.subr.mxu0 0.0
      %2356 = vmatpush1.msra.mxu0 0.0
      %2357 = vmatprep.subr.mxu0 0.0
      %2358 = vmatpush1.msra.mxu0 0.0
      %2359 = vmatprep.subr.mxu0 0.0
      %2360 = vmatpush1.msra.mxu0 0.0
      %2361 = vmatprep.subr.mxu0 0.0
      %2362 = vmatpush1.msra.mxu0 0.0
      %2363 = vmatprep.subr.mxu0 0.0
      %2364 = vmatpush1.msra.mxu0 0.0
      %2365 = vmatprep.subr.mxu0 0.0
      %2366 = vmatpush1.msra.mxu0 0.0
      %2367 = vmatprep.subr.mxu0 0.0
      %2368 = vmatpush1.msra.mxu0 0.0
      %2369 = vmatprep.subr.mxu0 0.0
      %2370 = vmatpush1.msra.mxu0 0.0
      %2371 = vmatprep.subr.mxu0 0.0
      %2372 = vmatpush1.msra.mxu0 %v2339
      %2373 = vmatprep.subr.mxu0 0.0
      %2374 = vmatpush2.msra.mxu0 0.0
      %2375 = vmatprep.subr.mxu0 0.0
      %2376 = vmatpush2.msra.mxu0 0.0
      %2377 = vmatprep.subr.mxu0 0.0
      %2378 = vmatpush2.msra.mxu0 0.0
      %2379 = vmatprep.subr.mxu0 0.0
      %2380 = vmatpush2.msra.mxu0 0.0
      %2381 = vmatprep.subr.mxu0 0.0
      %2382 = vmatpush2.msra.mxu0 0.0
      %2383 = vmatprep.subr.mxu0 0.0
      %2384 = vmatpush2.msra.mxu0 0.0
      %2385 = vmatprep.subr.mxu0 0.0
      %2386 = vmatpush2.msra.mxu0 0.0
      %2387 = vmatprep.subr.mxu0 0.0
      %2388 = vmatpush2.msra.mxu0 0.0
      %2389 = vmatprep.subr.mxu0 0.0
      %2390 = vmatpush2.msra.mxu0 0.0
      %2391 = vmatprep.subr.mxu0 0.0
      %2392 = vmatpush2.msra.mxu0 0.0
      %2393 = vmatprep.subr.mxu0 0.0
      %2394 = vmatpush2.msra.mxu0 0.0
      %2395 = vmatprep.subr.mxu0 0.0
      %2396 = vmatpush2.msra.mxu0 0.0
      %2397 = vmatprep.subr.mxu0 0.0
      %2398 = vmatpush2.msra.mxu0 0.0
      %2399 = vmatprep.subr.mxu0 0.0
      %2400 = vmatpush2.msra.mxu0 0.0
      %2401 = vmatprep.subr.mxu0 0.0
      %2402 = vmatpush2.msra.mxu0 0.0
      %2403 = vmatprep.subr.mxu0 0.0
      %2404 = vmatpush2.msra.mxu0 0.0
      %2405 = vmatprep.mubr.f32.mxu0 0.0
      %2406 = vmatmul.mubr.f32.gmra.mxu0 %v828
      %v2407 = vpop.f32.mrf.mxu0
      %v2408 = vadd.f32 0.0, %v2407
      %v2409 = vpop.f32.mrf.mxu0
      %2410 = vmatprep.mubr.f32.mxu0 0.0
      %2411 = vmatmul.mubr.f32.gmra.mxu0 %v830
      %v2412 = vpop.f32.mrf.mxu0
      %v2413 = vadd.f32 0.0, %v2412
      %v2414 = vpop.f32.mrf.mxu0
      %2415 = vmatprep.mubr.f32.mxu0 0.0
      %2416 = vmatmul.mubr.f32.gmra.mxu0 %v832
      %v2417 = vpop.f32.mrf.mxu0
      %v2418 = vadd.f32 0.0, %v2417
      %v2419 = vpop.f32.mrf.mxu0
      %2420 = vmatprep.mubr.f32.mxu0 0.0
      %2421 = vmatmul.mubr.f32.gmra.mxu0 %v834
      %v2422 = vpop.f32.mrf.mxu0
      %v2423 = vadd.f32 0.0, %v2422
      %v2424 = vpop.f32.mrf.mxu0
      %2425 = vmatprep.mubr.f32.mxu0 0.0
      %2426 = vmatmul.mubr.f32.gmra.mxu0 %v836
      %v2427 = vpop.f32.mrf.mxu0
      %v2428 = vadd.f32 0.0, %v2427
      %v2429 = vpop.f32.mrf.mxu0
      %2430 = vmatprep.mubr.f32.mxu0 0.0
      %2431 = vmatmul.mubr.f32.gmra.mxu0 %v838
      %v2432 = vpop.f32.mrf.mxu0
      %v2433 = vadd.f32 0.0, %v2432
      %v2434 = vpop.f32.mrf.mxu0
      %2435 = vmatprep.mubr.f32.mxu0 0.0
      %2436 = vmatmul.mubr.f32.gmra.mxu0 %v840
      %v2437 = vpop.f32.mrf.mxu0
      %v2438 = vadd.f32 0.0, %v2437
      %v2439 = vpop.f32.mrf.mxu0
      %2440 = vmatprep.mubr.f32.mxu0 0.0
      %2441 = vmatmul.mubr.f32.gmra.mxu0 %v842
      %v2442 = vpop.f32.mrf.mxu0
      %v2443 = vadd.f32 0.0, %v2442
      %v2444 = vpop.f32.mrf.mxu0
      %2445 = vmatprep.mubr.f32.mxu0 0.0
      %2446 = vmatmul.mubr.f32.gmra.mxu0 %v844
      %v2447 = vpop.f32.mrf.mxu0
      %v2448 = vadd.f32 0.0, %v2447
      %v2449 = vpop.f32.mrf.mxu0
      %2450 = vmatprep.mubr.f32.mxu0 0.0
      %2451 = vmatmul.mubr.f32.gmra.mxu0 %v846
      %v2452 = vpop.f32.mrf.mxu0
      %v2453 = vadd.f32 0.0, %v2452
      %v2454 = vpop.f32.mrf.mxu0
      %2455 = vmatprep.mubr.f32.mxu0 0.0
      %2456 = vmatmul.mubr.f32.gmra.mxu0 %v848
      %v2457 = vpop.f32.mrf.mxu0
      %v2458 = vadd.f32 0.0, %v2457
      %v2459 = vpop.f32.mrf.mxu0
      %2460 = vmatprep.mubr.f32.mxu0 0.0
      %2461 = vmatmul.mubr.f32.gmra.mxu0 %v850
      %v2462 = vpop.f32.mrf.mxu0
      %v2463 = vadd.f32 0.0, %v2462
      %v2464 = vpop.f32.mrf.mxu0
      %2465 = vmatprep.mubr.f32.mxu0 0.0
      %2466 = vmatmul.mubr.f32.gmra.mxu0 %v852
      %v2467 = vpop.f32.mrf.mxu0
      %v2468 = vadd.f32 0.0, %v2467
      %v2469 = vpop.f32.mrf.mxu0
      %2470 = vmatprep.mubr.f32.mxu0 0.0
      %2471 = vmatmul.mubr.f32.gmra.mxu0 %v854
      %v2472 = vpop.f32.mrf.mxu0
      %v2473 = vadd.f32 0.0, %v2472
      %v2474 = vpop.f32.mrf.mxu0
      %2475 = vmatprep.mubr.f32.mxu0 0.0
      %2476 = vmatmul.mubr.f32.gmra.mxu0 %v856
      %v2477 = vpop.f32.mrf.mxu0
      %v2478 = vadd.f32 0.0, %v2477
      %v2479 = vpop.f32.mrf.mxu0
      %2480 = vmatprep.mubr.f32.mxu0 0.0
      %2481 = vmatmul.mubr.f32.gmra.mxu0 %v858
      %v2482 = vpop.f32.mrf.mxu0
      %v2483 = vadd.f32 0.0, %v2482
      %v2484 = vpop.f32.mrf.mxu0
      %2485 = vmatprep.mubr.f32.mxu0 0.0
      %2486 = vmatmul.mubr.f32.gmra.mxu0 %v860
      %v2487 = vpop.f32.mrf.mxu0
      %v2488 = vadd.f32 0.0, %v2487
      %v2489 = vpop.f32.mrf.mxu0
      %2490 = vmatprep.mubr.f32.mxu0 0.0
      %2491 = vmatmul.mubr.f32.gmra.mxu0 %v862
      %v2492 = vpop.f32.mrf.mxu0
      %v2493 = vadd.f32 0.0, %v2492
      %v2494 = vpop.f32.mrf.mxu0
      %2495 = vmatprep.mubr.f32.mxu0 0.0
      %2496 = vmatmul.mubr.f32.gmra.mxu0 %v864
      %v2497 = vpop.f32.mrf.mxu0
      %v2498 = vadd.f32 0.0, %v2497
      %v2499 = vpop.f32.mrf.mxu0
      %2500 = vmatprep.mubr.f32.mxu0 0.0
      %2501 = vmatmul.mubr.f32.gmra.mxu0 %v866
      %v2502 = vpop.f32.mrf.mxu0
      %v2503 = vadd.f32 0.0, %v2502
      %v2504 = vpop.f32.mrf.mxu0
      %2505 = vmatprep.mubr.f32.mxu0 0.0
      %2506 = vmatmul.mubr.f32.gmra.mxu0 %v868
      %v2507 = vpop.f32.mrf.mxu0
      %v2508 = vadd.f32 0.0, %v2507
      %v2509 = vpop.f32.mrf.mxu0
      %2510 = vmatprep.mubr.f32.mxu0 0.0
      %2511 = vmatmul.mubr.f32.gmra.mxu0 %v870
      %v2512 = vpop.f32.mrf.mxu0
      %v2513 = vadd.f32 0.0, %v2512
      %v2514 = vpop.f32.mrf.mxu0
      %2515 = vmatprep.mubr.f32.mxu0 0.0
      %2516 = vmatmul.mubr.f32.gmra.mxu0 %v872
      %v2517 = vpop.f32.mrf.mxu0
      %v2518 = vadd.f32 0.0, %v2517
      %v2519 = vpop.f32.mrf.mxu0
      %2520 = vmatprep.mubr.f32.mxu0 0.0
      %2521 = vmatmul.mubr.f32.gmra.mxu0 %v874
      %v2522 = vpop.f32.mrf.mxu0
      %v2523 = vadd.f32 0.0, %v2522
      %v2524 = vpop.f32.mrf.mxu0
      %2525 = vmatprep.mubr.f32.mxu0 0.0
      %2526 = vmatmul.mubr.f32.gmra.mxu0 %v876
      %v2527 = vpop.f32.mrf.mxu0
      %v2528 = vadd.f32 0.0, %v2527
      %v2529 = vpop.f32.mrf.mxu0
      %2530 = vmatprep.mubr.f32.mxu0 0.0
      %2531 = vmatmul.mubr.f32.gmra.mxu0 %v878
      %v2532 = vpop.f32.mrf.mxu0
      %v2533 = vadd.f32 0.0, %v2532
      %v2534 = vpop.f32.mrf.mxu0
      %2535 = vmatprep.mubr.f32.mxu0 0.0
      %2536 = vmatmul.mubr.f32.gmra.mxu0 %v880
      %v2537 = vpop.f32.mrf.mxu0
      %v2538 = vadd.f32 0.0, %v2537
      %v2539 = vpop.f32.mrf.mxu0
      %2540 = vmatprep.mubr.f32.mxu0 0.0
      %2541 = vmatmul.mubr.f32.gmra.mxu0 %v882
      %v2542 = vpop.f32.mrf.mxu0
      %v2543 = vadd.f32 0.0, %v2542
      %v2544 = vpop.f32.mrf.mxu0
      %2545 = vmatprep.mubr.f32.mxu0 0.0
      %2546 = vmatmul.mubr.f32.gmra.mxu0 %v1522
      %v2547 = vpop.f32.mrf.mxu0
      %v2548 = vadd.f32 0.0, %v2547
      %v2549 = vpop.f32.mrf.mxu0
      %2550 = vmatprep.mubr.f32.mxu0 0.0
      %2551 = vmatmul.mubr.f32.gmra.mxu0 %v1525
      %v2552 = vpop.f32.mrf.mxu0
      %v2553 = vadd.f32 0.0, %v2552
      %v2554 = vpop.f32.mrf.mxu0
      %2555 = vmatprep.mubr.f32.mxu0 0.0
      %2556 = vmatmul.mubr.f32.gmra.mxu0 %v2333
      %v2557 = vpop.f32.mrf.mxu0
      %v2558 = vadd.f32 0.0, %v2557
      %v2559 = vpop.f32.mrf.mxu0
      %2560 = vmatprep.mubr.f32.mxu0 0.0
      %2561 = vmatmul.mubr.f32.gmra.mxu0 %v2336
      %v2562 = vpop.f32.mrf.mxu0
      %v2563 = vadd.f32 0.0, %v2562
      %v2564 = vpop.f32.mrf.mxu0
      %2565 = vdwg.mxu0
      %v2566 = vadd.f32 %v2298, %v2408
      %v2567 = vadd.f32 %v2299, %v2413
      %v2568 = vadd.f32 %v2300, %v2418
      %v2569 = vadd.f32 %v2301, %v2423
      %v2570 = vadd.f32 %v2302, %v2428
      %v2571 = vadd.f32 %v2303, %v2433
      %v2572 = vadd.f32 %v2304, %v2438
      %v2573 = vadd.f32 %v2305, %v2443
      %v2574 = vadd.f32 %v2306, %v2448
      %v2575 = vadd.f32 %v2307, %v2453
      %v2576 = vadd.f32 %v2308, %v2458
      %v2577 = vadd.f32 %v2309, %v2463
      %v2578 = vadd.f32 %v2310, %v2468
      %v2579 = vadd.f32 %v2311, %v2473
      %v2580 = vadd.f32 %v2312, %v2478
      %v2581 = vadd.f32 %v2313, %v2483
      %v2582 = vadd.f32 %v2314, %v2488
      %v2583 = vadd.f32 %v2315, %v2493
      %v2584 = vadd.f32 %v2316, %v2498
      %v2585 = vadd.f32 %v2317, %v2503
      %v2586 = vadd.f32 %v2318, %v2508
      %v2587 = vadd.f32 %v2319, %v2513
      %v2588 = vadd.f32 %v2320, %v2518
      %v2589 = vadd.f32 %v2321, %v2523
      %v2590 = vadd.f32 %v2322, %v2528
      %v2591 = vadd.f32 %v2323, %v2533
      %v2592 = vadd.f32 %v2324, %v2538
      %v2593 = vadd.f32 %v2325, %v2543
      %v2594 = vadd.f32 %v2326, %v2548
      %v2595 = vadd.f32 %v2327, %v2553
      %v2596 = vadd.f32 %v2328, %v2558
      %v2597 = vadd.f32 %v2329, %v2563
      %v2599 = vrot.slane %v392, 1
      %v2600 = vrot.slane %v393, 1
      %v2601 = vsel %vm444, %v2599, %v2600
      %v2602 = vrot.slane %v394, 1
      %v2603 = vsel %vm444, %v2600, %v2602
      %s2604 = scalar_lea.vmem %s1, 28
      %v2605 = vld [vmem:[%s2604] sm:$0xf]
      %v2606 = vsel %vm262, %v2601, 0
      %v2608 = vsel %vm262, %v2603, 0
      %v2611 = vsel %vm591, %v2605, 0
      %2613 = vmatprep.subr.mxu0 0.0
      %2614 = vmatpush1.msra.mxu0 0.0
      %2615 = vmatprep.subr.mxu0 0.0
      %2616 = vmatpush1.msra.mxu0 0.0
      %2617 = vmatprep.subr.mxu0 0.0
      %2618 = vmatpush1.msra.mxu0 0.0
      %2619 = vmatprep.subr.mxu0 0.0
      %2620 = vmatpush1.msra.mxu0 0.0
      %2621 = vmatprep.subr.mxu0 0.0
      %2622 = vmatpush1.msra.mxu0 0.0
      %2623 = vmatprep.subr.mxu0 0.0
      %2624 = vmatpush1.msra.mxu0 0.0
      %2625 = vmatprep.subr.mxu0 0.0
      %2626 = vmatpush1.msra.mxu0 0.0
      %2627 = vmatprep.subr.mxu0 0.0
      %2628 = vmatpush1.msra.mxu0 0.0
      %2629 = vmatprep.subr.mxu0 0.0
      %2630 = vmatpush1.msra.mxu0 0.0
      %2631 = vmatprep.subr.mxu0 0.0
      %2632 = vmatpush1.msra.mxu0 0.0
      %2633 = vmatprep.subr.mxu0 0.0
      %2634 = vmatpush1.msra.mxu0 0.0
      %2635 = vmatprep.subr.mxu0 0.0
      %2636 = vmatpush1.msra.mxu0 0.0
      %2637 = vmatprep.subr.mxu0 0.0
      %2638 = vmatpush1.msra.mxu0 0.0
      %2639 = vmatprep.subr.mxu0 0.0
      %2640 = vmatpush1.msra.mxu0 0.0
      %2641 = vmatprep.subr.mxu0 0.0
      %2642 = vmatpush1.msra.mxu0 0.0
      %2643 = vmatprep.subr.mxu0 0.0
      %2644 = vmatpush1.msra.mxu0 %v2611
      %2645 = vmatprep.subr.mxu0 0.0
      %2646 = vmatpush2.msra.mxu0 0.0
      %2647 = vmatprep.subr.mxu0 0.0
      %2648 = vmatpush2.msra.mxu0 0.0
      %2649 = vmatprep.subr.mxu0 0.0
      %2650 = vmatpush2.msra.mxu0 0.0
      %2651 = vmatprep.subr.mxu0 0.0
      %2652 = vmatpush2.msra.mxu0 0.0
      %2653 = vmatprep.subr.mxu0 0.0
      %2654 = vmatpush2.msra.mxu0 0.0
      %2655 = vmatprep.subr.mxu0 0.0
      %2656 = vmatpush2.msra.mxu0 0.0
      %2657 = vmatprep.subr.mxu0 0.0
      %2658 = vmatpush2.msra.mxu0 0.0
      %2659 = vmatprep.subr.mxu0 0.0
      %2660 = vmatpush2.msra.mxu0 0.0
      %2661 = vmatprep.subr.mxu0 0.0
      %2662 = vmatpush2.msra.mxu0 0.0
      %2663 = vmatprep.subr.mxu0 0.0
      %2664 = vmatpush2.msra.mxu0 0.0
      %2665 = vmatprep.subr.mxu0 0.0
      %2666 = vmatpush2.msra.mxu0 0.0
      %2667 = vmatprep.subr.mxu0 0.0
      %2668 = vmatpush2.msra.mxu0 0.0
      %2669 = vmatprep.subr.mxu0 0.0
      %2670 = vmatpush2.msra.mxu0 0.0
      %2671 = vmatprep.subr.mxu0 0.0
      %2672 = vmatpush2.msra.mxu0 0.0
      %2673 = vmatprep.subr.mxu0 0.0
      %2674 = vmatpush2.msra.mxu0 0.0
      %2675 = vmatprep.subr.mxu0 0.0
      %2676 = vmatpush2.msra.mxu0 0.0
      %2677 = vmatprep.mubr.f32.mxu0 0.0
      %2678 = vmatmul.mubr.f32.gmra.mxu0 %v535
      %v2679 = vpop.f32.mrf.mxu0
      %v2680 = vadd.f32 0.0, %v2679
      %v2681 = vpop.f32.mrf.mxu0
      %2682 = vmatprep.mubr.f32.mxu0 0.0
      %2683 = vmatmul.mubr.f32.gmra.mxu0 %v537
      %v2684 = vpop.f32.mrf.mxu0
      %v2685 = vadd.f32 0.0, %v2684
      %v2686 = vpop.f32.mrf.mxu0
      %2687 = vmatprep.mubr.f32.mxu0 0.0
      %2688 = vmatmul.mubr.f32.gmra.mxu0 %v539
      %v2689 = vpop.f32.mrf.mxu0
      %v2690 = vadd.f32 0.0, %v2689
      %v2691 = vpop.f32.mrf.mxu0
      %2692 = vmatprep.mubr.f32.mxu0 0.0
      %2693 = vmatmul.mubr.f32.gmra.mxu0 %v541
      %v2694 = vpop.f32.mrf.mxu0
      %v2695 = vadd.f32 0.0, %v2694
      %v2696 = vpop.f32.mrf.mxu0
      %2697 = vmatprep.mubr.f32.mxu0 0.0
      %2698 = vmatmul.mubr.f32.gmra.mxu0 %v543
      %v2699 = vpop.f32.mrf.mxu0
      %v2700 = vadd.f32 0.0, %v2699
      %v2701 = vpop.f32.mrf.mxu0
      %2702 = vmatprep.mubr.f32.mxu0 0.0
      %2703 = vmatmul.mubr.f32.gmra.mxu0 %v545
      %v2704 = vpop.f32.mrf.mxu0
      %v2705 = vadd.f32 0.0, %v2704
      %v2706 = vpop.f32.mrf.mxu0
      %2707 = vmatprep.mubr.f32.mxu0 0.0
      %2708 = vmatmul.mubr.f32.gmra.mxu0 %v547
      %v2709 = vpop.f32.mrf.mxu0
      %v2710 = vadd.f32 0.0, %v2709
      %v2711 = vpop.f32.mrf.mxu0
      %2712 = vmatprep.mubr.f32.mxu0 0.0
      %2713 = vmatmul.mubr.f32.gmra.mxu0 %v549
      %v2714 = vpop.f32.mrf.mxu0
      %v2715 = vadd.f32 0.0, %v2714
      %v2716 = vpop.f32.mrf.mxu0
      %2717 = vmatprep.mubr.f32.mxu0 0.0
      %2718 = vmatmul.mubr.f32.gmra.mxu0 %v551
      %v2719 = vpop.f32.mrf.mxu0
      %v2720 = vadd.f32 0.0, %v2719
      %v2721 = vpop.f32.mrf.mxu0
      %2722 = vmatprep.mubr.f32.mxu0 0.0
      %2723 = vmatmul.mubr.f32.gmra.mxu0 %v553
      %v2724 = vpop.f32.mrf.mxu0
      %v2725 = vadd.f32 0.0, %v2724
      %v2726 = vpop.f32.mrf.mxu0
      %2727 = vmatprep.mubr.f32.mxu0 0.0
      %2728 = vmatmul.mubr.f32.gmra.mxu0 %v555
      %v2729 = vpop.f32.mrf.mxu0
      %v2730 = vadd.f32 0.0, %v2729
      %v2731 = vpop.f32.mrf.mxu0
      %2732 = vmatprep.mubr.f32.mxu0 0.0
      %2733 = vmatmul.mubr.f32.gmra.mxu0 %v557
      %v2734 = vpop.f32.mrf.mxu0
      %v2735 = vadd.f32 0.0, %v2734
      %v2736 = vpop.f32.mrf.mxu0
      %2737 = vmatprep.mubr.f32.mxu0 0.0
      %2738 = vmatmul.mubr.f32.gmra.mxu0 %v559
      %v2739 = vpop.f32.mrf.mxu0
      %v2740 = vadd.f32 0.0, %v2739
      %v2741 = vpop.f32.mrf.mxu0
      %2742 = vmatprep.mubr.f32.mxu0 0.0
      %2743 = vmatmul.mubr.f32.gmra.mxu0 %v561
      %v2744 = vpop.f32.mrf.mxu0
      %v2745 = vadd.f32 0.0, %v2744
      %v2746 = vpop.f32.mrf.mxu0
      %2747 = vmatprep.mubr.f32.mxu0 0.0
      %2748 = vmatmul.mubr.f32.gmra.mxu0 %v563
      %v2749 = vpop.f32.mrf.mxu0
      %v2750 = vadd.f32 0.0, %v2749
      %v2751 = vpop.f32.mrf.mxu0
      %2752 = vmatprep.mubr.f32.mxu0 0.0
      %2753 = vmatmul.mubr.f32.gmra.mxu0 %v565
      %v2754 = vpop.f32.mrf.mxu0
      %v2755 = vadd.f32 0.0, %v2754
      %v2756 = vpop.f32.mrf.mxu0
      %2757 = vmatprep.mubr.f32.mxu0 0.0
      %2758 = vmatmul.mubr.f32.gmra.mxu0 %v567
      %v2759 = vpop.f32.mrf.mxu0
      %v2760 = vadd.f32 0.0, %v2759
      %v2761 = vpop.f32.mrf.mxu0
      %2762 = vmatprep.mubr.f32.mxu0 0.0
      %2763 = vmatmul.mubr.f32.gmra.mxu0 %v569
      %v2764 = vpop.f32.mrf.mxu0
      %v2765 = vadd.f32 0.0, %v2764
      %v2766 = vpop.f32.mrf.mxu0
      %2767 = vmatprep.mubr.f32.mxu0 0.0
      %2768 = vmatmul.mubr.f32.gmra.mxu0 %v571
      %v2769 = vpop.f32.mrf.mxu0
      %v2770 = vadd.f32 0.0, %v2769
      %v2771 = vpop.f32.mrf.mxu0
      %2772 = vmatprep.mubr.f32.mxu0 0.0
      %2773 = vmatmul.mubr.f32.gmra.mxu0 %v573
      %v2774 = vpop.f32.mrf.mxu0
      %v2775 = vadd.f32 0.0, %v2774
      %v2776 = vpop.f32.mrf.mxu0
      %2777 = vmatprep.mubr.f32.mxu0 0.0
      %2778 = vmatmul.mubr.f32.gmra.mxu0 %v575
      %v2779 = vpop.f32.mrf.mxu0
      %v2780 = vadd.f32 0.0, %v2779
      %v2781 = vpop.f32.mrf.mxu0
      %2782 = vmatprep.mubr.f32.mxu0 0.0
      %2783 = vmatmul.mubr.f32.gmra.mxu0 %v577
      %v2784 = vpop.f32.mrf.mxu0
      %v2785 = vadd.f32 0.0, %v2784
      %v2786 = vpop.f32.mrf.mxu0
      %2787 = vmatprep.mubr.f32.mxu0 0.0
      %2788 = vmatmul.mubr.f32.gmra.mxu0 %v579
      %v2789 = vpop.f32.mrf.mxu0
      %v2790 = vadd.f32 0.0, %v2789
      %v2791 = vpop.f32.mrf.mxu0
      %2792 = vmatprep.mubr.f32.mxu0 0.0
      %2793 = vmatmul.mubr.f32.gmra.mxu0 %v581
      %v2794 = vpop.f32.mrf.mxu0
      %v2795 = vadd.f32 0.0, %v2794
      %v2796 = vpop.f32.mrf.mxu0
      %2797 = vmatprep.mubr.f32.mxu0 0.0
      %2798 = vmatmul.mubr.f32.gmra.mxu0 %v583
      %v2799 = vpop.f32.mrf.mxu0
      %v2800 = vadd.f32 0.0, %v2799
      %v2801 = vpop.f32.mrf.mxu0
      %2802 = vmatprep.mubr.f32.mxu0 0.0
      %2803 = vmatmul.mubr.f32.gmra.mxu0 %v585
      %v2804 = vpop.f32.mrf.mxu0
      %v2805 = vadd.f32 0.0, %v2804
      %v2806 = vpop.f32.mrf.mxu0
      %2807 = vmatprep.mubr.f32.mxu0 0.0
      %2808 = vmatmul.mubr.f32.gmra.mxu0 %v587
      %v2809 = vpop.f32.mrf.mxu0
      %v2810 = vadd.f32 0.0, %v2809
      %v2811 = vpop.f32.mrf.mxu0
      %2812 = vmatprep.mubr.f32.mxu0 0.0
      %2813 = vmatmul.mubr.f32.gmra.mxu0 %v589
      %v2814 = vpop.f32.mrf.mxu0
      %v2815 = vadd.f32 0.0, %v2814
      %v2816 = vpop.f32.mrf.mxu0
      %2817 = vmatprep.mubr.f32.mxu0 0.0
      %2818 = vmatmul.mubr.f32.gmra.mxu0 %v1795
      %v2819 = vpop.f32.mrf.mxu0
      %v2820 = vadd.f32 0.0, %v2819
      %v2821 = vpop.f32.mrf.mxu0
      %2822 = vmatprep.mubr.f32.mxu0 0.0
      %2823 = vmatmul.mubr.f32.gmra.mxu0 %v1797
      %v2824 = vpop.f32.mrf.mxu0
      %v2825 = vadd.f32 0.0, %v2824
      %v2826 = vpop.f32.mrf.mxu0
      %2827 = vmatprep.mubr.f32.mxu0 0.0
      %2828 = vmatmul.mubr.f32.gmra.mxu0 %v2606
      %v2829 = vpop.f32.mrf.mxu0
      %v2830 = vadd.f32 0.0, %v2829
      %v2831 = vpop.f32.mrf.mxu0
      %2832 = vmatprep.mubr.f32.mxu0 0.0
      %2833 = vmatmul.mubr.f32.gmra.mxu0 %v2608
      %v2834 = vpop.f32.mrf.mxu0
      %v2835 = vadd.f32 0.0, %v2834
      %v2836 = vpop.f32.mrf.mxu0
      %2837 = vdwg.mxu0
      %v2838 = vadd.f32 %v2566, %v2680
      %v2839 = vadd.f32 %v2567, %v2685
      %v2840 = vadd.f32 %v2568, %v2690
      %v2841 = vadd.f32 %v2569, %v2695
      %v2842 = vadd.f32 %v2570, %v2700
      %v2843 = vadd.f32 %v2571, %v2705
      %v2844 = vadd.f32 %v2572, %v2710
      %v2845 = vadd.f32 %v2573, %v2715
      %v2846 = vadd.f32 %v2574, %v2720
      %v2847 = vadd.f32 %v2575, %v2725
      %v2848 = vadd.f32 %v2576, %v2730
      %v2849 = vadd.f32 %v2577, %v2735
      %v2850 = vadd.f32 %v2578, %v2740
      %v2851 = vadd.f32 %v2579, %v2745
      %v2852 = vadd.f32 %v2580, %v2750
      %v2853 = vadd.f32 %v2581, %v2755
      %v2854 = vadd.f32 %v2582, %v2760
      %v2855 = vadd.f32 %v2583, %v2765
      %v2856 = vadd.f32 %v2584, %v2770
      %v2857 = vadd.f32 %v2585, %v2775
      %v2858 = vadd.f32 %v2586, %v2780
      %v2859 = vadd.f32 %v2587, %v2785
      %v2860 = vadd.f32 %v2588, %v2790
      %v2861 = vadd.f32 %v2589, %v2795
      %v2862 = vadd.f32 %v2590, %v2800
      %v2863 = vadd.f32 %v2591, %v2805
      %v2864 = vadd.f32 %v2592, %v2810
      %v2865 = vadd.f32 %v2593, %v2815
      %v2866 = vadd.f32 %v2594, %v2820
      %v2867 = vadd.f32 %v2595, %v2825
      %v2868 = vadd.f32 %v2596, %v2830
      %v2869 = vadd.f32 %v2597, %v2835
      %v2870 = vrot.slane %v392, 2
      %v2871 = vrot.slane %v393, 2
      %v2872 = vsel %vm1112, %v2870, %v2871
      %v2873 = vrot.slane %v394, 2
      %v2874 = vsel %vm1112, %v2871, %v2873
      %s2875 = scalar_lea.vmem %s1, 32
      %v2876 = vld [vmem:[%s2875] sm:$0xf]
      %v2877 = vsel %vm262, %v2872, 0
      %v2879 = vsel %vm262, %v2874, 0
      %v2882 = vsel %vm591, %v2876, 0
      %2884 = vmatprep.subr.mxu0 0.0
      %2885 = vmatpush1.msra.mxu0 0.0
      %2886 = vmatprep.subr.mxu0 0.0
      %2887 = vmatpush1.msra.mxu0 0.0
      %2888 = vmatprep.subr.mxu0 0.0
      %2889 = vmatpush1.msra.mxu0 0.0
      %2890 = vmatprep.subr.mxu0 0.0
      %2891 = vmatpush1.msra.mxu0 0.0
      %2892 = vmatprep.subr.mxu0 0.0
      %2893 = vmatpush1.msra.mxu0 0.0
      %2894 = vmatprep.subr.mxu0 0.0
      %2895 = vmatpush1.msra.mxu0 0.0
      %2896 = vmatprep.subr.mxu0 0.0
      %2897 = vmatpush1.msra.mxu0 0.0
      %2898 = vmatprep.subr.mxu0 0.0
      %2899 = vmatpush1.msra.mxu0 0.0
      %2900 = vmatprep.subr.mxu0 0.0
      %2901 = vmatpush1.msra.mxu0 0.0
      %2902 = vmatprep.subr.mxu0 0.0
      %2903 = vmatpush1.msra.mxu0 0.0
      %2904 = vmatprep.subr.mxu0 0.0
      %2905 = vmatpush1.msra.mxu0 0.0
      %2906 = vmatprep.subr.mxu0 0.0
      %2907 = vmatpush1.msra.mxu0 0.0
      %2908 = vmatprep.subr.mxu0 0.0
      %2909 = vmatpush1.msra.mxu0 0.0
      %2910 = vmatprep.subr.mxu0 0.0
      %2911 = vmatpush1.msra.mxu0 0.0
      %2912 = vmatprep.subr.mxu0 0.0
      %2913 = vmatpush1.msra.mxu0 0.0
      %2914 = vmatprep.subr.mxu0 0.0
      %2915 = vmatpush1.msra.mxu0 %v2882
      %2916 = vmatprep.subr.mxu0 0.0
      %2917 = vmatpush2.msra.mxu0 0.0
      %2918 = vmatprep.subr.mxu0 0.0
      %2919 = vmatpush2.msra.mxu0 0.0
      %2920 = vmatprep.subr.mxu0 0.0
      %2921 = vmatpush2.msra.mxu0 0.0
      %2922 = vmatprep.subr.mxu0 0.0
      %2923 = vmatpush2.msra.mxu0 0.0
      %2924 = vmatprep.subr.mxu0 0.0
      %2925 = vmatpush2.msra.mxu0 0.0
      %2926 = vmatprep.subr.mxu0 0.0
      %2927 = vmatpush2.msra.mxu0 0.0
      %2928 = vmatprep.subr.mxu0 0.0
      %2929 = vmatpush2.msra.mxu0 0.0
      %2930 = vmatprep.subr.mxu0 0.0
      %2931 = vmatpush2.msra.mxu0 0.0
      %2932 = vmatprep.subr.mxu0 0.0
      %2933 = vmatpush2.msra.mxu0 0.0
      %2934 = vmatprep.subr.mxu0 0.0
      %2935 = vmatpush2.msra.mxu0 0.0
      %2936 = vmatprep.subr.mxu0 0.0
      %2937 = vmatpush2.msra.mxu0 0.0
      %2938 = vmatprep.subr.mxu0 0.0
      %2939 = vmatpush2.msra.mxu0 0.0
      %2940 = vmatprep.subr.mxu0 0.0
      %2941 = vmatpush2.msra.mxu0 0.0
      %2942 = vmatprep.subr.mxu0 0.0
      %2943 = vmatpush2.msra.mxu0 0.0
      %2944 = vmatprep.subr.mxu0 0.0
      %2945 = vmatpush2.msra.mxu0 0.0
      %2946 = vmatprep.subr.mxu0 0.0
      %2947 = vmatpush2.msra.mxu0 0.0
      %2948 = vmatprep.mubr.f32.mxu0 0.0
      %2949 = vmatmul.mubr.f32.gmra.mxu0 %v1203
      %v2950 = vpop.f32.mrf.mxu0
      %v2951 = vadd.f32 0.0, %v2950
      %v2952 = vpop.f32.mrf.mxu0
      %2953 = vmatprep.mubr.f32.mxu0 0.0
      %2954 = vmatmul.mubr.f32.gmra.mxu0 %v1205
      %v2955 = vpop.f32.mrf.mxu0
      %v2956 = vadd.f32 0.0, %v2955
      %v2957 = vpop.f32.mrf.mxu0
      %2958 = vmatprep.mubr.f32.mxu0 0.0
      %2959 = vmatmul.mubr.f32.gmra.mxu0 %v1207
      %v2960 = vpop.f32.mrf.mxu0
      %v2961 = vadd.f32 0.0, %v2960
      %v2962 = vpop.f32.mrf.mxu0
      %2963 = vmatprep.mubr.f32.mxu0 0.0
      %2964 = vmatmul.mubr.f32.gmra.mxu0 %v1209
      %v2965 = vpop.f32.mrf.mxu0
      %v2966 = vadd.f32 0.0, %v2965
      %v2967 = vpop.f32.mrf.mxu0
      %2968 = vmatprep.mubr.f32.mxu0 0.0
      %2969 = vmatmul.mubr.f32.gmra.mxu0 %v1211
      %v2970 = vpop.f32.mrf.mxu0
      %v2971 = vadd.f32 0.0, %v2970
      %v2972 = vpop.f32.mrf.mxu0
      %2973 = vmatprep.mubr.f32.mxu0 0.0
      %2974 = vmatmul.mubr.f32.gmra.mxu0 %v1213
      %v2975 = vpop.f32.mrf.mxu0
      %v2976 = vadd.f32 0.0, %v2975
      %v2977 = vpop.f32.mrf.mxu0
      %2978 = vmatprep.mubr.f32.mxu0 0.0
      %2979 = vmatmul.mubr.f32.gmra.mxu0 %v1215
      %v2980 = vpop.f32.mrf.mxu0
      %v2981 = vadd.f32 0.0, %v2980
      %v2982 = vpop.f32.mrf.mxu0
      %2983 = vmatprep.mubr.f32.mxu0 0.0
      %2984 = vmatmul.mubr.f32.gmra.mxu0 %v1217
      %v2985 = vpop.f32.mrf.mxu0
      %v2986 = vadd.f32 0.0, %v2985
      %v2987 = vpop.f32.mrf.mxu0
      %2988 = vmatprep.mubr.f32.mxu0 0.0
      %2989 = vmatmul.mubr.f32.gmra.mxu0 %v1219
      %v2990 = vpop.f32.mrf.mxu0
      %v2991 = vadd.f32 0.0, %v2990
      %v2992 = vpop.f32.mrf.mxu0
      %2993 = vmatprep.mubr.f32.mxu0 0.0
      %2994 = vmatmul.mubr.f32.gmra.mxu0 %v1221
      %v2995 = vpop.f32.mrf.mxu0
      %v2996 = vadd.f32 0.0, %v2995
      %v2997 = vpop.f32.mrf.mxu0
      %2998 = vmatprep.mubr.f32.mxu0 0.0
      %2999 = vmatmul.mubr.f32.gmra.mxu0 %v1223
      %v3000 = vpop.f32.mrf.mxu0
      %v3001 = vadd.f32 0.0, %v3000
      %v3002 = vpop.f32.mrf.mxu0
      %3003 = vmatprep.mubr.f32.mxu0 0.0
      %3004 = vmatmul.mubr.f32.gmra.mxu0 %v1225
      %v3005 = vpop.f32.mrf.mxu0
      %v3006 = vadd.f32 0.0, %v3005
      %v3007 = vpop.f32.mrf.mxu0
      %3008 = vmatprep.mubr.f32.mxu0 0.0
      %3009 = vmatmul.mubr.f32.gmra.mxu0 %v1227
      %v3010 = vpop.f32.mrf.mxu0
      %v3011 = vadd.f32 0.0, %v3010
      %v3012 = vpop.f32.mrf.mxu0
      %3013 = vmatprep.mubr.f32.mxu0 0.0
      %3014 = vmatmul.mubr.f32.gmra.mxu0 %v1229
      %v3015 = vpop.f32.mrf.mxu0
      %v3016 = vadd.f32 0.0, %v3015
      %v3017 = vpop.f32.mrf.mxu0
      %3018 = vmatprep.mubr.f32.mxu0 0.0
      %3019 = vmatmul.mubr.f32.gmra.mxu0 %v1231
      %v3020 = vpop.f32.mrf.mxu0
      %v3021 = vadd.f32 0.0, %v3020
      %v3022 = vpop.f32.mrf.mxu0
      %3023 = vmatprep.mubr.f32.mxu0 0.0
      %3024 = vmatmul.mubr.f32.gmra.mxu0 %v1233
      %v3025 = vpop.f32.mrf.mxu0
      %v3026 = vadd.f32 0.0, %v3025
      %v3027 = vpop.f32.mrf.mxu0
      %3028 = vmatprep.mubr.f32.mxu0 0.0
      %3029 = vmatmul.mubr.f32.gmra.mxu0 %v1235
      %v3030 = vpop.f32.mrf.mxu0
      %v3031 = vadd.f32 0.0, %v3030
      %v3032 = vpop.f32.mrf.mxu0
      %3033 = vmatprep.mubr.f32.mxu0 0.0
      %3034 = vmatmul.mubr.f32.gmra.mxu0 %v1237
      %v3035 = vpop.f32.mrf.mxu0
      %v3036 = vadd.f32 0.0, %v3035
      %v3037 = vpop.f32.mrf.mxu0
      %3038 = vmatprep.mubr.f32.mxu0 0.0
      %3039 = vmatmul.mubr.f32.gmra.mxu0 %v1239
      %v3040 = vpop.f32.mrf.mxu0
      %v3041 = vadd.f32 0.0, %v3040
      %v3042 = vpop.f32.mrf.mxu0
      %3043 = vmatprep.mubr.f32.mxu0 0.0
      %3044 = vmatmul.mubr.f32.gmra.mxu0 %v1241
      %v3045 = vpop.f32.mrf.mxu0
      %v3046 = vadd.f32 0.0, %v3045
      %v3047 = vpop.f32.mrf.mxu0
      %3048 = vmatprep.mubr.f32.mxu0 0.0
      %3049 = vmatmul.mubr.f32.gmra.mxu0 %v1243
      %v3050 = vpop.f32.mrf.mxu0
      %v3051 = vadd.f32 0.0, %v3050
      %v3052 = vpop.f32.mrf.mxu0
      %3053 = vmatprep.mubr.f32.mxu0 0.0
      %3054 = vmatmul.mubr.f32.gmra.mxu0 %v1245
      %v3055 = vpop.f32.mrf.mxu0
      %v3056 = vadd.f32 0.0, %v3055
      %v3057 = vpop.f32.mrf.mxu0
      %3058 = vmatprep.mubr.f32.mxu0 0.0
      %3059 = vmatmul.mubr.f32.gmra.mxu0 %v1247
      %v3060 = vpop.f32.mrf.mxu0
      %v3061 = vadd.f32 0.0, %v3060
      %v3062 = vpop.f32.mrf.mxu0
      %3063 = vmatprep.mubr.f32.mxu0 0.0
      %3064 = vmatmul.mubr.f32.gmra.mxu0 %v1249
      %v3065 = vpop.f32.mrf.mxu0
      %v3066 = vadd.f32 0.0, %v3065
      %v3067 = vpop.f32.mrf.mxu0
      %3068 = vmatprep.mubr.f32.mxu0 0.0
      %3069 = vmatmul.mubr.f32.gmra.mxu0 %v1251
      %v3070 = vpop.f32.mrf.mxu0
      %v3071 = vadd.f32 0.0, %v3070
      %v3072 = vpop.f32.mrf.mxu0
      %3073 = vmatprep.mubr.f32.mxu0 0.0
      %3074 = vmatmul.mubr.f32.gmra.mxu0 %v1253
      %v3075 = vpop.f32.mrf.mxu0
      %v3076 = vadd.f32 0.0, %v3075
      %v3077 = vpop.f32.mrf.mxu0
      %3078 = vmatprep.mubr.f32.mxu0 0.0
      %3079 = vmatmul.mubr.f32.gmra.mxu0 %v1255
      %v3080 = vpop.f32.mrf.mxu0
      %v3081 = vadd.f32 0.0, %v3080
      %v3082 = vpop.f32.mrf.mxu0
      %3083 = vmatprep.mubr.f32.mxu0 0.0
      %3084 = vmatmul.mubr.f32.gmra.mxu0 %v1257
      %v3085 = vpop.f32.mrf.mxu0
      %v3086 = vadd.f32 0.0, %v3085
      %v3087 = vpop.f32.mrf.mxu0
      %3088 = vmatprep.mubr.f32.mxu0 0.0
      %3089 = vmatmul.mubr.f32.gmra.mxu0 %v2066
      %v3090 = vpop.f32.mrf.mxu0
      %v3091 = vadd.f32 0.0, %v3090
      %v3092 = vpop.f32.mrf.mxu0
      %3093 = vmatprep.mubr.f32.mxu0 0.0
      %3094 = vmatmul.mubr.f32.gmra.mxu0 %v2068
      %v3095 = vpop.f32.mrf.mxu0
      %v3096 = vadd.f32 0.0, %v3095
      %v3097 = vpop.f32.mrf.mxu0
      %3098 = vmatprep.mubr.f32.mxu0 0.0
      %3099 = vmatmul.mubr.f32.gmra.mxu0 %v2877
      %v3100 = vpop.f32.mrf.mxu0
      %v3101 = vadd.f32 0.0, %v3100
      %v3102 = vpop.f32.mrf.mxu0
      %3103 = vmatprep.mubr.f32.mxu0 0.0
      %3104 = vmatmul.mubr.f32.gmra.mxu0 %v2879
      %v3105 = vpop.f32.mrf.mxu0
      %v3106 = vadd.f32 0.0, %v3105
      %v3107 = vpop.f32.mrf.mxu0
      %3108 = vdwg.mxu0
      %v3109 = vadd.f32 %v2838, %v2951
      %v3110 = vadd.f32 %v2839, %v2956
      %v3111 = vadd.f32 %v2840, %v2961
      %v3112 = vadd.f32 %v2841, %v2966
      %v3113 = vadd.f32 %v2842, %v2971
      %v3114 = vadd.f32 %v2843, %v2976
      %v3115 = vadd.f32 %v2844, %v2981
      %v3116 = vadd.f32 %v2845, %v2986
      %v3117 = vadd.f32 %v2846, %v2991
      %v3118 = vadd.f32 %v2847, %v2996
      %v3119 = vadd.f32 %v2848, %v3001
      %v3120 = vadd.f32 %v2849, %v3006
      %v3121 = vadd.f32 %v2850, %v3011
      %v3122 = vadd.f32 %v2851, %v3016
      %v3123 = vadd.f32 %v2852, %v3021
      %v3124 = vadd.f32 %v2853, %v3026
      %v3125 = vadd.f32 %v2854, %v3031
      %v3126 = vadd.f32 %v2855, %v3036
      %v3127 = vadd.f32 %v2856, %v3041
      %v3128 = vadd.f32 %v2857, %v3046
      %v3129 = vadd.f32 %v2858, %v3051
      %v3130 = vadd.f32 %v2859, %v3056
      %v3131 = vadd.f32 %v2860, %v3061
      %v3132 = vadd.f32 %v2861, %v3066
      %v3133 = vadd.f32 %v2862, %v3071
      %v3134 = vadd.f32 %v2863, %v3076
      %v3135 = vadd.f32 %v2864, %v3081
      %v3136 = vadd.f32 %v2865, %v3086
      %v3137 = vadd.f32 %v2866, %v3091
      %v3138 = vadd.f32 %v2867, %v3096
      %v3139 = vadd.f32 %v2868, %v3101
      %v3140 = vadd.f32 %v2869, %v3106
      %v3141 = vmax.f32 %v3109, 0.0
      %v3142 = vmax.f32 %v3110, 0.0
      %v3143 = vmax.f32 %v3111, 0.0
      %v3144 = vmax.f32 %v3112, 0.0
      %v3145 = vmax.f32 %v3113, 0.0
      %v3146 = vmax.f32 %v3114, 0.0
      %v3147 = vmax.f32 %v3115, 0.0
      %v3148 = vmax.f32 %v3116, 0.0
      %v3149 = vmax.f32 %v3117, 0.0
      %v3150 = vmax.f32 %v3118, 0.0
      %v3151 = vmax.f32 %v3119, 0.0
      %v3152 = vmax.f32 %v3120, 0.0
      %v3153 = vmax.f32 %v3121, 0.0
      %v3154 = vmax.f32 %v3122, 0.0
      %v3155 = vmax.f32 %v3123, 0.0
      %v3156 = vmax.f32 %v3124, 0.0
      %v3157 = vmax.f32 %v3125, 0.0
      %v3158 = vmax.f32 %v3126, 0.0
      %v3159 = vmax.f32 %v3127, 0.0
      %v3160 = vmax.f32 %v3128, 0.0
      %v3161 = vmax.f32 %v3129, 0.0
      %v3162 = vmax.f32 %v3130, 0.0
      %v3163 = vmax.f32 %v3131, 0.0
      %v3164 = vmax.f32 %v3132, 0.0
      %v3165 = vmax.f32 %v3133, 0.0
      %v3166 = vmax.f32 %v3134, 0.0
      %v3167 = vmax.f32 %v3135, 0.0
      %v3168 = vmax.f32 %v3136, 0.0
      %v3169 = vmax.f32 %v3137, 0.0
      %v3170 = vmax.f32 %v3138, 0.0
      %v3171 = vmax.f32 %v3139, 0.0
      %v3172 = vmax.f32 %v3140, 0.0
      %s3173 = scalar_lea.vmem [#allocation3], 384
      %3174 = vst.msk [vmem:[%s3173] sm:$0xff] %vm262, 0.0
      %3175 = vst.msk [vmem:[%s3173 + $0x8] sm:$0xff] %vm262, 0.0
      %3176 = vst.msk [vmem:[%s3173 + $0x10] sm:$0x1] %vm271, 0.0
      %3177 = vst.msk [vmem:[#allocation3 + $0x10] sm:$0x1] %vm271, 0.0
      %3178 = vst.msk [vmem:[#allocation3 + $0x28] sm:$0x1] %vm271, 0.0
      %3179 = vst.msk [vmem:[#allocation3 + $0x40] sm:$0x1] %vm271, 0.0
      %3180 = vst.msk [vmem:[#allocation3 + $0x58] sm:$0x1] %vm271, 0.0
      %3181 = vst.msk [vmem:[#allocation3 + $0x70] sm:$0x1] %vm271, 0.0
      %3182 = vst.msk [vmem:[#allocation3 + $0x88] sm:$0x1] %vm271, 0.0
      %3183 = vst.msk [vmem:[#allocation3 + $0xa0] sm:$0x1] %vm271, 0.0
      %3184 = vst.msk [vmem:[#allocation3 + $0xb8] sm:$0x1] %vm271, 0.0
      %3185 = vst.msk [vmem:[#allocation3 + $0xd0] sm:$0x1] %vm271, 0.0
      %3186 = vst.msk [vmem:[#allocation3 + $0xe8] sm:$0x1] %vm271, 0.0
      %3187 = vst.msk [vmem:[#allocation3 + $0x100] sm:$0x1] %vm271, 0.0
      %3188 = vst.msk [vmem:[#allocation3 + $0x118] sm:$0x1] %vm271, 0.0
      %3189 = vst.msk [vmem:[#allocation3 + $0x130] sm:$0x1] %vm271, 0.0
      %3190 = vst.msk [vmem:[#allocation3 + $0x148] sm:$0x1] %vm271, 0.0
      %3191 = vst.msk [vmem:[#allocation3 + $0x160] sm:$0x1] %vm271, 0.0
      %3192 = vst.msk [vmem:[#allocation3 + $0x178] sm:$0x1] %vm271, 0.0
      %3193 = vst.msk [vmem:[#allocation3 + $0x190] sm:$0x1] %vm271, 0.0
      %3194 = vst.msk [vmem:[#allocation3] sm:$0xff] %vm262, %v3141
      %3195 = vst.msk [vmem:[#allocation3 + $0x8] sm:$0xff] %vm262, %v3142
      %3196 = vst.msk [vmem:[#allocation3 + $0x18] sm:$0xff] %vm262, %v3143
      %3197 = vst.msk [vmem:[#allocation3 + $0x20] sm:$0xff] %vm262, %v3144
      %3198 = vst.msk [vmem:[#allocation3 + $0x30] sm:$0xff] %vm262, %v3145
      %3199 = vst.msk [vmem:[#allocation3 + $0x38] sm:$0xff] %vm262, %v3146
      %3200 = vst.msk [vmem:[#allocation3 + $0x48] sm:$0xff] %vm262, %v3147
      %3201 = vst.msk [vmem:[#allocation3 + $0x50] sm:$0xff] %vm262, %v3148
      %3202 = vst.msk [vmem:[#allocation3 + $0x60] sm:$0xff] %vm262, %v3149
      %3203 = vst.msk [vmem:[#allocation3 + $0x68] sm:$0xff] %vm262, %v3150
      %3204 = vst.msk [vmem:[#allocation3 + $0x78] sm:$0xff] %vm262, %v3151
      %3205 = vst.msk [vmem:[#allocation3 + $0x80] sm:$0xff] %vm262, %v3152
      %3206 = vst.msk [vmem:[#allocation3 + $0x90] sm:$0xff] %vm262, %v3153
      %3207 = vst.msk [vmem:[#allocation3 + $0x98] sm:$0xff] %vm262, %v3154
      %3208 = vst.msk [vmem:[#allocation3 + $0xa8] sm:$0xff] %vm262, %v3155
      %3209 = vst.msk [vmem:[#allocation3 + $0xb0] sm:$0xff] %vm262, %v3156
      %3210 = vst.msk [vmem:[#allocation3 + $0xc0] sm:$0xff] %vm262, %v3157
      %3211 = vst.msk [vmem:[#allocation3 + $0xc8] sm:$0xff] %vm262, %v3158
      %3212 = vst.msk [vmem:[#allocation3 + $0xd8] sm:$0xff] %vm262, %v3159
      %3213 = vst.msk [vmem:[#allocation3 + $0xe0] sm:$0xff] %vm262, %v3160
      %3214 = vst.msk [vmem:[#allocation3 + $0xf0] sm:$0xff] %vm262, %v3161
      %3215 = vst.msk [vmem:[#allocation3 + $0xf8] sm:$0xff] %vm262, %v3162
      %3216 = vst.msk [vmem:[#allocation3 + $0x108] sm:$0xff] %vm262, %v3163
      %3217 = vst.msk [vmem:[#allocation3 + $0x110] sm:$0xff] %vm262, %v3164
      %3218 = vst.msk [vmem:[#allocation3 + $0x120] sm:$0xff] %vm262, %v3165
      %3219 = vst.msk [vmem:[#allocation3 + $0x128] sm:$0xff] %vm262, %v3166
      %3220 = vst.msk [vmem:[#allocation3 + $0x138] sm:$0xff] %vm262, %v3167
      %3221 = vst.msk [vmem:[#allocation3 + $0x140] sm:$0xff] %vm262, %v3168
      %3222 = vst.msk [vmem:[#allocation3 + $0x150] sm:$0xff] %vm262, %v3169
      %3223 = vst.msk [vmem:[#allocation3 + $0x158] sm:$0xff] %vm262, %v3170
      %3224 = vst.msk [vmem:[#allocation3 + $0x168] sm:$0xff] %vm262, %v3171
      %3225 = vst.msk [vmem:[#allocation3 + $0x170] sm:$0xff] %vm262, %v3172
      %v3226 = vld [vmem:[#allocation3] sm:$0xff]
      %v3227 = vld [vmem:[#allocation3 + $0x8] sm:$0xff]
      %v3228 = vld [vmem:[#allocation3 + $0x10] sm:$0x1]
      %v3229 = vld [vmem:[#allocation3 + $0x18] sm:$0xff]
      %v3230 = vld [vmem:[#allocation3 + $0x20] sm:$0xff]
      %v3231 = vld [vmem:[#allocation3 + $0x28] sm:$0x1]
      %v3232 = vld [vmem:[#allocation3 + $0x30] sm:$0xff]
      %v3233 = vld [vmem:[#allocation3 + $0x38] sm:$0xff]
      %v3234 = vld [vmem:[#allocation3 + $0x40] sm:$0x1]
      %v3235 = vld [vmem:[#allocation3 + $0x48] sm:$0xff]
      %v3236 = vld [vmem:[#allocation3 + $0x50] sm:$0xff]
      %v3237 = vld [vmem:[#allocation3 + $0x58] sm:$0x1]
      %v3238 = vld [vmem:[#allocation3 + $0x60] sm:$0xff]
      %v3239 = vld [vmem:[#allocation3 + $0x68] sm:$0xff]
      %v3240 = vld [vmem:[#allocation3 + $0x70] sm:$0x1]
      %v3241 = vld [vmem:[#allocation3 + $0x78] sm:$0xff]
      %v3242 = vld [vmem:[#allocation3 + $0x80] sm:$0xff]
      %v3243 = vld [vmem:[#allocation3 + $0x88] sm:$0x1]
      %v3244 = vld [vmem:[#allocation3 + $0x90] sm:$0xff]
      %v3245 = vld [vmem:[#allocation3 + $0x98] sm:$0xff]
      %v3246 = vld [vmem:[#allocation3 + $0xa0] sm:$0x1]
      %v3247 = vld [vmem:[#allocation3 + $0xa8] sm:$0xff]
      %v3248 = vld [vmem:[#allocation3 + $0xb0] sm:$0xff]
      %v3249 = vld [vmem:[#allocation3 + $0xb8] sm:$0x1]
      %v3250 = vld [vmem:[#allocation3 + $0xc0] sm:$0xff]
      %v3251 = vld [vmem:[#allocation3 + $0xc8] sm:$0xff]
      %v3252 = vld [vmem:[#allocation3 + $0xd0] sm:$0x1]
      %v3253 = vld [vmem:[#allocation3 + $0xd8] sm:$0xff]
      %v3254 = vld [vmem:[#allocation3 + $0xe0] sm:$0xff]
      %v3255 = vld [vmem:[#allocation3 + $0xe8] sm:$0x1]
      %v3256 = vld [vmem:[#allocation3 + $0xf0] sm:$0xff]
      %v3257 = vld [vmem:[#allocation3 + $0xf8] sm:$0xff]
      %v3258 = vld [vmem:[#allocation3 + $0x100] sm:$0x1]
      %v3259 = vld [vmem:[#allocation3 + $0x108] sm:$0xff]
      %v3260 = vld [vmem:[#allocation3 + $0x110] sm:$0xff]
      %v3261 = vld [vmem:[#allocation3 + $0x118] sm:$0x1]
      %v3262 = vld [vmem:[#allocation3 + $0x120] sm:$0xff]
      %v3263 = vld [vmem:[#allocation3 + $0x128] sm:$0xff]
      %v3264 = vld [vmem:[#allocation3 + $0x130] sm:$0x1]
      %v3265 = vld [vmem:[#allocation3 + $0x138] sm:$0xff]
      %v3266 = vld [vmem:[#allocation3 + $0x140] sm:$0xff]
      %v3267 = vld [vmem:[#allocation3 + $0x148] sm:$0x1]
      %v3268 = vld [vmem:[#allocation3 + $0x150] sm:$0xff]
      %v3269 = vld [vmem:[#allocation3 + $0x158] sm:$0xff]
      %v3270 = vld [vmem:[#allocation3 + $0x160] sm:$0x1]
      %v3271 = vld [vmem:[#allocation3 + $0x168] sm:$0xff]
      %v3272 = vld [vmem:[#allocation3 + $0x170] sm:$0xff]
      %v3273 = vld [vmem:[#allocation3 + $0x178] sm:$0x1]
      %v3274 = vld [vmem:[#allocation3 + $0x180] sm:$0xff]
      %v3275 = vld [vmem:[#allocation3 + $0x188] sm:$0xff]
      %v3276 = vld [vmem:[#allocation3 + $0x190] sm:$0x1]
      %v3277 = vld [vmem:[%s2] sm:$0xf]
      %v3278 = vld [vmem:[%s3] sm:$0xf]
      %v3280 = vsel %vm262, %v230, 0
      %v3283 = vsel %vm262, %v231, 0
      %v3286 = vsel %vm262, %v232, 0
      %v3289 = vsel %vm262, %v233, 0
      %v3292 = vsel %vm262, %v234, 0
      %v3295 = vsel %vm262, %v235, 0
      %v3298 = vsel %vm262, %v236, 0
      %v3301 = vsel %vm262, %v237, 0
      %v3304 = vsel %vm262, %v238, 0
      %v3307 = vsel %vm262, %v239, 0
      %v3310 = vsel %vm262, %v240, 0
      %v3313 = vsel %vm262, %v241, 0
      %v3316 = vsel %vm262, %v242, 0
      %v3319 = vsel %vm262, %v243, 0
      %v3322 = vsel %vm262, %v244, 0
      %v3325 = vsel %vm262, %v245, 0
      %v3328 = vsel %vm262, %v246, 0
      %v3331 = vsel %vm262, %v247, 0
      %v3334 = vsel %vm262, %v248, 0
      %v3337 = vsel %vm262, %v249, 0
      %v3340 = vsel %vm262, %v250, 0
      %v3343 = vsel %vm262, %v251, 0
      %v3346 = vsel %vm262, %v252, 0
      %v3349 = vsel %vm262, %v253, 0
      %v3352 = vsel %vm262, %v254, 0
      %v3355 = vsel %vm262, %v255, 0
      %v3358 = vsel %vm262, %v256, 0
      %v3361 = vsel %vm262, %v257, 0
      %v3364 = vsel %vm262, %v258, 0
      %v3367 = vsel %vm262, %v259, 0
      %v3370 = vsel %vm262, %v260, 0
      %v3373 = vsel %vm262, %v261, 0
      %v3376 = vsel %vm591, %v3278, 0
      %3378 = vmatprep.subr.mxu0 0.0
      %3379 = vmatpush1.msra.mxu0 0.0
      %3380 = vmatprep.subr.mxu0 0.0
      %3381 = vmatpush1.msra.mxu0 0.0
      %3382 = vmatprep.subr.mxu0 0.0
      %3383 = vmatpush1.msra.mxu0 0.0
      %3384 = vmatprep.subr.mxu0 0.0
      %3385 = vmatpush1.msra.mxu0 0.0
      %3386 = vmatprep.subr.mxu0 0.0
      %3387 = vmatpush1.msra.mxu0 0.0
      %3388 = vmatprep.subr.mxu0 0.0
      %3389 = vmatpush1.msra.mxu0 0.0
      %3390 = vmatprep.subr.mxu0 0.0
      %3391 = vmatpush1.msra.mxu0 0.0
      %3392 = vmatprep.subr.mxu0 0.0
      %3393 = vmatpush1.msra.mxu0 0.0
      %3394 = vmatprep.subr.mxu0 0.0
      %3395 = vmatpush1.msra.mxu0 0.0
      %3396 = vmatprep.subr.mxu0 0.0
      %3397 = vmatpush1.msra.mxu0 0.0
      %3398 = vmatprep.subr.mxu0 0.0
      %3399 = vmatpush1.msra.mxu0 0.0
      %3400 = vmatprep.subr.mxu0 0.0
      %3401 = vmatpush1.msra.mxu0 0.0
      %3402 = vmatprep.subr.mxu0 0.0
      %3403 = vmatpush1.msra.mxu0 0.0
      %3404 = vmatprep.subr.mxu0 0.0
      %3405 = vmatpush1.msra.mxu0 0.0
      %3406 = vmatprep.subr.mxu0 0.0
      %3407 = vmatpush1.msra.mxu0 0.0
      %3408 = vmatprep.subr.mxu0 0.0
      %3409 = vmatpush1.msra.mxu0 %v3376
      %3410 = vmatprep.subr.mxu0 0.0
      %3411 = vmatpush2.msra.mxu0 0.0
      %3412 = vmatprep.subr.mxu0 0.0
      %3413 = vmatpush2.msra.mxu0 0.0
      %3414 = vmatprep.subr.mxu0 0.0
      %3415 = vmatpush2.msra.mxu0 0.0
      %3416 = vmatprep.subr.mxu0 0.0
      %3417 = vmatpush2.msra.mxu0 0.0
      %3418 = vmatprep.subr.mxu0 0.0
      %3419 = vmatpush2.msra.mxu0 0.0
      %3420 = vmatprep.subr.mxu0 0.0
      %3421 = vmatpush2.msra.mxu0 0.0
      %3422 = vmatprep.subr.mxu0 0.0
      %3423 = vmatpush2.msra.mxu0 0.0
      %3424 = vmatprep.subr.mxu0 0.0
      %3425 = vmatpush2.msra.mxu0 0.0
      %3426 = vmatprep.subr.mxu0 0.0
      %3427 = vmatpush2.msra.mxu0 0.0
      %3428 = vmatprep.subr.mxu0 0.0
      %3429 = vmatpush2.msra.mxu0 0.0
      %3430 = vmatprep.subr.mxu0 0.0
      %3431 = vmatpush2.msra.mxu0 0.0
      %3432 = vmatprep.subr.mxu0 0.0
      %3433 = vmatpush2.msra.mxu0 0.0
      %3434 = vmatprep.subr.mxu0 0.0
      %3435 = vmatpush2.msra.mxu0 0.0
      %3436 = vmatprep.subr.mxu0 0.0
      %3437 = vmatpush2.msra.mxu0 0.0
      %3438 = vmatprep.subr.mxu0 0.0
      %3439 = vmatpush2.msra.mxu0 0.0
      %3440 = vmatprep.subr.mxu0 0.0
      %3441 = vmatpush2.msra.mxu0 0.0
      %3442 = vmatprep.mubr.f32.mxu0 0.0
      %3443 = vmatmul.mubr.f32.gmra.mxu0 %v3280
      %v3444 = vpop.f32.mrf.mxu0
      %v3445 = vadd.f32 0.0, %v3444
      %v3446 = vpop.f32.mrf.mxu0
      %3447 = vmatprep.mubr.f32.mxu0 0.0
      %3448 = vmatmul.mubr.f32.gmra.mxu0 %v3283
      %v3449 = vpop.f32.mrf.mxu0
      %v3450 = vadd.f32 0.0, %v3449
      %v3451 = vpop.f32.mrf.mxu0
      %3452 = vmatprep.mubr.f32.mxu0 0.0
      %3453 = vmatmul.mubr.f32.gmra.mxu0 %v3286
      %v3454 = vpop.f32.mrf.mxu0
      %v3455 = vadd.f32 0.0, %v3454
      %v3456 = vpop.f32.mrf.mxu0
      %3457 = vmatprep.mubr.f32.mxu0 0.0
      %3458 = vmatmul.mubr.f32.gmra.mxu0 %v3289
      %v3459 = vpop.f32.mrf.mxu0
      %v3460 = vadd.f32 0.0, %v3459
      %v3461 = vpop.f32.mrf.mxu0
      %3462 = vmatprep.mubr.f32.mxu0 0.0
      %3463 = vmatmul.mubr.f32.gmra.mxu0 %v3292
      %v3464 = vpop.f32.mrf.mxu0
      %v3465 = vadd.f32 0.0, %v3464
      %v3466 = vpop.f32.mrf.mxu0
      %3467 = vmatprep.mubr.f32.mxu0 0.0
      %3468 = vmatmul.mubr.f32.gmra.mxu0 %v3295
      %v3469 = vpop.f32.mrf.mxu0
      %v3470 = vadd.f32 0.0, %v3469
      %v3471 = vpop.f32.mrf.mxu0
      %3472 = vmatprep.mubr.f32.mxu0 0.0
      %3473 = vmatmul.mubr.f32.gmra.mxu0 %v3298
      %v3474 = vpop.f32.mrf.mxu0
      %v3475 = vadd.f32 0.0, %v3474
      %v3476 = vpop.f32.mrf.mxu0
      %3477 = vmatprep.mubr.f32.mxu0 0.0
      %3478 = vmatmul.mubr.f32.gmra.mxu0 %v3301
      %v3479 = vpop.f32.mrf.mxu0
      %v3480 = vadd.f32 0.0, %v3479
      %v3481 = vpop.f32.mrf.mxu0
      %3482 = vmatprep.mubr.f32.mxu0 0.0
      %3483 = vmatmul.mubr.f32.gmra.mxu0 %v3304
      %v3484 = vpop.f32.mrf.mxu0
      %v3485 = vadd.f32 0.0, %v3484
      %v3486 = vpop.f32.mrf.mxu0
      %3487 = vmatprep.mubr.f32.mxu0 0.0
      %3488 = vmatmul.mubr.f32.gmra.mxu0 %v3307
      %v3489 = vpop.f32.mrf.mxu0
      %v3490 = vadd.f32 0.0, %v3489
      %v3491 = vpop.f32.mrf.mxu0
      %3492 = vmatprep.mubr.f32.mxu0 0.0
      %3493 = vmatmul.mubr.f32.gmra.mxu0 %v3310
      %v3494 = vpop.f32.mrf.mxu0
      %v3495 = vadd.f32 0.0, %v3494
      %v3496 = vpop.f32.mrf.mxu0
      %3497 = vmatprep.mubr.f32.mxu0 0.0
      %3498 = vmatmul.mubr.f32.gmra.mxu0 %v3313
      %v3499 = vpop.f32.mrf.mxu0
      %v3500 = vadd.f32 0.0, %v3499
      %v3501 = vpop.f32.mrf.mxu0
      %3502 = vmatprep.mubr.f32.mxu0 0.0
      %3503 = vmatmul.mubr.f32.gmra.mxu0 %v3316
      %v3504 = vpop.f32.mrf.mxu0
      %v3505 = vadd.f32 0.0, %v3504
      %v3506 = vpop.f32.mrf.mxu0
      %3507 = vmatprep.mubr.f32.mxu0 0.0
      %3508 = vmatmul.mubr.f32.gmra.mxu0 %v3319
      %v3509 = vpop.f32.mrf.mxu0
      %v3510 = vadd.f32 0.0, %v3509
      %v3511 = vpop.f32.mrf.mxu0
      %3512 = vmatprep.mubr.f32.mxu0 0.0
      %3513 = vmatmul.mubr.f32.gmra.mxu0 %v3322
      %v3514 = vpop.f32.mrf.mxu0
      %v3515 = vadd.f32 0.0, %v3514
      %v3516 = vpop.f32.mrf.mxu0
      %3517 = vmatprep.mubr.f32.mxu0 0.0
      %3518 = vmatmul.mubr.f32.gmra.mxu0 %v3325
      %v3519 = vpop.f32.mrf.mxu0
      %v3520 = vadd.f32 0.0, %v3519
      %v3521 = vpop.f32.mrf.mxu0
      %3522 = vmatprep.mubr.f32.mxu0 0.0
      %3523 = vmatmul.mubr.f32.gmra.mxu0 %v3328
      %v3524 = vpop.f32.mrf.mxu0
      %v3525 = vadd.f32 0.0, %v3524
      %v3526 = vpop.f32.mrf.mxu0
      %3527 = vmatprep.mubr.f32.mxu0 0.0
      %3528 = vmatmul.mubr.f32.gmra.mxu0 %v3331
      %v3529 = vpop.f32.mrf.mxu0
      %v3530 = vadd.f32 0.0, %v3529
      %v3531 = vpop.f32.mrf.mxu0
      %3532 = vmatprep.mubr.f32.mxu0 0.0
      %3533 = vmatmul.mubr.f32.gmra.mxu0 %v3334
      %v3534 = vpop.f32.mrf.mxu0
      %v3535 = vadd.f32 0.0, %v3534
      %v3536 = vpop.f32.mrf.mxu0
      %3537 = vmatprep.mubr.f32.mxu0 0.0
      %3538 = vmatmul.mubr.f32.gmra.mxu0 %v3337
      %v3539 = vpop.f32.mrf.mxu0
      %v3540 = vadd.f32 0.0, %v3539
      %v3541 = vpop.f32.mrf.mxu0
      %3542 = vmatprep.mubr.f32.mxu0 0.0
      %3543 = vmatmul.mubr.f32.gmra.mxu0 %v3340
      %v3544 = vpop.f32.mrf.mxu0
      %v3545 = vadd.f32 0.0, %v3544
      %v3546 = vpop.f32.mrf.mxu0
      %3547 = vmatprep.mubr.f32.mxu0 0.0
      %3548 = vmatmul.mubr.f32.gmra.mxu0 %v3343
      %v3549 = vpop.f32.mrf.mxu0
      %v3550 = vadd.f32 0.0, %v3549
      %v3551 = vpop.f32.mrf.mxu0
      %3552 = vmatprep.mubr.f32.mxu0 0.0
      %3553 = vmatmul.mubr.f32.gmra.mxu0 %v3346
      %v3554 = vpop.f32.mrf.mxu0
      %v3555 = vadd.f32 0.0, %v3554
      %v3556 = vpop.f32.mrf.mxu0
      %3557 = vmatprep.mubr.f32.mxu0 0.0
      %3558 = vmatmul.mubr.f32.gmra.mxu0 %v3349
      %v3559 = vpop.f32.mrf.mxu0
      %v3560 = vadd.f32 0.0, %v3559
      %v3561 = vpop.f32.mrf.mxu0
      %3562 = vmatprep.mubr.f32.mxu0 0.0
      %3563 = vmatmul.mubr.f32.gmra.mxu0 %v3352
      %v3564 = vpop.f32.mrf.mxu0
      %v3565 = vadd.f32 0.0, %v3564
      %v3566 = vpop.f32.mrf.mxu0
      %3567 = vmatprep.mubr.f32.mxu0 0.0
      %3568 = vmatmul.mubr.f32.gmra.mxu0 %v3355
      %v3569 = vpop.f32.mrf.mxu0
      %v3570 = vadd.f32 0.0, %v3569
      %v3571 = vpop.f32.mrf.mxu0
      %3572 = vmatprep.mubr.f32.mxu0 0.0
      %3573 = vmatmul.mubr.f32.gmra.mxu0 %v3358
      %v3574 = vpop.f32.mrf.mxu0
      %v3575 = vadd.f32 0.0, %v3574
      %v3576 = vpop.f32.mrf.mxu0
      %3577 = vmatprep.mubr.f32.mxu0 0.0
      %3578 = vmatmul.mubr.f32.gmra.mxu0 %v3361
      %v3579 = vpop.f32.mrf.mxu0
      %v3580 = vadd.f32 0.0, %v3579
      %v3581 = vpop.f32.mrf.mxu0
      %3582 = vmatprep.mubr.f32.mxu0 0.0
      %3583 = vmatmul.mubr.f32.gmra.mxu0 %v3364
      %v3584 = vpop.f32.mrf.mxu0
      %v3585 = vadd.f32 0.0, %v3584
      %v3586 = vpop.f32.mrf.mxu0
      %3587 = vmatprep.mubr.f32.mxu0 0.0
      %3588 = vmatmul.mubr.f32.gmra.mxu0 %v3367
      %v3589 = vpop.f32.mrf.mxu0
      %v3590 = vadd.f32 0.0, %v3589
      %v3591 = vpop.f32.mrf.mxu0
      %3592 = vmatprep.mubr.f32.mxu0 0.0
      %3593 = vmatmul.mubr.f32.gmra.mxu0 %v3370
      %v3594 = vpop.f32.mrf.mxu0
      %v3595 = vadd.f32 0.0, %v3594
      %v3596 = vpop.f32.mrf.mxu0
      %3597 = vmatprep.mubr.f32.mxu0 0.0
      %3598 = vmatmul.mubr.f32.gmra.mxu0 %v3373
      %v3599 = vpop.f32.mrf.mxu0
      %v3600 = vadd.f32 0.0, %v3599
      %v3601 = vpop.f32.mrf.mxu0
      %3602 = vdwg.mxu0
      %v3604 = vsel %vm262, %v3226, 0
      %v3607 = vsel %vm262, %v3227, 0
      %v3610 = vsel %vm262, %v3229, 0
      %v3613 = vsel %vm262, %v3230, 0
      %v3616 = vsel %vm262, %v3232, 0
      %v3619 = vsel %vm262, %v3233, 0
      %v3622 = vsel %vm262, %v3235, 0
      %v3625 = vsel %vm262, %v3236, 0
      %v3628 = vsel %vm262, %v3238, 0
      %v3631 = vsel %vm262, %v3239, 0
      %v3634 = vsel %vm262, %v3241, 0
      %v3637 = vsel %vm262, %v3242, 0
      %v3640 = vsel %vm262, %v3244, 0
      %v3643 = vsel %vm262, %v3245, 0
      %v3646 = vsel %vm262, %v3247, 0
      %v3649 = vsel %vm262, %v3248, 0
      %v3652 = vsel %vm262, %v3250, 0
      %v3655 = vsel %vm262, %v3251, 0
      %v3658 = vsel %vm262, %v3253, 0
      %v3661 = vsel %vm262, %v3254, 0
      %v3664 = vsel %vm262, %v3256, 0
      %v3667 = vsel %vm262, %v3257, 0
      %v3670 = vsel %vm262, %v3259, 0
      %v3673 = vsel %vm262, %v3260, 0
      %v3676 = vsel %vm262, %v3262, 0
      %v3679 = vsel %vm262, %v3263, 0
      %v3682 = vsel %vm262, %v3265, 0
      %v3685 = vsel %vm262, %v3266, 0
      %v3688 = vsel %vm262, %v3268, 0
      %v3691 = vsel %vm262, %v3269, 0
      %v3694 = vsel %vm262, %v3271, 0
      %v3697 = vsel %vm262, %v3272, 0
      %v3700 = vsel %vm591, %v3277, 0
      %3702 = vmatprep.subr.mxu0 0.0
      %3703 = vmatpush1.msra.mxu0 0.0
      %3704 = vmatprep.subr.mxu0 0.0
      %3705 = vmatpush1.msra.mxu0 0.0
      %3706 = vmatprep.subr.mxu0 0.0
      %3707 = vmatpush1.msra.mxu0 0.0
      %3708 = vmatprep.subr.mxu0 0.0
      %3709 = vmatpush1.msra.mxu0 0.0
      %3710 = vmatprep.subr.mxu0 0.0
      %3711 = vmatpush1.msra.mxu0 0.0
      %3712 = vmatprep.subr.mxu0 0.0
      %3713 = vmatpush1.msra.mxu0 0.0
      %3714 = vmatprep.subr.mxu0 0.0
      %3715 = vmatpush1.msra.mxu0 0.0
      %3716 = vmatprep.subr.mxu0 0.0
      %3717 = vmatpush1.msra.mxu0 0.0
      %3718 = vmatprep.subr.mxu0 0.0
      %3719 = vmatpush1.msra.mxu0 0.0
      %3720 = vmatprep.subr.mxu0 0.0
      %3721 = vmatpush1.msra.mxu0 0.0
      %3722 = vmatprep.subr.mxu0 0.0
      %3723 = vmatpush1.msra.mxu0 0.0
      %3724 = vmatprep.subr.mxu0 0.0
      %3725 = vmatpush1.msra.mxu0 0.0
      %3726 = vmatprep.subr.mxu0 0.0
      %3727 = vmatpush1.msra.mxu0 0.0
      %3728 = vmatprep.subr.mxu0 0.0
      %3729 = vmatpush1.msra.mxu0 0.0
      %3730 = vmatprep.subr.mxu0 0.0
      %3731 = vmatpush1.msra.mxu0 0.0
      %3732 = vmatprep.subr.mxu0 0.0
      %3733 = vmatpush1.msra.mxu0 %v3700
      %3734 = vmatprep.subr.mxu0 0.0
      %3735 = vmatpush2.msra.mxu0 0.0
      %3736 = vmatprep.subr.mxu0 0.0
      %3737 = vmatpush2.msra.mxu0 0.0
      %3738 = vmatprep.subr.mxu0 0.0
      %3739 = vmatpush2.msra.mxu0 0.0
      %3740 = vmatprep.subr.mxu0 0.0
      %3741 = vmatpush2.msra.mxu0 0.0
      %3742 = vmatprep.subr.mxu0 0.0
      %3743 = vmatpush2.msra.mxu0 0.0
      %3744 = vmatprep.subr.mxu0 0.0
      %3745 = vmatpush2.msra.mxu0 0.0
      %3746 = vmatprep.subr.mxu0 0.0
      %3747 = vmatpush2.msra.mxu0 0.0
      %3748 = vmatprep.subr.mxu0 0.0
      %3749 = vmatpush2.msra.mxu0 0.0
      %3750 = vmatprep.subr.mxu0 0.0
      %3751 = vmatpush2.msra.mxu0 0.0
      %3752 = vmatprep.subr.mxu0 0.0
      %3753 = vmatpush2.msra.mxu0 0.0
      %3754 = vmatprep.subr.mxu0 0.0
      %3755 = vmatpush2.msra.mxu0 0.0
      %3756 = vmatprep.subr.mxu0 0.0
      %3757 = vmatpush2.msra.mxu0 0.0
      %3758 = vmatprep.subr.mxu0 0.0
      %3759 = vmatpush2.msra.mxu0 0.0
      %3760 = vmatprep.subr.mxu0 0.0
      %3761 = vmatpush2.msra.mxu0 0.0
      %3762 = vmatprep.subr.mxu0 0.0
      %3763 = vmatpush2.msra.mxu0 0.0
      %3764 = vmatprep.subr.mxu0 0.0
      %3765 = vmatpush2.msra.mxu0 0.0
      %3766 = vmatprep.mubr.f32.mxu0 0.0
      %3767 = vmatmul.mubr.f32.gmra.mxu0 %v3604
      %v3768 = vpop.f32.mrf.mxu0
      %v3769 = vadd.f32 %v3445, %v3768
      %v3770 = vpop.f32.mrf.mxu0
      %3771 = vmatprep.mubr.f32.mxu0 0.0
      %3772 = vmatmul.mubr.f32.gmra.mxu0 %v3607
      %v3773 = vpop.f32.mrf.mxu0
      %v3774 = vadd.f32 %v3450, %v3773
      %v3775 = vpop.f32.mrf.mxu0
      %3776 = vmatprep.mubr.f32.mxu0 0.0
      %3777 = vmatmul.mubr.f32.gmra.mxu0 %v3610
      %v3778 = vpop.f32.mrf.mxu0
      %v3779 = vadd.f32 %v3455, %v3778
      %v3780 = vpop.f32.mrf.mxu0
      %3781 = vmatprep.mubr.f32.mxu0 0.0
      %3782 = vmatmul.mubr.f32.gmra.mxu0 %v3613
      %v3783 = vpop.f32.mrf.mxu0
      %v3784 = vadd.f32 %v3460, %v3783
      %v3785 = vpop.f32.mrf.mxu0
      %3786 = vmatprep.mubr.f32.mxu0 0.0
      %3787 = vmatmul.mubr.f32.gmra.mxu0 %v3616
      %v3788 = vpop.f32.mrf.mxu0
      %v3789 = vadd.f32 %v3465, %v3788
      %v3790 = vpop.f32.mrf.mxu0
      %3791 = vmatprep.mubr.f32.mxu0 0.0
      %3792 = vmatmul.mubr.f32.gmra.mxu0 %v3619
      %v3793 = vpop.f32.mrf.mxu0
      %v3794 = vadd.f32 %v3470, %v3793
      %v3795 = vpop.f32.mrf.mxu0
      %3796 = vmatprep.mubr.f32.mxu0 0.0
      %3797 = vmatmul.mubr.f32.gmra.mxu0 %v3622
      %v3798 = vpop.f32.mrf.mxu0
      %v3799 = vadd.f32 %v3475, %v3798
      %v3800 = vpop.f32.mrf.mxu0
      %3801 = vmatprep.mubr.f32.mxu0 0.0
      %3802 = vmatmul.mubr.f32.gmra.mxu0 %v3625
      %v3803 = vpop.f32.mrf.mxu0
      %v3804 = vadd.f32 %v3480, %v3803
      %v3805 = vpop.f32.mrf.mxu0
      %3806 = vmatprep.mubr.f32.mxu0 0.0
      %3807 = vmatmul.mubr.f32.gmra.mxu0 %v3628
      %v3808 = vpop.f32.mrf.mxu0
      %v3809 = vadd.f32 %v3485, %v3808
      %v3810 = vpop.f32.mrf.mxu0
      %3811 = vmatprep.mubr.f32.mxu0 0.0
      %3812 = vmatmul.mubr.f32.gmra.mxu0 %v3631
      %v3813 = vpop.f32.mrf.mxu0
      %v3814 = vadd.f32 %v3490, %v3813
      %v3815 = vpop.f32.mrf.mxu0
      %3816 = vmatprep.mubr.f32.mxu0 0.0
      %3817 = vmatmul.mubr.f32.gmra.mxu0 %v3634
      %v3818 = vpop.f32.mrf.mxu0
      %v3819 = vadd.f32 %v3495, %v3818
      %v3820 = vpop.f32.mrf.mxu0
      %3821 = vmatprep.mubr.f32.mxu0 0.0
      %3822 = vmatmul.mubr.f32.gmra.mxu0 %v3637
      %v3823 = vpop.f32.mrf.mxu0
      %v3824 = vadd.f32 %v3500, %v3823
      %v3825 = vpop.f32.mrf.mxu0
      %3826 = vmatprep.mubr.f32.mxu0 0.0
      %3827 = vmatmul.mubr.f32.gmra.mxu0 %v3640
      %v3828 = vpop.f32.mrf.mxu0
      %v3829 = vadd.f32 %v3505, %v3828
      %v3830 = vpop.f32.mrf.mxu0
      %3831 = vmatprep.mubr.f32.mxu0 0.0
      %3832 = vmatmul.mubr.f32.gmra.mxu0 %v3643
      %v3833 = vpop.f32.mrf.mxu0
      %v3834 = vadd.f32 %v3510, %v3833
      %v3835 = vpop.f32.mrf.mxu0
      %3836 = vmatprep.mubr.f32.mxu0 0.0
      %3837 = vmatmul.mubr.f32.gmra.mxu0 %v3646
      %v3838 = vpop.f32.mrf.mxu0
      %v3839 = vadd.f32 %v3515, %v3838
      %v3840 = vpop.f32.mrf.mxu0
      %3841 = vmatprep.mubr.f32.mxu0 0.0
      %3842 = vmatmul.mubr.f32.gmra.mxu0 %v3649
      %v3843 = vpop.f32.mrf.mxu0
      %v3844 = vadd.f32 %v3520, %v3843
      %v3845 = vpop.f32.mrf.mxu0
      %3846 = vmatprep.mubr.f32.mxu0 0.0
      %3847 = vmatmul.mubr.f32.gmra.mxu0 %v3652
      %v3848 = vpop.f32.mrf.mxu0
      %v3849 = vadd.f32 %v3525, %v3848
      %v3850 = vpop.f32.mrf.mxu0
      %3851 = vmatprep.mubr.f32.mxu0 0.0
      %3852 = vmatmul.mubr.f32.gmra.mxu0 %v3655
      %v3853 = vpop.f32.mrf.mxu0
      %v3854 = vadd.f32 %v3530, %v3853
      %v3855 = vpop.f32.mrf.mxu0
      %3856 = vmatprep.mubr.f32.mxu0 0.0
      %3857 = vmatmul.mubr.f32.gmra.mxu0 %v3658
      %v3858 = vpop.f32.mrf.mxu0
      %v3859 = vadd.f32 %v3535, %v3858
      %v3860 = vpop.f32.mrf.mxu0
      %3861 = vmatprep.mubr.f32.mxu0 0.0
      %3862 = vmatmul.mubr.f32.gmra.mxu0 %v3661
      %v3863 = vpop.f32.mrf.mxu0
      %v3864 = vadd.f32 %v3540, %v3863
      %v3865 = vpop.f32.mrf.mxu0
      %3866 = vmatprep.mubr.f32.mxu0 0.0
      %3867 = vmatmul.mubr.f32.gmra.mxu0 %v3664
      %v3868 = vpop.f32.mrf.mxu0
      %v3869 = vadd.f32 %v3545, %v3868
      %v3870 = vpop.f32.mrf.mxu0
      %3871 = vmatprep.mubr.f32.mxu0 0.0
      %3872 = vmatmul.mubr.f32.gmra.mxu0 %v3667
      %v3873 = vpop.f32.mrf.mxu0
      %v3874 = vadd.f32 %v3550, %v3873
      %v3875 = vpop.f32.mrf.mxu0
      %3876 = vmatprep.mubr.f32.mxu0 0.0
      %3877 = vmatmul.mubr.f32.gmra.mxu0 %v3670
      %v3878 = vpop.f32.mrf.mxu0
      %v3879 = vadd.f32 %v3555, %v3878
      %v3880 = vpop.f32.mrf.mxu0
      %3881 = vmatprep.mubr.f32.mxu0 0.0
      %3882 = vmatmul.mubr.f32.gmra.mxu0 %v3673
      %v3883 = vpop.f32.mrf.mxu0
      %v3884 = vadd.f32 %v3560, %v3883
      %v3885 = vpop.f32.mrf.mxu0
      %3886 = vmatprep.mubr.f32.mxu0 0.0
      %3887 = vmatmul.mubr.f32.gmra.mxu0 %v3676
      %v3888 = vpop.f32.mrf.mxu0
      %v3889 = vadd.f32 %v3565, %v3888
      %v3890 = vpop.f32.mrf.mxu0
      %3891 = vmatprep.mubr.f32.mxu0 0.0
      %3892 = vmatmul.mubr.f32.gmra.mxu0 %v3679
      %v3893 = vpop.f32.mrf.mxu0
      %v3894 = vadd.f32 %v3570, %v3893
      %v3895 = vpop.f32.mrf.mxu0
      %3896 = vmatprep.mubr.f32.mxu0 0.0
      %3897 = vmatmul.mubr.f32.gmra.mxu0 %v3682
      %v3898 = vpop.f32.mrf.mxu0
      %v3899 = vadd.f32 %v3575, %v3898
      %v3900 = vpop.f32.mrf.mxu0
      %3901 = vmatprep.mubr.f32.mxu0 0.0
      %3902 = vmatmul.mubr.f32.gmra.mxu0 %v3685
      %v3903 = vpop.f32.mrf.mxu0
      %v3904 = vadd.f32 %v3580, %v3903
      %v3905 = vpop.f32.mrf.mxu0
      %3906 = vmatprep.mubr.f32.mxu0 0.0
      %3907 = vmatmul.mubr.f32.gmra.mxu0 %v3688
      %v3908 = vpop.f32.mrf.mxu0
      %v3909 = vadd.f32 %v3585, %v3908
      %v3910 = vpop.f32.mrf.mxu0
      %3911 = vmatprep.mubr.f32.mxu0 0.0
      %3912 = vmatmul.mubr.f32.gmra.mxu0 %v3691
      %v3913 = vpop.f32.mrf.mxu0
      %v3914 = vadd.f32 %v3590, %v3913
      %v3915 = vpop.f32.mrf.mxu0
      %3916 = vmatprep.mubr.f32.mxu0 0.0
      %3917 = vmatmul.mubr.f32.gmra.mxu0 %v3694
      %v3918 = vpop.f32.mrf.mxu0
      %v3919 = vadd.f32 %v3595, %v3918
      %v3920 = vpop.f32.mrf.mxu0
      %3921 = vmatprep.mubr.f32.mxu0 0.0
      %3922 = vmatmul.mubr.f32.gmra.mxu0 %v3697
      %v3923 = vpop.f32.mrf.mxu0
      %v3924 = vadd.f32 %v3600, %v3923
      %v3925 = vpop.f32.mrf.mxu0
      %3926 = vdwg.mxu0
      %3927 = vst.msk [vmem:[%s197] sm:$0xff] %vm262, %v3769
      %3928 = vst.msk [vmem:[%s197 + $0x8] sm:$0xff] %vm262, %v3774
      %3929 = vst.msk [vmem:[%s197 + $0x10] sm:$0xff] %vm262, %v3779
      %3930 = vst.msk [vmem:[%s197 + $0x18] sm:$0xff] %vm262, %v3784
      %3931 = vst.msk [vmem:[%s197 + $0x20] sm:$0xff] %vm262, %v3789
      %3932 = vst.msk [vmem:[%s197 + $0x28] sm:$0xff] %vm262, %v3794
      %3933 = vst.msk [vmem:[%s197 + $0x30] sm:$0xff] %vm262, %v3799
      %3934 = vst.msk [vmem:[%s197 + $0x38] sm:$0xff] %vm262, %v3804
      %3935 = vst.msk [vmem:[%s197 + $0x40] sm:$0xff] %vm262, %v3809
      %3936 = vst.msk [vmem:[%s197 + $0x48] sm:$0xff] %vm262, %v3814
      %3937 = vst.msk [vmem:[%s197 + $0x50] sm:$0xff] %vm262, %v3819
      %3938 = vst.msk [vmem:[%s197 + $0x58] sm:$0xff] %vm262, %v3824
      %3939 = vst.msk [vmem:[%s197 + $0x60] sm:$0xff] %vm262, %v3829
      %3940 = vst.msk [vmem:[%s197 + $0x68] sm:$0xff] %vm262, %v3834
      %3941 = vst.msk [vmem:[%s197 + $0x70] sm:$0xff] %vm262, %v3839
      %3942 = vst.msk [vmem:[%s197 + $0x78] sm:$0xff] %vm262, %v3844
      %3943 = vst.msk [vmem:[%s197 + $0x80] sm:$0xff] %vm262, %v3849
      %3944 = vst.msk [vmem:[%s197 + $0x88] sm:$0xff] %vm262, %v3854
      %3945 = vst.msk [vmem:[%s197 + $0x90] sm:$0xff] %vm262, %v3859
      %3946 = vst.msk [vmem:[%s197 + $0x98] sm:$0xff] %vm262, %v3864
      %3947 = vst.msk [vmem:[%s197 + $0xa0] sm:$0xff] %vm262, %v3869
      %3948 = vst.msk [vmem:[%s197 + $0xa8] sm:$0xff] %vm262, %v3874
      %3949 = vst.msk [vmem:[%s197 + $0xb0] sm:$0xff] %vm262, %v3879
      %3950 = vst.msk [vmem:[%s197 + $0xb8] sm:$0xff] %vm262, %v3884
      %3951 = vst.msk [vmem:[%s197 + $0xc0] sm:$0xff] %vm262, %v3889
      %3952 = vst.msk [vmem:[%s197 + $0xc8] sm:$0xff] %vm262, %v3894
      %3953 = vst.msk [vmem:[%s197 + $0xd0] sm:$0xff] %vm262, %v3899
      %3954 = vst.msk [vmem:[%s197 + $0xd8] sm:$0xff] %vm262, %v3904
      %3955 = vst.msk [vmem:[%s197 + $0xe0] sm:$0xff] %vm262, %v3909
      %3956 = vst.msk [vmem:[%s197 + $0xe8] sm:$0xff] %vm262, %v3914
      %3957 = vst.msk [vmem:[%s197 + $0xf0] sm:$0xff] %vm262, %v3919
      %3958 = vst.msk [vmem:[%s197 + $0xf8] sm:$0xff] %vm262, %v3924
      %s3959 = scalar_lea.vmem %s2, 4
      %v3960 = vld [vmem:[%s3959] sm:$0xf]
      %v3977 = vrot.slane %v3226, 1
      %v3978 = vrot.slane %v3227, 1
      %v3979 = vsel %vm444, %v3977, %v3978
      %v3980 = vrot.slane %v3228, 1
      %v3981 = vsel %vm444, %v3978, %v3980
      %v3982 = vrot.slane %v3229, 1
      %v3983 = vrot.slane %v3230, 1
      %v3984 = vsel %vm444, %v3982, %v3983
      %v3985 = vrot.slane %v3231, 1
      %v3986 = vsel %vm444, %v3983, %v3985
      %v3987 = vrot.slane %v3232, 1
      %v3988 = vrot.slane %v3233, 1
      %v3989 = vsel %vm444, %v3987, %v3988
      %v3990 = vrot.slane %v3234, 1
      %v3991 = vsel %vm444, %v3988, %v3990
      %v3992 = vrot.slane %v3235, 1
      %v3993 = vrot.slane %v3236, 1
      %v3994 = vsel %vm444, %v3992, %v3993
      %v3995 = vrot.slane %v3237, 1
      %v3996 = vsel %vm444, %v3993, %v3995
      %v3997 = vrot.slane %v3238, 1
      %v3998 = vrot.slane %v3239, 1
      %v3999 = vsel %vm444, %v3997, %v3998
      %v4000 = vrot.slane %v3240, 1
      %v4001 = vsel %vm444, %v3998, %v4000
      %v4002 = vrot.slane %v3241, 1
      %v4003 = vrot.slane %v3242, 1
      %v4004 = vsel %vm444, %v4002, %v4003
      %v4005 = vrot.slane %v3243, 1
      %v4006 = vsel %vm444, %v4003, %v4005
      %v4007 = vrot.slane %v3244, 1
      %v4008 = vrot.slane %v3245, 1
      %v4009 = vsel %vm444, %v4007, %v4008
      %v4010 = vrot.slane %v3246, 1
      %v4011 = vsel %vm444, %v4008, %v4010
      %v4012 = vrot.slane %v3247, 1
      %v4013 = vrot.slane %v3248, 1
      %v4014 = vsel %vm444, %v4012, %v4013
      %v4015 = vrot.slane %v3249, 1
      %v4016 = vsel %vm444, %v4013, %v4015
      %v4017 = vrot.slane %v3250, 1
      %v4018 = vrot.slane %v3251, 1
      %v4019 = vsel %vm444, %v4017, %v4018
      %v4020 = vrot.slane %v3252, 1
      %v4021 = vsel %vm444, %v4018, %v4020
      %v4022 = vrot.slane %v3253, 1
      %v4023 = vrot.slane %v3254, 1
      %v4024 = vsel %vm444, %v4022, %v4023
      %v4025 = vrot.slane %v3255, 1
      %v4026 = vsel %vm444, %v4023, %v4025
      %v4027 = vrot.slane %v3256, 1
      %v4028 = vrot.slane %v3257, 1
      %v4029 = vsel %vm444, %v4027, %v4028
      %v4030 = vrot.slane %v3258, 1
      %v4031 = vsel %vm444, %v4028, %v4030
      %v4032 = vrot.slane %v3259, 1
      %v4033 = vrot.slane %v3260, 1
      %v4034 = vsel %vm444, %v4032, %v4033
      %v4035 = vrot.slane %v3261, 1
      %v4036 = vsel %vm444, %v4033, %v4035
      %v4037 = vrot.slane %v3262, 1
      %v4038 = vrot.slane %v3263, 1
      %v4039 = vsel %vm444, %v4037, %v4038
      %v4040 = vrot.slane %v3264, 1
      %v4041 = vsel %vm444, %v4038, %v4040
      %v4042 = vrot.slane %v3265, 1
      %v4043 = vrot.slane %v3266, 1
      %v4044 = vsel %vm444, %v4042, %v4043
      %v4045 = vrot.slane %v3267, 1
      %v4046 = vsel %vm444, %v4043, %v4045
      %v4047 = vrot.slane %v3268, 1
      %v4048 = vrot.slane %v3269, 1
      %v4049 = vsel %vm444, %v4047, %v4048
      %v4050 = vrot.slane %v3270, 1
      %v4051 = vsel %vm444, %v4048, %v4050
      %v4052 = vrot.slane %v3271, 1
      %v4053 = vrot.slane %v3272, 1
      %v4054 = vsel %vm444, %v4052, %v4053
      %v4055 = vrot.slane %v3273, 1
      %v4056 = vsel %vm444, %v4053, %v4055
      %s4057 = scalar_lea.vmem %s2, 8
      %v4058 = vld [vmem:[%s4057] sm:$0xf]
      %v4059 = vsel %vm262, %v3979, 0
      %v4061 = vsel %vm262, %v3981, 0
      %v4063 = vsel %vm262, %v3984, 0
      %v4065 = vsel %vm262, %v3986, 0
      %v4067 = vsel %vm262, %v3989, 0
      %v4069 = vsel %vm262, %v3991, 0
      %v4071 = vsel %vm262, %v3994, 0
      %v4073 = vsel %vm262, %v3996, 0
      %v4075 = vsel %vm262, %v3999, 0
      %v4077 = vsel %vm262, %v4001, 0
      %v4079 = vsel %vm262, %v4004, 0
      %v4081 = vsel %vm262, %v4006, 0
      %v4083 = vsel %vm262, %v4009, 0
      %v4085 = vsel %vm262, %v4011, 0
      %v4087 = vsel %vm262, %v4014, 0
      %v4089 = vsel %vm262, %v4016, 0
      %v4091 = vsel %vm262, %v4019, 0
      %v4093 = vsel %vm262, %v4021, 0
      %v4095 = vsel %vm262, %v4024, 0
      %v4097 = vsel %vm262, %v4026, 0
      %v4099 = vsel %vm262, %v4029, 0
      %v4101 = vsel %vm262, %v4031, 0
      %v4103 = vsel %vm262, %v4034, 0
      %v4105 = vsel %vm262, %v4036, 0
      %v4107 = vsel %vm262, %v4039, 0
      %v4109 = vsel %vm262, %v4041, 0
      %v4111 = vsel %vm262, %v4044, 0
      %v4113 = vsel %vm262, %v4046, 0
      %v4115 = vsel %vm262, %v4049, 0
      %v4117 = vsel %vm262, %v4051, 0
      %v4119 = vsel %vm262, %v4054, 0
      %v4121 = vsel %vm262, %v4056, 0
      %v4124 = vsel %vm591, %v4058, 0
      %4126 = vmatprep.subr.mxu0 0.0
      %4127 = vmatpush1.msra.mxu0 0.0
      %4128 = vmatprep.subr.mxu0 0.0
      %4129 = vmatpush1.msra.mxu0 0.0
      %4130 = vmatprep.subr.mxu0 0.0
      %4131 = vmatpush1.msra.mxu0 0.0
      %4132 = vmatprep.subr.mxu0 0.0
      %4133 = vmatpush1.msra.mxu0 0.0
      %4134 = vmatprep.subr.mxu0 0.0
      %4135 = vmatpush1.msra.mxu0 0.0
      %4136 = vmatprep.subr.mxu0 0.0
      %4137 = vmatpush1.msra.mxu0 0.0
      %4138 = vmatprep.subr.mxu0 0.0
      %4139 = vmatpush1.msra.mxu0 0.0
      %4140 = vmatprep.subr.mxu0 0.0
      %4141 = vmatpush1.msra.mxu0 0.0
      %4142 = vmatprep.subr.mxu0 0.0
      %4143 = vmatpush1.msra.mxu0 0.0
      %4144 = vmatprep.subr.mxu0 0.0
      %4145 = vmatpush1.msra.mxu0 0.0
      %4146 = vmatprep.subr.mxu0 0.0
      %4147 = vmatpush1.msra.mxu0 0.0
      %4148 = vmatprep.subr.mxu0 0.0
      %4149 = vmatpush1.msra.mxu0 0.0
      %4150 = vmatprep.subr.mxu0 0.0
      %4151 = vmatpush1.msra.mxu0 0.0
      %4152 = vmatprep.subr.mxu0 0.0
      %4153 = vmatpush1.msra.mxu0 0.0
      %4154 = vmatprep.subr.mxu0 0.0
      %4155 = vmatpush1.msra.mxu0 0.0
      %4156 = vmatprep.subr.mxu0 0.0
      %4157 = vmatpush1.msra.mxu0 %v4124
      %4158 = vmatprep.subr.mxu0 0.0
      %4159 = vmatpush2.msra.mxu0 0.0
      %4160 = vmatprep.subr.mxu0 0.0
      %4161 = vmatpush2.msra.mxu0 0.0
      %4162 = vmatprep.subr.mxu0 0.0
      %4163 = vmatpush2.msra.mxu0 0.0
      %4164 = vmatprep.subr.mxu0 0.0
      %4165 = vmatpush2.msra.mxu0 0.0
      %4166 = vmatprep.subr.mxu0 0.0
      %4167 = vmatpush2.msra.mxu0 0.0
      %4168 = vmatprep.subr.mxu0 0.0
      %4169 = vmatpush2.msra.mxu0 0.0
      %4170 = vmatprep.subr.mxu0 0.0
      %4171 = vmatpush2.msra.mxu0 0.0
      %4172 = vmatprep.subr.mxu0 0.0
      %4173 = vmatpush2.msra.mxu0 0.0
      %4174 = vmatprep.subr.mxu0 0.0
      %4175 = vmatpush2.msra.mxu0 0.0
      %4176 = vmatprep.subr.mxu0 0.0
      %4177 = vmatpush2.msra.mxu0 0.0
      %4178 = vmatprep.subr.mxu0 0.0
      %4179 = vmatpush2.msra.mxu0 0.0
      %4180 = vmatprep.subr.mxu0 0.0
      %4181 = vmatpush2.msra.mxu0 0.0
      %4182 = vmatprep.subr.mxu0 0.0
      %4183 = vmatpush2.msra.mxu0 0.0
      %4184 = vmatprep.subr.mxu0 0.0
      %4185 = vmatpush2.msra.mxu0 0.0
      %4186 = vmatprep.subr.mxu0 0.0
      %4187 = vmatpush2.msra.mxu0 0.0
      %4188 = vmatprep.subr.mxu0 0.0
      %4189 = vmatpush2.msra.mxu0 0.0
      %4190 = vmatprep.mubr.f32.mxu0 0.0
      %4191 = vmatmul.mubr.f32.gmra.mxu0 %v4059
      %v4192 = vpop.f32.mrf.mxu0
      %v4193 = vadd.f32 0.0, %v4192
      %v4194 = vpop.f32.mrf.mxu0
      %4195 = vmatprep.mubr.f32.mxu0 0.0
      %4196 = vmatmul.mubr.f32.gmra.mxu0 %v4061
      %v4197 = vpop.f32.mrf.mxu0
      %v4198 = vadd.f32 0.0, %v4197
      %v4199 = vpop.f32.mrf.mxu0
      %4200 = vmatprep.mubr.f32.mxu0 0.0
      %4201 = vmatmul.mubr.f32.gmra.mxu0 %v4063
      %v4202 = vpop.f32.mrf.mxu0
      %v4203 = vadd.f32 0.0, %v4202
      %v4204 = vpop.f32.mrf.mxu0
      %4205 = vmatprep.mubr.f32.mxu0 0.0
      %4206 = vmatmul.mubr.f32.gmra.mxu0 %v4065
      %v4207 = vpop.f32.mrf.mxu0
      %v4208 = vadd.f32 0.0, %v4207
      %v4209 = vpop.f32.mrf.mxu0
      %4210 = vmatprep.mubr.f32.mxu0 0.0
      %4211 = vmatmul.mubr.f32.gmra.mxu0 %v4067
      %v4212 = vpop.f32.mrf.mxu0
      %v4213 = vadd.f32 0.0, %v4212
      %v4214 = vpop.f32.mrf.mxu0
      %4215 = vmatprep.mubr.f32.mxu0 0.0
      %4216 = vmatmul.mubr.f32.gmra.mxu0 %v4069
      %v4217 = vpop.f32.mrf.mxu0
      %v4218 = vadd.f32 0.0, %v4217
      %v4219 = vpop.f32.mrf.mxu0
      %4220 = vmatprep.mubr.f32.mxu0 0.0
      %4221 = vmatmul.mubr.f32.gmra.mxu0 %v4071
      %v4222 = vpop.f32.mrf.mxu0
      %v4223 = vadd.f32 0.0, %v4222
      %v4224 = vpop.f32.mrf.mxu0
      %4225 = vmatprep.mubr.f32.mxu0 0.0
      %4226 = vmatmul.mubr.f32.gmra.mxu0 %v4073
      %v4227 = vpop.f32.mrf.mxu0
      %v4228 = vadd.f32 0.0, %v4227
      %v4229 = vpop.f32.mrf.mxu0
      %4230 = vmatprep.mubr.f32.mxu0 0.0
      %4231 = vmatmul.mubr.f32.gmra.mxu0 %v4075
      %v4232 = vpop.f32.mrf.mxu0
      %v4233 = vadd.f32 0.0, %v4232
      %v4234 = vpop.f32.mrf.mxu0
      %4235 = vmatprep.mubr.f32.mxu0 0.0
      %4236 = vmatmul.mubr.f32.gmra.mxu0 %v4077
      %v4237 = vpop.f32.mrf.mxu0
      %v4238 = vadd.f32 0.0, %v4237
      %v4239 = vpop.f32.mrf.mxu0
      %4240 = vmatprep.mubr.f32.mxu0 0.0
      %4241 = vmatmul.mubr.f32.gmra.mxu0 %v4079
      %v4242 = vpop.f32.mrf.mxu0
      %v4243 = vadd.f32 0.0, %v4242
      %v4244 = vpop.f32.mrf.mxu0
      %4245 = vmatprep.mubr.f32.mxu0 0.0
      %4246 = vmatmul.mubr.f32.gmra.mxu0 %v4081
      %v4247 = vpop.f32.mrf.mxu0
      %v4248 = vadd.f32 0.0, %v4247
      %v4249 = vpop.f32.mrf.mxu0
      %4250 = vmatprep.mubr.f32.mxu0 0.0
      %4251 = vmatmul.mubr.f32.gmra.mxu0 %v4083
      %v4252 = vpop.f32.mrf.mxu0
      %v4253 = vadd.f32 0.0, %v4252
      %v4254 = vpop.f32.mrf.mxu0
      %4255 = vmatprep.mubr.f32.mxu0 0.0
      %4256 = vmatmul.mubr.f32.gmra.mxu0 %v4085
      %v4257 = vpop.f32.mrf.mxu0
      %v4258 = vadd.f32 0.0, %v4257
      %v4259 = vpop.f32.mrf.mxu0
      %4260 = vmatprep.mubr.f32.mxu0 0.0
      %4261 = vmatmul.mubr.f32.gmra.mxu0 %v4087
      %v4262 = vpop.f32.mrf.mxu0
      %v4263 = vadd.f32 0.0, %v4262
      %v4264 = vpop.f32.mrf.mxu0
      %4265 = vmatprep.mubr.f32.mxu0 0.0
      %4266 = vmatmul.mubr.f32.gmra.mxu0 %v4089
      %v4267 = vpop.f32.mrf.mxu0
      %v4268 = vadd.f32 0.0, %v4267
      %v4269 = vpop.f32.mrf.mxu0
      %4270 = vmatprep.mubr.f32.mxu0 0.0
      %4271 = vmatmul.mubr.f32.gmra.mxu0 %v4091
      %v4272 = vpop.f32.mrf.mxu0
      %v4273 = vadd.f32 0.0, %v4272
      %v4274 = vpop.f32.mrf.mxu0
      %4275 = vmatprep.mubr.f32.mxu0 0.0
      %4276 = vmatmul.mubr.f32.gmra.mxu0 %v4093
      %v4277 = vpop.f32.mrf.mxu0
      %v4278 = vadd.f32 0.0, %v4277
      %v4279 = vpop.f32.mrf.mxu0
      %4280 = vmatprep.mubr.f32.mxu0 0.0
      %4281 = vmatmul.mubr.f32.gmra.mxu0 %v4095
      %v4282 = vpop.f32.mrf.mxu0
      %v4283 = vadd.f32 0.0, %v4282
      %v4284 = vpop.f32.mrf.mxu0
      %4285 = vmatprep.mubr.f32.mxu0 0.0
      %4286 = vmatmul.mubr.f32.gmra.mxu0 %v4097
      %v4287 = vpop.f32.mrf.mxu0
      %v4288 = vadd.f32 0.0, %v4287
      %v4289 = vpop.f32.mrf.mxu0
      %4290 = vmatprep.mubr.f32.mxu0 0.0
      %4291 = vmatmul.mubr.f32.gmra.mxu0 %v4099
      %v4292 = vpop.f32.mrf.mxu0
      %v4293 = vadd.f32 0.0, %v4292
      %v4294 = vpop.f32.mrf.mxu0
      %4295 = vmatprep.mubr.f32.mxu0 0.0
      %4296 = vmatmul.mubr.f32.gmra.mxu0 %v4101
      %v4297 = vpop.f32.mrf.mxu0
      %v4298 = vadd.f32 0.0, %v4297
      %v4299 = vpop.f32.mrf.mxu0
      %4300 = vmatprep.mubr.f32.mxu0 0.0
      %4301 = vmatmul.mubr.f32.gmra.mxu0 %v4103
      %v4302 = vpop.f32.mrf.mxu0
      %v4303 = vadd.f32 0.0, %v4302
      %v4304 = vpop.f32.mrf.mxu0
      %4305 = vmatprep.mubr.f32.mxu0 0.0
      %4306 = vmatmul.mubr.f32.gmra.mxu0 %v4105
      %v4307 = vpop.f32.mrf.mxu0
      %v4308 = vadd.f32 0.0, %v4307
      %v4309 = vpop.f32.mrf.mxu0
      %4310 = vmatprep.mubr.f32.mxu0 0.0
      %4311 = vmatmul.mubr.f32.gmra.mxu0 %v4107
      %v4312 = vpop.f32.mrf.mxu0
      %v4313 = vadd.f32 0.0, %v4312
      %v4314 = vpop.f32.mrf.mxu0
      %4315 = vmatprep.mubr.f32.mxu0 0.0
      %4316 = vmatmul.mubr.f32.gmra.mxu0 %v4109
      %v4317 = vpop.f32.mrf.mxu0
      %v4318 = vadd.f32 0.0, %v4317
      %v4319 = vpop.f32.mrf.mxu0
      %4320 = vmatprep.mubr.f32.mxu0 0.0
      %4321 = vmatmul.mubr.f32.gmra.mxu0 %v4111
      %v4322 = vpop.f32.mrf.mxu0
      %v4323 = vadd.f32 0.0, %v4322
      %v4324 = vpop.f32.mrf.mxu0
      %4325 = vmatprep.mubr.f32.mxu0 0.0
      %4326 = vmatmul.mubr.f32.gmra.mxu0 %v4113
      %v4327 = vpop.f32.mrf.mxu0
      %v4328 = vadd.f32 0.0, %v4327
      %v4329 = vpop.f32.mrf.mxu0
      %4330 = vmatprep.mubr.f32.mxu0 0.0
      %4331 = vmatmul.mubr.f32.gmra.mxu0 %v4115
      %v4332 = vpop.f32.mrf.mxu0
      %v4333 = vadd.f32 0.0, %v4332
      %v4334 = vpop.f32.mrf.mxu0
      %4335 = vmatprep.mubr.f32.mxu0 0.0
      %4336 = vmatmul.mubr.f32.gmra.mxu0 %v4117
      %v4337 = vpop.f32.mrf.mxu0
      %v4338 = vadd.f32 0.0, %v4337
      %v4339 = vpop.f32.mrf.mxu0
      %4340 = vmatprep.mubr.f32.mxu0 0.0
      %4341 = vmatmul.mubr.f32.gmra.mxu0 %v4119
      %v4342 = vpop.f32.mrf.mxu0
      %v4343 = vadd.f32 0.0, %v4342
      %v4344 = vpop.f32.mrf.mxu0
      %4345 = vmatprep.mubr.f32.mxu0 0.0
      %4346 = vmatmul.mubr.f32.gmra.mxu0 %v4121
      %v4347 = vpop.f32.mrf.mxu0
      %v4348 = vadd.f32 0.0, %v4347
      %v4349 = vpop.f32.mrf.mxu0
      %4350 = vdwg.mxu0
      %v4352 = vsel %vm591, %v3960, 0
      %4354 = vmatprep.subr.mxu0 0.0
      %4355 = vmatpush1.msra.mxu0 0.0
      %4356 = vmatprep.subr.mxu0 0.0
      %4357 = vmatpush1.msra.mxu0 0.0
      %4358 = vmatprep.subr.mxu0 0.0
      %4359 = vmatpush1.msra.mxu0 0.0
      %4360 = vmatprep.subr.mxu0 0.0
      %4361 = vmatpush1.msra.mxu0 0.0
      %4362 = vmatprep.subr.mxu0 0.0
      %4363 = vmatpush1.msra.mxu0 0.0
      %4364 = vmatprep.subr.mxu0 0.0
      %4365 = vmatpush1.msra.mxu0 0.0
      %4366 = vmatprep.subr.mxu0 0.0
      %4367 = vmatpush1.msra.mxu0 0.0
      %4368 = vmatprep.subr.mxu0 0.0
      %4369 = vmatpush1.msra.mxu0 0.0
      %4370 = vmatprep.subr.mxu0 0.0
      %4371 = vmatpush1.msra.mxu0 0.0
      %4372 = vmatprep.subr.mxu0 0.0
      %4373 = vmatpush1.msra.mxu0 0.0
      %4374 = vmatprep.subr.mxu0 0.0
      %4375 = vmatpush1.msra.mxu0 0.0
      %4376 = vmatprep.subr.mxu0 0.0
      %4377 = vmatpush1.msra.mxu0 0.0
      %4378 = vmatprep.subr.mxu0 0.0
      %4379 = vmatpush1.msra.mxu0 0.0
      %4380 = vmatprep.subr.mxu0 0.0
      %4381 = vmatpush1.msra.mxu0 0.0
      %4382 = vmatprep.subr.mxu0 0.0
      %4383 = vmatpush1.msra.mxu0 0.0
      %4384 = vmatprep.subr.mxu0 0.0
      %4385 = vmatpush1.msra.mxu0 %v4352
      %4386 = vmatprep.subr.mxu0 0.0
      %4387 = vmatpush2.msra.mxu0 0.0
      %4388 = vmatprep.subr.mxu0 0.0
      %4389 = vmatpush2.msra.mxu0 0.0
      %4390 = vmatprep.subr.mxu0 0.0
      %4391 = vmatpush2.msra.mxu0 0.0
      %4392 = vmatprep.subr.mxu0 0.0
      %4393 = vmatpush2.msra.mxu0 0.0
      %4394 = vmatprep.subr.mxu0 0.0
      %4395 = vmatpush2.msra.mxu0 0.0
      %4396 = vmatprep.subr.mxu0 0.0
      %4397 = vmatpush2.msra.mxu0 0.0
      %4398 = vmatprep.subr.mxu0 0.0
      %4399 = vmatpush2.msra.mxu0 0.0
      %4400 = vmatprep.subr.mxu0 0.0
      %4401 = vmatpush2.msra.mxu0 0.0
      %4402 = vmatprep.subr.mxu0 0.0
      %4403 = vmatpush2.msra.mxu0 0.0
      %4404 = vmatprep.subr.mxu0 0.0
      %4405 = vmatpush2.msra.mxu0 0.0
      %4406 = vmatprep.subr.mxu0 0.0
      %4407 = vmatpush2.msra.mxu0 0.0
      %4408 = vmatprep.subr.mxu0 0.0
      %4409 = vmatpush2.msra.mxu0 0.0
      %4410 = vmatprep.subr.mxu0 0.0
      %4411 = vmatpush2.msra.mxu0 0.0
      %4412 = vmatprep.subr.mxu0 0.0
      %4413 = vmatpush2.msra.mxu0 0.0
      %4414 = vmatprep.subr.mxu0 0.0
      %4415 = vmatpush2.msra.mxu0 0.0
      %4416 = vmatprep.subr.mxu0 0.0
      %4417 = vmatpush2.msra.mxu0 0.0
      %4418 = vmatprep.mubr.f32.mxu0 0.0
      %4419 = vmatmul.mubr.f32.gmra.mxu0 %v3604
      %v4420 = vpop.f32.mrf.mxu0
      %v4421 = vadd.f32 %v4193, %v4420
      %v4422 = vpop.f32.mrf.mxu0
      %4423 = vmatprep.mubr.f32.mxu0 0.0
      %4424 = vmatmul.mubr.f32.gmra.mxu0 %v3607
      %v4425 = vpop.f32.mrf.mxu0
      %v4426 = vadd.f32 %v4198, %v4425
      %v4427 = vpop.f32.mrf.mxu0
      %4428 = vmatprep.mubr.f32.mxu0 0.0
      %4429 = vmatmul.mubr.f32.gmra.mxu0 %v3610
      %v4430 = vpop.f32.mrf.mxu0
      %v4431 = vadd.f32 %v4203, %v4430
      %v4432 = vpop.f32.mrf.mxu0
      %4433 = vmatprep.mubr.f32.mxu0 0.0
      %4434 = vmatmul.mubr.f32.gmra.mxu0 %v3613
      %v4435 = vpop.f32.mrf.mxu0
      %v4436 = vadd.f32 %v4208, %v4435
      %v4437 = vpop.f32.mrf.mxu0
      %4438 = vmatprep.mubr.f32.mxu0 0.0
      %4439 = vmatmul.mubr.f32.gmra.mxu0 %v3616
      %v4440 = vpop.f32.mrf.mxu0
      %v4441 = vadd.f32 %v4213, %v4440
      %v4442 = vpop.f32.mrf.mxu0
      %4443 = vmatprep.mubr.f32.mxu0 0.0
      %4444 = vmatmul.mubr.f32.gmra.mxu0 %v3619
      %v4445 = vpop.f32.mrf.mxu0
      %v4446 = vadd.f32 %v4218, %v4445
      %v4447 = vpop.f32.mrf.mxu0
      %4448 = vmatprep.mubr.f32.mxu0 0.0
      %4449 = vmatmul.mubr.f32.gmra.mxu0 %v3622
      %v4450 = vpop.f32.mrf.mxu0
      %v4451 = vadd.f32 %v4223, %v4450
      %v4452 = vpop.f32.mrf.mxu0
      %4453 = vmatprep.mubr.f32.mxu0 0.0
      %4454 = vmatmul.mubr.f32.gmra.mxu0 %v3625
      %v4455 = vpop.f32.mrf.mxu0
      %v4456 = vadd.f32 %v4228, %v4455
      %v4457 = vpop.f32.mrf.mxu0
      %4458 = vmatprep.mubr.f32.mxu0 0.0
      %4459 = vmatmul.mubr.f32.gmra.mxu0 %v3628
      %v4460 = vpop.f32.mrf.mxu0
      %v4461 = vadd.f32 %v4233, %v4460
      %v4462 = vpop.f32.mrf.mxu0
      %4463 = vmatprep.mubr.f32.mxu0 0.0
      %4464 = vmatmul.mubr.f32.gmra.mxu0 %v3631
      %v4465 = vpop.f32.mrf.mxu0
      %v4466 = vadd.f32 %v4238, %v4465
      %v4467 = vpop.f32.mrf.mxu0
      %4468 = vmatprep.mubr.f32.mxu0 0.0
      %4469 = vmatmul.mubr.f32.gmra.mxu0 %v3634
      %v4470 = vpop.f32.mrf.mxu0
      %v4471 = vadd.f32 %v4243, %v4470
      %v4472 = vpop.f32.mrf.mxu0
      %4473 = vmatprep.mubr.f32.mxu0 0.0
      %4474 = vmatmul.mubr.f32.gmra.mxu0 %v3637
      %v4475 = vpop.f32.mrf.mxu0
      %v4476 = vadd.f32 %v4248, %v4475
      %v4477 = vpop.f32.mrf.mxu0
      %4478 = vmatprep.mubr.f32.mxu0 0.0
      %4479 = vmatmul.mubr.f32.gmra.mxu0 %v3640
      %v4480 = vpop.f32.mrf.mxu0
      %v4481 = vadd.f32 %v4253, %v4480
      %v4482 = vpop.f32.mrf.mxu0
      %4483 = vmatprep.mubr.f32.mxu0 0.0
      %4484 = vmatmul.mubr.f32.gmra.mxu0 %v3643
      %v4485 = vpop.f32.mrf.mxu0
      %v4486 = vadd.f32 %v4258, %v4485
      %v4487 = vpop.f32.mrf.mxu0
      %4488 = vmatprep.mubr.f32.mxu0 0.0
      %4489 = vmatmul.mubr.f32.gmra.mxu0 %v3646
      %v4490 = vpop.f32.mrf.mxu0
      %v4491 = vadd.f32 %v4263, %v4490
      %v4492 = vpop.f32.mrf.mxu0
      %4493 = vmatprep.mubr.f32.mxu0 0.0
      %4494 = vmatmul.mubr.f32.gmra.mxu0 %v3649
      %v4495 = vpop.f32.mrf.mxu0
      %v4496 = vadd.f32 %v4268, %v4495
      %v4497 = vpop.f32.mrf.mxu0
      %4498 = vmatprep.mubr.f32.mxu0 0.0
      %4499 = vmatmul.mubr.f32.gmra.mxu0 %v3652
      %v4500 = vpop.f32.mrf.mxu0
      %v4501 = vadd.f32 %v4273, %v4500
      %v4502 = vpop.f32.mrf.mxu0
      %4503 = vmatprep.mubr.f32.mxu0 0.0
      %4504 = vmatmul.mubr.f32.gmra.mxu0 %v3655
      %v4505 = vpop.f32.mrf.mxu0
      %v4506 = vadd.f32 %v4278, %v4505
      %v4507 = vpop.f32.mrf.mxu0
      %4508 = vmatprep.mubr.f32.mxu0 0.0
      %4509 = vmatmul.mubr.f32.gmra.mxu0 %v3658
      %v4510 = vpop.f32.mrf.mxu0
      %v4511 = vadd.f32 %v4283, %v4510
      %v4512 = vpop.f32.mrf.mxu0
      %4513 = vmatprep.mubr.f32.mxu0 0.0
      %4514 = vmatmul.mubr.f32.gmra.mxu0 %v3661
      %v4515 = vpop.f32.mrf.mxu0
      %v4516 = vadd.f32 %v4288, %v4515
      %v4517 = vpop.f32.mrf.mxu0
      %4518 = vmatprep.mubr.f32.mxu0 0.0
      %4519 = vmatmul.mubr.f32.gmra.mxu0 %v3664
      %v4520 = vpop.f32.mrf.mxu0
      %v4521 = vadd.f32 %v4293, %v4520
      %v4522 = vpop.f32.mrf.mxu0
      %4523 = vmatprep.mubr.f32.mxu0 0.0
      %4524 = vmatmul.mubr.f32.gmra.mxu0 %v3667
      %v4525 = vpop.f32.mrf.mxu0
      %v4526 = vadd.f32 %v4298, %v4525
      %v4527 = vpop.f32.mrf.mxu0
      %4528 = vmatprep.mubr.f32.mxu0 0.0
      %4529 = vmatmul.mubr.f32.gmra.mxu0 %v3670
      %v4530 = vpop.f32.mrf.mxu0
      %v4531 = vadd.f32 %v4303, %v4530
      %v4532 = vpop.f32.mrf.mxu0
      %4533 = vmatprep.mubr.f32.mxu0 0.0
      %4534 = vmatmul.mubr.f32.gmra.mxu0 %v3673
      %v4535 = vpop.f32.mrf.mxu0
      %v4536 = vadd.f32 %v4308, %v4535
      %v4537 = vpop.f32.mrf.mxu0
      %4538 = vmatprep.mubr.f32.mxu0 0.0
      %4539 = vmatmul.mubr.f32.gmra.mxu0 %v3676
      %v4540 = vpop.f32.mrf.mxu0
      %v4541 = vadd.f32 %v4313, %v4540
      %v4542 = vpop.f32.mrf.mxu0
      %4543 = vmatprep.mubr.f32.mxu0 0.0
      %4544 = vmatmul.mubr.f32.gmra.mxu0 %v3679
      %v4545 = vpop.f32.mrf.mxu0
      %v4546 = vadd.f32 %v4318, %v4545
      %v4547 = vpop.f32.mrf.mxu0
      %4548 = vmatprep.mubr.f32.mxu0 0.0
      %4549 = vmatmul.mubr.f32.gmra.mxu0 %v3682
      %v4550 = vpop.f32.mrf.mxu0
      %v4551 = vadd.f32 %v4323, %v4550
      %v4552 = vpop.f32.mrf.mxu0
      %4553 = vmatprep.mubr.f32.mxu0 0.0
      %4554 = vmatmul.mubr.f32.gmra.mxu0 %v3685
      %v4555 = vpop.f32.mrf.mxu0
      %v4556 = vadd.f32 %v4328, %v4555
      %v4557 = vpop.f32.mrf.mxu0
      %4558 = vmatprep.mubr.f32.mxu0 0.0
      %4559 = vmatmul.mubr.f32.gmra.mxu0 %v3688
      %v4560 = vpop.f32.mrf.mxu0
      %v4561 = vadd.f32 %v4333, %v4560
      %v4562 = vpop.f32.mrf.mxu0
      %4563 = vmatprep.mubr.f32.mxu0 0.0
      %4564 = vmatmul.mubr.f32.gmra.mxu0 %v3691
      %v4565 = vpop.f32.mrf.mxu0
      %v4566 = vadd.f32 %v4338, %v4565
      %v4567 = vpop.f32.mrf.mxu0
      %4568 = vmatprep.mubr.f32.mxu0 0.0
      %4569 = vmatmul.mubr.f32.gmra.mxu0 %v3694
      %v4570 = vpop.f32.mrf.mxu0
      %v4571 = vadd.f32 %v4343, %v4570
      %v4572 = vpop.f32.mrf.mxu0
      %4573 = vmatprep.mubr.f32.mxu0 0.0
      %4574 = vmatmul.mubr.f32.gmra.mxu0 %v3697
      %v4575 = vpop.f32.mrf.mxu0
      %v4576 = vadd.f32 %v4348, %v4575
      %v4577 = vpop.f32.mrf.mxu0
      %4578 = vdwg.mxu0
      %s4579 = scalar_lea.vmem %s197, 256
      %4580 = vst.msk [vmem:[%s4579] sm:$0xff] %vm262, %v4421
      %4581 = vst.msk [vmem:[%s4579 + $0x8] sm:$0xff] %vm262, %v4426
      %4582 = vst.msk [vmem:[%s4579 + $0x10] sm:$0xff] %vm262, %v4431
      %4583 = vst.msk [vmem:[%s4579 + $0x18] sm:$0xff] %vm262, %v4436
      %4584 = vst.msk [vmem:[%s4579 + $0x20] sm:$0xff] %vm262, %v4441
      %4585 = vst.msk [vmem:[%s4579 + $0x28] sm:$0xff] %vm262, %v4446
      %4586 = vst.msk [vmem:[%s4579 + $0x30] sm:$0xff] %vm262, %v4451
      %4587 = vst.msk [vmem:[%s4579 + $0x38] sm:$0xff] %vm262, %v4456
      %4588 = vst.msk [vmem:[%s4579 + $0x40] sm:$0xff] %vm262, %v4461
      %4589 = vst.msk [vmem:[%s4579 + $0x48] sm:$0xff] %vm262, %v4466
      %4590 = vst.msk [vmem:[%s4579 + $0x50] sm:$0xff] %vm262, %v4471
      %4591 = vst.msk [vmem:[%s4579 + $0x58] sm:$0xff] %vm262, %v4476
      %4592 = vst.msk [vmem:[%s4579 + $0x60] sm:$0xff] %vm262, %v4481
      %4593 = vst.msk [vmem:[%s4579 + $0x68] sm:$0xff] %vm262, %v4486
      %4594 = vst.msk [vmem:[%s4579 + $0x70] sm:$0xff] %vm262, %v4491
      %4595 = vst.msk [vmem:[%s4579 + $0x78] sm:$0xff] %vm262, %v4496
      %4596 = vst.msk [vmem:[%s4579 + $0x80] sm:$0xff] %vm262, %v4501
      %4597 = vst.msk [vmem:[%s4579 + $0x88] sm:$0xff] %vm262, %v4506
      %4598 = vst.msk [vmem:[%s4579 + $0x90] sm:$0xff] %vm262, %v4511
      %4599 = vst.msk [vmem:[%s4579 + $0x98] sm:$0xff] %vm262, %v4516
      %4600 = vst.msk [vmem:[%s4579 + $0xa0] sm:$0xff] %vm262, %v4521
      %4601 = vst.msk [vmem:[%s4579 + $0xa8] sm:$0xff] %vm262, %v4526
      %4602 = vst.msk [vmem:[%s4579 + $0xb0] sm:$0xff] %vm262, %v4531
      %4603 = vst.msk [vmem:[%s4579 + $0xb8] sm:$0xff] %vm262, %v4536
      %4604 = vst.msk [vmem:[%s4579 + $0xc0] sm:$0xff] %vm262, %v4541
      %4605 = vst.msk [vmem:[%s4579 + $0xc8] sm:$0xff] %vm262, %v4546
      %4606 = vst.msk [vmem:[%s4579 + $0xd0] sm:$0xff] %vm262, %v4551
      %4607 = vst.msk [vmem:[%s4579 + $0xd8] sm:$0xff] %vm262, %v4556
      %4608 = vst.msk [vmem:[%s4579 + $0xe0] sm:$0xff] %vm262, %v4561
      %4609 = vst.msk [vmem:[%s4579 + $0xe8] sm:$0xff] %vm262, %v4566
      %4610 = vst.msk [vmem:[%s4579 + $0xf0] sm:$0xff] %vm262, %v4571
      %4611 = vst.msk [vmem:[%s4579 + $0xf8] sm:$0xff] %vm262, %v4576
      %s4612 = scalar_lea.vmem %s2, 12
      %v4613 = vld [vmem:[%s4612] sm:$0xf]
      %s4614 = scalar_lea.vmem %s2, 16
      %v4615 = vld [vmem:[%s4614] sm:$0xf]
      %v4617 = vsel %vm262, %v3274, 0
      %v4620 = vsel %vm262, %v3275, 0
      %v4623 = vsel %vm591, %v4615, 0
      %4625 = vmatprep.subr.mxu0 0.0
      %4626 = vmatpush1.msra.mxu0 0.0
      %4627 = vmatprep.subr.mxu0 0.0
      %4628 = vmatpush1.msra.mxu0 0.0
      %4629 = vmatprep.subr.mxu0 0.0
      %4630 = vmatpush1.msra.mxu0 0.0
      %4631 = vmatprep.subr.mxu0 0.0
      %4632 = vmatpush1.msra.mxu0 0.0
      %4633 = vmatprep.subr.mxu0 0.0
      %4634 = vmatpush1.msra.mxu0 0.0
      %4635 = vmatprep.subr.mxu0 0.0
      %4636 = vmatpush1.msra.mxu0 0.0
      %4637 = vmatprep.subr.mxu0 0.0
      %4638 = vmatpush1.msra.mxu0 0.0
      %4639 = vmatprep.subr.mxu0 0.0
      %4640 = vmatpush1.msra.mxu0 0.0
      %4641 = vmatprep.subr.mxu0 0.0
      %4642 = vmatpush1.msra.mxu0 0.0
      %4643 = vmatprep.subr.mxu0 0.0
      %4644 = vmatpush1.msra.mxu0 0.0
      %4645 = vmatprep.subr.mxu0 0.0
      %4646 = vmatpush1.msra.mxu0 0.0
      %4647 = vmatprep.subr.mxu0 0.0
      %4648 = vmatpush1.msra.mxu0 0.0
      %4649 = vmatprep.subr.mxu0 0.0
      %4650 = vmatpush1.msra.mxu0 0.0
      %4651 = vmatprep.subr.mxu0 0.0
      %4652 = vmatpush1.msra.mxu0 0.0
      %4653 = vmatprep.subr.mxu0 0.0
      %4654 = vmatpush1.msra.mxu0 0.0
      %4655 = vmatprep.subr.mxu0 0.0
      %4656 = vmatpush1.msra.mxu0 %v4623
      %4657 = vmatprep.subr.mxu0 0.0
      %4658 = vmatpush2.msra.mxu0 0.0
      %4659 = vmatprep.subr.mxu0 0.0
      %4660 = vmatpush2.msra.mxu0 0.0
      %4661 = vmatprep.subr.mxu0 0.0
      %4662 = vmatpush2.msra.mxu0 0.0
      %4663 = vmatprep.subr.mxu0 0.0
      %4664 = vmatpush2.msra.mxu0 0.0
      %4665 = vmatprep.subr.mxu0 0.0
      %4666 = vmatpush2.msra.mxu0 0.0
      %4667 = vmatprep.subr.mxu0 0.0
      %4668 = vmatpush2.msra.mxu0 0.0
      %4669 = vmatprep.subr.mxu0 0.0
      %4670 = vmatpush2.msra.mxu0 0.0
      %4671 = vmatprep.subr.mxu0 0.0
      %4672 = vmatpush2.msra.mxu0 0.0
      %4673 = vmatprep.subr.mxu0 0.0
      %4674 = vmatpush2.msra.mxu0 0.0
      %4675 = vmatprep.subr.mxu0 0.0
      %4676 = vmatpush2.msra.mxu0 0.0
      %4677 = vmatprep.subr.mxu0 0.0
      %4678 = vmatpush2.msra.mxu0 0.0
      %4679 = vmatprep.subr.mxu0 0.0
      %4680 = vmatpush2.msra.mxu0 0.0
      %4681 = vmatprep.subr.mxu0 0.0
      %4682 = vmatpush2.msra.mxu0 0.0
      %4683 = vmatprep.subr.mxu0 0.0
      %4684 = vmatpush2.msra.mxu0 0.0
      %4685 = vmatprep.subr.mxu0 0.0
      %4686 = vmatpush2.msra.mxu0 0.0
      %4687 = vmatprep.subr.mxu0 0.0
      %4688 = vmatpush2.msra.mxu0 0.0
      %4689 = vmatprep.mubr.f32.mxu0 0.0
      %4690 = vmatmul.mubr.f32.gmra.mxu0 %v3610
      %v4691 = vpop.f32.mrf.mxu0
      %v4692 = vadd.f32 0.0, %v4691
      %v4693 = vpop.f32.mrf.mxu0
      %4694 = vmatprep.mubr.f32.mxu0 0.0
      %4695 = vmatmul.mubr.f32.gmra.mxu0 %v3613
      %v4696 = vpop.f32.mrf.mxu0
      %v4697 = vadd.f32 0.0, %v4696
      %v4698 = vpop.f32.mrf.mxu0
      %4699 = vmatprep.mubr.f32.mxu0 0.0
      %4700 = vmatmul.mubr.f32.gmra.mxu0 %v3616
      %v4701 = vpop.f32.mrf.mxu0
      %v4702 = vadd.f32 0.0, %v4701
      %v4703 = vpop.f32.mrf.mxu0
      %4704 = vmatprep.mubr.f32.mxu0 0.0
      %4705 = vmatmul.mubr.f32.gmra.mxu0 %v3619
      %v4706 = vpop.f32.mrf.mxu0
      %v4707 = vadd.f32 0.0, %v4706
      %v4708 = vpop.f32.mrf.mxu0
      %4709 = vmatprep.mubr.f32.mxu0 0.0
      %4710 = vmatmul.mubr.f32.gmra.mxu0 %v3622
      %v4711 = vpop.f32.mrf.mxu0
      %v4712 = vadd.f32 0.0, %v4711
      %v4713 = vpop.f32.mrf.mxu0
      %4714 = vmatprep.mubr.f32.mxu0 0.0
      %4715 = vmatmul.mubr.f32.gmra.mxu0 %v3625
      %v4716 = vpop.f32.mrf.mxu0
      %v4717 = vadd.f32 0.0, %v4716
      %v4718 = vpop.f32.mrf.mxu0
      %4719 = vmatprep.mubr.f32.mxu0 0.0
      %4720 = vmatmul.mubr.f32.gmra.mxu0 %v3628
      %v4721 = vpop.f32.mrf.mxu0
      %v4722 = vadd.f32 0.0, %v4721
      %v4723 = vpop.f32.mrf.mxu0
      %4724 = vmatprep.mubr.f32.mxu0 0.0
      %4725 = vmatmul.mubr.f32.gmra.mxu0 %v3631
      %v4726 = vpop.f32.mrf.mxu0
      %v4727 = vadd.f32 0.0, %v4726
      %v4728 = vpop.f32.mrf.mxu0
      %4729 = vmatprep.mubr.f32.mxu0 0.0
      %4730 = vmatmul.mubr.f32.gmra.mxu0 %v3634
      %v4731 = vpop.f32.mrf.mxu0
      %v4732 = vadd.f32 0.0, %v4731
      %v4733 = vpop.f32.mrf.mxu0
      %4734 = vmatprep.mubr.f32.mxu0 0.0
      %4735 = vmatmul.mubr.f32.gmra.mxu0 %v3637
      %v4736 = vpop.f32.mrf.mxu0
      %v4737 = vadd.f32 0.0, %v4736
      %v4738 = vpop.f32.mrf.mxu0
      %4739 = vmatprep.mubr.f32.mxu0 0.0
      %4740 = vmatmul.mubr.f32.gmra.mxu0 %v3640
      %v4741 = vpop.f32.mrf.mxu0
      %v4742 = vadd.f32 0.0, %v4741
      %v4743 = vpop.f32.mrf.mxu0
      %4744 = vmatprep.mubr.f32.mxu0 0.0
      %4745 = vmatmul.mubr.f32.gmra.mxu0 %v3643
      %v4746 = vpop.f32.mrf.mxu0
      %v4747 = vadd.f32 0.0, %v4746
      %v4748 = vpop.f32.mrf.mxu0
      %4749 = vmatprep.mubr.f32.mxu0 0.0
      %4750 = vmatmul.mubr.f32.gmra.mxu0 %v3646
      %v4751 = vpop.f32.mrf.mxu0
      %v4752 = vadd.f32 0.0, %v4751
      %v4753 = vpop.f32.mrf.mxu0
      %4754 = vmatprep.mubr.f32.mxu0 0.0
      %4755 = vmatmul.mubr.f32.gmra.mxu0 %v3649
      %v4756 = vpop.f32.mrf.mxu0
      %v4757 = vadd.f32 0.0, %v4756
      %v4758 = vpop.f32.mrf.mxu0
      %4759 = vmatprep.mubr.f32.mxu0 0.0
      %4760 = vmatmul.mubr.f32.gmra.mxu0 %v3652
      %v4761 = vpop.f32.mrf.mxu0
      %v4762 = vadd.f32 0.0, %v4761
      %v4763 = vpop.f32.mrf.mxu0
      %4764 = vmatprep.mubr.f32.mxu0 0.0
      %4765 = vmatmul.mubr.f32.gmra.mxu0 %v3655
      %v4766 = vpop.f32.mrf.mxu0
      %v4767 = vadd.f32 0.0, %v4766
      %v4768 = vpop.f32.mrf.mxu0
      %4769 = vmatprep.mubr.f32.mxu0 0.0
      %4770 = vmatmul.mubr.f32.gmra.mxu0 %v3658
      %v4771 = vpop.f32.mrf.mxu0
      %v4772 = vadd.f32 0.0, %v4771
      %v4773 = vpop.f32.mrf.mxu0
      %4774 = vmatprep.mubr.f32.mxu0 0.0
      %4775 = vmatmul.mubr.f32.gmra.mxu0 %v3661
      %v4776 = vpop.f32.mrf.mxu0
      %v4777 = vadd.f32 0.0, %v4776
      %v4778 = vpop.f32.mrf.mxu0
      %4779 = vmatprep.mubr.f32.mxu0 0.0
      %4780 = vmatmul.mubr.f32.gmra.mxu0 %v3664
      %v4781 = vpop.f32.mrf.mxu0
      %v4782 = vadd.f32 0.0, %v4781
      %v4783 = vpop.f32.mrf.mxu0
      %4784 = vmatprep.mubr.f32.mxu0 0.0
      %4785 = vmatmul.mubr.f32.gmra.mxu0 %v3667
      %v4786 = vpop.f32.mrf.mxu0
      %v4787 = vadd.f32 0.0, %v4786
      %v4788 = vpop.f32.mrf.mxu0
      %4789 = vmatprep.mubr.f32.mxu0 0.0
      %4790 = vmatmul.mubr.f32.gmra.mxu0 %v3670
      %v4791 = vpop.f32.mrf.mxu0
      %v4792 = vadd.f32 0.0, %v4791
      %v4793 = vpop.f32.mrf.mxu0
      %4794 = vmatprep.mubr.f32.mxu0 0.0
      %4795 = vmatmul.mubr.f32.gmra.mxu0 %v3673
      %v4796 = vpop.f32.mrf.mxu0
      %v4797 = vadd.f32 0.0, %v4796
      %v4798 = vpop.f32.mrf.mxu0
      %4799 = vmatprep.mubr.f32.mxu0 0.0
      %4800 = vmatmul.mubr.f32.gmra.mxu0 %v3676
      %v4801 = vpop.f32.mrf.mxu0
      %v4802 = vadd.f32 0.0, %v4801
      %v4803 = vpop.f32.mrf.mxu0
      %4804 = vmatprep.mubr.f32.mxu0 0.0
      %4805 = vmatmul.mubr.f32.gmra.mxu0 %v3679
      %v4806 = vpop.f32.mrf.mxu0
      %v4807 = vadd.f32 0.0, %v4806
      %v4808 = vpop.f32.mrf.mxu0
      %4809 = vmatprep.mubr.f32.mxu0 0.0
      %4810 = vmatmul.mubr.f32.gmra.mxu0 %v3682
      %v4811 = vpop.f32.mrf.mxu0
      %v4812 = vadd.f32 0.0, %v4811
      %v4813 = vpop.f32.mrf.mxu0
      %4814 = vmatprep.mubr.f32.mxu0 0.0
      %4815 = vmatmul.mubr.f32.gmra.mxu0 %v3685
      %v4816 = vpop.f32.mrf.mxu0
      %v4817 = vadd.f32 0.0, %v4816
      %v4818 = vpop.f32.mrf.mxu0
      %4819 = vmatprep.mubr.f32.mxu0 0.0
      %4820 = vmatmul.mubr.f32.gmra.mxu0 %v3688
      %v4821 = vpop.f32.mrf.mxu0
      %v4822 = vadd.f32 0.0, %v4821
      %v4823 = vpop.f32.mrf.mxu0
      %4824 = vmatprep.mubr.f32.mxu0 0.0
      %4825 = vmatmul.mubr.f32.gmra.mxu0 %v3691
      %v4826 = vpop.f32.mrf.mxu0
      %v4827 = vadd.f32 0.0, %v4826
      %v4828 = vpop.f32.mrf.mxu0
      %4829 = vmatprep.mubr.f32.mxu0 0.0
      %4830 = vmatmul.mubr.f32.gmra.mxu0 %v3694
      %v4831 = vpop.f32.mrf.mxu0
      %v4832 = vadd.f32 0.0, %v4831
      %v4833 = vpop.f32.mrf.mxu0
      %4834 = vmatprep.mubr.f32.mxu0 0.0
      %4835 = vmatmul.mubr.f32.gmra.mxu0 %v3697
      %v4836 = vpop.f32.mrf.mxu0
      %v4837 = vadd.f32 0.0, %v4836
      %v4838 = vpop.f32.mrf.mxu0
      %4839 = vmatprep.mubr.f32.mxu0 0.0
      %4840 = vmatmul.mubr.f32.gmra.mxu0 %v4617
      %v4841 = vpop.f32.mrf.mxu0
      %v4842 = vadd.f32 0.0, %v4841
      %v4843 = vpop.f32.mrf.mxu0
      %4844 = vmatprep.mubr.f32.mxu0 0.0
      %4845 = vmatmul.mubr.f32.gmra.mxu0 %v4620
      %v4846 = vpop.f32.mrf.mxu0
      %v4847 = vadd.f32 0.0, %v4846
      %v4848 = vpop.f32.mrf.mxu0
      %4849 = vdwg.mxu0
      %v4851 = vsel %vm591, %v4613, 0
      %4853 = vmatprep.subr.mxu0 0.0
      %4854 = vmatpush1.msra.mxu0 0.0
      %4855 = vmatprep.subr.mxu0 0.0
      %4856 = vmatpush1.msra.mxu0 0.0
      %4857 = vmatprep.subr.mxu0 0.0
      %4858 = vmatpush1.msra.mxu0 0.0
      %4859 = vmatprep.subr.mxu0 0.0
      %4860 = vmatpush1.msra.mxu0 0.0
      %4861 = vmatprep.subr.mxu0 0.0
      %4862 = vmatpush1.msra.mxu0 0.0
      %4863 = vmatprep.subr.mxu0 0.0
      %4864 = vmatpush1.msra.mxu0 0.0
      %4865 = vmatprep.subr.mxu0 0.0
      %4866 = vmatpush1.msra.mxu0 0.0
      %4867 = vmatprep.subr.mxu0 0.0
      %4868 = vmatpush1.msra.mxu0 0.0
      %4869 = vmatprep.subr.mxu0 0.0
      %4870 = vmatpush1.msra.mxu0 0.0
      %4871 = vmatprep.subr.mxu0 0.0
      %4872 = vmatpush1.msra.mxu0 0.0
      %4873 = vmatprep.subr.mxu0 0.0
      %4874 = vmatpush1.msra.mxu0 0.0
      %4875 = vmatprep.subr.mxu0 0.0
      %4876 = vmatpush1.msra.mxu0 0.0
      %4877 = vmatprep.subr.mxu0 0.0
      %4878 = vmatpush1.msra.mxu0 0.0
      %4879 = vmatprep.subr.mxu0 0.0
      %4880 = vmatpush1.msra.mxu0 0.0
      %4881 = vmatprep.subr.mxu0 0.0
      %4882 = vmatpush1.msra.mxu0 0.0
      %4883 = vmatprep.subr.mxu0 0.0
      %4884 = vmatpush1.msra.mxu0 %v4851
      %4885 = vmatprep.subr.mxu0 0.0
      %4886 = vmatpush2.msra.mxu0 0.0
      %4887 = vmatprep.subr.mxu0 0.0
      %4888 = vmatpush2.msra.mxu0 0.0
      %4889 = vmatprep.subr.mxu0 0.0
      %4890 = vmatpush2.msra.mxu0 0.0
      %4891 = vmatprep.subr.mxu0 0.0
      %4892 = vmatpush2.msra.mxu0 0.0
      %4893 = vmatprep.subr.mxu0 0.0
      %4894 = vmatpush2.msra.mxu0 0.0
      %4895 = vmatprep.subr.mxu0 0.0
      %4896 = vmatpush2.msra.mxu0 0.0
      %4897 = vmatprep.subr.mxu0 0.0
      %4898 = vmatpush2.msra.mxu0 0.0
      %4899 = vmatprep.subr.mxu0 0.0
      %4900 = vmatpush2.msra.mxu0 0.0
      %4901 = vmatprep.subr.mxu0 0.0
      %4902 = vmatpush2.msra.mxu0 0.0
      %4903 = vmatprep.subr.mxu0 0.0
      %4904 = vmatpush2.msra.mxu0 0.0
      %4905 = vmatprep.subr.mxu0 0.0
      %4906 = vmatpush2.msra.mxu0 0.0
      %4907 = vmatprep.subr.mxu0 0.0
      %4908 = vmatpush2.msra.mxu0 0.0
      %4909 = vmatprep.subr.mxu0 0.0
      %4910 = vmatpush2.msra.mxu0 0.0
      %4911 = vmatprep.subr.mxu0 0.0
      %4912 = vmatpush2.msra.mxu0 0.0
      %4913 = vmatprep.subr.mxu0 0.0
      %4914 = vmatpush2.msra.mxu0 0.0
      %4915 = vmatprep.subr.mxu0 0.0
      %4916 = vmatpush2.msra.mxu0 0.0
      %4917 = vmatprep.mubr.f32.mxu0 0.0
      %4918 = vmatmul.mubr.f32.gmra.mxu0 %v3604
      %v4919 = vpop.f32.mrf.mxu0
      %v4920 = vadd.f32 %v4692, %v4919
      %v4921 = vpop.f32.mrf.mxu0
      %4922 = vmatprep.mubr.f32.mxu0 0.0
      %4923 = vmatmul.mubr.f32.gmra.mxu0 %v3607
      %v4924 = vpop.f32.mrf.mxu0
      %v4925 = vadd.f32 %v4697, %v4924
      %v4926 = vpop.f32.mrf.mxu0
      %4927 = vmatprep.mubr.f32.mxu0 0.0
      %4928 = vmatmul.mubr.f32.gmra.mxu0 %v3610
      %v4929 = vpop.f32.mrf.mxu0
      %v4930 = vadd.f32 %v4702, %v4929
      %v4931 = vpop.f32.mrf.mxu0
      %4932 = vmatprep.mubr.f32.mxu0 0.0
      %4933 = vmatmul.mubr.f32.gmra.mxu0 %v3613
      %v4934 = vpop.f32.mrf.mxu0
      %v4935 = vadd.f32 %v4707, %v4934
      %v4936 = vpop.f32.mrf.mxu0
      %4937 = vmatprep.mubr.f32.mxu0 0.0
      %4938 = vmatmul.mubr.f32.gmra.mxu0 %v3616
      %v4939 = vpop.f32.mrf.mxu0
      %v4940 = vadd.f32 %v4712, %v4939
      %v4941 = vpop.f32.mrf.mxu0
      %4942 = vmatprep.mubr.f32.mxu0 0.0
      %4943 = vmatmul.mubr.f32.gmra.mxu0 %v3619
      %v4944 = vpop.f32.mrf.mxu0
      %v4945 = vadd.f32 %v4717, %v4944
      %v4946 = vpop.f32.mrf.mxu0
      %4947 = vmatprep.mubr.f32.mxu0 0.0
      %4948 = vmatmul.mubr.f32.gmra.mxu0 %v3622
      %v4949 = vpop.f32.mrf.mxu0
      %v4950 = vadd.f32 %v4722, %v4949
      %v4951 = vpop.f32.mrf.mxu0
      %4952 = vmatprep.mubr.f32.mxu0 0.0
      %4953 = vmatmul.mubr.f32.gmra.mxu0 %v3625
      %v4954 = vpop.f32.mrf.mxu0
      %v4955 = vadd.f32 %v4727, %v4954
      %v4956 = vpop.f32.mrf.mxu0
      %4957 = vmatprep.mubr.f32.mxu0 0.0
      %4958 = vmatmul.mubr.f32.gmra.mxu0 %v3628
      %v4959 = vpop.f32.mrf.mxu0
      %v4960 = vadd.f32 %v4732, %v4959
      %v4961 = vpop.f32.mrf.mxu0
      %4962 = vmatprep.mubr.f32.mxu0 0.0
      %4963 = vmatmul.mubr.f32.gmra.mxu0 %v3631
      %v4964 = vpop.f32.mrf.mxu0
      %v4965 = vadd.f32 %v4737, %v4964
      %v4966 = vpop.f32.mrf.mxu0
      %4967 = vmatprep.mubr.f32.mxu0 0.0
      %4968 = vmatmul.mubr.f32.gmra.mxu0 %v3634
      %v4969 = vpop.f32.mrf.mxu0
      %v4970 = vadd.f32 %v4742, %v4969
      %v4971 = vpop.f32.mrf.mxu0
      %4972 = vmatprep.mubr.f32.mxu0 0.0
      %4973 = vmatmul.mubr.f32.gmra.mxu0 %v3637
      %v4974 = vpop.f32.mrf.mxu0
      %v4975 = vadd.f32 %v4747, %v4974
      %v4976 = vpop.f32.mrf.mxu0
      %4977 = vmatprep.mubr.f32.mxu0 0.0
      %4978 = vmatmul.mubr.f32.gmra.mxu0 %v3640
      %v4979 = vpop.f32.mrf.mxu0
      %v4980 = vadd.f32 %v4752, %v4979
      %v4981 = vpop.f32.mrf.mxu0
      %4982 = vmatprep.mubr.f32.mxu0 0.0
      %4983 = vmatmul.mubr.f32.gmra.mxu0 %v3643
      %v4984 = vpop.f32.mrf.mxu0
      %v4985 = vadd.f32 %v4757, %v4984
      %v4986 = vpop.f32.mrf.mxu0
      %4987 = vmatprep.mubr.f32.mxu0 0.0
      %4988 = vmatmul.mubr.f32.gmra.mxu0 %v3646
      %v4989 = vpop.f32.mrf.mxu0
      %v4990 = vadd.f32 %v4762, %v4989
      %v4991 = vpop.f32.mrf.mxu0
      %4992 = vmatprep.mubr.f32.mxu0 0.0
      %4993 = vmatmul.mubr.f32.gmra.mxu0 %v3649
      %v4994 = vpop.f32.mrf.mxu0
      %v4995 = vadd.f32 %v4767, %v4994
      %v4996 = vpop.f32.mrf.mxu0
      %4997 = vmatprep.mubr.f32.mxu0 0.0
      %4998 = vmatmul.mubr.f32.gmra.mxu0 %v3652
      %v4999 = vpop.f32.mrf.mxu0
      %v5000 = vadd.f32 %v4772, %v4999
      %v5001 = vpop.f32.mrf.mxu0
      %5002 = vmatprep.mubr.f32.mxu0 0.0
      %5003 = vmatmul.mubr.f32.gmra.mxu0 %v3655
      %v5004 = vpop.f32.mrf.mxu0
      %v5005 = vadd.f32 %v4777, %v5004
      %v5006 = vpop.f32.mrf.mxu0
      %5007 = vmatprep.mubr.f32.mxu0 0.0
      %5008 = vmatmul.mubr.f32.gmra.mxu0 %v3658
      %v5009 = vpop.f32.mrf.mxu0
      %v5010 = vadd.f32 %v4782, %v5009
      %v5011 = vpop.f32.mrf.mxu0
      %5012 = vmatprep.mubr.f32.mxu0 0.0
      %5013 = vmatmul.mubr.f32.gmra.mxu0 %v3661
      %v5014 = vpop.f32.mrf.mxu0
      %v5015 = vadd.f32 %v4787, %v5014
      %v5016 = vpop.f32.mrf.mxu0
      %5017 = vmatprep.mubr.f32.mxu0 0.0
      %5018 = vmatmul.mubr.f32.gmra.mxu0 %v3664
      %v5019 = vpop.f32.mrf.mxu0
      %v5020 = vadd.f32 %v4792, %v5019
      %v5021 = vpop.f32.mrf.mxu0
      %5022 = vmatprep.mubr.f32.mxu0 0.0
      %5023 = vmatmul.mubr.f32.gmra.mxu0 %v3667
      %v5024 = vpop.f32.mrf.mxu0
      %v5025 = vadd.f32 %v4797, %v5024
      %v5026 = vpop.f32.mrf.mxu0
      %5027 = vmatprep.mubr.f32.mxu0 0.0
      %5028 = vmatmul.mubr.f32.gmra.mxu0 %v3670
      %v5029 = vpop.f32.mrf.mxu0
      %v5030 = vadd.f32 %v4802, %v5029
      %v5031 = vpop.f32.mrf.mxu0
      %5032 = vmatprep.mubr.f32.mxu0 0.0
      %5033 = vmatmul.mubr.f32.gmra.mxu0 %v3673
      %v5034 = vpop.f32.mrf.mxu0
      %v5035 = vadd.f32 %v4807, %v5034
      %v5036 = vpop.f32.mrf.mxu0
      %5037 = vmatprep.mubr.f32.mxu0 0.0
      %5038 = vmatmul.mubr.f32.gmra.mxu0 %v3676
      %v5039 = vpop.f32.mrf.mxu0
      %v5040 = vadd.f32 %v4812, %v5039
      %v5041 = vpop.f32.mrf.mxu0
      %5042 = vmatprep.mubr.f32.mxu0 0.0
      %5043 = vmatmul.mubr.f32.gmra.mxu0 %v3679
      %v5044 = vpop.f32.mrf.mxu0
      %v5045 = vadd.f32 %v4817, %v5044
      %v5046 = vpop.f32.mrf.mxu0
      %5047 = vmatprep.mubr.f32.mxu0 0.0
      %5048 = vmatmul.mubr.f32.gmra.mxu0 %v3682
      %v5049 = vpop.f32.mrf.mxu0
      %v5050 = vadd.f32 %v4822, %v5049
      %v5051 = vpop.f32.mrf.mxu0
      %5052 = vmatprep.mubr.f32.mxu0 0.0
      %5053 = vmatmul.mubr.f32.gmra.mxu0 %v3685
      %v5054 = vpop.f32.mrf.mxu0
      %v5055 = vadd.f32 %v4827, %v5054
      %v5056 = vpop.f32.mrf.mxu0
      %5057 = vmatprep.mubr.f32.mxu0 0.0
      %5058 = vmatmul.mubr.f32.gmra.mxu0 %v3688
      %v5059 = vpop.f32.mrf.mxu0
      %v5060 = vadd.f32 %v4832, %v5059
      %v5061 = vpop.f32.mrf.mxu0
      %5062 = vmatprep.mubr.f32.mxu0 0.0
      %5063 = vmatmul.mubr.f32.gmra.mxu0 %v3691
      %v5064 = vpop.f32.mrf.mxu0
      %v5065 = vadd.f32 %v4837, %v5064
      %v5066 = vpop.f32.mrf.mxu0
      %5067 = vmatprep.mubr.f32.mxu0 0.0
      %5068 = vmatmul.mubr.f32.gmra.mxu0 %v3694
      %v5069 = vpop.f32.mrf.mxu0
      %v5070 = vadd.f32 %v4842, %v5069
      %v5071 = vpop.f32.mrf.mxu0
      %5072 = vmatprep.mubr.f32.mxu0 0.0
      %5073 = vmatmul.mubr.f32.gmra.mxu0 %v3697
      %v5074 = vpop.f32.mrf.mxu0
      %v5075 = vadd.f32 %v4847, %v5074
      %v5076 = vpop.f32.mrf.mxu0
      %5077 = vdwg.mxu0
      %s5078 = scalar_lea.vmem %s197, 512
      %5079 = vst.msk [vmem:[%s5078] sm:$0xff] %vm262, %v4920
      %5080 = vst.msk [vmem:[%s5078 + $0x8] sm:$0xff] %vm262, %v4925
      %5081 = vst.msk [vmem:[%s5078 + $0x10] sm:$0xff] %vm262, %v4930
      %5082 = vst.msk [vmem:[%s5078 + $0x18] sm:$0xff] %vm262, %v4935
      %5083 = vst.msk [vmem:[%s5078 + $0x20] sm:$0xff] %vm262, %v4940
      %5084 = vst.msk [vmem:[%s5078 + $0x28] sm:$0xff] %vm262, %v4945
      %5085 = vst.msk [vmem:[%s5078 + $0x30] sm:$0xff] %vm262, %v4950
      %5086 = vst.msk [vmem:[%s5078 + $0x38] sm:$0xff] %vm262, %v4955
      %5087 = vst.msk [vmem:[%s5078 + $0x40] sm:$0xff] %vm262, %v4960
      %5088 = vst.msk [vmem:[%s5078 + $0x48] sm:$0xff] %vm262, %v4965
      %5089 = vst.msk [vmem:[%s5078 + $0x50] sm:$0xff] %vm262, %v4970
      %5090 = vst.msk [vmem:[%s5078 + $0x58] sm:$0xff] %vm262, %v4975
      %5091 = vst.msk [vmem:[%s5078 + $0x60] sm:$0xff] %vm262, %v4980
      %5092 = vst.msk [vmem:[%s5078 + $0x68] sm:$0xff] %vm262, %v4985
      %5093 = vst.msk [vmem:[%s5078 + $0x70] sm:$0xff] %vm262, %v4990
      %5094 = vst.msk [vmem:[%s5078 + $0x78] sm:$0xff] %vm262, %v4995
      %5095 = vst.msk [vmem:[%s5078 + $0x80] sm:$0xff] %vm262, %v5000
      %5096 = vst.msk [vmem:[%s5078 + $0x88] sm:$0xff] %vm262, %v5005
      %5097 = vst.msk [vmem:[%s5078 + $0x90] sm:$0xff] %vm262, %v5010
      %5098 = vst.msk [vmem:[%s5078 + $0x98] sm:$0xff] %vm262, %v5015
      %5099 = vst.msk [vmem:[%s5078 + $0xa0] sm:$0xff] %vm262, %v5020
      %5100 = vst.msk [vmem:[%s5078 + $0xa8] sm:$0xff] %vm262, %v5025
      %5101 = vst.msk [vmem:[%s5078 + $0xb0] sm:$0xff] %vm262, %v5030
      %5102 = vst.msk [vmem:[%s5078 + $0xb8] sm:$0xff] %vm262, %v5035
      %5103 = vst.msk [vmem:[%s5078 + $0xc0] sm:$0xff] %vm262, %v5040
      %5104 = vst.msk [vmem:[%s5078 + $0xc8] sm:$0xff] %vm262, %v5045
      %5105 = vst.msk [vmem:[%s5078 + $0xd0] sm:$0xff] %vm262, %v5050
      %5106 = vst.msk [vmem:[%s5078 + $0xd8] sm:$0xff] %vm262, %v5055
      %5107 = vst.msk [vmem:[%s5078 + $0xe0] sm:$0xff] %vm262, %v5060
      %5108 = vst.msk [vmem:[%s5078 + $0xe8] sm:$0xff] %vm262, %v5065
      %5109 = vst.msk [vmem:[%s5078 + $0xf0] sm:$0xff] %vm262, %v5070
      %5110 = vst.msk [vmem:[%s5078 + $0xf8] sm:$0xff] %vm262, %v5075
      %s5111 = scalar_lea.vmem %s2, 20
      %v5112 = vld [vmem:[%s5111] sm:$0xf]
      %s5113 = scalar_lea.vmem %s2, 24
      %v5114 = vld [vmem:[%s5113] sm:$0xf]
      %v5116 = vsel %vm591, %v5114, 0
      %5118 = vmatprep.subr.mxu0 0.0
      %5119 = vmatpush1.msra.mxu0 0.0
      %5120 = vmatprep.subr.mxu0 0.0
      %5121 = vmatpush1.msra.mxu0 0.0
      %5122 = vmatprep.subr.mxu0 0.0
      %5123 = vmatpush1.msra.mxu0 0.0
      %5124 = vmatprep.subr.mxu0 0.0
      %5125 = vmatpush1.msra.mxu0 0.0
      %5126 = vmatprep.subr.mxu0 0.0
      %5127 = vmatpush1.msra.mxu0 0.0
      %5128 = vmatprep.subr.mxu0 0.0
      %5129 = vmatpush1.msra.mxu0 0.0
      %5130 = vmatprep.subr.mxu0 0.0
      %5131 = vmatpush1.msra.mxu0 0.0
      %5132 = vmatprep.subr.mxu0 0.0
      %5133 = vmatpush1.msra.mxu0 0.0
      %5134 = vmatprep.subr.mxu0 0.0
      %5135 = vmatpush1.msra.mxu0 0.0
      %5136 = vmatprep.subr.mxu0 0.0
      %5137 = vmatpush1.msra.mxu0 0.0
      %5138 = vmatprep.subr.mxu0 0.0
      %5139 = vmatpush1.msra.mxu0 0.0
      %5140 = vmatprep.subr.mxu0 0.0
      %5141 = vmatpush1.msra.mxu0 0.0
      %5142 = vmatprep.subr.mxu0 0.0
      %5143 = vmatpush1.msra.mxu0 0.0
      %5144 = vmatprep.subr.mxu0 0.0
      %5145 = vmatpush1.msra.mxu0 0.0
      %5146 = vmatprep.subr.mxu0 0.0
      %5147 = vmatpush1.msra.mxu0 0.0
      %5148 = vmatprep.subr.mxu0 0.0
      %5149 = vmatpush1.msra.mxu0 %v5116
      %5150 = vmatprep.subr.mxu0 0.0
      %5151 = vmatpush2.msra.mxu0 0.0
      %5152 = vmatprep.subr.mxu0 0.0
      %5153 = vmatpush2.msra.mxu0 0.0
      %5154 = vmatprep.subr.mxu0 0.0
      %5155 = vmatpush2.msra.mxu0 0.0
      %5156 = vmatprep.subr.mxu0 0.0
      %5157 = vmatpush2.msra.mxu0 0.0
      %5158 = vmatprep.subr.mxu0 0.0
      %5159 = vmatpush2.msra.mxu0 0.0
      %5160 = vmatprep.subr.mxu0 0.0
      %5161 = vmatpush2.msra.mxu0 0.0
      %5162 = vmatprep.subr.mxu0 0.0
      %5163 = vmatpush2.msra.mxu0 0.0
      %5164 = vmatprep.subr.mxu0 0.0
      %5165 = vmatpush2.msra.mxu0 0.0
      %5166 = vmatprep.subr.mxu0 0.0
      %5167 = vmatpush2.msra.mxu0 0.0
      %5168 = vmatprep.subr.mxu0 0.0
      %5169 = vmatpush2.msra.mxu0 0.0
      %5170 = vmatprep.subr.mxu0 0.0
      %5171 = vmatpush2.msra.mxu0 0.0
      %5172 = vmatprep.subr.mxu0 0.0
      %5173 = vmatpush2.msra.mxu0 0.0
      %5174 = vmatprep.subr.mxu0 0.0
      %5175 = vmatpush2.msra.mxu0 0.0
      %5176 = vmatprep.subr.mxu0 0.0
      %5177 = vmatpush2.msra.mxu0 0.0
      %5178 = vmatprep.subr.mxu0 0.0
      %5179 = vmatpush2.msra.mxu0 0.0
      %5180 = vmatprep.subr.mxu0 0.0
      %5181 = vmatpush2.msra.mxu0 0.0
      %5182 = vmatprep.mubr.f32.mxu0 0.0
      %5183 = vmatmul.mubr.f32.gmra.mxu0 %v4059
      %v5184 = vpop.f32.mrf.mxu0
      %v5185 = vadd.f32 0.0, %v5184
      %v5186 = vpop.f32.mrf.mxu0
      %5187 = vmatprep.mubr.f32.mxu0 0.0
      %5188 = vmatmul.mubr.f32.gmra.mxu0 %v4061
      %v5189 = vpop.f32.mrf.mxu0
      %v5190 = vadd.f32 0.0, %v5189
      %v5191 = vpop.f32.mrf.mxu0
      %5192 = vmatprep.mubr.f32.mxu0 0.0
      %5193 = vmatmul.mubr.f32.gmra.mxu0 %v4063
      %v5194 = vpop.f32.mrf.mxu0
      %v5195 = vadd.f32 0.0, %v5194
      %v5196 = vpop.f32.mrf.mxu0
      %5197 = vmatprep.mubr.f32.mxu0 0.0
      %5198 = vmatmul.mubr.f32.gmra.mxu0 %v4065
      %v5199 = vpop.f32.mrf.mxu0
      %v5200 = vadd.f32 0.0, %v5199
      %v5201 = vpop.f32.mrf.mxu0
      %5202 = vmatprep.mubr.f32.mxu0 0.0
      %5203 = vmatmul.mubr.f32.gmra.mxu0 %v4067
      %v5204 = vpop.f32.mrf.mxu0
      %v5205 = vadd.f32 0.0, %v5204
      %v5206 = vpop.f32.mrf.mxu0
      %5207 = vmatprep.mubr.f32.mxu0 0.0
      %5208 = vmatmul.mubr.f32.gmra.mxu0 %v4069
      %v5209 = vpop.f32.mrf.mxu0
      %v5210 = vadd.f32 0.0, %v5209
      %v5211 = vpop.f32.mrf.mxu0
      %5212 = vmatprep.mubr.f32.mxu0 0.0
      %5213 = vmatmul.mubr.f32.gmra.mxu0 %v4071
      %v5214 = vpop.f32.mrf.mxu0
      %v5215 = vadd.f32 0.0, %v5214
      %v5216 = vpop.f32.mrf.mxu0
      %5217 = vmatprep.mubr.f32.mxu0 0.0
      %5218 = vmatmul.mubr.f32.gmra.mxu0 %v4073
      %v5219 = vpop.f32.mrf.mxu0
      %v5220 = vadd.f32 0.0, %v5219
      %v5221 = vpop.f32.mrf.mxu0
      %5222 = vmatprep.mubr.f32.mxu0 0.0
      %5223 = vmatmul.mubr.f32.gmra.mxu0 %v4075
      %v5224 = vpop.f32.mrf.mxu0
      %v5225 = vadd.f32 0.0, %v5224
      %v5226 = vpop.f32.mrf.mxu0
      %5227 = vmatprep.mubr.f32.mxu0 0.0
      %5228 = vmatmul.mubr.f32.gmra.mxu0 %v4077
      %v5229 = vpop.f32.mrf.mxu0
      %v5230 = vadd.f32 0.0, %v5229
      %v5231 = vpop.f32.mrf.mxu0
      %5232 = vmatprep.mubr.f32.mxu0 0.0
      %5233 = vmatmul.mubr.f32.gmra.mxu0 %v4079
      %v5234 = vpop.f32.mrf.mxu0
      %v5235 = vadd.f32 0.0, %v5234
      %v5236 = vpop.f32.mrf.mxu0
      %5237 = vmatprep.mubr.f32.mxu0 0.0
      %5238 = vmatmul.mubr.f32.gmra.mxu0 %v4081
      %v5239 = vpop.f32.mrf.mxu0
      %v5240 = vadd.f32 0.0, %v5239
      %v5241 = vpop.f32.mrf.mxu0
      %5242 = vmatprep.mubr.f32.mxu0 0.0
      %5243 = vmatmul.mubr.f32.gmra.mxu0 %v4083
      %v5244 = vpop.f32.mrf.mxu0
      %v5245 = vadd.f32 0.0, %v5244
      %v5246 = vpop.f32.mrf.mxu0
      %5247 = vmatprep.mubr.f32.mxu0 0.0
      %5248 = vmatmul.mubr.f32.gmra.mxu0 %v4085
      %v5249 = vpop.f32.mrf.mxu0
      %v5250 = vadd.f32 0.0, %v5249
      %v5251 = vpop.f32.mrf.mxu0
      %5252 = vmatprep.mubr.f32.mxu0 0.0
      %5253 = vmatmul.mubr.f32.gmra.mxu0 %v4087
      %v5254 = vpop.f32.mrf.mxu0
      %v5255 = vadd.f32 0.0, %v5254
      %v5256 = vpop.f32.mrf.mxu0
      %5257 = vmatprep.mubr.f32.mxu0 0.0
      %5258 = vmatmul.mubr.f32.gmra.mxu0 %v4089
      %v5259 = vpop.f32.mrf.mxu0
      %v5260 = vadd.f32 0.0, %v5259
      %v5261 = vpop.f32.mrf.mxu0
      %5262 = vmatprep.mubr.f32.mxu0 0.0
      %5263 = vmatmul.mubr.f32.gmra.mxu0 %v4091
      %v5264 = vpop.f32.mrf.mxu0
      %v5265 = vadd.f32 0.0, %v5264
      %v5266 = vpop.f32.mrf.mxu0
      %5267 = vmatprep.mubr.f32.mxu0 0.0
      %5268 = vmatmul.mubr.f32.gmra.mxu0 %v4093
      %v5269 = vpop.f32.mrf.mxu0
      %v5270 = vadd.f32 0.0, %v5269
      %v5271 = vpop.f32.mrf.mxu0
      %5272 = vmatprep.mubr.f32.mxu0 0.0
      %5273 = vmatmul.mubr.f32.gmra.mxu0 %v4095
      %v5274 = vpop.f32.mrf.mxu0
      %v5275 = vadd.f32 0.0, %v5274
      %v5276 = vpop.f32.mrf.mxu0
      %5277 = vmatprep.mubr.f32.mxu0 0.0
      %5278 = vmatmul.mubr.f32.gmra.mxu0 %v4097
      %v5279 = vpop.f32.mrf.mxu0
      %v5280 = vadd.f32 0.0, %v5279
      %v5281 = vpop.f32.mrf.mxu0
      %5282 = vmatprep.mubr.f32.mxu0 0.0
      %5283 = vmatmul.mubr.f32.gmra.mxu0 %v4099
      %v5284 = vpop.f32.mrf.mxu0
      %v5285 = vadd.f32 0.0, %v5284
      %v5286 = vpop.f32.mrf.mxu0
      %5287 = vmatprep.mubr.f32.mxu0 0.0
      %5288 = vmatmul.mubr.f32.gmra.mxu0 %v4101
      %v5289 = vpop.f32.mrf.mxu0
      %v5290 = vadd.f32 0.0, %v5289
      %v5291 = vpop.f32.mrf.mxu0
      %5292 = vmatprep.mubr.f32.mxu0 0.0
      %5293 = vmatmul.mubr.f32.gmra.mxu0 %v4103
      %v5294 = vpop.f32.mrf.mxu0
      %v5295 = vadd.f32 0.0, %v5294
      %v5296 = vpop.f32.mrf.mxu0
      %5297 = vmatprep.mubr.f32.mxu0 0.0
      %5298 = vmatmul.mubr.f32.gmra.mxu0 %v4105
      %v5299 = vpop.f32.mrf.mxu0
      %v5300 = vadd.f32 0.0, %v5299
      %v5301 = vpop.f32.mrf.mxu0
      %5302 = vmatprep.mubr.f32.mxu0 0.0
      %5303 = vmatmul.mubr.f32.gmra.mxu0 %v4107
      %v5304 = vpop.f32.mrf.mxu0
      %v5305 = vadd.f32 0.0, %v5304
      %v5306 = vpop.f32.mrf.mxu0
      %5307 = vmatprep.mubr.f32.mxu0 0.0
      %5308 = vmatmul.mubr.f32.gmra.mxu0 %v4109
      %v5309 = vpop.f32.mrf.mxu0
      %v5310 = vadd.f32 0.0, %v5309
      %v5311 = vpop.f32.mrf.mxu0
      %5312 = vmatprep.mubr.f32.mxu0 0.0
      %5313 = vmatmul.mubr.f32.gmra.mxu0 %v4111
      %v5314 = vpop.f32.mrf.mxu0
      %v5315 = vadd.f32 0.0, %v5314
      %v5316 = vpop.f32.mrf.mxu0
      %5317 = vmatprep.mubr.f32.mxu0 0.0
      %5318 = vmatmul.mubr.f32.gmra.mxu0 %v4113
      %v5319 = vpop.f32.mrf.mxu0
      %v5320 = vadd.f32 0.0, %v5319
      %v5321 = vpop.f32.mrf.mxu0
      %5322 = vmatprep.mubr.f32.mxu0 0.0
      %5323 = vmatmul.mubr.f32.gmra.mxu0 %v4115
      %v5324 = vpop.f32.mrf.mxu0
      %v5325 = vadd.f32 0.0, %v5324
      %v5326 = vpop.f32.mrf.mxu0
      %5327 = vmatprep.mubr.f32.mxu0 0.0
      %5328 = vmatmul.mubr.f32.gmra.mxu0 %v4117
      %v5329 = vpop.f32.mrf.mxu0
      %v5330 = vadd.f32 0.0, %v5329
      %v5331 = vpop.f32.mrf.mxu0
      %5332 = vmatprep.mubr.f32.mxu0 0.0
      %5333 = vmatmul.mubr.f32.gmra.mxu0 %v4119
      %v5334 = vpop.f32.mrf.mxu0
      %v5335 = vadd.f32 0.0, %v5334
      %v5336 = vpop.f32.mrf.mxu0
      %5337 = vmatprep.mubr.f32.mxu0 0.0
      %5338 = vmatmul.mubr.f32.gmra.mxu0 %v4121
      %v5339 = vpop.f32.mrf.mxu0
      %v5340 = vadd.f32 0.0, %v5339
      %v5341 = vpop.f32.mrf.mxu0
      %5342 = vdwg.mxu0
      %v5344 = vsel %vm591, %v5112, 0
      %5346 = vmatprep.subr.mxu0 0.0
      %5347 = vmatpush1.msra.mxu0 0.0
      %5348 = vmatprep.subr.mxu0 0.0
      %5349 = vmatpush1.msra.mxu0 0.0
      %5350 = vmatprep.subr.mxu0 0.0
      %5351 = vmatpush1.msra.mxu0 0.0
      %5352 = vmatprep.subr.mxu0 0.0
      %5353 = vmatpush1.msra.mxu0 0.0
      %5354 = vmatprep.subr.mxu0 0.0
      %5355 = vmatpush1.msra.mxu0 0.0
      %5356 = vmatprep.subr.mxu0 0.0
      %5357 = vmatpush1.msra.mxu0 0.0
      %5358 = vmatprep.subr.mxu0 0.0
      %5359 = vmatpush1.msra.mxu0 0.0
      %5360 = vmatprep.subr.mxu0 0.0
      %5361 = vmatpush1.msra.mxu0 0.0
      %5362 = vmatprep.subr.mxu0 0.0
      %5363 = vmatpush1.msra.mxu0 0.0
      %5364 = vmatprep.subr.mxu0 0.0
      %5365 = vmatpush1.msra.mxu0 0.0
      %5366 = vmatprep.subr.mxu0 0.0
      %5367 = vmatpush1.msra.mxu0 0.0
      %5368 = vmatprep.subr.mxu0 0.0
      %5369 = vmatpush1.msra.mxu0 0.0
      %5370 = vmatprep.subr.mxu0 0.0
      %5371 = vmatpush1.msra.mxu0 0.0
      %5372 = vmatprep.subr.mxu0 0.0
      %5373 = vmatpush1.msra.mxu0 0.0
      %5374 = vmatprep.subr.mxu0 0.0
      %5375 = vmatpush1.msra.mxu0 0.0
      %5376 = vmatprep.subr.mxu0 0.0
      %5377 = vmatpush1.msra.mxu0 %v5344
      %5378 = vmatprep.subr.mxu0 0.0
      %5379 = vmatpush2.msra.mxu0 0.0
      %5380 = vmatprep.subr.mxu0 0.0
      %5381 = vmatpush2.msra.mxu0 0.0
      %5382 = vmatprep.subr.mxu0 0.0
      %5383 = vmatpush2.msra.mxu0 0.0
      %5384 = vmatprep.subr.mxu0 0.0
      %5385 = vmatpush2.msra.mxu0 0.0
      %5386 = vmatprep.subr.mxu0 0.0
      %5387 = vmatpush2.msra.mxu0 0.0
      %5388 = vmatprep.subr.mxu0 0.0
      %5389 = vmatpush2.msra.mxu0 0.0
      %5390 = vmatprep.subr.mxu0 0.0
      %5391 = vmatpush2.msra.mxu0 0.0
      %5392 = vmatprep.subr.mxu0 0.0
      %5393 = vmatpush2.msra.mxu0 0.0
      %5394 = vmatprep.subr.mxu0 0.0
      %5395 = vmatpush2.msra.mxu0 0.0
      %5396 = vmatprep.subr.mxu0 0.0
      %5397 = vmatpush2.msra.mxu0 0.0
      %5398 = vmatprep.subr.mxu0 0.0
      %5399 = vmatpush2.msra.mxu0 0.0
      %5400 = vmatprep.subr.mxu0 0.0
      %5401 = vmatpush2.msra.mxu0 0.0
      %5402 = vmatprep.subr.mxu0 0.0
      %5403 = vmatpush2.msra.mxu0 0.0
      %5404 = vmatprep.subr.mxu0 0.0
      %5405 = vmatpush2.msra.mxu0 0.0
      %5406 = vmatprep.subr.mxu0 0.0
      %5407 = vmatpush2.msra.mxu0 0.0
      %5408 = vmatprep.subr.mxu0 0.0
      %5409 = vmatpush2.msra.mxu0 0.0
      %5410 = vmatprep.mubr.f32.mxu0 0.0
      %5411 = vmatmul.mubr.f32.gmra.mxu0 %v3604
      %v5412 = vpop.f32.mrf.mxu0
      %v5413 = vadd.f32 %v5185, %v5412
      %v5414 = vpop.f32.mrf.mxu0
      %5415 = vmatprep.mubr.f32.mxu0 0.0
      %5416 = vmatmul.mubr.f32.gmra.mxu0 %v3607
      %v5417 = vpop.f32.mrf.mxu0
      %v5418 = vadd.f32 %v5190, %v5417
      %v5419 = vpop.f32.mrf.mxu0
      %5420 = vmatprep.mubr.f32.mxu0 0.0
      %5421 = vmatmul.mubr.f32.gmra.mxu0 %v3610
      %v5422 = vpop.f32.mrf.mxu0
      %v5423 = vadd.f32 %v5195, %v5422
      %v5424 = vpop.f32.mrf.mxu0
      %5425 = vmatprep.mubr.f32.mxu0 0.0
      %5426 = vmatmul.mubr.f32.gmra.mxu0 %v3613
      %v5427 = vpop.f32.mrf.mxu0
      %v5428 = vadd.f32 %v5200, %v5427
      %v5429 = vpop.f32.mrf.mxu0
      %5430 = vmatprep.mubr.f32.mxu0 0.0
      %5431 = vmatmul.mubr.f32.gmra.mxu0 %v3616
      %v5432 = vpop.f32.mrf.mxu0
      %v5433 = vadd.f32 %v5205, %v5432
      %v5434 = vpop.f32.mrf.mxu0
      %5435 = vmatprep.mubr.f32.mxu0 0.0
      %5436 = vmatmul.mubr.f32.gmra.mxu0 %v3619
      %v5437 = vpop.f32.mrf.mxu0
      %v5438 = vadd.f32 %v5210, %v5437
      %v5439 = vpop.f32.mrf.mxu0
      %5440 = vmatprep.mubr.f32.mxu0 0.0
      %5441 = vmatmul.mubr.f32.gmra.mxu0 %v3622
      %v5442 = vpop.f32.mrf.mxu0
      %v5443 = vadd.f32 %v5215, %v5442
      %v5444 = vpop.f32.mrf.mxu0
      %5445 = vmatprep.mubr.f32.mxu0 0.0
      %5446 = vmatmul.mubr.f32.gmra.mxu0 %v3625
      %v5447 = vpop.f32.mrf.mxu0
      %v5448 = vadd.f32 %v5220, %v5447
      %v5449 = vpop.f32.mrf.mxu0
      %5450 = vmatprep.mubr.f32.mxu0 0.0
      %5451 = vmatmul.mubr.f32.gmra.mxu0 %v3628
      %v5452 = vpop.f32.mrf.mxu0
      %v5453 = vadd.f32 %v5225, %v5452
      %v5454 = vpop.f32.mrf.mxu0
      %5455 = vmatprep.mubr.f32.mxu0 0.0
      %5456 = vmatmul.mubr.f32.gmra.mxu0 %v3631
      %v5457 = vpop.f32.mrf.mxu0
      %v5458 = vadd.f32 %v5230, %v5457
      %v5459 = vpop.f32.mrf.mxu0
      %5460 = vmatprep.mubr.f32.mxu0 0.0
      %5461 = vmatmul.mubr.f32.gmra.mxu0 %v3634
      %v5462 = vpop.f32.mrf.mxu0
      %v5463 = vadd.f32 %v5235, %v5462
      %v5464 = vpop.f32.mrf.mxu0
      %5465 = vmatprep.mubr.f32.mxu0 0.0
      %5466 = vmatmul.mubr.f32.gmra.mxu0 %v3637
      %v5467 = vpop.f32.mrf.mxu0
      %v5468 = vadd.f32 %v5240, %v5467
      %v5469 = vpop.f32.mrf.mxu0
      %5470 = vmatprep.mubr.f32.mxu0 0.0
      %5471 = vmatmul.mubr.f32.gmra.mxu0 %v3640
      %v5472 = vpop.f32.mrf.mxu0
      %v5473 = vadd.f32 %v5245, %v5472
      %v5474 = vpop.f32.mrf.mxu0
      %5475 = vmatprep.mubr.f32.mxu0 0.0
      %5476 = vmatmul.mubr.f32.gmra.mxu0 %v3643
      %v5477 = vpop.f32.mrf.mxu0
      %v5478 = vadd.f32 %v5250, %v5477
      %v5479 = vpop.f32.mrf.mxu0
      %5480 = vmatprep.mubr.f32.mxu0 0.0
      %5481 = vmatmul.mubr.f32.gmra.mxu0 %v3646
      %v5482 = vpop.f32.mrf.mxu0
      %v5483 = vadd.f32 %v5255, %v5482
      %v5484 = vpop.f32.mrf.mxu0
      %5485 = vmatprep.mubr.f32.mxu0 0.0
      %5486 = vmatmul.mubr.f32.gmra.mxu0 %v3649
      %v5487 = vpop.f32.mrf.mxu0
      %v5488 = vadd.f32 %v5260, %v5487
      %v5489 = vpop.f32.mrf.mxu0
      %5490 = vmatprep.mubr.f32.mxu0 0.0
      %5491 = vmatmul.mubr.f32.gmra.mxu0 %v3652
      %v5492 = vpop.f32.mrf.mxu0
      %v5493 = vadd.f32 %v5265, %v5492
      %v5494 = vpop.f32.mrf.mxu0
      %5495 = vmatprep.mubr.f32.mxu0 0.0
      %5496 = vmatmul.mubr.f32.gmra.mxu0 %v3655
      %v5497 = vpop.f32.mrf.mxu0
      %v5498 = vadd.f32 %v5270, %v5497
      %v5499 = vpop.f32.mrf.mxu0
      %5500 = vmatprep.mubr.f32.mxu0 0.0
      %5501 = vmatmul.mubr.f32.gmra.mxu0 %v3658
      %v5502 = vpop.f32.mrf.mxu0
      %v5503 = vadd.f32 %v5275, %v5502
      %v5504 = vpop.f32.mrf.mxu0
      %5505 = vmatprep.mubr.f32.mxu0 0.0
      %5506 = vmatmul.mubr.f32.gmra.mxu0 %v3661
      %v5507 = vpop.f32.mrf.mxu0
      %v5508 = vadd.f32 %v5280, %v5507
      %v5509 = vpop.f32.mrf.mxu0
      %5510 = vmatprep.mubr.f32.mxu0 0.0
      %5511 = vmatmul.mubr.f32.gmra.mxu0 %v3664
      %v5512 = vpop.f32.mrf.mxu0
      %v5513 = vadd.f32 %v5285, %v5512
      %v5514 = vpop.f32.mrf.mxu0
      %5515 = vmatprep.mubr.f32.mxu0 0.0
      %5516 = vmatmul.mubr.f32.gmra.mxu0 %v3667
      %v5517 = vpop.f32.mrf.mxu0
      %v5518 = vadd.f32 %v5290, %v5517
      %v5519 = vpop.f32.mrf.mxu0
      %5520 = vmatprep.mubr.f32.mxu0 0.0
      %5521 = vmatmul.mubr.f32.gmra.mxu0 %v3670
      %v5522 = vpop.f32.mrf.mxu0
      %v5523 = vadd.f32 %v5295, %v5522
      %v5524 = vpop.f32.mrf.mxu0
      %5525 = vmatprep.mubr.f32.mxu0 0.0
      %5526 = vmatmul.mubr.f32.gmra.mxu0 %v3673
      %v5527 = vpop.f32.mrf.mxu0
      %v5528 = vadd.f32 %v5300, %v5527
      %v5529 = vpop.f32.mrf.mxu0
      %5530 = vmatprep.mubr.f32.mxu0 0.0
      %5531 = vmatmul.mubr.f32.gmra.mxu0 %v3676
      %v5532 = vpop.f32.mrf.mxu0
      %v5533 = vadd.f32 %v5305, %v5532
      %v5534 = vpop.f32.mrf.mxu0
      %5535 = vmatprep.mubr.f32.mxu0 0.0
      %5536 = vmatmul.mubr.f32.gmra.mxu0 %v3679
      %v5537 = vpop.f32.mrf.mxu0
      %v5538 = vadd.f32 %v5310, %v5537
      %v5539 = vpop.f32.mrf.mxu0
      %5540 = vmatprep.mubr.f32.mxu0 0.0
      %5541 = vmatmul.mubr.f32.gmra.mxu0 %v3682
      %v5542 = vpop.f32.mrf.mxu0
      %v5543 = vadd.f32 %v5315, %v5542
      %v5544 = vpop.f32.mrf.mxu0
      %5545 = vmatprep.mubr.f32.mxu0 0.0
      %5546 = vmatmul.mubr.f32.gmra.mxu0 %v3685
      %v5547 = vpop.f32.mrf.mxu0
      %v5548 = vadd.f32 %v5320, %v5547
      %v5549 = vpop.f32.mrf.mxu0
      %5550 = vmatprep.mubr.f32.mxu0 0.0
      %5551 = vmatmul.mubr.f32.gmra.mxu0 %v3688
      %v5552 = vpop.f32.mrf.mxu0
      %v5553 = vadd.f32 %v5325, %v5552
      %v5554 = vpop.f32.mrf.mxu0
      %5555 = vmatprep.mubr.f32.mxu0 0.0
      %5556 = vmatmul.mubr.f32.gmra.mxu0 %v3691
      %v5557 = vpop.f32.mrf.mxu0
      %v5558 = vadd.f32 %v5330, %v5557
      %v5559 = vpop.f32.mrf.mxu0
      %5560 = vmatprep.mubr.f32.mxu0 0.0
      %5561 = vmatmul.mubr.f32.gmra.mxu0 %v3694
      %v5562 = vpop.f32.mrf.mxu0
      %v5563 = vadd.f32 %v5335, %v5562
      %v5564 = vpop.f32.mrf.mxu0
      %5565 = vmatprep.mubr.f32.mxu0 0.0
      %5566 = vmatmul.mubr.f32.gmra.mxu0 %v3697
      %v5567 = vpop.f32.mrf.mxu0
      %v5568 = vadd.f32 %v5340, %v5567
      %v5569 = vpop.f32.mrf.mxu0
      %5570 = vdwg.mxu0
      %s5571 = scalar_lea.vmem %s2, 28
      %v5572 = vld [vmem:[%s5571] sm:$0xf]
      %v5574 = vsel %vm591, %v5572, 0
      %5576 = vmatprep.subr.mxu0 0.0
      %5577 = vmatpush1.msra.mxu0 0.0
      %5578 = vmatprep.subr.mxu0 0.0
      %5579 = vmatpush1.msra.mxu0 0.0
      %5580 = vmatprep.subr.mxu0 0.0
      %5581 = vmatpush1.msra.mxu0 0.0
      %5582 = vmatprep.subr.mxu0 0.0
      %5583 = vmatpush1.msra.mxu0 0.0
      %5584 = vmatprep.subr.mxu0 0.0
      %5585 = vmatpush1.msra.mxu0 0.0
      %5586 = vmatprep.subr.mxu0 0.0
      %5587 = vmatpush1.msra.mxu0 0.0
      %5588 = vmatprep.subr.mxu0 0.0
      %5589 = vmatpush1.msra.mxu0 0.0
      %5590 = vmatprep.subr.mxu0 0.0
      %5591 = vmatpush1.msra.mxu0 0.0
      %5592 = vmatprep.subr.mxu0 0.0
      %5593 = vmatpush1.msra.mxu0 0.0
      %5594 = vmatprep.subr.mxu0 0.0
      %5595 = vmatpush1.msra.mxu0 0.0
      %5596 = vmatprep.subr.mxu0 0.0
      %5597 = vmatpush1.msra.mxu0 0.0
      %5598 = vmatprep.subr.mxu0 0.0
      %5599 = vmatpush1.msra.mxu0 0.0
      %5600 = vmatprep.subr.mxu0 0.0
      %5601 = vmatpush1.msra.mxu0 0.0
      %5602 = vmatprep.subr.mxu0 0.0
      %5603 = vmatpush1.msra.mxu0 0.0
      %5604 = vmatprep.subr.mxu0 0.0
      %5605 = vmatpush1.msra.mxu0 0.0
      %5606 = vmatprep.subr.mxu0 0.0
      %5607 = vmatpush1.msra.mxu0 %v5574
      %5608 = vmatprep.subr.mxu0 0.0
      %5609 = vmatpush2.msra.mxu0 0.0
      %5610 = vmatprep.subr.mxu0 0.0
      %5611 = vmatpush2.msra.mxu0 0.0
      %5612 = vmatprep.subr.mxu0 0.0
      %5613 = vmatpush2.msra.mxu0 0.0
      %5614 = vmatprep.subr.mxu0 0.0
      %5615 = vmatpush2.msra.mxu0 0.0
      %5616 = vmatprep.subr.mxu0 0.0
      %5617 = vmatpush2.msra.mxu0 0.0
      %5618 = vmatprep.subr.mxu0 0.0
      %5619 = vmatpush2.msra.mxu0 0.0
      %5620 = vmatprep.subr.mxu0 0.0
      %5621 = vmatpush2.msra.mxu0 0.0
      %5622 = vmatprep.subr.mxu0 0.0
      %5623 = vmatpush2.msra.mxu0 0.0
      %5624 = vmatprep.subr.mxu0 0.0
      %5625 = vmatpush2.msra.mxu0 0.0
      %5626 = vmatprep.subr.mxu0 0.0
      %5627 = vmatpush2.msra.mxu0 0.0
      %5628 = vmatprep.subr.mxu0 0.0
      %5629 = vmatpush2.msra.mxu0 0.0
      %5630 = vmatprep.subr.mxu0 0.0
      %5631 = vmatpush2.msra.mxu0 0.0
      %5632 = vmatprep.subr.mxu0 0.0
      %5633 = vmatpush2.msra.mxu0 0.0
      %5634 = vmatprep.subr.mxu0 0.0
      %5635 = vmatpush2.msra.mxu0 0.0
      %5636 = vmatprep.subr.mxu0 0.0
      %5637 = vmatpush2.msra.mxu0 0.0
      %5638 = vmatprep.subr.mxu0 0.0
      %5639 = vmatpush2.msra.mxu0 0.0
      %5640 = vmatprep.mubr.f32.mxu0 0.0
      %5641 = vmatmul.mubr.f32.gmra.mxu0 %v3610
      %v5642 = vpop.f32.mrf.mxu0
      %v5643 = vadd.f32 0.0, %v5642
      %v5644 = vpop.f32.mrf.mxu0
      %5645 = vmatprep.mubr.f32.mxu0 0.0
      %5646 = vmatmul.mubr.f32.gmra.mxu0 %v3613
      %v5647 = vpop.f32.mrf.mxu0
      %v5648 = vadd.f32 0.0, %v5647
      %v5649 = vpop.f32.mrf.mxu0
      %5650 = vmatprep.mubr.f32.mxu0 0.0
      %5651 = vmatmul.mubr.f32.gmra.mxu0 %v3616
      %v5652 = vpop.f32.mrf.mxu0
      %v5653 = vadd.f32 0.0, %v5652
      %v5654 = vpop.f32.mrf.mxu0
      %5655 = vmatprep.mubr.f32.mxu0 0.0
      %5656 = vmatmul.mubr.f32.gmra.mxu0 %v3619
      %v5657 = vpop.f32.mrf.mxu0
      %v5658 = vadd.f32 0.0, %v5657
      %v5659 = vpop.f32.mrf.mxu0
      %5660 = vmatprep.mubr.f32.mxu0 0.0
      %5661 = vmatmul.mubr.f32.gmra.mxu0 %v3622
      %v5662 = vpop.f32.mrf.mxu0
      %v5663 = vadd.f32 0.0, %v5662
      %v5664 = vpop.f32.mrf.mxu0
      %5665 = vmatprep.mubr.f32.mxu0 0.0
      %5666 = vmatmul.mubr.f32.gmra.mxu0 %v3625
      %v5667 = vpop.f32.mrf.mxu0
      %v5668 = vadd.f32 0.0, %v5667
      %v5669 = vpop.f32.mrf.mxu0
      %5670 = vmatprep.mubr.f32.mxu0 0.0
      %5671 = vmatmul.mubr.f32.gmra.mxu0 %v3628
      %v5672 = vpop.f32.mrf.mxu0
      %v5673 = vadd.f32 0.0, %v5672
      %v5674 = vpop.f32.mrf.mxu0
      %5675 = vmatprep.mubr.f32.mxu0 0.0
      %5676 = vmatmul.mubr.f32.gmra.mxu0 %v3631
      %v5677 = vpop.f32.mrf.mxu0
      %v5678 = vadd.f32 0.0, %v5677
      %v5679 = vpop.f32.mrf.mxu0
      %5680 = vmatprep.mubr.f32.mxu0 0.0
      %5681 = vmatmul.mubr.f32.gmra.mxu0 %v3634
      %v5682 = vpop.f32.mrf.mxu0
      %v5683 = vadd.f32 0.0, %v5682
      %v5684 = vpop.f32.mrf.mxu0
      %5685 = vmatprep.mubr.f32.mxu0 0.0
      %5686 = vmatmul.mubr.f32.gmra.mxu0 %v3637
      %v5687 = vpop.f32.mrf.mxu0
      %v5688 = vadd.f32 0.0, %v5687
      %v5689 = vpop.f32.mrf.mxu0
      %5690 = vmatprep.mubr.f32.mxu0 0.0
      %5691 = vmatmul.mubr.f32.gmra.mxu0 %v3640
      %v5692 = vpop.f32.mrf.mxu0
      %v5693 = vadd.f32 0.0, %v5692
      %v5694 = vpop.f32.mrf.mxu0
      %5695 = vmatprep.mubr.f32.mxu0 0.0
      %5696 = vmatmul.mubr.f32.gmra.mxu0 %v3643
      %v5697 = vpop.f32.mrf.mxu0
      %v5698 = vadd.f32 0.0, %v5697
      %v5699 = vpop.f32.mrf.mxu0
      %5700 = vmatprep.mubr.f32.mxu0 0.0
      %5701 = vmatmul.mubr.f32.gmra.mxu0 %v3646
      %v5702 = vpop.f32.mrf.mxu0
      %v5703 = vadd.f32 0.0, %v5702
      %v5704 = vpop.f32.mrf.mxu0
      %5705 = vmatprep.mubr.f32.mxu0 0.0
      %5706 = vmatmul.mubr.f32.gmra.mxu0 %v3649
      %v5707 = vpop.f32.mrf.mxu0
      %v5708 = vadd.f32 0.0, %v5707
      %v5709 = vpop.f32.mrf.mxu0
      %5710 = vmatprep.mubr.f32.mxu0 0.0
      %5711 = vmatmul.mubr.f32.gmra.mxu0 %v3652
      %v5712 = vpop.f32.mrf.mxu0
      %v5713 = vadd.f32 0.0, %v5712
      %v5714 = vpop.f32.mrf.mxu0
      %5715 = vmatprep.mubr.f32.mxu0 0.0
      %5716 = vmatmul.mubr.f32.gmra.mxu0 %v3655
      %v5717 = vpop.f32.mrf.mxu0
      %v5718 = vadd.f32 0.0, %v5717
      %v5719 = vpop.f32.mrf.mxu0
      %5720 = vmatprep.mubr.f32.mxu0 0.0
      %5721 = vmatmul.mubr.f32.gmra.mxu0 %v3658
      %v5722 = vpop.f32.mrf.mxu0
      %v5723 = vadd.f32 0.0, %v5722
      %v5724 = vpop.f32.mrf.mxu0
      %5725 = vmatprep.mubr.f32.mxu0 0.0
      %5726 = vmatmul.mubr.f32.gmra.mxu0 %v3661
      %v5727 = vpop.f32.mrf.mxu0
      %v5728 = vadd.f32 0.0, %v5727
      %v5729 = vpop.f32.mrf.mxu0
      %5730 = vmatprep.mubr.f32.mxu0 0.0
      %5731 = vmatmul.mubr.f32.gmra.mxu0 %v3664
      %v5732 = vpop.f32.mrf.mxu0
      %v5733 = vadd.f32 0.0, %v5732
      %v5734 = vpop.f32.mrf.mxu0
      %5735 = vmatprep.mubr.f32.mxu0 0.0
      %5736 = vmatmul.mubr.f32.gmra.mxu0 %v3667
      %v5737 = vpop.f32.mrf.mxu0
      %v5738 = vadd.f32 0.0, %v5737
      %v5739 = vpop.f32.mrf.mxu0
      %5740 = vmatprep.mubr.f32.mxu0 0.0
      %5741 = vmatmul.mubr.f32.gmra.mxu0 %v3670
      %v5742 = vpop.f32.mrf.mxu0
      %v5743 = vadd.f32 0.0, %v5742
      %v5744 = vpop.f32.mrf.mxu0
      %5745 = vmatprep.mubr.f32.mxu0 0.0
      %5746 = vmatmul.mubr.f32.gmra.mxu0 %v3673
      %v5747 = vpop.f32.mrf.mxu0
      %v5748 = vadd.f32 0.0, %v5747
      %v5749 = vpop.f32.mrf.mxu0
      %5750 = vmatprep.mubr.f32.mxu0 0.0
      %5751 = vmatmul.mubr.f32.gmra.mxu0 %v3676
      %v5752 = vpop.f32.mrf.mxu0
      %v5753 = vadd.f32 0.0, %v5752
      %v5754 = vpop.f32.mrf.mxu0
      %5755 = vmatprep.mubr.f32.mxu0 0.0
      %5756 = vmatmul.mubr.f32.gmra.mxu0 %v3679
      %v5757 = vpop.f32.mrf.mxu0
      %v5758 = vadd.f32 0.0, %v5757
      %v5759 = vpop.f32.mrf.mxu0
      %5760 = vmatprep.mubr.f32.mxu0 0.0
      %5761 = vmatmul.mubr.f32.gmra.mxu0 %v3682
      %v5762 = vpop.f32.mrf.mxu0
      %v5763 = vadd.f32 0.0, %v5762
      %v5764 = vpop.f32.mrf.mxu0
      %5765 = vmatprep.mubr.f32.mxu0 0.0
      %5766 = vmatmul.mubr.f32.gmra.mxu0 %v3685
      %v5767 = vpop.f32.mrf.mxu0
      %v5768 = vadd.f32 0.0, %v5767
      %v5769 = vpop.f32.mrf.mxu0
      %5770 = vmatprep.mubr.f32.mxu0 0.0
      %5771 = vmatmul.mubr.f32.gmra.mxu0 %v3688
      %v5772 = vpop.f32.mrf.mxu0
      %v5773 = vadd.f32 0.0, %v5772
      %v5774 = vpop.f32.mrf.mxu0
      %5775 = vmatprep.mubr.f32.mxu0 0.0
      %5776 = vmatmul.mubr.f32.gmra.mxu0 %v3691
      %v5777 = vpop.f32.mrf.mxu0
      %v5778 = vadd.f32 0.0, %v5777
      %v5779 = vpop.f32.mrf.mxu0
      %5780 = vmatprep.mubr.f32.mxu0 0.0
      %5781 = vmatmul.mubr.f32.gmra.mxu0 %v3694
      %v5782 = vpop.f32.mrf.mxu0
      %v5783 = vadd.f32 0.0, %v5782
      %v5784 = vpop.f32.mrf.mxu0
      %5785 = vmatprep.mubr.f32.mxu0 0.0
      %5786 = vmatmul.mubr.f32.gmra.mxu0 %v3697
      %v5787 = vpop.f32.mrf.mxu0
      %v5788 = vadd.f32 0.0, %v5787
      %v5789 = vpop.f32.mrf.mxu0
      %5790 = vmatprep.mubr.f32.mxu0 0.0
      %5791 = vmatmul.mubr.f32.gmra.mxu0 %v4617
      %v5792 = vpop.f32.mrf.mxu0
      %v5793 = vadd.f32 0.0, %v5792
      %v5794 = vpop.f32.mrf.mxu0
      %5795 = vmatprep.mubr.f32.mxu0 0.0
      %5796 = vmatmul.mubr.f32.gmra.mxu0 %v4620
      %v5797 = vpop.f32.mrf.mxu0
      %v5798 = vadd.f32 0.0, %v5797
      %v5799 = vpop.f32.mrf.mxu0
      %5800 = vdwg.mxu0
      %v5801 = vadd.f32 %v5413, %v5643
      %v5802 = vadd.f32 %v5418, %v5648
      %v5803 = vadd.f32 %v5423, %v5653
      %v5804 = vadd.f32 %v5428, %v5658
      %v5805 = vadd.f32 %v5433, %v5663
      %v5806 = vadd.f32 %v5438, %v5668
      %v5807 = vadd.f32 %v5443, %v5673
      %v5808 = vadd.f32 %v5448, %v5678
      %v5809 = vadd.f32 %v5453, %v5683
      %v5810 = vadd.f32 %v5458, %v5688
      %v5811 = vadd.f32 %v5463, %v5693
      %v5812 = vadd.f32 %v5468, %v5698
      %v5813 = vadd.f32 %v5473, %v5703
      %v5814 = vadd.f32 %v5478, %v5708
      %v5815 = vadd.f32 %v5483, %v5713
      %v5816 = vadd.f32 %v5488, %v5718
      %v5817 = vadd.f32 %v5493, %v5723
      %v5818 = vadd.f32 %v5498, %v5728
      %v5819 = vadd.f32 %v5503, %v5733
      %v5820 = vadd.f32 %v5508, %v5738
      %v5821 = vadd.f32 %v5513, %v5743
      %v5822 = vadd.f32 %v5518, %v5748
      %v5823 = vadd.f32 %v5523, %v5753
      %v5824 = vadd.f32 %v5528, %v5758
      %v5825 = vadd.f32 %v5533, %v5763
      %v5826 = vadd.f32 %v5538, %v5768
      %v5827 = vadd.f32 %v5543, %v5773
      %v5828 = vadd.f32 %v5548, %v5778
      %v5829 = vadd.f32 %v5553, %v5783
      %v5830 = vadd.f32 %v5558, %v5788
      %v5831 = vadd.f32 %v5563, %v5793
      %v5832 = vadd.f32 %v5568, %v5798
      %v5834 = vrot.slane %v3274, 1
      %v5835 = vrot.slane %v3275, 1
      %v5836 = vsel %vm444, %v5834, %v5835
      %v5837 = vrot.slane %v3276, 1
      %v5838 = vsel %vm444, %v5835, %v5837
      %s5839 = scalar_lea.vmem %s2, 32
      %v5840 = vld [vmem:[%s5839] sm:$0xf]
      %v5841 = vsel %vm262, %v5836, 0
      %v5843 = vsel %vm262, %v5838, 0
      %v5846 = vsel %vm591, %v5840, 0
      %5848 = vmatprep.subr.mxu0 0.0
      %5849 = vmatpush1.msra.mxu0 0.0
      %5850 = vmatprep.subr.mxu0 0.0
      %5851 = vmatpush1.msra.mxu0 0.0
      %5852 = vmatprep.subr.mxu0 0.0
      %5853 = vmatpush1.msra.mxu0 0.0
      %5854 = vmatprep.subr.mxu0 0.0
      %5855 = vmatpush1.msra.mxu0 0.0
      %5856 = vmatprep.subr.mxu0 0.0
      %5857 = vmatpush1.msra.mxu0 0.0
      %5858 = vmatprep.subr.mxu0 0.0
      %5859 = vmatpush1.msra.mxu0 0.0
      %5860 = vmatprep.subr.mxu0 0.0
      %5861 = vmatpush1.msra.mxu0 0.0
      %5862 = vmatprep.subr.mxu0 0.0
      %5863 = vmatpush1.msra.mxu0 0.0
      %5864 = vmatprep.subr.mxu0 0.0
      %5865 = vmatpush1.msra.mxu0 0.0
      %5866 = vmatprep.subr.mxu0 0.0
      %5867 = vmatpush1.msra.mxu0 0.0
      %5868 = vmatprep.subr.mxu0 0.0
      %5869 = vmatpush1.msra.mxu0 0.0
      %5870 = vmatprep.subr.mxu0 0.0
      %5871 = vmatpush1.msra.mxu0 0.0
      %5872 = vmatprep.subr.mxu0 0.0
      %5873 = vmatpush1.msra.mxu0 0.0
      %5874 = vmatprep.subr.mxu0 0.0
      %5875 = vmatpush1.msra.mxu0 0.0
      %5876 = vmatprep.subr.mxu0 0.0
      %5877 = vmatpush1.msra.mxu0 0.0
      %5878 = vmatprep.subr.mxu0 0.0
      %5879 = vmatpush1.msra.mxu0 %v5846
      %5880 = vmatprep.subr.mxu0 0.0
      %5881 = vmatpush2.msra.mxu0 0.0
      %5882 = vmatprep.subr.mxu0 0.0
      %5883 = vmatpush2.msra.mxu0 0.0
      %5884 = vmatprep.subr.mxu0 0.0
      %5885 = vmatpush2.msra.mxu0 0.0
      %5886 = vmatprep.subr.mxu0 0.0
      %5887 = vmatpush2.msra.mxu0 0.0
      %5888 = vmatprep.subr.mxu0 0.0
      %5889 = vmatpush2.msra.mxu0 0.0
      %5890 = vmatprep.subr.mxu0 0.0
      %5891 = vmatpush2.msra.mxu0 0.0
      %5892 = vmatprep.subr.mxu0 0.0
      %5893 = vmatpush2.msra.mxu0 0.0
      %5894 = vmatprep.subr.mxu0 0.0
      %5895 = vmatpush2.msra.mxu0 0.0
      %5896 = vmatprep.subr.mxu0 0.0
      %5897 = vmatpush2.msra.mxu0 0.0
      %5898 = vmatprep.subr.mxu0 0.0
      %5899 = vmatpush2.msra.mxu0 0.0
      %5900 = vmatprep.subr.mxu0 0.0
      %5901 = vmatpush2.msra.mxu0 0.0
      %5902 = vmatprep.subr.mxu0 0.0
      %5903 = vmatpush2.msra.mxu0 0.0
      %5904 = vmatprep.subr.mxu0 0.0
      %5905 = vmatpush2.msra.mxu0 0.0
      %5906 = vmatprep.subr.mxu0 0.0
      %5907 = vmatpush2.msra.mxu0 0.0
      %5908 = vmatprep.subr.mxu0 0.0
      %5909 = vmatpush2.msra.mxu0 0.0
      %5910 = vmatprep.subr.mxu0 0.0
      %5911 = vmatpush2.msra.mxu0 0.0
      %5912 = vmatprep.mubr.f32.mxu0 0.0
      %5913 = vmatmul.mubr.f32.gmra.mxu0 %v4063
      %v5914 = vpop.f32.mrf.mxu0
      %v5915 = vadd.f32 0.0, %v5914
      %v5916 = vpop.f32.mrf.mxu0
      %5917 = vmatprep.mubr.f32.mxu0 0.0
      %5918 = vmatmul.mubr.f32.gmra.mxu0 %v4065
      %v5919 = vpop.f32.mrf.mxu0
      %v5920 = vadd.f32 0.0, %v5919
      %v5921 = vpop.f32.mrf.mxu0
      %5922 = vmatprep.mubr.f32.mxu0 0.0
      %5923 = vmatmul.mubr.f32.gmra.mxu0 %v4067
      %v5924 = vpop.f32.mrf.mxu0
      %v5925 = vadd.f32 0.0, %v5924
      %v5926 = vpop.f32.mrf.mxu0
      %5927 = vmatprep.mubr.f32.mxu0 0.0
      %5928 = vmatmul.mubr.f32.gmra.mxu0 %v4069
      %v5929 = vpop.f32.mrf.mxu0
      %v5930 = vadd.f32 0.0, %v5929
      %v5931 = vpop.f32.mrf.mxu0
      %5932 = vmatprep.mubr.f32.mxu0 0.0
      %5933 = vmatmul.mubr.f32.gmra.mxu0 %v4071
      %v5934 = vpop.f32.mrf.mxu0
      %v5935 = vadd.f32 0.0, %v5934
      %v5936 = vpop.f32.mrf.mxu0
      %5937 = vmatprep.mubr.f32.mxu0 0.0
      %5938 = vmatmul.mubr.f32.gmra.mxu0 %v4073
      %v5939 = vpop.f32.mrf.mxu0
      %v5940 = vadd.f32 0.0, %v5939
      %v5941 = vpop.f32.mrf.mxu0
      %5942 = vmatprep.mubr.f32.mxu0 0.0
      %5943 = vmatmul.mubr.f32.gmra.mxu0 %v4075
      %v5944 = vpop.f32.mrf.mxu0
      %v5945 = vadd.f32 0.0, %v5944
      %v5946 = vpop.f32.mrf.mxu0
      %5947 = vmatprep.mubr.f32.mxu0 0.0
      %5948 = vmatmul.mubr.f32.gmra.mxu0 %v4077
      %v5949 = vpop.f32.mrf.mxu0
      %v5950 = vadd.f32 0.0, %v5949
      %v5951 = vpop.f32.mrf.mxu0
      %5952 = vmatprep.mubr.f32.mxu0 0.0
      %5953 = vmatmul.mubr.f32.gmra.mxu0 %v4079
      %v5954 = vpop.f32.mrf.mxu0
      %v5955 = vadd.f32 0.0, %v5954
      %v5956 = vpop.f32.mrf.mxu0
      %5957 = vmatprep.mubr.f32.mxu0 0.0
      %5958 = vmatmul.mubr.f32.gmra.mxu0 %v4081
      %v5959 = vpop.f32.mrf.mxu0
      %v5960 = vadd.f32 0.0, %v5959
      %v5961 = vpop.f32.mrf.mxu0
      %5962 = vmatprep.mubr.f32.mxu0 0.0
      %5963 = vmatmul.mubr.f32.gmra.mxu0 %v4083
      %v5964 = vpop.f32.mrf.mxu0
      %v5965 = vadd.f32 0.0, %v5964
      %v5966 = vpop.f32.mrf.mxu0
      %5967 = vmatprep.mubr.f32.mxu0 0.0
      %5968 = vmatmul.mubr.f32.gmra.mxu0 %v4085
      %v5969 = vpop.f32.mrf.mxu0
      %v5970 = vadd.f32 0.0, %v5969
      %v5971 = vpop.f32.mrf.mxu0
      %5972 = vmatprep.mubr.f32.mxu0 0.0
      %5973 = vmatmul.mubr.f32.gmra.mxu0 %v4087
      %v5974 = vpop.f32.mrf.mxu0
      %v5975 = vadd.f32 0.0, %v5974
      %v5976 = vpop.f32.mrf.mxu0
      %5977 = vmatprep.mubr.f32.mxu0 0.0
      %5978 = vmatmul.mubr.f32.gmra.mxu0 %v4089
      %v5979 = vpop.f32.mrf.mxu0
      %v5980 = vadd.f32 0.0, %v5979
      %v5981 = vpop.f32.mrf.mxu0
      %5982 = vmatprep.mubr.f32.mxu0 0.0
      %5983 = vmatmul.mubr.f32.gmra.mxu0 %v4091
      %v5984 = vpop.f32.mrf.mxu0
      %v5985 = vadd.f32 0.0, %v5984
      %v5986 = vpop.f32.mrf.mxu0
      %5987 = vmatprep.mubr.f32.mxu0 0.0
      %5988 = vmatmul.mubr.f32.gmra.mxu0 %v4093
      %v5989 = vpop.f32.mrf.mxu0
      %v5990 = vadd.f32 0.0, %v5989
      %v5991 = vpop.f32.mrf.mxu0
      %5992 = vmatprep.mubr.f32.mxu0 0.0
      %5993 = vmatmul.mubr.f32.gmra.mxu0 %v4095
      %v5994 = vpop.f32.mrf.mxu0
      %v5995 = vadd.f32 0.0, %v5994
      %v5996 = vpop.f32.mrf.mxu0
      %5997 = vmatprep.mubr.f32.mxu0 0.0
      %5998 = vmatmul.mubr.f32.gmra.mxu0 %v4097
      %v5999 = vpop.f32.mrf.mxu0
      %v6000 = vadd.f32 0.0, %v5999
      %v6001 = vpop.f32.mrf.mxu0
      %6002 = vmatprep.mubr.f32.mxu0 0.0
      %6003 = vmatmul.mubr.f32.gmra.mxu0 %v4099
      %v6004 = vpop.f32.mrf.mxu0
      %v6005 = vadd.f32 0.0, %v6004
      %v6006 = vpop.f32.mrf.mxu0
      %6007 = vmatprep.mubr.f32.mxu0 0.0
      %6008 = vmatmul.mubr.f32.gmra.mxu0 %v4101
      %v6009 = vpop.f32.mrf.mxu0
      %v6010 = vadd.f32 0.0, %v6009
      %v6011 = vpop.f32.mrf.mxu0
      %6012 = vmatprep.mubr.f32.mxu0 0.0
      %6013 = vmatmul.mubr.f32.gmra.mxu0 %v4103
      %v6014 = vpop.f32.mrf.mxu0
      %v6015 = vadd.f32 0.0, %v6014
      %v6016 = vpop.f32.mrf.mxu0
      %6017 = vmatprep.mubr.f32.mxu0 0.0
      %6018 = vmatmul.mubr.f32.gmra.mxu0 %v4105
      %v6019 = vpop.f32.mrf.mxu0
      %v6020 = vadd.f32 0.0, %v6019
      %v6021 = vpop.f32.mrf.mxu0
      %6022 = vmatprep.mubr.f32.mxu0 0.0
      %6023 = vmatmul.mubr.f32.gmra.mxu0 %v4107
      %v6024 = vpop.f32.mrf.mxu0
      %v6025 = vadd.f32 0.0, %v6024
      %v6026 = vpop.f32.mrf.mxu0
      %6027 = vmatprep.mubr.f32.mxu0 0.0
      %6028 = vmatmul.mubr.f32.gmra.mxu0 %v4109
      %v6029 = vpop.f32.mrf.mxu0
      %v6030 = vadd.f32 0.0, %v6029
      %v6031 = vpop.f32.mrf.mxu0
      %6032 = vmatprep.mubr.f32.mxu0 0.0
      %6033 = vmatmul.mubr.f32.gmra.mxu0 %v4111
      %v6034 = vpop.f32.mrf.mxu0
      %v6035 = vadd.f32 0.0, %v6034
      %v6036 = vpop.f32.mrf.mxu0
      %6037 = vmatprep.mubr.f32.mxu0 0.0
      %6038 = vmatmul.mubr.f32.gmra.mxu0 %v4113
      %v6039 = vpop.f32.mrf.mxu0
      %v6040 = vadd.f32 0.0, %v6039
      %v6041 = vpop.f32.mrf.mxu0
      %6042 = vmatprep.mubr.f32.mxu0 0.0
      %6043 = vmatmul.mubr.f32.gmra.mxu0 %v4115
      %v6044 = vpop.f32.mrf.mxu0
      %v6045 = vadd.f32 0.0, %v6044
      %v6046 = vpop.f32.mrf.mxu0
      %6047 = vmatprep.mubr.f32.mxu0 0.0
      %6048 = vmatmul.mubr.f32.gmra.mxu0 %v4117
      %v6049 = vpop.f32.mrf.mxu0
      %v6050 = vadd.f32 0.0, %v6049
      %v6051 = vpop.f32.mrf.mxu0
      %6052 = vmatprep.mubr.f32.mxu0 0.0
      %6053 = vmatmul.mubr.f32.gmra.mxu0 %v4119
      %v6054 = vpop.f32.mrf.mxu0
      %v6055 = vadd.f32 0.0, %v6054
      %v6056 = vpop.f32.mrf.mxu0
      %6057 = vmatprep.mubr.f32.mxu0 0.0
      %6058 = vmatmul.mubr.f32.gmra.mxu0 %v4121
      %v6059 = vpop.f32.mrf.mxu0
      %v6060 = vadd.f32 0.0, %v6059
      %v6061 = vpop.f32.mrf.mxu0
      %6062 = vmatprep.mubr.f32.mxu0 0.0
      %6063 = vmatmul.mubr.f32.gmra.mxu0 %v5841
      %v6064 = vpop.f32.mrf.mxu0
      %v6065 = vadd.f32 0.0, %v6064
      %v6066 = vpop.f32.mrf.mxu0
      %6067 = vmatprep.mubr.f32.mxu0 0.0
      %6068 = vmatmul.mubr.f32.gmra.mxu0 %v5843
      %v6069 = vpop.f32.mrf.mxu0
      %v6070 = vadd.f32 0.0, %v6069
      %v6071 = vpop.f32.mrf.mxu0
      %6072 = vdwg.mxu0
      %v6073 = vadd.f32 %v5801, %v5915
      %v6074 = vadd.f32 %v5802, %v5920
      %v6075 = vadd.f32 %v5803, %v5925
      %v6076 = vadd.f32 %v5804, %v5930
      %v6077 = vadd.f32 %v5805, %v5935
      %v6078 = vadd.f32 %v5806, %v5940
      %v6079 = vadd.f32 %v5807, %v5945
      %v6080 = vadd.f32 %v5808, %v5950
      %v6081 = vadd.f32 %v5809, %v5955
      %v6082 = vadd.f32 %v5810, %v5960
      %v6083 = vadd.f32 %v5811, %v5965
      %v6084 = vadd.f32 %v5812, %v5970
      %v6085 = vadd.f32 %v5813, %v5975
      %v6086 = vadd.f32 %v5814, %v5980
      %v6087 = vadd.f32 %v5815, %v5985
      %v6088 = vadd.f32 %v5816, %v5990
      %v6089 = vadd.f32 %v5817, %v5995
      %v6090 = vadd.f32 %v5818, %v6000
      %v6091 = vadd.f32 %v5819, %v6005
      %v6092 = vadd.f32 %v5820, %v6010
      %v6093 = vadd.f32 %v5821, %v6015
      %v6094 = vadd.f32 %v5822, %v6020
      %v6095 = vadd.f32 %v5823, %v6025
      %v6096 = vadd.f32 %v5824, %v6030
      %v6097 = vadd.f32 %v5825, %v6035
      %v6098 = vadd.f32 %v5826, %v6040
      %v6099 = vadd.f32 %v5827, %v6045
      %v6100 = vadd.f32 %v5828, %v6050
      %v6101 = vadd.f32 %v5829, %v6055
      %v6102 = vadd.f32 %v5830, %v6060
      %v6103 = vadd.f32 %v5831, %v6065
      %v6104 = vadd.f32 %v5832, %v6070
      %s6105 = scalar_lea.vmem %s197, 768
      %6106 = vst.msk [vmem:[%s6105] sm:$0xff] %vm262, %v6073
      %6107 = vst.msk [vmem:[%s6105 + $0x8] sm:$0xff] %vm262, %v6074
      %6108 = vst.msk [vmem:[%s6105 + $0x10] sm:$0xff] %vm262, %v6075
      %6109 = vst.msk [vmem:[%s6105 + $0x18] sm:$0xff] %vm262, %v6076
      %6110 = vst.msk [vmem:[%s6105 + $0x20] sm:$0xff] %vm262, %v6077
      %6111 = vst.msk [vmem:[%s6105 + $0x28] sm:$0xff] %vm262, %v6078
      %6112 = vst.msk [vmem:[%s6105 + $0x30] sm:$0xff] %vm262, %v6079
      %6113 = vst.msk [vmem:[%s6105 + $0x38] sm:$0xff] %vm262, %v6080
      %6114 = vst.msk [vmem:[%s6105 + $0x40] sm:$0xff] %vm262, %v6081
      %6115 = vst.msk [vmem:[%s6105 + $0x48] sm:$0xff] %vm262, %v6082
      %6116 = vst.msk [vmem:[%s6105 + $0x50] sm:$0xff] %vm262, %v6083
      %6117 = vst.msk [vmem:[%s6105 + $0x58] sm:$0xff] %vm262, %v6084
      %6118 = vst.msk [vmem:[%s6105 + $0x60] sm:$0xff] %vm262, %v6085
      %6119 = vst.msk [vmem:[%s6105 + $0x68] sm:$0xff] %vm262, %v6086
      %6120 = vst.msk [vmem:[%s6105 + $0x70] sm:$0xff] %vm262, %v6087
      %6121 = vst.msk [vmem:[%s6105 + $0x78] sm:$0xff] %vm262, %v6088
      %6122 = vst.msk [vmem:[%s6105 + $0x80] sm:$0xff] %vm262, %v6089
      %6123 = vst.msk [vmem:[%s6105 + $0x88] sm:$0xff] %vm262, %v6090
      %6124 = vst.msk [vmem:[%s6105 + $0x90] sm:$0xff] %vm262, %v6091
      %6125 = vst.msk [vmem:[%s6105 + $0x98] sm:$0xff] %vm262, %v6092
      %6126 = vst.msk [vmem:[%s6105 + $0xa0] sm:$0xff] %vm262, %v6093
      %6127 = vst.msk [vmem:[%s6105 + $0xa8] sm:$0xff] %vm262, %v6094
      %6128 = vst.msk [vmem:[%s6105 + $0xb0] sm:$0xff] %vm262, %v6095
      %6129 = vst.msk [vmem:[%s6105 + $0xb8] sm:$0xff] %vm262, %v6096
      %6130 = vst.msk [vmem:[%s6105 + $0xc0] sm:$0xff] %vm262, %v6097
      %6131 = vst.msk [vmem:[%s6105 + $0xc8] sm:$0xff] %vm262, %v6098
      %6132 = vst.msk [vmem:[%s6105 + $0xd0] sm:$0xff] %vm262, %v6099
      %6133 = vst.msk [vmem:[%s6105 + $0xd8] sm:$0xff] %vm262, %v6100
      %6134 = vst.msk [vmem:[%s6105 + $0xe0] sm:$0xff] %vm262, %v6101
      %6135 = vst.msk [vmem:[%s6105 + $0xe8] sm:$0xff] %vm262, %v6102
      %6136 = vst.msk [vmem:[%s6105 + $0xf0] sm:$0xff] %vm262, %v6103
      %6137 = vst.msk [vmem:[%s6105 + $0xf8] sm:$0xff] %vm262, %v6104
      %p6138 = scmp.lt.s32.totalorder %s15, 1
      %s6139 = scalar_select %p6138, %s15, 1
      %s6140 = smul.addr %s6139, 128
      %s6141 = smul.addr %s6140, 8
      %s6142 = scalar_lea.vmem %s4, %s6141
      // Predicated region
      $region37: #{deconv_basic_block.1} parent=35 // pred_check
        %p6143 = pneg %p122
      $region38: #{deconv_basic_block.1} parent=35 // pred_check_branch
        %6145 = sbr.rel (%p6143) target = $region40
      $region39: #{deconv_basic_block.1} parent=35 // pred_region
        _
      $region40: #{deconv_basic_block.1} parent=35 // pred_fallthru
        _
    $region36: #{deconv_basic_block.1} parent=5 // pred_fallthru
      _
    %p6146 = scmp.le.s32.totalorder 2, %s10
    // Predicated region
    $region41: #{deconv_basic_block.1} parent=5 // pred_check
      %p6147 = pneg %p6146
    $region42: #{deconv_basic_block.1} parent=5 // pred_check_branch
      %6149 = sbr.rel (%p6147) target = $region44
    $region43: #{deconv_basic_block.1} parent=5 // pred_region
      %s6150 = ssub.s32 %s10, 2
      // Predicated region
      $region45: #{deconv_basic_block.1} parent=43 // pred_check
        %p6151 = pneg %p128
      $region46: #{deconv_basic_block.1} parent=43 // pred_check_branch
        %6153 = sbr.rel (%p6151) target = $region48
      $region47: #{deconv_basic_block.1} parent=43 // pred_region
        %p6154 = scmp.lt.s32.totalorder %s16, 1
        %s6155 = scalar_select %p6154, %s16, 1
        %s6156 = smul.addr %s6155, 128
        %s6157 = smul.addr %s6156, 8
        %s6158 = scalar_lea.vmem %s4, %s6157
      $region48: #{deconv_basic_block.1} parent=43 // pred_fallthru
        _
    $region44: #{deconv_basic_block.1} parent=5 // pred_fallthru
      _
  $region6: #{deconv_basic_block.1} parent=0 // loop_footer
    %s14 = sadd.s32 1, %s10
  $region7: #{deconv_basic_block.1} parent=0 // loop_footer_branch
    %9 = sbr.rel target = $region3
  $region8: #{deconv_basic_block.1} parent=0 // loop_exit
    _

</llo_original>
